<compile_context>
chip_gen: v6e
topology: v6e:2x2x1
jax: 0.10.0
libtpu: 0.0.40
codegen_flags: <defaults>
</compile_context>

<pallas_src>
import math

import jax
import jax.numpy as jnp
from jax.experimental import pallas as pl
from jax.experimental.pallas import tpu as pltpu

# ----------------------- SLAYER neuron / sim constants ----------------------
THETA = 1.0          # spike threshold
TS = 1.0             # simulation time step
TAU_SR = 2.0         # SRM (psp) time constant
TAU_REF = 2.0        # refractory time constant
INV_TS = 1.0 / TS    # spike amplitude

# ------------------------------ model sizes --------------------------------
D_IN = 28 * 28 * 1   # flattened input_size = (28, 28, 1)
HIDDEN = 200
LATENT = 2
D_PAD = 896          # 784 -> 7 * 128 lane-dense (zeros, exact)
HID_PAD = 256        # 200 -> 2 * 128
LAT_PAD = 128        # 2   -> 1 * 128
B_BLK = 16           # batch elements per grid step -> M = B_BLK * T = 128
                     # (use 32 on v6e/v7x for M = 256 if desired)


def _refk(d):
    """Refractory kernel value at integer delay d >= 1 (compile-time float)."""
    t = d * TS
    return -2.0 * THETA * (t / TAU_REF) * math.exp(1.0 - t / TAU_REF)


# ------------------------------ Pallas kernel -------------------------------

def _snn_fused_kernel(x_ref, lbd_ref, w1_ref, w2_ref, w3_ref, w4_ref, o_ref):
    """One batch block: 4x (dense -> psp -> spike) SLAYER layers, fused."""
    T, B, Dp = x_ref.shape
    R = T * B
    LBD = lbd_ref[...]                        # (R, R) f32 block-diag psp filter

    def spike_layer(s_in, w_ref):
        # dense (per-timestep, bias-free) then psp == psp then dense.
        z = jnp.dot(s_in, w_ref[...],
                    preferred_element_type=jnp.float32)          # (R, Fout) bf16 MXU
        u = jnp.dot(LBD, z, preferred_element_type=jnp.float32)  # psp along T, f32
        fired = []
        for t in range(T):                    # sequential spike dynamics (unrolled)
            ut = u[t * B:(t + 1) * B, :]      # contiguous sublane slab (B, Fout)
            for tau in range(t):              # refractory response of past spikes
                ut = ut + _refk(t - tau) * fired[tau]
            fired.append(jnp.where(ut >= THETA, INV_TS, 0.0))
        return jnp.concatenate(fired, axis=0).astype(jnp.bfloat16)   # (R, Fout)

    s = x_ref[...].reshape(R, Dp)             # time-major stacked rows, bf16
    s = spike_layer(s, w1_ref)    # encoder fc1: 896(=784+pad) -> 256(=200+pad)
    s = spike_layer(s, w2_ref)    # encoder fc2: 256 -> 128(=2 latent + pad)
    s = spike_layer(s, w3_ref)    # decoder fc1: 128 -> 256
    s = spike_layer(s, w4_ref)    # decoder fc2: 256 -> 896
    o_ref[...] = s.reshape(T, B, Dp)


# -------------------------------- wrapper -----------------------------------

def simple_autoencoder_forward(x, P, *, b_blk=B_BLK):
    """x: (N, 1, 28, 28, T) spike train, NCHWT (slayerSNN convention)."""
    N, C, H, W, T = x.shape
    D = C * H * W
    R = b_blk * T

    # bf16 cast BEFORE the transpose (spikes are 0 or 1/Ts: lossless, halves traffic)
    xb = x.astype(jnp.bfloat16).reshape(N, D, T)
    # pad features 784 -> 896 and batch to a multiple of b_blk (zeros never fire)
    Np = pl.cdiv(N, b_blk) * b_blk
    xb = jnp.pad(xb, ((0, Np - N), (0, D_PAD - D), (0, 0)))
    xt = xb.transpose(2, 0, 1)                         # (T, Np, D_PAD) time-major

    # block-diagonal psp filter for the stacked (t*B + b) row order, f32 for exactness
    LBD = jnp.kron(P["LT"], jnp.eye(b_blk, dtype=jnp.float32))      # (R, R)

    def wspec(shape):
        return pl.BlockSpec(shape, lambda n: (0, 0))

    out = pl.pallas_call(
        _snn_fused_kernel,
        out_shape=jax.ShapeDtypeStruct((T, Np, D_PAD), jnp.bfloat16),
        grid=(Np // b_blk,),
        in_specs=[
            pl.BlockSpec((T, b_blk, D_PAD), lambda n: (0, n, 0)),   # input spikes
            wspec((R, R)),                                          # psp filter
            wspec(P["w1"].shape), wspec(P["w2"].shape),
            wspec(P["w3"].shape), wspec(P["w4"].shape),
        ],
        out_specs=pl.BlockSpec((T, b_blk, D_PAD), lambda n: (0, n, 0)),
        compiler_params=pltpu.CompilerParams(
            dimension_semantics=("parallel",)),
    )(xt, LBD, P["w1"], P["w2"], P["w3"], P["w4"])

    # back to (N, D, T), drop padding, then the module's final reshape
    y = out.transpose(1, 2, 0)[:N, :D, :]              # (N, 784, T) bf16 (exact)
    return y.reshape(-1, 1, 28, 28, T)


# --------------------------- constant construction --------------------------

def psp_filter_T(T):
    """LT[t_out, t_in] = srm[t_out - t_in] * Ts (causal), so u = LT @ z."""
    t = jnp.arange(T, dtype=jnp.float32) * TS
    srm = (t / TAU_SR) * jnp.exp(1.0 - t / TAU_SR)
    d = jnp.arange(T)[:, None] - jnp.arange(T)[None, :]
    return jnp.where(d >= 0, srm[jnp.clip(d, 0, T - 1)] * TS, 0.0).astype(jnp.float32)


def init_params(key, T):
    def dense_w(k, fin, fout, fin_pad, fout_pad):
        w = 3.0 * jax.random.normal(k, (fin, fout), jnp.float32) / math.sqrt(fin)
        w = jnp.pad(w, ((0, fin_pad - fin), (0, fout_pad - fout)))
        # bf16 weights, f32 MXU accumulation in-kernel.
        # TODO(synk): keep f32 master weights if bit-parity with the f32
        # PyTorch reference is required (near-threshold spikes may differ).
        return w.astype(jnp.bfloat16)

    ks = jax.random.split(key, 4)
    return dict(
        LT=psp_filter_T(T),                                        # (T, T) f32
        w1=dense_w(ks[0], D_IN,   HIDDEN, D_PAD,   HID_PAD),       # enc fc1
        w2=dense_w(ks[1], HIDDEN, LATENT, HID_PAD, LAT_PAD),       # enc fc2
        w3=dense_w(ks[2], LATENT, HIDDEN, LAT_PAD, HID_PAD),       # dec fc1
        w4=dense_w(ks[3], HIDDEN, D_IN,   HID_PAD, D_PAD),         # dec fc2
    )


# ---------------------------------- main ------------------------------------

if __name__ == "__main__":
    N, T = 32, 8            # N=32 -> grid of 2 batch blocks (both v7x TCs busy)
    key = jax.random.PRNGKey(0)
    k_in, k_par = jax.random.split(key)

    # binary spike-train input, NCHWT
    x = (jax.random.uniform(k_in, (N, 1, 28, 28, T)) < 0.3).astype(jnp.float32)
    params = init_params(k_par, T)

    fwd = jax.jit(simple_autoencoder_forward, static_argnames=("b_blk",))
    out = fwd(x, params)
    jax.block_until_ready(out)

    assert out.shape == (N, 1, 28, 28, T), out.shape
    assert out.dtype == jnp.bfloat16       # spikes are exactly 0 or 1/Ts in bf16
    print("KERNEL_OK")
</pallas_src>

<mosaic_0001>
module attributes {stable_mosaic.version = 11 : i64} {
  func.func @_snn_fused_kernel(%arg0: i32, %arg1: memref<8x16x896xbf16, #tpu.memory_space<vmem>>, %arg2: memref<128x128xf32, #tpu.memory_space<vmem>>, %arg3: memref<896x256xbf16, #tpu.memory_space<vmem>>, %arg4: memref<256x128xbf16, #tpu.memory_space<vmem>>, %arg5: memref<128x256xbf16, #tpu.memory_space<vmem>>, %arg6: memref<256x896xbf16, #tpu.memory_space<vmem>>, %arg7: memref<8x16x896xbf16, #tpu.memory_space<vmem>>) attributes {dimension_semantics = [#tpu.dimension_semantics<parallel>], iteration_bounds = array<i64: 2>, scalar_prefetch = 0 : i64, scratch_operands = 0 : i64, tpu.core_type = #tpu.core_type<tc>, window_params = [{transform_indices = @transform_0, window_bounds = array<i64: 8, 16, 896>}, {pipeline_mode = #tpu.pipeline_mode<synchronous>, transform_indices = @transform_1, window_bounds = array<i64: 128, 128>}, {pipeline_mode = #tpu.pipeline_mode<synchronous>, transform_indices = @transform_2, window_bounds = array<i64: 896, 256>}, {pipeline_mode = #tpu.pipeline_mode<synchronous>, transform_indices = @transform_3, window_bounds = array<i64: 256, 128>}, {pipeline_mode = #tpu.pipeline_mode<synchronous>, transform_indices = @transform_4, window_bounds = array<i64: 128, 256>}, {pipeline_mode = #tpu.pipeline_mode<synchronous>, transform_indices = @transform_5, window_bounds = array<i64: 256, 896>}, {transform_indices = @transform_6, window_bounds = array<i64: 8, 16, 896>}]} {
    %c0 = arith.constant 0 : index
    %c0_0 = arith.constant 0 : index
    %0 = vector.load %arg2[%c0, %c0_0] : memref<128x128xf32, #tpu.memory_space<vmem>>, vector<128x128xf32>
    %c0_1 = arith.constant 0 : index
    %c0_2 = arith.constant 0 : index
    %c0_3 = arith.constant 0 : index
    %1 = vector.load %arg1[%c0_1, %c0_2, %c0_3] : memref<8x16x896xbf16, #tpu.memory_space<vmem>>, vector<8x16x896xbf16>
    %2 = vector.shape_cast %1 : vector<8x16x896xbf16> to vector<128x896xbf16>
    %c0_4 = arith.constant 0 : index
    %c0_5 = arith.constant 0 : index
    %3 = vector.load %arg3[%c0_4, %c0_5] : memref<896x256xbf16, #tpu.memory_space<vmem>>, vector<896x256xbf16>
    %cst = arith.constant dense<0.000000e+00> : vector<128x256xf32>
    %4 = tpu.matmul %2, %3, %cst {dimension_numbers = #tpu.dot_dimension_numbers<[1], [0], [0], [1], [0, 0, 1, 1], [], []>} : vector<128x896xbf16>, vector<896x256xbf16>, vector<128x256xf32> -> vector<128x256xf32>
    %cst_6 = arith.constant dense<0.000000e+00> : vector<128x256xf32>
    %5 = tpu.matmul %0, %4, %cst_6 {dimension_numbers = #tpu.dot_dimension_numbers<[1], [0], [0], [1], [0, 0, 1, 1], [], []>} : vector<128x128xf32>, vector<128x256xf32>, vector<128x256xf32> -> vector<128x256xf32>
    %6 = vector.extract_strided_slice %5 {offsets = [0, 0], sizes = [16, 256], strides = [1, 1]} : vector<128x256xf32> to vector<16x256xf32>
    %cst_7 = arith.constant 1.000000e+00 : f32
    %7 = vector.broadcast %cst_7 : f32 to vector<16x256xf32>
    %8 = arith.cmpf oge, %6, %7 : vector<16x256xf32>
    %cst_8 = arith.constant 1.000000e+00 : f32
    %cst_9 = arith.constant 0.000000e+00 : f32
    %9 = vector.broadcast %cst_8 : f32 to vector<16x256xf32>
    %10 = vector.broadcast %cst_9 : f32 to vector<16x256xf32>
    %11 = arith.select %8, %9, %10 : vector<16x256xi1>, vector<16x256xf32>
    %12 = vector.extract_strided_slice %5 {offsets = [16, 0], sizes = [16, 256], strides = [1, 1]} : vector<128x256xf32> to vector<16x256xf32>
    %cst_10 = arith.constant -1.64872122 : f32
    %13 = vector.broadcast %cst_10 : f32 to vector<16x256xf32>
    %14 = arith.mulf %13, %11 : vector<16x256xf32>
    %15 = arith.addf %12, %14 : vector<16x256xf32>
    %cst_11 = arith.constant 1.000000e+00 : f32
    %16 = vector.broadcast %cst_11 : f32 to vector<16x256xf32>
    %17 = arith.cmpf oge, %15, %16 : vector<16x256xf32>
    %cst_12 = arith.constant 1.000000e+00 : f32
    %cst_13 = arith.constant 0.000000e+00 : f32
    %18 = vector.broadcast %cst_12 : f32 to vector<16x256xf32>
    %19 = vector.broadcast %cst_13 : f32 to vector<16x256xf32>
    %20 = arith.select %17, %18, %19 : vector<16x256xi1>, vector<16x256xf32>
    %21 = vector.extract_strided_slice %5 {offsets = [32, 0], sizes = [16, 256], strides = [1, 1]} : vector<128x256xf32> to vector<16x256xf32>
    %cst_14 = arith.constant -2.000000e+00 : f32
    %22 = vector.broadcast %cst_14 : f32 to vector<16x256xf32>
    %23 = arith.mulf %22, %11 : vector<16x256xf32>
    %24 = arith.addf %21, %23 : vector<16x256xf32>
    %cst_15 = arith.constant -1.64872122 : f32
    %25 = vector.broadcast %cst_15 : f32 to vector<16x256xf32>
    %26 = arith.mulf %25, %20 : vector<16x256xf32>
    %27 = arith.addf %24, %26 : vector<16x256xf32>
    %cst_16 = arith.constant 1.000000e+00 : f32
    %28 = vector.broadcast %cst_16 : f32 to vector<16x256xf32>
    %29 = arith.cmpf oge, %27, %28 : vector<16x256xf32>
    %cst_17 = arith.constant 1.000000e+00 : f32
    %cst_18 = arith.constant 0.000000e+00 : f32
    %30 = vector.broadcast %cst_17 : f32 to vector<16x256xf32>
    %31 = vector.broadcast %cst_18 : f32 to vector<16x256xf32>
    %32 = arith.select %29, %30, %31 : vector<16x256xi1>, vector<16x256xf32>
    %33 = vector.extract_strided_slice %5 {offsets = [48, 0], sizes = [16, 256], strides = [1, 1]} : vector<128x256xf32> to vector<16x256xf32>
    %cst_19 = arith.constant -1.819592 : f32
    %34 = vector.broadcast %cst_19 : f32 to vector<16x256xf32>
    %35 = arith.mulf %34, %11 : vector<16x256xf32>
    %36 = arith.addf %33, %35 : vector<16x256xf32>
    %cst_20 = arith.constant -2.000000e+00 : f32
    %37 = vector.broadcast %cst_20 : f32 to vector<16x256xf32>
    %38 = arith.mulf %37, %20 : vector<16x256xf32>
    %39 = arith.addf %36, %38 : vector<16x256xf32>
    %cst_21 = arith.constant -1.64872122 : f32
    %40 = vector.broadcast %cst_21 : f32 to vector<16x256xf32>
    %41 = arith.mulf %40, %32 : vector<16x256xf32>
    %42 = arith.addf %39, %41 : vector<16x256xf32>
    %cst_22 = arith.constant 1.000000e+00 : f32
    %43 = vector.broadcast %cst_22 : f32 to vector<16x256xf32>
    %44 = arith.cmpf oge, %42, %43 : vector<16x256xf32>
    %cst_23 = arith.constant 1.000000e+00 : f32
    %cst_24 = arith.constant 0.000000e+00 : f32
    %45 = vector.broadcast %cst_23 : f32 to vector<16x256xf32>
    %46 = vector.broadcast %cst_24 : f32 to vector<16x256xf32>
    %47 = arith.select %44, %45, %46 : vector<16x256xi1>, vector<16x256xf32>
    %48 = vector.extract_strided_slice %5 {offsets = [64, 0], sizes = [16, 256], strides = [1, 1]} : vector<128x256xf32> to vector<16x256xf32>
    %cst_25 = arith.constant -1.4715178 : f32
    %49 = vector.broadcast %cst_25 : f32 to vector<16x256xf32>
    %50 = arith.mulf %49, %11 : vector<16x256xf32>
    %51 = arith.addf %48, %50 : vector<16x256xf32>
    %cst_26 = arith.constant -1.819592 : f32
    %52 = vector.broadcast %cst_26 : f32 to vector<16x256xf32>
    %53 = arith.mulf %52, %20 : vector<16x256xf32>
    %54 = arith.addf %51, %53 : vector<16x256xf32>
    %cst_27 = arith.constant -2.000000e+00 : f32
    %55 = vector.broadcast %cst_27 : f32 to vector<16x256xf32>
    %56 = arith.mulf %55, %32 : vector<16x256xf32>
    %57 = arith.addf %54, %56 : vector<16x256xf32>
    %cst_28 = arith.constant -1.64872122 : f32
    %58 = vector.broadcast %cst_28 : f32 to vector<16x256xf32>
    %59 = arith.mulf %58, %47 : vector<16x256xf32>
    %60 = arith.addf %57, %59 : vector<16x256xf32>
    %cst_29 = arith.constant 1.000000e+00 : f32
    %61 = vector.broadcast %cst_29 : f32 to vector<16x256xf32>
    %62 = arith.cmpf oge, %60, %61 : vector<16x256xf32>
    %cst_30 = arith.constant 1.000000e+00 : f32
    %cst_31 = arith.constant 0.000000e+00 : f32
    %63 = vector.broadcast %cst_30 : f32 to vector<16x256xf32>
    %64 = vector.broadcast %cst_31 : f32 to vector<16x256xf32>
    %65 = arith.select %62, %63, %64 : vector<16x256xi1>, vector<16x256xf32>
    %66 = vector.extract_strided_slice %5 {offsets = [80, 0], sizes = [16, 256], strides = [1, 1]} : vector<128x256xf32> to vector<16x256xf32>
    %cst_32 = arith.constant -1.11565077 : f32
    %67 = vector.broadcast %cst_32 : f32 to vector<16x256xf32>
    %68 = arith.mulf %67, %11 : vector<16x256xf32>
    %69 = arith.addf %66, %68 : vector<16x256xf32>
    %cst_33 = arith.constant -1.4715178 : f32
    %70 = vector.broadcast %cst_33 : f32 to vector<16x256xf32>
    %71 = arith.mulf %70, %20 : vector<16x256xf32>
    %72 = arith.addf %69, %71 : vector<16x256xf32>
    %cst_34 = arith.constant -1.819592 : f32
    %73 = vector.broadcast %cst_34 : f32 to vector<16x256xf32>
    %74 = arith.mulf %73, %32 : vector<16x256xf32>
    %75 = arith.addf %72, %74 : vector<16x256xf32>
    %cst_35 = arith.constant -2.000000e+00 : f32
    %76 = vector.broadcast %cst_35 : f32 to vector<16x256xf32>
    %77 = arith.mulf %76, %47 : vector<16x256xf32>
    %78 = arith.addf %75, %77 : vector<16x256xf32>
    %cst_36 = arith.constant -1.64872122 : f32
    %79 = vector.broadcast %cst_36 : f32 to vector<16x256xf32>
    %80 = arith.mulf %79, %65 : vector<16x256xf32>
    %81 = arith.addf %78, %80 : vector<16x256xf32>
    %cst_37 = arith.constant 1.000000e+00 : f32
    %82 = vector.broadcast %cst_37 : f32 to vector<16x256xf32>
    %83 = arith.cmpf oge, %81, %82 : vector<16x256xf32>
    %cst_38 = arith.constant 1.000000e+00 : f32
    %cst_39 = arith.constant 0.000000e+00 : f32
    %84 = vector.broadcast %cst_38 : f32 to vector<16x256xf32>
    %85 = vector.broadcast %cst_39 : f32 to vector<16x256xf32>
    %86 = arith.select %83, %84, %85 : vector<16x256xi1>, vector<16x256xf32>
    %87 = vector.extract_strided_slice %5 {offsets = [96, 0], sizes = [16, 256], strides = [1, 1]} : vector<128x256xf32> to vector<16x256xf32>
    %cst_40 = arith.constant -0.812011718 : f32
    %88 = vector.broadcast %cst_40 : f32 to vector<16x256xf32>
    %89 = arith.mulf %88, %11 : vector<16x256xf32>
    %90 = arith.addf %87, %89 : vector<16x256xf32>
    %cst_41 = arith.constant -1.11565077 : f32
    %91 = vector.broadcast %cst_41 : f32 to vector<16x256xf32>
    %92 = arith.mulf %91, %20 : vector<16x256xf32>
    %93 = arith.addf %90, %92 : vector<16x256xf32>
    %cst_42 = arith.constant -1.4715178 : f32
    %94 = vector.broadcast %cst_42 : f32 to vector<16x256xf32>
    %95 = arith.mulf %94, %32 : vector<16x256xf32>
    %96 = arith.addf %93, %95 : vector<16x256xf32>
    %cst_43 = arith.constant -1.819592 : f32
    %97 = vector.broadcast %cst_43 : f32 to vector<16x256xf32>
    %98 = arith.mulf %97, %47 : vector<16x256xf32>
    %99 = arith.addf %96, %98 : vector<16x256xf32>
    %cst_44 = arith.constant -2.000000e+00 : f32
    %100 = vector.broadcast %cst_44 : f32 to vector<16x256xf32>
    %101 = arith.mulf %100, %65 : vector<16x256xf32>
    %102 = arith.addf %99, %101 : vector<16x256xf32>
    %cst_45 = arith.constant -1.64872122 : f32
    %103 = vector.broadcast %cst_45 : f32 to vector<16x256xf32>
    %104 = arith.mulf %103, %86 : vector<16x256xf32>
    %105 = arith.addf %102, %104 : vector<16x256xf32>
    %cst_46 = arith.constant 1.000000e+00 : f32
    %106 = vector.broadcast %cst_46 : f32 to vector<16x256xf32>
    %107 = arith.cmpf oge, %105, %106 : vector<16x256xf32>
    %cst_47 = arith.constant 1.000000e+00 : f32
    %cst_48 = arith.constant 0.000000e+00 : f32
    %108 = vector.broadcast %cst_47 : f32 to vector<16x256xf32>
    %109 = vector.broadcast %cst_48 : f32 to vector<16x256xf32>
    %110 = arith.select %107, %108, %109 : vector<16x256xi1>, vector<16x256xf32>
    %111 = vector.extract_strided_slice %5 {offsets = [112, 0], sizes = [16, 256], strides = [1, 1]} : vector<128x256xf32> to vector<16x256xf32>
    %cst_49 = arith.constant -5.745950e-01 : f32
    %112 = vector.broadcast %cst_49 : f32 to vector<16x256xf32>
    %113 = arith.mulf %112, %11 : vector<16x256xf32>
    %114 = arith.addf %111, %113 : vector<16x256xf32>
    %cst_50 = arith.constant -0.812011718 : f32
    %115 = vector.broadcast %cst_50 : f32 to vector<16x256xf32>
    %116 = arith.mulf %115, %20 : vector<16x256xf32>
    %117 = arith.addf %114, %116 : vector<16x256xf32>
    %cst_51 = arith.constant -1.11565077 : f32
    %118 = vector.broadcast %cst_51 : f32 to vector<16x256xf32>
    %119 = arith.mulf %118, %32 : vector<16x256xf32>
    %120 = arith.addf %117, %119 : vector<16x256xf32>
    %cst_52 = arith.constant -1.4715178 : f32
    %121 = vector.broadcast %cst_52 : f32 to vector<16x256xf32>
    %122 = arith.mulf %121, %47 : vector<16x256xf32>
    %123 = arith.addf %120, %122 : vector<16x256xf32>
    %cst_53 = arith.constant -1.819592 : f32
    %124 = vector.broadcast %cst_53 : f32 to vector<16x256xf32>
    %125 = arith.mulf %124, %65 : vector<16x256xf32>
    %126 = arith.addf %123, %125 : vector<16x256xf32>
    %cst_54 = arith.constant -2.000000e+00 : f32
    %127 = vector.broadcast %cst_54 : f32 to vector<16x256xf32>
    %128 = arith.mulf %127, %86 : vector<16x256xf32>
    %129 = arith.addf %126, %128 : vector<16x256xf32>
    %cst_55 = arith.constant -1.64872122 : f32
    %130 = vector.broadcast %cst_55 : f32 to vector<16x256xf32>
    %131 = arith.mulf %130, %110 : vector<16x256xf32>
    %132 = arith.addf %129, %131 : vector<16x256xf32>
    %cst_56 = arith.constant 1.000000e+00 : f32
    %133 = vector.broadcast %cst_56 : f32 to vector<16x256xf32>
    %134 = arith.cmpf oge, %132, %133 : vector<16x256xf32>
    %cst_57 = arith.constant 1.000000e+00 : f32
    %cst_58 = arith.constant 0.000000e+00 : f32
    %135 = vector.broadcast %cst_57 : f32 to vector<16x256xf32>
    %136 = vector.broadcast %cst_58 : f32 to vector<16x256xf32>
    %137 = arith.select %134, %135, %136 : vector<16x256xi1>, vector<16x256xf32>
    %138 = tpu.concatenate %11, %20, %32, %47, %65, %86, %110, %137 in 0 : vector<16x256xf32>, vector<16x256xf32>, vector<16x256xf32>, vector<16x256xf32>, vector<16x256xf32>, vector<16x256xf32>, vector<16x256xf32>, vector<16x256xf32> -> vector<128x256xf32>
    %139 = arith.truncf %138 : vector<128x256xf32> to vector<128x256xbf16>
    %c0_59 = arith.constant 0 : index
    %c0_60 = arith.constant 0 : index
    %140 = vector.load %arg4[%c0_59, %c0_60] : memref<256x128xbf16, #tpu.memory_space<vmem>>, vector<256x128xbf16>
    %cst_61 = arith.constant dense<0.000000e+00> : vector<128x128xf32>
    %141 = tpu.matmul %139, %140, %cst_61 {dimension_numbers = #tpu.dot_dimension_numbers<[1], [0], [0], [1], [0, 0, 1, 1], [], []>} : vector<128x256xbf16>, vector<256x128xbf16>, vector<128x128xf32> -> vector<128x128xf32>
    %cst_62 = arith.constant dense<0.000000e+00> : vector<128x128xf32>
    %142 = tpu.matmul %0, %141, %cst_62 {dimension_numbers = #tpu.dot_dimension_numbers<[1], [0], [0], [1], [0, 0, 1, 1], [], []>} : vector<128x128xf32>, vector<128x128xf32>, vector<128x128xf32> -> vector<128x128xf32>
    %143 = vector.extract_strided_slice %142 {offsets = [0, 0], sizes = [16, 128], strides = [1, 1]} : vector<128x128xf32> to vector<16x128xf32>
    %cst_63 = arith.constant 1.000000e+00 : f32
    %144 = vector.broadcast %cst_63 : f32 to vector<16x128xf32>
    %145 = arith.cmpf oge, %143, %144 : vector<16x128xf32>
    %cst_64 = arith.constant 1.000000e+00 : f32
    %cst_65 = arith.constant 0.000000e+00 : f32
    %146 = vector.broadcast %cst_64 : f32 to vector<16x128xf32>
    %147 = vector.broadcast %cst_65 : f32 to vector<16x128xf32>
    %148 = arith.select %145, %146, %147 : vector<16x128xi1>, vector<16x128xf32>
    %149 = vector.extract_strided_slice %142 {offsets = [16, 0], sizes = [16, 128], strides = [1, 1]} : vector<128x128xf32> to vector<16x128xf32>
    %cst_66 = arith.constant -1.64872122 : f32
    %150 = vector.broadcast %cst_66 : f32 to vector<16x128xf32>
    %151 = arith.mulf %150, %148 : vector<16x128xf32>
    %152 = arith.addf %149, %151 : vector<16x128xf32>
    %cst_67 = arith.constant 1.000000e+00 : f32
    %153 = vector.broadcast %cst_67 : f32 to vector<16x128xf32>
    %154 = arith.cmpf oge, %152, %153 : vector<16x128xf32>
    %cst_68 = arith.constant 1.000000e+00 : f32
    %cst_69 = arith.constant 0.000000e+00 : f32
    %155 = vector.broadcast %cst_68 : f32 to vector<16x128xf32>
    %156 = vector.broadcast %cst_69 : f32 to vector<16x128xf32>
    %157 = arith.select %154, %155, %156 : vector<16x128xi1>, vector<16x128xf32>
    %158 = vector.extract_strided_slice %142 {offsets = [32, 0], sizes = [16, 128], strides = [1, 1]} : vector<128x128xf32> to vector<16x128xf32>
    %cst_70 = arith.constant -2.000000e+00 : f32
    %159 = vector.broadcast %cst_70 : f32 to vector<16x128xf32>
    %160 = arith.mulf %159, %148 : vector<16x128xf32>
    %161 = arith.addf %158, %160 : vector<16x128xf32>
    %cst_71 = arith.constant -1.64872122 : f32
    %162 = vector.broadcast %cst_71 : f32 to vector<16x128xf32>
    %163 = arith.mulf %162, %157 : vector<16x128xf32>
    %164 = arith.addf %161, %163 : vector<16x128xf32>
    %cst_72 = arith.constant 1.000000e+00 : f32
    %165 = vector.broadcast %cst_72 : f32 to vector<16x128xf32>
    %166 = arith.cmpf oge, %164, %165 : vector<16x128xf32>
    %cst_73 = arith.constant 1.000000e+00 : f32
    %cst_74 = arith.constant 0.000000e+00 : f32
    %167 = vector.broadcast %cst_73 : f32 to vector<16x128xf32>
    %168 = vector.broadcast %cst_74 : f32 to vector<16x128xf32>
    %169 = arith.select %166, %167, %168 : vector<16x128xi1>, vector<16x128xf32>
    %170 = vector.extract_strided_slice %142 {offsets = [48, 0], sizes = [16, 128], strides = [1, 1]} : vector<128x128xf32> to vector<16x128xf32>
    %cst_75 = arith.constant -1.819592 : f32
    %171 = vector.broadcast %cst_75 : f32 to vector<16x128xf32>
    %172 = arith.mulf %171, %148 : vector<16x128xf32>
    %173 = arith.addf %170, %172 : vector<16x128xf32>
    %cst_76 = arith.constant -2.000000e+00 : f32
    %174 = vector.broadcast %cst_76 : f32 to vector<16x128xf32>
    %175 = arith.mulf %174, %157 : vector<16x128xf32>
    %176 = arith.addf %173, %175 : vector<16x128xf32>
    %cst_77 = arith.constant -1.64872122 : f32
    %177 = vector.broadcast %cst_77 : f32 to vector<16x128xf32>
    %178 = arith.mulf %177, %169 : vector<16x128xf32>
    %179 = arith.addf %176, %178 : vector<16x128xf32>
    %cst_78 = arith.constant 1.000000e+00 : f32
    %180 = vector.broadcast %cst_78 : f32 to vector<16x128xf32>
    %181 = arith.cmpf oge, %179, %180 : vector<16x128xf32>
    %cst_79 = arith.constant 1.000000e+00 : f32
    %cst_80 = arith.constant 0.000000e+00 : f32
    %182 = vector.broadcast %cst_79 : f32 to vector<16x128xf32>
    %183 = vector.broadcast %cst_80 : f32 to vector<16x128xf32>
    %184 = arith.select %181, %182, %183 : vector<16x128xi1>, vector<16x128xf32>
    %185 = vector.extract_strided_slice %142 {offsets = [64, 0], sizes = [16, 128], strides = [1, 1]} : vector<128x128xf32> to vector<16x128xf32>
    %cst_81 = arith.constant -1.4715178 : f32
    %186 = vector.broadcast %cst_81 : f32 to vector<16x128xf32>
    %187 = arith.mulf %186, %148 : vector<16x128xf32>
    %188 = arith.addf %185, %187 : vector<16x128xf32>
    %cst_82 = arith.constant -1.819592 : f32
    %189 = vector.broadcast %cst_82 : f32 to vector<16x128xf32>
    %190 = arith.mulf %189, %157 : vector<16x128xf32>
    %191 = arith.addf %188, %190 : vector<16x128xf32>
    %cst_83 = arith.constant -2.000000e+00 : f32
    %192 = vector.broadcast %cst_83 : f32 to vector<16x128xf32>
    %193 = arith.mulf %192, %169 : vector<16x128xf32>
    %194 = arith.addf %191, %193 : vector<16x128xf32>
    %cst_84 = arith.constant -1.64872122 : f32
    %195 = vector.broadcast %cst_84 : f32 to vector<16x128xf32>
    %196 = arith.mulf %195, %184 : vector<16x128xf32>
    %197 = arith.addf %194, %196 : vector<16x128xf32>
    %cst_85 = arith.constant 1.000000e+00 : f32
    %198 = vector.broadcast %cst_85 : f32 to vector<16x128xf32>
    %199 = arith.cmpf oge, %197, %198 : vector<16x128xf32>
    %cst_86 = arith.constant 1.000000e+00 : f32
    %cst_87 = arith.constant 0.000000e+00 : f32
    %200 = vector.broadcast %cst_86 : f32 to vector<16x128xf32>
    %201 = vector.broadcast %cst_87 : f32 to vector<16x128xf32>
    %202 = arith.select %199, %200, %201 : vector<16x128xi1>, vector<16x128xf32>
    %203 = vector.extract_strided_slice %142 {offsets = [80, 0], sizes = [16, 128], strides = [1, 1]} : vector<128x128xf32> to vector<16x128xf32>
    %cst_88 = arith.constant -1.11565077 : f32
    %204 = vector.broadcast %cst_88 : f32 to vector<16x128xf32>
    %205 = arith.mulf %204, %148 : vector<16x128xf32>
    %206 = arith.addf %203, %205 : vector<16x128xf32>
    %cst_89 = arith.constant -1.4715178 : f32
    %207 = vector.broadcast %cst_89 : f32 to vector<16x128xf32>
    %208 = arith.mulf %207, %157 : vector<16x128xf32>
    %209 = arith.addf %206, %208 : vector<16x128xf32>
    %cst_90 = arith.constant -1.819592 : f32
    %210 = vector.broadcast %cst_90 : f32 to vector<16x128xf32>
    %211 = arith.mulf %210, %169 : vector<16x128xf32>
    %212 = arith.addf %209, %211 : vector<16x128xf32>
    %cst_91 = arith.constant -2.000000e+00 : f32
    %213 = vector.broadcast %cst_91 : f32 to vector<16x128xf32>
    %214 = arith.mulf %213, %184 : vector<16x128xf32>
    %215 = arith.addf %212, %214 : vector<16x128xf32>
    %cst_92 = arith.constant -1.64872122 : f32
    %216 = vector.broadcast %cst_92 : f32 to vector<16x128xf32>
    %217 = arith.mulf %216, %202 : vector<16x128xf32>
    %218 = arith.addf %215, %217 : vector<16x128xf32>
    %cst_93 = arith.constant 1.000000e+00 : f32
    %219 = vector.broadcast %cst_93 : f32 to vector<16x128xf32>
    %220 = arith.cmpf oge, %218, %219 : vector<16x128xf32>
    %cst_94 = arith.constant 1.000000e+00 : f32
    %cst_95 = arith.constant 0.000000e+00 : f32
    %221 = vector.broadcast %cst_94 : f32 to vector<16x128xf32>
    %222 = vector.broadcast %cst_95 : f32 to vector<16x128xf32>
    %223 = arith.select %220, %221, %222 : vector<16x128xi1>, vector<16x128xf32>
    %224 = vector.extract_strided_slice %142 {offsets = [96, 0], sizes = [16, 128], strides = [1, 1]} : vector<128x128xf32> to vector<16x128xf32>
    %cst_96 = arith.constant -0.812011718 : f32
    %225 = vector.broadcast %cst_96 : f32 to vector<16x128xf32>
    %226 = arith.mulf %225, %148 : vector<16x128xf32>
    %227 = arith.addf %224, %226 : vector<16x128xf32>
    %cst_97 = arith.constant -1.11565077 : f32
    %228 = vector.broadcast %cst_97 : f32 to vector<16x128xf32>
    %229 = arith.mulf %228, %157 : vector<16x128xf32>
    %230 = arith.addf %227, %229 : vector<16x128xf32>
    %cst_98 = arith.constant -1.4715178 : f32
    %231 = vector.broadcast %cst_98 : f32 to vector<16x128xf32>
    %232 = arith.mulf %231, %169 : vector<16x128xf32>
    %233 = arith.addf %230, %232 : vector<16x128xf32>
    %cst_99 = arith.constant -1.819592 : f32
    %234 = vector.broadcast %cst_99 : f32 to vector<16x128xf32>
    %235 = arith.mulf %234, %184 : vector<16x128xf32>
    %236 = arith.addf %233, %235 : vector<16x128xf32>
    %cst_100 = arith.constant -2.000000e+00 : f32
    %237 = vector.broadcast %cst_100 : f32 to vector<16x128xf32>
    %238 = arith.mulf %237, %202 : vector<16x128xf32>
    %239 = arith.addf %236, %238 : vector<16x128xf32>
    %cst_101 = arith.constant -1.64872122 : f32
    %240 = vector.broadcast %cst_101 : f32 to vector<16x128xf32>
    %241 = arith.mulf %240, %223 : vector<16x128xf32>
    %242 = arith.addf %239, %241 : vector<16x128xf32>
    %cst_102 = arith.constant 1.000000e+00 : f32
    %243 = vector.broadcast %cst_102 : f32 to vector<16x128xf32>
    %244 = arith.cmpf oge, %242, %243 : vector<16x128xf32>
    %cst_103 = arith.constant 1.000000e+00 : f32
    %cst_104 = arith.constant 0.000000e+00 : f32
    %245 = vector.broadcast %cst_103 : f32 to vector<16x128xf32>
    %246 = vector.broadcast %cst_104 : f32 to vector<16x128xf32>
    %247 = arith.select %244, %245, %246 : vector<16x128xi1>, vector<16x128xf32>
    %248 = vector.extract_strided_slice %142 {offsets = [112, 0], sizes = [16, 128], strides = [1, 1]} : vector<128x128xf32> to vector<16x128xf32>
    %cst_105 = arith.constant -5.745950e-01 : f32
    %249 = vector.broadcast %cst_105 : f32 to vector<16x128xf32>
    %250 = arith.mulf %249, %148 : vector<16x128xf32>
    %251 = arith.addf %248, %250 : vector<16x128xf32>
    %cst_106 = arith.constant -0.812011718 : f32
    %252 = vector.broadcast %cst_106 : f32 to vector<16x128xf32>
    %253 = arith.mulf %252, %157 : vector<16x128xf32>
    %254 = arith.addf %251, %253 : vector<16x128xf32>
    %cst_107 = arith.constant -1.11565077 : f32
    %255 = vector.broadcast %cst_107 : f32 to vector<16x128xf32>
    %256 = arith.mulf %255, %169 : vector<16x128xf32>
    %257 = arith.addf %254, %256 : vector<16x128xf32>
    %cst_108 = arith.constant -1.4715178 : f32
    %258 = vector.broadcast %cst_108 : f32 to vector<16x128xf32>
    %259 = arith.mulf %258, %184 : vector<16x128xf32>
    %260 = arith.addf %257, %259 : vector<16x128xf32>
    %cst_109 = arith.constant -1.819592 : f32
    %261 = vector.broadcast %cst_109 : f32 to vector<16x128xf32>
    %262 = arith.mulf %261, %202 : vector<16x128xf32>
    %263 = arith.addf %260, %262 : vector<16x128xf32>
    %cst_110 = arith.constant -2.000000e+00 : f32
    %264 = vector.broadcast %cst_110 : f32 to vector<16x128xf32>
    %265 = arith.mulf %264, %223 : vector<16x128xf32>
    %266 = arith.addf %263, %265 : vector<16x128xf32>
    %cst_111 = arith.constant -1.64872122 : f32
    %267 = vector.broadcast %cst_111 : f32 to vector<16x128xf32>
    %268 = arith.mulf %267, %247 : vector<16x128xf32>
    %269 = arith.addf %266, %268 : vector<16x128xf32>
    %cst_112 = arith.constant 1.000000e+00 : f32
    %270 = vector.broadcast %cst_112 : f32 to vector<16x128xf32>
    %271 = arith.cmpf oge, %269, %270 : vector<16x128xf32>
    %cst_113 = arith.constant 1.000000e+00 : f32
    %cst_114 = arith.constant 0.000000e+00 : f32
    %272 = vector.broadcast %cst_113 : f32 to vector<16x128xf32>
    %273 = vector.broadcast %cst_114 : f32 to vector<16x128xf32>
    %274 = arith.select %271, %272, %273 : vector<16x128xi1>, vector<16x128xf32>
    %275 = tpu.concatenate %148, %157, %169, %184, %202, %223, %247, %274 in 0 : vector<16x128xf32>, vector<16x128xf32>, vector<16x128xf32>, vector<16x128xf32>, vector<16x128xf32>, vector<16x128xf32>, vector<16x128xf32>, vector<16x128xf32> -> vector<128x128xf32>
    %276 = arith.truncf %275 : vector<128x128xf32> to vector<128x128xbf16>
    %c0_115 = arith.constant 0 : index
    %c0_116 = arith.constant 0 : index
    %277 = vector.load %arg5[%c0_115, %c0_116] : memref<128x256xbf16, #tpu.memory_space<vmem>>, vector<128x256xbf16>
    %cst_117 = arith.constant dense<0.000000e+00> : vector<128x256xf32>
    %278 = tpu.matmul %276, %277, %cst_117 {dimension_numbers = #tpu.dot_dimension_numbers<[1], [0], [0], [1], [0, 0, 1, 1], [], []>} : vector<128x128xbf16>, vector<128x256xbf16>, vector<128x256xf32> -> vector<128x256xf32>
    %cst_118 = arith.constant dense<0.000000e+00> : vector<128x256xf32>
    %279 = tpu.matmul %0, %278, %cst_118 {dimension_numbers = #tpu.dot_dimension_numbers<[1], [0], [0], [1], [0, 0, 1, 1], [], []>} : vector<128x128xf32>, vector<128x256xf32>, vector<128x256xf32> -> vector<128x256xf32>
    %280 = vector.extract_strided_slice %279 {offsets = [0, 0], sizes = [16, 256], strides = [1, 1]} : vector<128x256xf32> to vector<16x256xf32>
    %cst_119 = arith.constant 1.000000e+00 : f32
    %281 = vector.broadcast %cst_119 : f32 to vector<16x256xf32>
    %282 = arith.cmpf oge, %280, %281 : vector<16x256xf32>
    %cst_120 = arith.constant 1.000000e+00 : f32
    %cst_121 = arith.constant 0.000000e+00 : f32
    %283 = vector.broadcast %cst_120 : f32 to vector<16x256xf32>
    %284 = vector.broadcast %cst_121 : f32 to vector<16x256xf32>
    %285 = arith.select %282, %283, %284 : vector<16x256xi1>, vector<16x256xf32>
    %286 = vector.extract_strided_slice %279 {offsets = [16, 0], sizes = [16, 256], strides = [1, 1]} : vector<128x256xf32> to vector<16x256xf32>
    %cst_122 = arith.constant -1.64872122 : f32
    %287 = vector.broadcast %cst_122 : f32 to vector<16x256xf32>
    %288 = arith.mulf %287, %285 : vector<16x256xf32>
    %289 = arith.addf %286, %288 : vector<16x256xf32>
    %cst_123 = arith.constant 1.000000e+00 : f32
    %290 = vector.broadcast %cst_123 : f32 to vector<16x256xf32>
    %291 = arith.cmpf oge, %289, %290 : vector<16x256xf32>
    %cst_124 = arith.constant 1.000000e+00 : f32
    %cst_125 = arith.constant 0.000000e+00 : f32
    %292 = vector.broadcast %cst_124 : f32 to vector<16x256xf32>
    %293 = vector.broadcast %cst_125 : f32 to vector<16x256xf32>
    %294 = arith.select %291, %292, %293 : vector<16x256xi1>, vector<16x256xf32>
    %295 = vector.extract_strided_slice %279 {offsets = [32, 0], sizes = [16, 256], strides = [1, 1]} : vector<128x256xf32> to vector<16x256xf32>
    %cst_126 = arith.constant -2.000000e+00 : f32
    %296 = vector.broadcast %cst_126 : f32 to vector<16x256xf32>
    %297 = arith.mulf %296, %285 : vector<16x256xf32>
    %298 = arith.addf %295, %297 : vector<16x256xf32>
    %cst_127 = arith.constant -1.64872122 : f32
    %299 = vector.broadcast %cst_127 : f32 to vector<16x256xf32>
    %300 = arith.mulf %299, %294 : vector<16x256xf32>
    %301 = arith.addf %298, %300 : vector<16x256xf32>
    %cst_128 = arith.constant 1.000000e+00 : f32
    %302 = vector.broadcast %cst_128 : f32 to vector<16x256xf32>
    %303 = arith.cmpf oge, %301, %302 : vector<16x256xf32>
    %cst_129 = arith.constant 1.000000e+00 : f32
    %cst_130 = arith.constant 0.000000e+00 : f32
    %304 = vector.broadcast %cst_129 : f32 to vector<16x256xf32>
    %305 = vector.broadcast %cst_130 : f32 to vector<16x256xf32>
    %306 = arith.select %303, %304, %305 : vector<16x256xi1>, vector<16x256xf32>
    %307 = vector.extract_strided_slice %279 {offsets = [48, 0], sizes = [16, 256], strides = [1, 1]} : vector<128x256xf32> to vector<16x256xf32>
    %cst_131 = arith.constant -1.819592 : f32
    %308 = vector.broadcast %cst_131 : f32 to vector<16x256xf32>
    %309 = arith.mulf %308, %285 : vector<16x256xf32>
    %310 = arith.addf %307, %309 : vector<16x256xf32>
    %cst_132 = arith.constant -2.000000e+00 : f32
    %311 = vector.broadcast %cst_132 : f32 to vector<16x256xf32>
    %312 = arith.mulf %311, %294 : vector<16x256xf32>
    %313 = arith.addf %310, %312 : vector<16x256xf32>
    %cst_133 = arith.constant -1.64872122 : f32
    %314 = vector.broadcast %cst_133 : f32 to vector<16x256xf32>
    %315 = arith.mulf %314, %306 : vector<16x256xf32>
    %316 = arith.addf %313, %315 : vector<16x256xf32>
    %cst_134 = arith.constant 1.000000e+00 : f32
    %317 = vector.broadcast %cst_134 : f32 to vector<16x256xf32>
    %318 = arith.cmpf oge, %316, %317 : vector<16x256xf32>
    %cst_135 = arith.constant 1.000000e+00 : f32
    %cst_136 = arith.constant 0.000000e+00 : f32
    %319 = vector.broadcast %cst_135 : f32 to vector<16x256xf32>
    %320 = vector.broadcast %cst_136 : f32 to vector<16x256xf32>
    %321 = arith.select %318, %319, %320 : vector<16x256xi1>, vector<16x256xf32>
    %322 = vector.extract_strided_slice %279 {offsets = [64, 0], sizes = [16, 256], strides = [1, 1]} : vector<128x256xf32> to vector<16x256xf32>
    %cst_137 = arith.constant -1.4715178 : f32
    %323 = vector.broadcast %cst_137 : f32 to vector<16x256xf32>
    %324 = arith.mulf %323, %285 : vector<16x256xf32>
    %325 = arith.addf %322, %324 : vector<16x256xf32>
    %cst_138 = arith.constant -1.819592 : f32
    %326 = vector.broadcast %cst_138 : f32 to vector<16x256xf32>
    %327 = arith.mulf %326, %294 : vector<16x256xf32>
    %328 = arith.addf %325, %327 : vector<16x256xf32>
    %cst_139 = arith.constant -2.000000e+00 : f32
    %329 = vector.broadcast %cst_139 : f32 to vector<16x256xf32>
    %330 = arith.mulf %329, %306 : vector<16x256xf32>
    %331 = arith.addf %328, %330 : vector<16x256xf32>
    %cst_140 = arith.constant -1.64872122 : f32
    %332 = vector.broadcast %cst_140 : f32 to vector<16x256xf32>
    %333 = arith.mulf %332, %321 : vector<16x256xf32>
    %334 = arith.addf %331, %333 : vector<16x256xf32>
    %cst_141 = arith.constant 1.000000e+00 : f32
    %335 = vector.broadcast %cst_141 : f32 to vector<16x256xf32>
    %336 = arith.cmpf oge, %334, %335 : vector<16x256xf32>
    %cst_142 = arith.constant 1.000000e+00 : f32
    %cst_143 = arith.constant 0.000000e+00 : f32
    %337 = vector.broadcast %cst_142 : f32 to vector<16x256xf32>
    %338 = vector.broadcast %cst_143 : f32 to vector<16x256xf32>
    %339 = arith.select %336, %337, %338 : vector<16x256xi1>, vector<16x256xf32>
    %340 = vector.extract_strided_slice %279 {offsets = [80, 0], sizes = [16, 256], strides = [1, 1]} : vector<128x256xf32> to vector<16x256xf32>
    %cst_144 = arith.constant -1.11565077 : f32
    %341 = vector.broadcast %cst_144 : f32 to vector<16x256xf32>
    %342 = arith.mulf %341, %285 : vector<16x256xf32>
    %343 = arith.addf %340, %342 : vector<16x256xf32>
    %cst_145 = arith.constant -1.4715178 : f32
    %344 = vector.broadcast %cst_145 : f32 to vector<16x256xf32>
    %345 = arith.mulf %344, %294 : vector<16x256xf32>
    %346 = arith.addf %343, %345 : vector<16x256xf32>
    %cst_146 = arith.constant -1.819592 : f32
    %347 = vector.broadcast %cst_146 : f32 to vector<16x256xf32>
    %348 = arith.mulf %347, %306 : vector<16x256xf32>
    %349 = arith.addf %346, %348 : vector<16x256xf32>
    %cst_147 = arith.constant -2.000000e+00 : f32
    %350 = vector.broadcast %cst_147 : f32 to vector<16x256xf32>
    %351 = arith.mulf %350, %321 : vector<16x256xf32>
    %352 = arith.addf %349, %351 : vector<16x256xf32>
    %cst_148 = arith.constant -1.64872122 : f32
    %353 = vector.broadcast %cst_148 : f32 to vector<16x256xf32>
    %354 = arith.mulf %353, %339 : vector<16x256xf32>
    %355 = arith.addf %352, %354 : vector<16x256xf32>
    %cst_149 = arith.constant 1.000000e+00 : f32
    %356 = vector.broadcast %cst_149 : f32 to vector<16x256xf32>
    %357 = arith.cmpf oge, %355, %356 : vector<16x256xf32>
    %cst_150 = arith.constant 1.000000e+00 : f32
    %cst_151 = arith.constant 0.000000e+00 : f32
    %358 = vector.broadcast %cst_150 : f32 to vector<16x256xf32>
    %359 = vector.broadcast %cst_151 : f32 to vector<16x256xf32>
    %360 = arith.select %357, %358, %359 : vector<16x256xi1>, vector<16x256xf32>
    %361 = vector.extract_strided_slice %279 {offsets = [96, 0], sizes = [16, 256], strides = [1, 1]} : vector<128x256xf32> to vector<16x256xf32>
    %cst_152 = arith.constant -0.812011718 : f32
    %362 = vector.broadcast %cst_152 : f32 to vector<16x256xf32>
    %363 = arith.mulf %362, %285 : vector<16x256xf32>
    %364 = arith.addf %361, %363 : vector<16x256xf32>
    %cst_153 = arith.constant -1.11565077 : f32
    %365 = vector.broadcast %cst_153 : f32 to vector<16x256xf32>
    %366 = arith.mulf %365, %294 : vector<16x256xf32>
    %367 = arith.addf %364, %366 : vector<16x256xf32>
    %cst_154 = arith.constant -1.4715178 : f32
    %368 = vector.broadcast %cst_154 : f32 to vector<16x256xf32>
    %369 = arith.mulf %368, %306 : vector<16x256xf32>
    %370 = arith.addf %367, %369 : vector<16x256xf32>
    %cst_155 = arith.constant -1.819592 : f32
    %371 = vector.broadcast %cst_155 : f32 to vector<16x256xf32>
    %372 = arith.mulf %371, %321 : vector<16x256xf32>
    %373 = arith.addf %370, %372 : vector<16x256xf32>
    %cst_156 = arith.constant -2.000000e+00 : f32
    %374 = vector.broadcast %cst_156 : f32 to vector<16x256xf32>
    %375 = arith.mulf %374, %339 : vector<16x256xf32>
    %376 = arith.addf %373, %375 : vector<16x256xf32>
    %cst_157 = arith.constant -1.64872122 : f32
    %377 = vector.broadcast %cst_157 : f32 to vector<16x256xf32>
    %378 = arith.mulf %377, %360 : vector<16x256xf32>
    %379 = arith.addf %376, %378 : vector<16x256xf32>
    %cst_158 = arith.constant 1.000000e+00 : f32
    %380 = vector.broadcast %cst_158 : f32 to vector<16x256xf32>
    %381 = arith.cmpf oge, %379, %380 : vector<16x256xf32>
    %cst_159 = arith.constant 1.000000e+00 : f32
    %cst_160 = arith.constant 0.000000e+00 : f32
    %382 = vector.broadcast %cst_159 : f32 to vector<16x256xf32>
    %383 = vector.broadcast %cst_160 : f32 to vector<16x256xf32>
    %384 = arith.select %381, %382, %383 : vector<16x256xi1>, vector<16x256xf32>
    %385 = vector.extract_strided_slice %279 {offsets = [112, 0], sizes = [16, 256], strides = [1, 1]} : vector<128x256xf32> to vector<16x256xf32>
    %cst_161 = arith.constant -5.745950e-01 : f32
    %386 = vector.broadcast %cst_161 : f32 to vector<16x256xf32>
    %387 = arith.mulf %386, %285 : vector<16x256xf32>
    %388 = arith.addf %385, %387 : vector<16x256xf32>
    %cst_162 = arith.constant -0.812011718 : f32
    %389 = vector.broadcast %cst_162 : f32 to vector<16x256xf32>
    %390 = arith.mulf %389, %294 : vector<16x256xf32>
    %391 = arith.addf %388, %390 : vector<16x256xf32>
    %cst_163 = arith.constant -1.11565077 : f32
    %392 = vector.broadcast %cst_163 : f32 to vector<16x256xf32>
    %393 = arith.mulf %392, %306 : vector<16x256xf32>
    %394 = arith.addf %391, %393 : vector<16x256xf32>
    %cst_164 = arith.constant -1.4715178 : f32
    %395 = vector.broadcast %cst_164 : f32 to vector<16x256xf32>
    %396 = arith.mulf %395, %321 : vector<16x256xf32>
    %397 = arith.addf %394, %396 : vector<16x256xf32>
    %cst_165 = arith.constant -1.819592 : f32
    %398 = vector.broadcast %cst_165 : f32 to vector<16x256xf32>
    %399 = arith.mulf %398, %339 : vector<16x256xf32>
    %400 = arith.addf %397, %399 : vector<16x256xf32>
    %cst_166 = arith.constant -2.000000e+00 : f32
    %401 = vector.broadcast %cst_166 : f32 to vector<16x256xf32>
    %402 = arith.mulf %401, %360 : vector<16x256xf32>
    %403 = arith.addf %400, %402 : vector<16x256xf32>
    %cst_167 = arith.constant -1.64872122 : f32
    %404 = vector.broadcast %cst_167 : f32 to vector<16x256xf32>
    %405 = arith.mulf %404, %384 : vector<16x256xf32>
    %406 = arith.addf %403, %405 : vector<16x256xf32>
    %cst_168 = arith.constant 1.000000e+00 : f32
    %407 = vector.broadcast %cst_168 : f32 to vector<16x256xf32>
    %408 = arith.cmpf oge, %406, %407 : vector<16x256xf32>
    %cst_169 = arith.constant 1.000000e+00 : f32
    %cst_170 = arith.constant 0.000000e+00 : f32
    %409 = vector.broadcast %cst_169 : f32 to vector<16x256xf32>
    %410 = vector.broadcast %cst_170 : f32 to vector<16x256xf32>
    %411 = arith.select %408, %409, %410 : vector<16x256xi1>, vector<16x256xf32>
    %412 = tpu.concatenate %285, %294, %306, %321, %339, %360, %384, %411 in 0 : vector<16x256xf32>, vector<16x256xf32>, vector<16x256xf32>, vector<16x256xf32>, vector<16x256xf32>, vector<16x256xf32>, vector<16x256xf32>, vector<16x256xf32> -> vector<128x256xf32>
    %413 = arith.truncf %412 : vector<128x256xf32> to vector<128x256xbf16>
    %c0_171 = arith.constant 0 : index
    %c0_172 = arith.constant 0 : index
    %414 = vector.load %arg6[%c0_171, %c0_172] : memref<256x896xbf16, #tpu.memory_space<vmem>>, vector<256x896xbf16>
    %cst_173 = arith.constant dense<0.000000e+00> : vector<128x896xf32>
    %415 = tpu.matmul %413, %414, %cst_173 {dimension_numbers = #tpu.dot_dimension_numbers<[1], [0], [0], [1], [0, 0, 1, 1], [], []>} : vector<128x256xbf16>, vector<256x896xbf16>, vector<128x896xf32> -> vector<128x896xf32>
    %cst_174 = arith.constant dense<0.000000e+00> : vector<128x896xf32>
    %416 = tpu.matmul %0, %415, %cst_174 {dimension_numbers = #tpu.dot_dimension_numbers<[1], [0], [0], [1], [0, 0, 1, 1], [], []>} : vector<128x128xf32>, vector<128x896xf32>, vector<128x896xf32> -> vector<128x896xf32>
    %417 = vector.extract_strided_slice %416 {offsets = [0, 0], sizes = [16, 896], strides = [1, 1]} : vector<128x896xf32> to vector<16x896xf32>
    %cst_175 = arith.constant 1.000000e+00 : f32
    %418 = vector.broadcast %cst_175 : f32 to vector<16x896xf32>
    %419 = arith.cmpf oge, %417, %418 : vector<16x896xf32>
    %cst_176 = arith.constant 1.000000e+00 : f32
    %cst_177 = arith.constant 0.000000e+00 : f32
    %420 = vector.broadcast %cst_176 : f32 to vector<16x896xf32>
    %421 = vector.broadcast %cst_177 : f32 to vector<16x896xf32>
    %422 = arith.select %419, %420, %421 : vector<16x896xi1>, vector<16x896xf32>
    %423 = vector.extract_strided_slice %416 {offsets = [16, 0], sizes = [16, 896], strides = [1, 1]} : vector<128x896xf32> to vector<16x896xf32>
    %cst_178 = arith.constant -1.64872122 : f32
    %424 = vector.broadcast %cst_178 : f32 to vector<16x896xf32>
    %425 = arith.mulf %424, %422 : vector<16x896xf32>
    %426 = arith.addf %423, %425 : vector<16x896xf32>
    %cst_179 = arith.constant 1.000000e+00 : f32
    %427 = vector.broadcast %cst_179 : f32 to vector<16x896xf32>
    %428 = arith.cmpf oge, %426, %427 : vector<16x896xf32>
    %cst_180 = arith.constant 1.000000e+00 : f32
    %cst_181 = arith.constant 0.000000e+00 : f32
    %429 = vector.broadcast %cst_180 : f32 to vector<16x896xf32>
    %430 = vector.broadcast %cst_181 : f32 to vector<16x896xf32>
    %431 = arith.select %428, %429, %430 : vector<16x896xi1>, vector<16x896xf32>
    %432 = vector.extract_strided_slice %416 {offsets = [32, 0], sizes = [16, 896], strides = [1, 1]} : vector<128x896xf32> to vector<16x896xf32>
    %cst_182 = arith.constant -2.000000e+00 : f32
    %433 = vector.broadcast %cst_182 : f32 to vector<16x896xf32>
    %434 = arith.mulf %433, %422 : vector<16x896xf32>
    %435 = arith.addf %432, %434 : vector<16x896xf32>
    %cst_183 = arith.constant -1.64872122 : f32
    %436 = vector.broadcast %cst_183 : f32 to vector<16x896xf32>
    %437 = arith.mulf %436, %431 : vector<16x896xf32>
    %438 = arith.addf %435, %437 : vector<16x896xf32>
    %cst_184 = arith.constant 1.000000e+00 : f32
    %439 = vector.broadcast %cst_184 : f32 to vector<16x896xf32>
    %440 = arith.cmpf oge, %438, %439 : vector<16x896xf32>
    %cst_185 = arith.constant 1.000000e+00 : f32
    %cst_186 = arith.constant 0.000000e+00 : f32
    %441 = vector.broadcast %cst_185 : f32 to vector<16x896xf32>
    %442 = vector.broadcast %cst_186 : f32 to vector<16x896xf32>
    %443 = arith.select %440, %441, %442 : vector<16x896xi1>, vector<16x896xf32>
    %444 = vector.extract_strided_slice %416 {offsets = [48, 0], sizes = [16, 896], strides = [1, 1]} : vector<128x896xf32> to vector<16x896xf32>
    %cst_187 = arith.constant -1.819592 : f32
    %445 = vector.broadcast %cst_187 : f32 to vector<16x896xf32>
    %446 = arith.mulf %445, %422 : vector<16x896xf32>
    %447 = arith.addf %444, %446 : vector<16x896xf32>
    %cst_188 = arith.constant -2.000000e+00 : f32
    %448 = vector.broadcast %cst_188 : f32 to vector<16x896xf32>
    %449 = arith.mulf %448, %431 : vector<16x896xf32>
    %450 = arith.addf %447, %449 : vector<16x896xf32>
    %cst_189 = arith.constant -1.64872122 : f32
    %451 = vector.broadcast %cst_189 : f32 to vector<16x896xf32>
    %452 = arith.mulf %451, %443 : vector<16x896xf32>
    %453 = arith.addf %450, %452 : vector<16x896xf32>
    %cst_190 = arith.constant 1.000000e+00 : f32
    %454 = vector.broadcast %cst_190 : f32 to vector<16x896xf32>
    %455 = arith.cmpf oge, %453, %454 : vector<16x896xf32>
    %cst_191 = arith.constant 1.000000e+00 : f32
    %cst_192 = arith.constant 0.000000e+00 : f32
    %456 = vector.broadcast %cst_191 : f32 to vector<16x896xf32>
    %457 = vector.broadcast %cst_192 : f32 to vector<16x896xf32>
    %458 = arith.select %455, %456, %457 : vector<16x896xi1>, vector<16x896xf32>
    %459 = vector.extract_strided_slice %416 {offsets = [64, 0], sizes = [16, 896], strides = [1, 1]} : vector<128x896xf32> to vector<16x896xf32>
    %cst_193 = arith.constant -1.4715178 : f32
    %460 = vector.broadcast %cst_193 : f32 to vector<16x896xf32>
    %461 = arith.mulf %460, %422 : vector<16x896xf32>
    %462 = arith.addf %459, %461 : vector<16x896xf32>
    %cst_194 = arith.constant -1.819592 : f32
    %463 = vector.broadcast %cst_194 : f32 to vector<16x896xf32>
    %464 = arith.mulf %463, %431 : vector<16x896xf32>
    %465 = arith.addf %462, %464 : vector<16x896xf32>
    %cst_195 = arith.constant -2.000000e+00 : f32
    %466 = vector.broadcast %cst_195 : f32 to vector<16x896xf32>
    %467 = arith.mulf %466, %443 : vector<16x896xf32>
    %468 = arith.addf %465, %467 : vector<16x896xf32>
    %cst_196 = arith.constant -1.64872122 : f32
    %469 = vector.broadcast %cst_196 : f32 to vector<16x896xf32>
    %470 = arith.mulf %469, %458 : vector<16x896xf32>
    %471 = arith.addf %468, %470 : vector<16x896xf32>
    %cst_197 = arith.constant 1.000000e+00 : f32
    %472 = vector.broadcast %cst_197 : f32 to vector<16x896xf32>
    %473 = arith.cmpf oge, %471, %472 : vector<16x896xf32>
    %cst_198 = arith.constant 1.000000e+00 : f32
    %cst_199 = arith.constant 0.000000e+00 : f32
    %474 = vector.broadcast %cst_198 : f32 to vector<16x896xf32>
    %475 = vector.broadcast %cst_199 : f32 to vector<16x896xf32>
    %476 = arith.select %473, %474, %475 : vector<16x896xi1>, vector<16x896xf32>
    %477 = vector.extract_strided_slice %416 {offsets = [80, 0], sizes = [16, 896], strides = [1, 1]} : vector<128x896xf32> to vector<16x896xf32>
    %cst_200 = arith.constant -1.11565077 : f32
    %478 = vector.broadcast %cst_200 : f32 to vector<16x896xf32>
    %479 = arith.mulf %478, %422 : vector<16x896xf32>
    %480 = arith.addf %477, %479 : vector<16x896xf32>
    %cst_201 = arith.constant -1.4715178 : f32
    %481 = vector.broadcast %cst_201 : f32 to vector<16x896xf32>
    %482 = arith.mulf %481, %431 : vector<16x896xf32>
    %483 = arith.addf %480, %482 : vector<16x896xf32>
    %cst_202 = arith.constant -1.819592 : f32
    %484 = vector.broadcast %cst_202 : f32 to vector<16x896xf32>
    %485 = arith.mulf %484, %443 : vector<16x896xf32>
    %486 = arith.addf %483, %485 : vector<16x896xf32>
    %cst_203 = arith.constant -2.000000e+00 : f32
    %487 = vector.broadcast %cst_203 : f32 to vector<16x896xf32>
    %488 = arith.mulf %487, %458 : vector<16x896xf32>
    %489 = arith.addf %486, %488 : vector<16x896xf32>
    %cst_204 = arith.constant -1.64872122 : f32
    %490 = vector.broadcast %cst_204 : f32 to vector<16x896xf32>
    %491 = arith.mulf %490, %476 : vector<16x896xf32>
    %492 = arith.addf %489, %491 : vector<16x896xf32>
    %cst_205 = arith.constant 1.000000e+00 : f32
    %493 = vector.broadcast %cst_205 : f32 to vector<16x896xf32>
    %494 = arith.cmpf oge, %492, %493 : vector<16x896xf32>
    %cst_206 = arith.constant 1.000000e+00 : f32
    %cst_207 = arith.constant 0.000000e+00 : f32
    %495 = vector.broadcast %cst_206 : f32 to vector<16x896xf32>
    %496 = vector.broadcast %cst_207 : f32 to vector<16x896xf32>
    %497 = arith.select %494, %495, %496 : vector<16x896xi1>, vector<16x896xf32>
    %498 = vector.extract_strided_slice %416 {offsets = [96, 0], sizes = [16, 896], strides = [1, 1]} : vector<128x896xf32> to vector<16x896xf32>
    %cst_208 = arith.constant -0.812011718 : f32
    %499 = vector.broadcast %cst_208 : f32 to vector<16x896xf32>
    %500 = arith.mulf %499, %422 : vector<16x896xf32>
    %501 = arith.addf %498, %500 : vector<16x896xf32>
    %cst_209 = arith.constant -1.11565077 : f32
    %502 = vector.broadcast %cst_209 : f32 to vector<16x896xf32>
    %503 = arith.mulf %502, %431 : vector<16x896xf32>
    %504 = arith.addf %501, %503 : vector<16x896xf32>
    %cst_210 = arith.constant -1.4715178 : f32
    %505 = vector.broadcast %cst_210 : f32 to vector<16x896xf32>
    %506 = arith.mulf %505, %443 : vector<16x896xf32>
    %507 = arith.addf %504, %506 : vector<16x896xf32>
    %cst_211 = arith.constant -1.819592 : f32
    %508 = vector.broadcast %cst_211 : f32 to vector<16x896xf32>
    %509 = arith.mulf %508, %458 : vector<16x896xf32>
    %510 = arith.addf %507, %509 : vector<16x896xf32>
    %cst_212 = arith.constant -2.000000e+00 : f32
    %511 = vector.broadcast %cst_212 : f32 to vector<16x896xf32>
    %512 = arith.mulf %511, %476 : vector<16x896xf32>
    %513 = arith.addf %510, %512 : vector<16x896xf32>
    %cst_213 = arith.constant -1.64872122 : f32
    %514 = vector.broadcast %cst_213 : f32 to vector<16x896xf32>
    %515 = arith.mulf %514, %497 : vector<16x896xf32>
    %516 = arith.addf %513, %515 : vector<16x896xf32>
    %cst_214 = arith.constant 1.000000e+00 : f32
    %517 = vector.broadcast %cst_214 : f32 to vector<16x896xf32>
    %518 = arith.cmpf oge, %516, %517 : vector<16x896xf32>
    %cst_215 = arith.constant 1.000000e+00 : f32
    %cst_216 = arith.constant 0.000000e+00 : f32
    %519 = vector.broadcast %cst_215 : f32 to vector<16x896xf32>
    %520 = vector.broadcast %cst_216 : f32 to vector<16x896xf32>
    %521 = arith.select %518, %519, %520 : vector<16x896xi1>, vector<16x896xf32>
    %522 = vector.extract_strided_slice %416 {offsets = [112, 0], sizes = [16, 896], strides = [1, 1]} : vector<128x896xf32> to vector<16x896xf32>
    %cst_217 = arith.constant -5.745950e-01 : f32
    %523 = vector.broadcast %cst_217 : f32 to vector<16x896xf32>
    %524 = arith.mulf %523, %422 : vector<16x896xf32>
    %525 = arith.addf %522, %524 : vector<16x896xf32>
    %cst_218 = arith.constant -0.812011718 : f32
    %526 = vector.broadcast %cst_218 : f32 to vector<16x896xf32>
    %527 = arith.mulf %526, %431 : vector<16x896xf32>
    %528 = arith.addf %525, %527 : vector<16x896xf32>
    %cst_219 = arith.constant -1.11565077 : f32
    %529 = vector.broadcast %cst_219 : f32 to vector<16x896xf32>
    %530 = arith.mulf %529, %443 : vector<16x896xf32>
    %531 = arith.addf %528, %530 : vector<16x896xf32>
    %cst_220 = arith.constant -1.4715178 : f32
    %532 = vector.broadcast %cst_220 : f32 to vector<16x896xf32>
    %533 = arith.mulf %532, %458 : vector<16x896xf32>
    %534 = arith.addf %531, %533 : vector<16x896xf32>
    %cst_221 = arith.constant -1.819592 : f32
    %535 = vector.broadcast %cst_221 : f32 to vector<16x896xf32>
    %536 = arith.mulf %535, %476 : vector<16x896xf32>
    %537 = arith.addf %534, %536 : vector<16x896xf32>
    %cst_222 = arith.constant -2.000000e+00 : f32
    %538 = vector.broadcast %cst_222 : f32 to vector<16x896xf32>
    %539 = arith.mulf %538, %497 : vector<16x896xf32>
    %540 = arith.addf %537, %539 : vector<16x896xf32>
    %cst_223 = arith.constant -1.64872122 : f32
    %541 = vector.broadcast %cst_223 : f32 to vector<16x896xf32>
    %542 = arith.mulf %541, %521 : vector<16x896xf32>
    %543 = arith.addf %540, %542 : vector<16x896xf32>
    %cst_224 = arith.constant 1.000000e+00 : f32
    %544 = vector.broadcast %cst_224 : f32 to vector<16x896xf32>
    %545 = arith.cmpf oge, %543, %544 : vector<16x896xf32>
    %cst_225 = arith.constant 1.000000e+00 : f32
    %cst_226 = arith.constant 0.000000e+00 : f32
    %546 = vector.broadcast %cst_225 : f32 to vector<16x896xf32>
    %547 = vector.broadcast %cst_226 : f32 to vector<16x896xf32>
    %548 = arith.select %545, %546, %547 : vector<16x896xi1>, vector<16x896xf32>
    %549 = tpu.concatenate %422, %431, %443, %458, %476, %497, %521, %548 in 0 : vector<16x896xf32>, vector<16x896xf32>, vector<16x896xf32>, vector<16x896xf32>, vector<16x896xf32>, vector<16x896xf32>, vector<16x896xf32>, vector<16x896xf32> -> vector<128x896xf32>
    %550 = arith.truncf %549 : vector<128x896xf32> to vector<128x896xbf16>
    %551 = vector.shape_cast %550 : vector<128x896xbf16> to vector<8x16x896xbf16>
    %c0_227 = arith.constant 0 : index
    %c0_228 = arith.constant 0 : index
    %c0_229 = arith.constant 0 : index
    %552 = vector.load %arg7[%c0_227, %c0_228, %c0_229] : memref<8x16x896xbf16, #tpu.memory_space<vmem>>, vector<8x16x896xbf16>
    tpu.vector_store %arg7[%c0_227, %c0_228, %c0_229], %551 {strides = array<i32>} : memref<8x16x896xbf16, #tpu.memory_space<vmem>>, vector<8x16x896xbf16>,
    return
  }
  func.func @transform_0(%arg0: i32) -> (i32, i32, i32) {
    %c0_i32 = arith.constant 0 : i32
    %c0_i32_0 = arith.constant 0 : i32
    %c0_i32_1 = arith.constant 0 : i32
    return %c0_i32, %arg0, %c0_i32_0 : i32, i32, i32
  }
  func.func @transform_1(%arg0: i32) -> (i32, i32) {
    %c0_i32 = arith.constant 0 : i32
    %c0_i32_0 = arith.constant 0 : i32
    %c0_i32_1 = arith.constant 0 : i32
    return %c0_i32, %c0_i32_0 : i32, i32
  }
  func.func @transform_2(%arg0: i32) -> (i32, i32) {
    %c0_i32 = arith.constant 0 : i32
    %c0_i32_0 = arith.constant 0 : i32
    %c0_i32_1 = arith.constant 0 : i32
    return %c0_i32, %c0_i32_0 : i32, i32
  }
  func.func @transform_3(%arg0: i32) -> (i32, i32) {
    %c0_i32 = arith.constant 0 : i32
    %c0_i32_0 = arith.constant 0 : i32
    %c0_i32_1 = arith.constant 0 : i32
    return %c0_i32, %c0_i32_0 : i32, i32
  }
  func.func @transform_4(%arg0: i32) -> (i32, i32) {
    %c0_i32 = arith.constant 0 : i32
    %c0_i32_0 = arith.constant 0 : i32
    %c0_i32_1 = arith.constant 0 : i32
    return %c0_i32, %c0_i32_0 : i32, i32
  }
  func.func @transform_5(%arg0: i32) -> (i32, i32) {
    %c0_i32 = arith.constant 0 : i32
    %c0_i32_0 = arith.constant 0 : i32
    %c0_i32_1 = arith.constant 0 : i32
    return %c0_i32, %c0_i32_0 : i32, i32
  }
  func.func @transform_6(%arg0: i32) -> (i32, i32, i32) {
    %c0_i32 = arith.constant 0 : i32
    %c0_i32_0 = arith.constant 0 : i32
    %c0_i32_1 = arith.constant 0 : i32
    return %c0_i32, %arg0, %c0_i32_0 : i32, i32, i32
  }
}

</mosaic_0001>

<llo_original>
// kernel: simple_autoencoder_forward.1
$region0: #{simple_autoencoder_forward.1}
  #allocation0 [shape = 'u32[]', space=smem, size = 0x4, offset = 0x4, fixed_abs, tag = 'smem constant byte address 0x4 - core index']
  #allocation1 [shape = 'u32[144,128]{1,0:T(1,128)}', space=vmem, size = 0x12000, scoped, tag = 'internal scratch']
  %s0 = inlined_call_operand.vmem [shape: bf16[8,32,896], index: 0, kind: input, shape index: {}]
  %s1 = inlined_call_operand.vmem [shape: f32[128,128], index: 1, kind: input, shape index: {}]
  %s2 = inlined_call_operand.vmem [shape: bf16[896,256], index: 2, kind: input, shape index: {}]
  %s3 = inlined_call_operand.vmem [shape: bf16[256,128], index: 3, kind: input, shape index: {}]
  %s4 = inlined_call_operand.vmem [shape: bf16[128,256], index: 4, kind: input, shape index: {}]
  %s5 = inlined_call_operand.vmem [shape: bf16[256,896], index: 5, kind: input, shape index: {}]
  %s6 = inlined_call_operand.vmem [shape: bf16[8,32,896], index: 6, kind: output, shape index: {}]
  %s7 = sld [smem:[#allocation0]]
  $region105: #{simple_autoencoder_forward.1} parent=0
    _
  %s9 = ssub.s32 1, %s7
  %s10 = scalar_select 0, %s9, %s7
  $region1: #{simple_autoencoder_forward.1} parent=0
    #allocation2 [shape = 'u8[458752]{0}', space=vmem, size = 0x70000, scoped, tag = 'input window, operand 0']
    #allocation3 [shape = 'u8[458752]{0}', space=vmem, size = 0x70000, scoped, tag = 'output window, operand 0']
    loop: start=0, step=1, limit=4
    $region2: #{simple_autoencoder_forward.1} parent=1 // loop_pre_header
      _
    $region3: #{simple_autoencoder_forward.1} parent=1 // loop_header
      %s12 = sphi 0, %s16
      %p13 = scmp.ge.s32.totalorder %s12, 4
      %s22 = sphi 0, %s24
      %s25 = sphi 0, %s22
      %s26 = sphi 0, %s25
      %s42 = sphi 0, %s26
      %s46 = sphi 0, %s46
      %s48 = sphi 0, %s46
      %s49 = sphi 0, %s48
      %s63 = sphi 0, %s49
      %s67 = sphi 0, %s67
      %s69 = sphi 0, %s67
      %s70 = sphi 0, %s69
      %s84 = sphi 0, %s70
      %s88 = sphi 0, %s88
      %s90 = sphi 0, %s88
      %s91 = sphi 0, %s90
      %s105 = sphi 0, %s91
      %s109 = sphi 0, %s109
      %s111 = sphi 0, %s109
      %s112 = sphi 0, %s111
      %s126 = sphi 0, %s112
      %s130 = sphi 0, %s130
      %s132 = sphi 0, %s130
      %s133 = sphi 0, %s132
      %s147 = sphi 0, %s133
      %s153 = sphi 0, %s155
      %s156 = sphi 0, %s153
      %s157 = sphi 0, %s156
      %s173 = sphi 0, %s157
    $region4: #{simple_autoencoder_forward.1} parent=1 // loop_header_branch
      %15 = sbr.rel (%p13) target = $region8
    $region5: #{simple_autoencoder_forward.1} parent=1 // loop_body
      %s17 = ssub.s32 %s12, 1
      %s18 = ssub.s32 %s12, 2
      %s19 = sadd.s32 %s12, 1
      %s20 = ssub.s32 %s12, %s19
      %p21 = scmp.eq.s32.totalorder %s20, 0
      %s23 = sadd.s32 %s22, 1
      %s24 = scalar_select %p21, %s22, %s23
      %p27 = pneg %p21
      %p28 = scmp.eq.s32.totalorder %s12, 1
      %p29 = por %p27, %p28
      %p30 = scmp.ne.s32.totalorder %s22, %s25
      %p31 = scmp.eq.s32.totalorder %s12, 0
      %p32 = por %p30, %p31
      %p33 = scmp.ne.s32.totalorder %s22, %s25
      %p34 = scmp.eq.s32.totalorder %s17, 1
      %p35 = por %p33, %p34
      %p36 = scmp.ne.s32.totalorder %s25, %s26
      %p37 = scmp.eq.s32.totalorder %s17, 0
      %p38 = por %p36, %p37
      %p39 = scmp.ne.s32.totalorder %s25, %s26
      %p40 = scmp.eq.s32.totalorder %s18, 1
      %p41 = por %p39, %p40
      %p43 = scmp.ne.s32.totalorder %s26, %s42
      %p44 = scmp.eq.s32.totalorder %s18, 0
      %p45 = por %p43, %p44
      %s47 = sadd.s32 %s46, 1
      %p50 = scmp.eq.s32.totalorder %s12, 1
      %p51 = scmp.ne.s32.totalorder %s46, %s48
      %p52 = scmp.eq.s32.totalorder %s12, 0
      %p53 = por %p51, %p52
      %p54 = scmp.ne.s32.totalorder %s46, %s48
      %p55 = scmp.eq.s32.totalorder %s17, 1
      %p56 = por %p54, %p55
      %p57 = scmp.ne.s32.totalorder %s48, %s49
      %p58 = scmp.eq.s32.totalorder %s17, 0
      %p59 = por %p57, %p58
      %p60 = scmp.ne.s32.totalorder %s48, %s49
      %p61 = scmp.eq.s32.totalorder %s18, 1
      %p62 = por %p60, %p61
      %p64 = scmp.ne.s32.totalorder %s49, %s63
      %p65 = scmp.eq.s32.totalorder %s18, 0
      %p66 = por %p64, %p65
      %s68 = sadd.s32 %s67, 1
      %p71 = scmp.eq.s32.totalorder %s12, 1
      %p72 = scmp.ne.s32.totalorder %s67, %s69
      %p73 = scmp.eq.s32.totalorder %s12, 0
      %p74 = por %p72, %p73
      %p75 = scmp.ne.s32.totalorder %s67, %s69
      %p76 = scmp.eq.s32.totalorder %s17, 1
      %p77 = por %p75, %p76
      %p78 = scmp.ne.s32.totalorder %s69, %s70
      %p79 = scmp.eq.s32.totalorder %s17, 0
      %p80 = por %p78, %p79
      %p81 = scmp.ne.s32.totalorder %s69, %s70
      %p82 = scmp.eq.s32.totalorder %s18, 1
      %p83 = por %p81, %p82
      %p85 = scmp.ne.s32.totalorder %s70, %s84
      %p86 = scmp.eq.s32.totalorder %s18, 0
      %p87 = por %p85, %p86
      %s89 = sadd.s32 %s88, 1
      %p92 = scmp.eq.s32.totalorder %s12, 1
      %p93 = scmp.ne.s32.totalorder %s88, %s90
      %p94 = scmp.eq.s32.totalorder %s12, 0
      %p95 = por %p93, %p94
      %p96 = scmp.ne.s32.totalorder %s88, %s90
      %p97 = scmp.eq.s32.totalorder %s17, 1
      %p98 = por %p96, %p97
      %p99 = scmp.ne.s32.totalorder %s90, %s91
      %p100 = scmp.eq.s32.totalorder %s17, 0
      %p101 = por %p99, %p100
      %p102 = scmp.ne.s32.totalorder %s90, %s91
      %p103 = scmp.eq.s32.totalorder %s18, 1
      %p104 = por %p102, %p103
      %p106 = scmp.ne.s32.totalorder %s91, %s105
      %p107 = scmp.eq.s32.totalorder %s18, 0
      %p108 = por %p106, %p107
      %s110 = sadd.s32 %s109, 1
      %p113 = scmp.eq.s32.totalorder %s12, 1
      %p114 = scmp.ne.s32.totalorder %s109, %s111
      %p115 = scmp.eq.s32.totalorder %s12, 0
      %p116 = por %p114, %p115
      %p117 = scmp.ne.s32.totalorder %s109, %s111
      %p118 = scmp.eq.s32.totalorder %s17, 1
      %p119 = por %p117, %p118
      %p120 = scmp.ne.s32.totalorder %s111, %s112
      %p121 = scmp.eq.s32.totalorder %s17, 0
      %p122 = por %p120, %p121
      %p123 = scmp.ne.s32.totalorder %s111, %s112
      %p124 = scmp.eq.s32.totalorder %s18, 1
      %p125 = por %p123, %p124
      %p127 = scmp.ne.s32.totalorder %s112, %s126
      %p128 = scmp.eq.s32.totalorder %s18, 0
      %p129 = por %p127, %p128
      %s131 = sadd.s32 %s130, 1
      %p134 = scmp.eq.s32.totalorder %s12, 1
      %p135 = scmp.ne.s32.totalorder %s130, %s132
      %p136 = scmp.eq.s32.totalorder %s12, 0
      %p137 = por %p135, %p136
      %p138 = scmp.ne.s32.totalorder %s130, %s132
      %p139 = scmp.eq.s32.totalorder %s17, 1
      %p140 = por %p138, %p139
      %p141 = scmp.ne.s32.totalorder %s132, %s133
      %p142 = scmp.eq.s32.totalorder %s17, 0
      %p143 = por %p141, %p142
      %p144 = scmp.ne.s32.totalorder %s132, %s133
      %p145 = scmp.eq.s32.totalorder %s18, 1
      %p146 = por %p144, %p145
      %p148 = scmp.ne.s32.totalorder %s133, %s147
      %p149 = scmp.eq.s32.totalorder %s18, 0
      %p150 = por %p148, %p149
      %s151 = ssub.s32 %s12, %s19
      %p152 = scmp.eq.s32.totalorder %s151, 0
      %s154 = sadd.s32 %s153, 1
      %s155 = scalar_select %p152, %s153, %s154
      %p158 = pneg %p152
      %p159 = scmp.eq.s32.totalorder %s12, 1
      %p160 = por %p158, %p159
      %p161 = scmp.ne.s32.totalorder %s153, %s156
      %p162 = scmp.eq.s32.totalorder %s12, 0
      %p163 = por %p161, %p162
      %p164 = scmp.ne.s32.totalorder %s153, %s156
      %p165 = scmp.eq.s32.totalorder %s17, 1
      %p166 = por %p164, %p165
      %p167 = scmp.ne.s32.totalorder %s156, %s157
      %p168 = scmp.eq.s32.totalorder %s17, 0
      %p169 = por %p167, %p168
      %p170 = scmp.ne.s32.totalorder %s156, %s157
      %p171 = scmp.eq.s32.totalorder %s18, 1
      %p172 = por %p170, %p171
      %p174 = scmp.ne.s32.totalorder %s157, %s173
      %p175 = scmp.eq.s32.totalorder %s18, 0
      %p176 = por %p174, %p175
      %p177 = scmp.le.s32.totalorder 1, %s12
      %p178 = scmp.lt.s32.totalorder %s12, 3
      %p179 = pnand %p177, %p178
      %p180 = pneg %p179
      // Predicated region
      $region9: #{simple_autoencoder_forward.1} parent=5 // pred_check
        _
      $region10: #{simple_autoencoder_forward.1} parent=5 // pred_check_branch
        %182 = sbr.rel (%p179) target = $region12
      $region11: #{simple_autoencoder_forward.1} parent=5 // pred_region
        %s183 = ssub.s32 %s12, 1
        // Predicated region
        $region13: #{simple_autoencoder_forward.1} parent=11 // pred_check
          %p184 = pneg %p59
        $region14: #{simple_autoencoder_forward.1} parent=11 // pred_check_branch
          %186 = sbr.rel (%p184) target = $region16
        $region15: #{simple_autoencoder_forward.1} parent=11 // pred_region
          _
        $region16: #{simple_autoencoder_forward.1} parent=11 // pred_fallthru
          _
        // Predicated region
        $region17: #{simple_autoencoder_forward.1} parent=11 // pred_check
          %p187 = pneg %p80
        $region18: #{simple_autoencoder_forward.1} parent=11 // pred_check_branch
          %189 = sbr.rel (%p187) target = $region20
        $region19: #{simple_autoencoder_forward.1} parent=11 // pred_region
          _
        $region20: #{simple_autoencoder_forward.1} parent=11 // pred_fallthru
          _
        // Predicated region
        $region21: #{simple_autoencoder_forward.1} parent=11 // pred_check
          %p190 = pneg %p101
        $region22: #{simple_autoencoder_forward.1} parent=11 // pred_check_branch
          %192 = sbr.rel (%p190) target = $region24
        $region23: #{simple_autoencoder_forward.1} parent=11 // pred_region
          _
        $region24: #{simple_autoencoder_forward.1} parent=11 // pred_fallthru
          _
        // Predicated region
        $region25: #{simple_autoencoder_forward.1} parent=11 // pred_check
          %p193 = pneg %p122
        $region26: #{simple_autoencoder_forward.1} parent=11 // pred_check_branch
          %195 = sbr.rel (%p193) target = $region28
        $region27: #{simple_autoencoder_forward.1} parent=11 // pred_region
          _
        $region28: #{simple_autoencoder_forward.1} parent=11 // pred_fallthru
          _
        // Predicated region
        $region29: #{simple_autoencoder_forward.1} parent=11 // pred_check
          %p196 = pneg %p143
        $region30: #{simple_autoencoder_forward.1} parent=11 // pred_check_branch
          %198 = sbr.rel (%p196) target = $region32
        $region31: #{simple_autoencoder_forward.1} parent=11 // pred_region
          _
        $region32: #{simple_autoencoder_forward.1} parent=11 // pred_fallthru
          _
      $region12: #{simple_autoencoder_forward.1} parent=5 // pred_fallthru
        _
      %p199 = scmp.lt.s32.totalorder %s12, 2
      // Predicated region
      $region33: #{simple_autoencoder_forward.1} parent=5 // pred_check
        %p200 = pneg %p199
      $region34: #{simple_autoencoder_forward.1} parent=5 // pred_check_branch
        %202 = sbr.rel (%p200) target = $region36
      $region35: #{simple_autoencoder_forward.1} parent=5 // pred_region
        // Predicated region
        $region37: #{simple_autoencoder_forward.1} parent=35 // pred_check
          %p203 = pneg %p32
        $region38: #{simple_autoencoder_forward.1} parent=35 // pred_check_branch
          %205 = sbr.rel (%p203) target = $region40
        $region39: #{simple_autoencoder_forward.1} parent=35 // pred_region
          %s206 = sand.u32 %s22, 1
          %s207 = sand.u32 %s22, 1
          %s208 = smul.addr %s207, 448
          %s209 = scalar_lea.vmem [#allocation2], %s208
          %s210 = smul.u32 2, %s12
          %s211 = smul.addr %s210, 7
          %s212 = smul.addr %s211, 4
          %s213 = scalar_lea.vmem %s0, %s212
          // Predicated region
          $region41: #{simple_autoencoder_forward.1} parent=39 // pred_check
            _
          $region42: #{simple_autoencoder_forward.1} parent=39 // pred_check_branch
            %215 = sbr.rel (0) target = $region44
          $region43: #{simple_autoencoder_forward.1} parent=39 // pred_region
            // Predicated region
            $region45: #{simple_autoencoder_forward.1} parent=43 // pred_check
              _
            $region46: #{simple_autoencoder_forward.1} parent=43 // pred_check_branch
              %217 = sbr.rel (0) target = $region48
            $region47: #{simple_autoencoder_forward.1} parent=43 // pred_region
              %s218 = scalar_lea.vmem %s213, 24
              %s219 = scalar_lea.vmem %s209, 24 [#allocation2]
              loop: start=0, step=1, limit=1
              $region49: #{simple_autoencoder_forward.1} parent=47 // loop_pre_header
                _
              $region50: #{simple_autoencoder_forward.1} parent=47 // loop_header
                %s221 = sphi 0, %s225
                %p222 = scmp.ge.s32.totalorder %s221, 1
                %s226 = sphi %s213, %s213
                %s227 = sphi %s209, %s209
              $region51: #{simple_autoencoder_forward.1} parent=47 // loop_header_branch
                %224 = sbr.rel (%p222) target = $region55
              $region52: #{simple_autoencoder_forward.1} parent=47 // loop_body
                %v228 = vld [vmem:[%s226] sm:$0xff]
                %229 = vst [vmem:[%s227] sm:$0xff] %v228
                %v230 = vld [vmem:[%s226 + $0x8] sm:$0xff]
                %231 = vst [vmem:[%s227 + $0x8] sm:$0xff] %v230
                %v232 = vld [vmem:[%s226 + $0x10] sm:$0xff]
                %233 = vst [vmem:[%s227 + $0x10] sm:$0xff] %v232
                %v234 = vld [vmem:[%s226 + $0x1c] sm:$0xff]
                %235 = vst [vmem:[%s227 + $0x1c] sm:$0xff] %v234
                %v236 = vld [vmem:[%s226 + $0x24] sm:$0xff]
                %237 = vst [vmem:[%s227 + $0x24] sm:$0xff] %v236
                %v238 = vld [vmem:[%s226 + $0x2c] sm:$0xff]
                %239 = vst [vmem:[%s227 + $0x2c] sm:$0xff] %v238
                %v240 = vld [vmem:[%s226 + $0x70] sm:$0xff]
                %241 = vst [vmem:[%s227 + $0x38] sm:$0xff] %v240
                %v242 = vld [vmem:[%s226 + $0x78] sm:$0xff]
                %243 = vst [vmem:[%s227 + $0x40] sm:$0xff] %v242
                %v244 = vld [vmem:[%s226 + $0x80] sm:$0xff]
                %245 = vst [vmem:[%s227 + $0x48] sm:$0xff] %v244
                %v246 = vld [vmem:[%s226 + $0x8c] sm:$0xff]
                %247 = vst [vmem:[%s227 + $0x54] sm:$0xff] %v246
                %v248 = vld [vmem:[%s226 + $0x94] sm:$0xff]
                %249 = vst [vmem:[%s227 + $0x5c] sm:$0xff] %v248
                %v250 = vld [vmem:[%s226 + $0x9c] sm:$0xff]
                %251 = vst [vmem:[%s227 + $0x64] sm:$0xff] %v250
                %v252 = vld [vmem:[%s226 + $0xe0] sm:$0xff]
                %253 = vst [vmem:[%s227 + $0x70] sm:$0xff] %v252
                %v254 = vld [vmem:[%s226 + $0xe8] sm:$0xff]
                %255 = vst [vmem:[%s227 + $0x78] sm:$0xff] %v254
                %v256 = vld [vmem:[%s226 + $0xf0] sm:$0xff]
                %257 = vst [vmem:[%s227 + $0x80] sm:$0xff] %v256
                %v258 = vld [vmem:[%s226 + $0xfc] sm:$0xff]
                %259 = vst [vmem:[%s227 + $0x8c] sm:$0xff] %v258
                %v260 = vld [vmem:[%s226 + $0x104] sm:$0xff]
                %261 = vst [vmem:[%s227 + $0x94] sm:$0xff] %v260
                %v262 = vld [vmem:[%s226 + $0x10c] sm:$0xff]
                %263 = vst [vmem:[%s227 + $0x9c] sm:$0xff] %v262
                %v264 = vld [vmem:[%s226 + $0x150] sm:$0xff]
                %265 = vst [vmem:[%s227 + $0xa8] sm:$0xff] %v264
                %v266 = vld [vmem:[%s226 + $0x158] sm:$0xff]
                %267 = vst [vmem:[%s227 + $0xb0] sm:$0xff] %v266
                %v268 = vld [vmem:[%s226 + $0x160] sm:$0xff]
                %269 = vst [vmem:[%s227 + $0xb8] sm:$0xff] %v268
                %v270 = vld [vmem:[%s226 + $0x16c] sm:$0xff]
                %271 = vst [vmem:[%s227 + $0xc4] sm:$0xff] %v270
                %v272 = vld [vmem:[%s226 + $0x174] sm:$0xff]
                %273 = vst [vmem:[%s227 + $0xcc] sm:$0xff] %v272
                %v274 = vld [vmem:[%s226 + $0x17c] sm:$0xff]
                %275 = vst [vmem:[%s227 + $0xd4] sm:$0xff] %v274
                %v276 = vld [vmem:[%s226 + $0x1c0] sm:$0xff]
                %277 = vst [vmem:[%s227 + $0xe0] sm:$0xff] %v276
                %v278 = vld [vmem:[%s226 + $0x1c8] sm:$0xff]
                %279 = vst [vmem:[%s227 + $0xe8] sm:$0xff] %v278
                %v280 = vld [vmem:[%s226 + $0x1d0] sm:$0xff]
                %281 = vst [vmem:[%s227 + $0xf0] sm:$0xff] %v280
                %v282 = vld [vmem:[%s226 + $0x1dc] sm:$0xff]
                %283 = vst [vmem:[%s227 + $0xfc] sm:$0xff] %v282
                %v284 = vld [vmem:[%s226 + $0x1e4] sm:$0xff]
                %285 = vst [vmem:[%s227 + $0x104] sm:$0xff] %v284
                %v286 = vld [vmem:[%s226 + $0x1ec] sm:$0xff]
                %287 = vst [vmem:[%s227 + $0x10c] sm:$0xff] %v286
                %v288 = vld [vmem:[%s226 + $0x230] sm:$0xff]
                %289 = vst [vmem:[%s227 + $0x118] sm:$0xff] %v288
                %v290 = vld [vmem:[%s226 + $0x238] sm:$0xff]
                %291 = vst [vmem:[%s227 + $0x120] sm:$0xff] %v290
                %v292 = vld [vmem:[%s226 + $0x240] sm:$0xff]
                %293 = vst [vmem:[%s227 + $0x128] sm:$0xff] %v292
                %v294 = vld [vmem:[%s226 + $0x24c] sm:$0xff]
                %295 = vst [vmem:[%s227 + $0x134] sm:$0xff] %v294
                %v296 = vld [vmem:[%s226 + $0x254] sm:$0xff]
                %297 = vst [vmem:[%s227 + $0x13c] sm:$0xff] %v296
                %v298 = vld [vmem:[%s226 + $0x25c] sm:$0xff]
                %299 = vst [vmem:[%s227 + $0x144] sm:$0xff] %v298
                %v300 = vld [vmem:[%s226 + $0x2a0] sm:$0xff]
                %301 = vst [vmem:[%s227 + $0x150] sm:$0xff] %v300
                %v302 = vld [vmem:[%s226 + $0x2a8] sm:$0xff]
                %303 = vst [vmem:[%s227 + $0x158] sm:$0xff] %v302
                %v304 = vld [vmem:[%s226 + $0x2b0] sm:$0xff]
                %305 = vst [vmem:[%s227 + $0x160] sm:$0xff] %v304
                %v306 = vld [vmem:[%s226 + $0x2bc] sm:$0xff]
                %307 = vst [vmem:[%s227 + $0x16c] sm:$0xff] %v306
                %v308 = vld [vmem:[%s226 + $0x2c4] sm:$0xff]
                %309 = vst [vmem:[%s227 + $0x174] sm:$0xff] %v308
                %v310 = vld [vmem:[%s226 + $0x2cc] sm:$0xff]
                %311 = vst [vmem:[%s227 + $0x17c] sm:$0xff] %v310
                %v312 = vld [vmem:[%s226 + $0x310] sm:$0xff]
                %313 = vst [vmem:[%s227 + $0x188] sm:$0xff] %v312
                %v314 = vld [vmem:[%s226 + $0x318] sm:$0xff]
                %315 = vst [vmem:[%s227 + $0x190] sm:$0xff] %v314
                %v316 = vld [vmem:[%s226 + $0x320] sm:$0xff]
                %317 = vst [vmem:[%s227 + $0x198] sm:$0xff] %v316
                %v318 = vld [vmem:[%s226 + $0x32c] sm:$0xff]
                %319 = vst [vmem:[%s227 + $0x1a4] sm:$0xff] %v318
                %v320 = vld [vmem:[%s226 + $0x334] sm:$0xff]
                %321 = vst [vmem:[%s227 + $0x1ac] sm:$0xff] %v320
                %v322 = vld [vmem:[%s226 + $0x33c] sm:$0xff]
                %323 = vst [vmem:[%s227 + $0x1b4] sm:$0xff] %v322
              $region53: #{simple_autoencoder_forward.1} parent=47 // loop_footer
                %s225 = sadd.s32 1, %s221
              $region54: #{simple_autoencoder_forward.1} parent=47 // loop_footer_branch
                %220 = sbr.rel target = $region50
              $region55: #{simple_autoencoder_forward.1} parent=47 // loop_exit
                _
              %s325 = ssub.s32 16, 1
              loop: start=0, step=1, limit=1
              $region56: #{simple_autoencoder_forward.1} parent=47 // loop_pre_header
                _
              $region57: #{simple_autoencoder_forward.1} parent=47 // loop_header
                %s327 = sphi 0, %s331
                %p328 = scmp.ge.s32.totalorder %s327, 1
                %s332 = sphi %s218, %s218
                %s333 = sphi %s219, %s219
              $region58: #{simple_autoencoder_forward.1} parent=47 // loop_header_branch
                %330 = sbr.rel (%p328) target = $region62
              $region59: #{simple_autoencoder_forward.1} parent=47 // loop_body
                %v334 = vld [vmem:[%s332] sm:%s325]
                %335 = vst [vmem:[%s333] sm:%s325] %v334
                %v336 = vld [vmem:[%s332 + $0x1c] sm:%s325]
                %337 = vst [vmem:[%s333 + $0x1c] sm:%s325] %v336
                %v338 = vld [vmem:[%s332 + $0x70] sm:%s325]
                %339 = vst [vmem:[%s333 + $0x38] sm:%s325] %v338
                %v340 = vld [vmem:[%s332 + $0x8c] sm:%s325]
                %341 = vst [vmem:[%s333 + $0x54] sm:%s325] %v340
                %v342 = vld [vmem:[%s332 + $0xe0] sm:%s325]
                %343 = vst [vmem:[%s333 + $0x70] sm:%s325] %v342
                %v344 = vld [vmem:[%s332 + $0xfc] sm:%s325]
                %345 = vst [vmem:[%s333 + $0x8c] sm:%s325] %v344
                %v346 = vld [vmem:[%s332 + $0x150] sm:%s325]
                %347 = vst [vmem:[%s333 + $0xa8] sm:%s325] %v346
                %v348 = vld [vmem:[%s332 + $0x16c] sm:%s325]
                %349 = vst [vmem:[%s333 + $0xc4] sm:%s325] %v348
                %v350 = vld [vmem:[%s332 + $0x1c0] sm:%s325]
                %351 = vst [vmem:[%s333 + $0xe0] sm:%s325] %v350
                %v352 = vld [vmem:[%s332 + $0x1dc] sm:%s325]
                %353 = vst [vmem:[%s333 + $0xfc] sm:%s325] %v352
                %v354 = vld [vmem:[%s332 + $0x230] sm:%s325]
                %355 = vst [vmem:[%s333 + $0x118] sm:%s325] %v354
                %v356 = vld [vmem:[%s332 + $0x24c] sm:%s325]
                %357 = vst [vmem:[%s333 + $0x134] sm:%s325] %v356
                %v358 = vld [vmem:[%s332 + $0x2a0] sm:%s325]
                %359 = vst [vmem:[%s333 + $0x150] sm:%s325] %v358
                %v360 = vld [vmem:[%s332 + $0x2bc] sm:%s325]
                %361 = vst [vmem:[%s333 + $0x16c] sm:%s325] %v360
                %v362 = vld [vmem:[%s332 + $0x310] sm:%s325]
                %363 = vst [vmem:[%s333 + $0x188] sm:%s325] %v362
                %v364 = vld [vmem:[%s332 + $0x32c] sm:%s325]
                %365 = vst [vmem:[%s333 + $0x1a4] sm:%s325] %v364
              $region60: #{simple_autoencoder_forward.1} parent=47 // loop_footer
                %s331 = sadd.s32 1, %s327
              $region61: #{simple_autoencoder_forward.1} parent=47 // loop_footer_branch
                %326 = sbr.rel target = $region57
              $region62: #{simple_autoencoder_forward.1} parent=47 // loop_exit
                _
            $region48: #{simple_autoencoder_forward.1} parent=43 // pred_fallthru
              _
          $region44: #{simple_autoencoder_forward.1} parent=39 // pred_fallthru
            _
          %366 = vnop
        $region40: #{simple_autoencoder_forward.1} parent=35 // pred_fallthru
          _
      $region36: #{simple_autoencoder_forward.1} parent=5 // pred_fallthru
        _
      %p367 = scmp.le.s32.totalorder 1, %s12
      %p368 = scmp.lt.s32.totalorder %s12, 3
      %p369 = pnand %p367, %p368
      %p370 = pneg %p369
      // Predicated region
      $region63: #{simple_autoencoder_forward.1} parent=5 // pred_check
        _
      $region64: #{simple_autoencoder_forward.1} parent=5 // pred_check_branch
        %372 = sbr.rel (%p369) target = $region66
      $region65: #{simple_autoencoder_forward.1} parent=5 // pred_region
        %s373 = ssub.s32 %s12, 1
        %s374 = sand.u32 %s25, 1
        %s375 = sand.u32 %s25, 1
        %s376 = smul.addr %s375, 448
        %s377 = scalar_lea.vmem [#allocation2], %s376
        // Predicated region
        $region67: #{simple_autoencoder_forward.1} parent=65 // pred_check
          %p378 = pneg %p38
        $region68: #{simple_autoencoder_forward.1} parent=65 // pred_check_branch
          %380 = sbr.rel (%p378) target = $region70
        $region69: #{simple_autoencoder_forward.1} parent=65 // pred_region
          _
        $region70: #{simple_autoencoder_forward.1} parent=65 // pred_fallthru
          _
        %s381 = sand.u32 %s25, 1
        %s382 = sand.u32 %s25, 1
        %s383 = smul.addr %s382, 448
        %s384 = scalar_lea.vmem [#allocation2], %s383
        %p385 = pneg %p38
        %p386 = pneg %p35
        %p387 = pneg %p59
        %p388 = pneg %p56
        %p389 = pneg %p80
        %p390 = pneg %p77
        %p391 = pneg %p101
        %p392 = pneg %p98
        %p393 = pneg %p122
        %p394 = pneg %p119
        %p395 = pneg %p143
        %p396 = pneg %p140
        %p397 = pneg %p169
        %p398 = pneg %p166
        %s399 = sand.u32 %s156, 1
        %s400 = sand.u32 %s156, 1
        %s401 = smul.addr %s400, 448
        %s402 = scalar_lea.vmem [#allocation3], %s401
        %s403 = smul.u32 2, %s17
        %s404 = smul.u32 2, %s17
        %v406 = vld [vmem:[%s1] sm:$0xff]
        %v407 = vld [vmem:[%s1 + $0x8] sm:$0xff]
        %v408 = vld [vmem:[%s1 + $0x10] sm:$0xff]
        %v409 = vld [vmem:[%s1 + $0x18] sm:$0xff]
        %v410 = vld [vmem:[%s1 + $0x20] sm:$0xff]
        %v411 = vld [vmem:[%s1 + $0x28] sm:$0xff]
        %v412 = vld [vmem:[%s1 + $0x30] sm:$0xff]
        %v413 = vld [vmem:[%s1 + $0x38] sm:$0xff]
        %v414 = vld [vmem:[%s1 + $0x40] sm:$0xff]
        %v415 = vld [vmem:[%s1 + $0x48] sm:$0xff]
        %v416 = vld [vmem:[%s1 + $0x50] sm:$0xff]
        %v417 = vld [vmem:[%s1 + $0x58] sm:$0xff]
        %v418 = vld [vmem:[%s1 + $0x60] sm:$0xff]
        %v419 = vld [vmem:[%s1 + $0x68] sm:$0xff]
        %v420 = vld [vmem:[%s1 + $0x70] sm:$0xff]
        %v421 = vld [vmem:[%s1 + $0x78] sm:$0xff]
        %v422 = vld [vmem:[%s377] sm:$0xff]
        %v423 = vld [vmem:[%s377 + $0x8] sm:$0xff]
        %v424 = vld [vmem:[%s377 + $0x10] sm:$0xff]
        %v425 = vld [vmem:[%s377 + $0x18] sm:$0xf]
        %v426 = vld [vmem:[%s377 + $0x1c] sm:$0xff]
        %v427 = vld [vmem:[%s377 + $0x24] sm:$0xff]
        %v428 = vld [vmem:[%s377 + $0x2c] sm:$0xff]
        %v429 = vld [vmem:[%s377 + $0x34] sm:$0xf]
        %v430 = vld [vmem:[%s377 + $0x38] sm:$0xff]
        %v431 = vld [vmem:[%s377 + $0x40] sm:$0xff]
        %v432 = vld [vmem:[%s377 + $0x48] sm:$0xff]
        %v433 = vld [vmem:[%s377 + $0x50] sm:$0xf]
        %v434 = vld [vmem:[%s377 + $0x54] sm:$0xff]
        %v435 = vld [vmem:[%s377 + $0x5c] sm:$0xff]
        %v436 = vld [vmem:[%s377 + $0x64] sm:$0xff]
        %v437 = vld [vmem:[%s377 + $0x6c] sm:$0xf]
        %v438 = vld [vmem:[%s377 + $0x70] sm:$0xff]
        %v439 = vld [vmem:[%s377 + $0x78] sm:$0xff]
        %v440 = vld [vmem:[%s377 + $0x80] sm:$0xff]
        %v441 = vld [vmem:[%s377 + $0x88] sm:$0xf]
        %v442 = vld [vmem:[%s377 + $0x8c] sm:$0xff]
        %v443 = vld [vmem:[%s377 + $0x94] sm:$0xff]
        %v444 = vld [vmem:[%s377 + $0x9c] sm:$0xff]
        %v445 = vld [vmem:[%s377 + $0xa4] sm:$0xf]
        %v446 = vld [vmem:[%s377 + $0xa8] sm:$0xff]
        %v447 = vld [vmem:[%s377 + $0xb0] sm:$0xff]
        %v448 = vld [vmem:[%s377 + $0xb8] sm:$0xff]
        %v449 = vld [vmem:[%s377 + $0xc0] sm:$0xf]
        %v450 = vld [vmem:[%s377 + $0xc4] sm:$0xff]
        %v451 = vld [vmem:[%s377 + $0xcc] sm:$0xff]
        %v452 = vld [vmem:[%s377 + $0xd4] sm:$0xff]
        %v453 = vld [vmem:[%s377 + $0xdc] sm:$0xf]
        %v454 = vld [vmem:[%s377 + $0xe0] sm:$0xff]
        %v455 = vld [vmem:[%s377 + $0xe8] sm:$0xff]
        %v456 = vld [vmem:[%s377 + $0xf0] sm:$0xff]
        %v457 = vld [vmem:[%s377 + $0xf8] sm:$0xf]
        %v458 = vld [vmem:[%s377 + $0xfc] sm:$0xff]
        %v459 = vld [vmem:[%s377 + $0x104] sm:$0xff]
        %v460 = vld [vmem:[%s377 + $0x10c] sm:$0xff]
        %v461 = vld [vmem:[%s377 + $0x114] sm:$0xf]
        %v462 = vld [vmem:[%s377 + $0x118] sm:$0xff]
        %v463 = vld [vmem:[%s377 + $0x120] sm:$0xff]
        %v464 = vld [vmem:[%s377 + $0x128] sm:$0xff]
        %v465 = vld [vmem:[%s377 + $0x130] sm:$0xf]
        %v466 = vld [vmem:[%s377 + $0x134] sm:$0xff]
        %v467 = vld [vmem:[%s377 + $0x13c] sm:$0xff]
        %v468 = vld [vmem:[%s377 + $0x144] sm:$0xff]
        %v469 = vld [vmem:[%s377 + $0x14c] sm:$0xf]
        %v470 = vld [vmem:[%s377 + $0x150] sm:$0xff]
        %v471 = vld [vmem:[%s377 + $0x158] sm:$0xff]
        %v472 = vld [vmem:[%s377 + $0x160] sm:$0xff]
        %v473 = vld [vmem:[%s377 + $0x168] sm:$0xf]
        %v474 = vld [vmem:[%s377 + $0x16c] sm:$0xff]
        %v475 = vld [vmem:[%s377 + $0x174] sm:$0xff]
        %v476 = vld [vmem:[%s377 + $0x17c] sm:$0xff]
        %v477 = vld [vmem:[%s377 + $0x184] sm:$0xf]
        %v478 = vld [vmem:[%s377 + $0x188] sm:$0xff]
        %v479 = vld [vmem:[%s377 + $0x190] sm:$0xff]
        %v480 = vld [vmem:[%s377 + $0x198] sm:$0xff]
        %v481 = vld [vmem:[%s377 + $0x1a0] sm:$0xf]
        %v482 = vld [vmem:[%s377 + $0x1a4] sm:$0xff]
        %v483 = vld [vmem:[%s377 + $0x1ac] sm:$0xff]
        %v484 = vld [vmem:[%s377 + $0x1b4] sm:$0xff]
        %v485 = vld [vmem:[%s377 + $0x1bc] sm:$0xf]
        %v486 = vld [vmem:[%s2] sm:$0xff]
        %v487 = vld [vmem:[%s2 + $0x8] sm:$0xff]
        %v488 = vld [vmem:[%s2 + $0x10] sm:$0xff]
        %v489 = vld [vmem:[%s2 + $0x18] sm:$0xff]
        %v490 = vld [vmem:[%s2 + $0x20] sm:$0xff]
        %v491 = vld [vmem:[%s2 + $0x28] sm:$0xff]
        %v492 = vld [vmem:[%s2 + $0x30] sm:$0xff]
        %v493 = vld [vmem:[%s2 + $0x38] sm:$0xff]
        %v494 = vld [vmem:[%s2 + $0x40] sm:$0xff]
        %v495 = vld [vmem:[%s2 + $0x48] sm:$0xff]
        %v496 = vld [vmem:[%s2 + $0x50] sm:$0xff]
        %v497 = vld [vmem:[%s2 + $0x58] sm:$0xff]
        %v498 = vld [vmem:[%s2 + $0x60] sm:$0xff]
        %v499 = vld [vmem:[%s2 + $0x68] sm:$0xff]
        %v500 = vld [vmem:[%s2 + $0x70] sm:$0xff]
        %v501 = vld [vmem:[%s2 + $0x78] sm:$0xff]
        %v502 = vld [vmem:[%s2 + $0x80] sm:$0xff]
        %v503 = vld [vmem:[%s2 + $0x88] sm:$0xff]
        %v504 = vld [vmem:[%s2 + $0x90] sm:$0xff]
        %v505 = vld [vmem:[%s2 + $0x98] sm:$0xff]
        %v506 = vld [vmem:[%s2 + $0xa0] sm:$0xff]
        %v507 = vld [vmem:[%s2 + $0xa8] sm:$0xff]
        %v508 = vld [vmem:[%s2 + $0xb0] sm:$0xff]
        %v509 = vld [vmem:[%s2 + $0xb8] sm:$0xff]
        %v510 = vld [vmem:[%s2 + $0xc0] sm:$0xff]
        %v511 = vld [vmem:[%s2 + $0xc8] sm:$0xff]
        %v512 = vld [vmem:[%s2 + $0xd0] sm:$0xff]
        %v513 = vld [vmem:[%s2 + $0xd8] sm:$0xff]
        %v514 = vld [vmem:[%s2 + $0xe0] sm:$0xff]
        %v515 = vld [vmem:[%s2 + $0xe8] sm:$0xff]
        %v516 = vld [vmem:[%s2 + $0xf0] sm:$0xff]
        %v517 = vld [vmem:[%s2 + $0xf8] sm:$0xff]
        %v518 = vld [vmem:[%s2 + $0x100] sm:$0xff]
        %v519 = vld [vmem:[%s2 + $0x108] sm:$0xff]
        %v520 = vld [vmem:[%s2 + $0x110] sm:$0xff]
        %v521 = vld [vmem:[%s2 + $0x118] sm:$0xff]
        %v522 = vld [vmem:[%s2 + $0x120] sm:$0xff]
        %v523 = vld [vmem:[%s2 + $0x128] sm:$0xff]
        %v524 = vld [vmem:[%s2 + $0x130] sm:$0xff]
        %v525 = vld [vmem:[%s2 + $0x138] sm:$0xff]
        %v526 = vld [vmem:[%s2 + $0x140] sm:$0xff]
        %v527 = vld [vmem:[%s2 + $0x148] sm:$0xff]
        %v528 = vld [vmem:[%s2 + $0x150] sm:$0xff]
        %v529 = vld [vmem:[%s2 + $0x158] sm:$0xff]
        %v530 = vld [vmem:[%s2 + $0x160] sm:$0xff]
        %v531 = vld [vmem:[%s2 + $0x168] sm:$0xff]
        %v532 = vld [vmem:[%s2 + $0x170] sm:$0xff]
        %v533 = vld [vmem:[%s2 + $0x178] sm:$0xff]
        %v534 = vld [vmem:[%s2 + $0x180] sm:$0xff]
        %v535 = vld [vmem:[%s2 + $0x188] sm:$0xff]
        %v536 = vld [vmem:[%s2 + $0x190] sm:$0xff]
        %v537 = vld [vmem:[%s2 + $0x198] sm:$0xff]
        %v538 = vld [vmem:[%s2 + $0x1a0] sm:$0xff]
        %v539 = vld [vmem:[%s2 + $0x1a8] sm:$0xff]
        %v540 = vld [vmem:[%s2 + $0x1b0] sm:$0xff]
        %v541 = vld [vmem:[%s2 + $0x1b8] sm:$0xff]
        %v542 = vld [vmem:[%s2 + $0x1c0] sm:$0xff]
        %v543 = vld [vmem:[%s2 + $0x1c8] sm:$0xff]
        %v544 = vld [vmem:[%s2 + $0x1d0] sm:$0xff]
        %v545 = vld [vmem:[%s2 + $0x1d8] sm:$0xff]
        %v546 = vld [vmem:[%s2 + $0x1e0] sm:$0xff]
        %v547 = vld [vmem:[%s2 + $0x1e8] sm:$0xff]
        %v548 = vld [vmem:[%s2 + $0x1f0] sm:$0xff]
        %v549 = vld [vmem:[%s2 + $0x1f8] sm:$0xff]
        %v550 = vld [vmem:[%s2 + $0x200] sm:$0xff]
        %v551 = vld [vmem:[%s2 + $0x208] sm:$0xff]
        %v552 = vld [vmem:[%s2 + $0x210] sm:$0xff]
        %v553 = vld [vmem:[%s2 + $0x218] sm:$0xff]
        %v554 = vld [vmem:[%s2 + $0x220] sm:$0xff]
        %v555 = vld [vmem:[%s2 + $0x228] sm:$0xff]
        %v556 = vld [vmem:[%s2 + $0x230] sm:$0xff]
        %v557 = vld [vmem:[%s2 + $0x238] sm:$0xff]
        %v558 = vld [vmem:[%s2 + $0x240] sm:$0xff]
        %v559 = vld [vmem:[%s2 + $0x248] sm:$0xff]
        %v560 = vld [vmem:[%s2 + $0x250] sm:$0xff]
        %v561 = vld [vmem:[%s2 + $0x258] sm:$0xff]
        %v562 = vld [vmem:[%s2 + $0x260] sm:$0xff]
        %v563 = vld [vmem:[%s2 + $0x268] sm:$0xff]
        %v564 = vld [vmem:[%s2 + $0x270] sm:$0xff]
        %v565 = vld [vmem:[%s2 + $0x278] sm:$0xff]
        %v566 = vld [vmem:[%s2 + $0x280] sm:$0xff]
        %v567 = vld [vmem:[%s2 + $0x288] sm:$0xff]
        %v568 = vld [vmem:[%s2 + $0x290] sm:$0xff]
        %v569 = vld [vmem:[%s2 + $0x298] sm:$0xff]
        %v570 = vld [vmem:[%s2 + $0x2a0] sm:$0xff]
        %v571 = vld [vmem:[%s2 + $0x2a8] sm:$0xff]
        %v572 = vld [vmem:[%s2 + $0x2b0] sm:$0xff]
        %v573 = vld [vmem:[%s2 + $0x2b8] sm:$0xff]
        %v574 = vld [vmem:[%s2 + $0x2c0] sm:$0xff]
        %v575 = vld [vmem:[%s2 + $0x2c8] sm:$0xff]
        %v576 = vld [vmem:[%s2 + $0x2d0] sm:$0xff]
        %v577 = vld [vmem:[%s2 + $0x2d8] sm:$0xff]
        %v578 = vld [vmem:[%s2 + $0x2e0] sm:$0xff]
        %v579 = vld [vmem:[%s2 + $0x2e8] sm:$0xff]
        %v580 = vld [vmem:[%s2 + $0x2f0] sm:$0xff]
        %v581 = vld [vmem:[%s2 + $0x2f8] sm:$0xff]
        %v582 = vld [vmem:[%s2 + $0x300] sm:$0xff]
        %v583 = vld [vmem:[%s2 + $0x308] sm:$0xff]
        %v584 = vld [vmem:[%s2 + $0x310] sm:$0xff]
        %v585 = vld [vmem:[%s2 + $0x318] sm:$0xff]
        %v586 = vld [vmem:[%s2 + $0x320] sm:$0xff]
        %v587 = vld [vmem:[%s2 + $0x328] sm:$0xff]
        %v588 = vld [vmem:[%s2 + $0x330] sm:$0xff]
        %v589 = vld [vmem:[%s2 + $0x338] sm:$0xff]
        %v590 = vld [vmem:[%s2 + $0x340] sm:$0xff]
        %v591 = vld [vmem:[%s2 + $0x348] sm:$0xff]
        %v592 = vld [vmem:[%s2 + $0x350] sm:$0xff]
        %v593 = vld [vmem:[%s2 + $0x358] sm:$0xff]
        %v594 = vld [vmem:[%s2 + $0x360] sm:$0xff]
        %v595 = vld [vmem:[%s2 + $0x368] sm:$0xff]
        %v596 = vld [vmem:[%s2 + $0x370] sm:$0xff]
        %v597 = vld [vmem:[%s2 + $0x378] sm:$0xff]
        %v662 = vunpack.c.l.b16 %v422
        %v663 = vunpack.c.h.b16 %v422
        %v664 = vunpack.c.l.b16 %v423
        %v665 = vunpack.c.h.b16 %v423
        %v666 = vunpack.c.l.b16 %v424
        %v667 = vunpack.c.h.b16 %v424
        %v668 = vunpack.c.l.b16 %v425
        %v669 = vunpack.c.l.b16 %v426
        %v670 = vunpack.c.h.b16 %v426
        %v671 = vunpack.c.l.b16 %v427
        %v672 = vunpack.c.h.b16 %v427
        %v673 = vunpack.c.l.b16 %v428
        %v674 = vunpack.c.h.b16 %v428
        %v675 = vunpack.c.l.b16 %v429
        %v676 = vunpack.c.l.b16 %v430
        %v677 = vunpack.c.h.b16 %v430
        %v678 = vunpack.c.l.b16 %v431
        %v679 = vunpack.c.h.b16 %v431
        %v680 = vunpack.c.l.b16 %v432
        %v681 = vunpack.c.h.b16 %v432
        %v682 = vunpack.c.l.b16 %v433
        %v683 = vunpack.c.l.b16 %v434
        %v684 = vunpack.c.h.b16 %v434
        %v685 = vunpack.c.l.b16 %v435
        %v686 = vunpack.c.h.b16 %v435
        %v687 = vunpack.c.l.b16 %v436
        %v688 = vunpack.c.h.b16 %v436
        %v689 = vunpack.c.l.b16 %v437
        %v690 = vunpack.c.l.b16 %v438
        %v691 = vunpack.c.h.b16 %v438
        %v692 = vunpack.c.l.b16 %v439
        %v693 = vunpack.c.h.b16 %v439
        %v694 = vunpack.c.l.b16 %v440
        %v695 = vunpack.c.h.b16 %v440
        %v696 = vunpack.c.l.b16 %v441
        %v697 = vunpack.c.l.b16 %v442
        %v698 = vunpack.c.h.b16 %v442
        %v699 = vunpack.c.l.b16 %v443
        %v700 = vunpack.c.h.b16 %v443
        %v701 = vunpack.c.l.b16 %v444
        %v702 = vunpack.c.h.b16 %v444
        %v703 = vunpack.c.l.b16 %v445
        %v704 = vunpack.c.l.b16 %v446
        %v705 = vunpack.c.h.b16 %v446
        %v706 = vunpack.c.l.b16 %v447
        %v707 = vunpack.c.h.b16 %v447
        %v708 = vunpack.c.l.b16 %v448
        %v709 = vunpack.c.h.b16 %v448
        %v710 = vunpack.c.l.b16 %v449
        %v711 = vunpack.c.l.b16 %v450
        %v712 = vunpack.c.h.b16 %v450
        %v713 = vunpack.c.l.b16 %v451
        %v714 = vunpack.c.h.b16 %v451
        %v715 = vunpack.c.l.b16 %v452
        %v716 = vunpack.c.h.b16 %v452
        %v717 = vunpack.c.l.b16 %v453
        %v718 = vunpack.c.l.b16 %v454
        %v719 = vunpack.c.h.b16 %v454
        %v720 = vunpack.c.l.b16 %v455
        %v721 = vunpack.c.h.b16 %v455
        %v722 = vunpack.c.l.b16 %v456
        %v723 = vunpack.c.h.b16 %v456
        %v724 = vunpack.c.l.b16 %v457
        %v725 = vunpack.c.l.b16 %v458
        %v726 = vunpack.c.h.b16 %v458
        %v727 = vunpack.c.l.b16 %v459
        %v728 = vunpack.c.h.b16 %v459
        %v729 = vunpack.c.l.b16 %v460
        %v730 = vunpack.c.h.b16 %v460
        %v731 = vunpack.c.l.b16 %v461
        %v732 = vunpack.c.l.b16 %v462
        %v733 = vunpack.c.h.b16 %v462
        %v734 = vunpack.c.l.b16 %v463
        %v735 = vunpack.c.h.b16 %v463
        %v736 = vunpack.c.l.b16 %v464
        %v737 = vunpack.c.h.b16 %v464
        %v738 = vunpack.c.l.b16 %v465
        %v739 = vunpack.c.l.b16 %v466
        %v740 = vunpack.c.h.b16 %v466
        %v741 = vunpack.c.l.b16 %v467
        %v742 = vunpack.c.h.b16 %v467
        %v743 = vunpack.c.l.b16 %v468
        %v744 = vunpack.c.h.b16 %v468
        %v745 = vunpack.c.l.b16 %v469
        %v746 = vunpack.c.l.b16 %v470
        %v747 = vunpack.c.h.b16 %v470
        %v748 = vunpack.c.l.b16 %v471
        %v749 = vunpack.c.h.b16 %v471
        %v750 = vunpack.c.l.b16 %v472
        %v751 = vunpack.c.h.b16 %v472
        %v752 = vunpack.c.l.b16 %v473
        %v753 = vunpack.c.l.b16 %v474
        %v754 = vunpack.c.h.b16 %v474
        %v755 = vunpack.c.l.b16 %v475
        %v756 = vunpack.c.h.b16 %v475
        %v757 = vunpack.c.l.b16 %v476
        %v758 = vunpack.c.h.b16 %v476
        %v759 = vunpack.c.l.b16 %v477
        %v760 = vunpack.c.l.b16 %v478
        %v761 = vunpack.c.h.b16 %v478
        %v762 = vunpack.c.l.b16 %v479
        %v763 = vunpack.c.h.b16 %v479
        %v764 = vunpack.c.l.b16 %v480
        %v765 = vunpack.c.h.b16 %v480
        %v766 = vunpack.c.l.b16 %v481
        %v767 = vunpack.c.l.b16 %v482
        %v768 = vunpack.c.h.b16 %v482
        %v769 = vunpack.c.l.b16 %v483
        %v770 = vunpack.c.h.b16 %v483
        %v771 = vunpack.c.l.b16 %v484
        %v772 = vunpack.c.h.b16 %v484
        %v773 = vunpack.c.l.b16 %v485
        %v774 = vpack.c.b16 %v669, %v662
        %v775 = vpack.c.b16 %v670, %v663
        %v776 = vpack.c.b16 %v671, %v664
        %v777 = vpack.c.b16 %v672, %v665
        %v778 = vpack.c.b16 %v673, %v666
        %v779 = vpack.c.b16 %v674, %v667
        %v780 = vpack.c.b16 %v675, %v668
        %v781 = vpack.c.b16 %v683, %v676
        %v782 = vpack.c.b16 %v684, %v677
        %v783 = vpack.c.b16 %v685, %v678
        %v784 = vpack.c.b16 %v686, %v679
        %v785 = vpack.c.b16 %v687, %v680
        %v786 = vpack.c.b16 %v688, %v681
        %v787 = vpack.c.b16 %v689, %v682
        %v788 = vpack.c.b16 %v697, %v690
        %v789 = vpack.c.b16 %v698, %v691
        %v790 = vpack.c.b16 %v699, %v692
        %v791 = vpack.c.b16 %v700, %v693
        %v792 = vpack.c.b16 %v701, %v694
        %v793 = vpack.c.b16 %v702, %v695
        %v794 = vpack.c.b16 %v703, %v696
        %v795 = vpack.c.b16 %v711, %v704
        %v796 = vpack.c.b16 %v712, %v705
        %v797 = vpack.c.b16 %v713, %v706
        %v798 = vpack.c.b16 %v714, %v707
        %v799 = vpack.c.b16 %v715, %v708
        %v800 = vpack.c.b16 %v716, %v709
        %v801 = vpack.c.b16 %v717, %v710
        %v802 = vpack.c.b16 %v725, %v718
        %v803 = vpack.c.b16 %v726, %v719
        %v804 = vpack.c.b16 %v727, %v720
        %v805 = vpack.c.b16 %v728, %v721
        %v806 = vpack.c.b16 %v729, %v722
        %v807 = vpack.c.b16 %v730, %v723
        %v808 = vpack.c.b16 %v731, %v724
        %v809 = vpack.c.b16 %v739, %v732
        %v810 = vpack.c.b16 %v740, %v733
        %v811 = vpack.c.b16 %v741, %v734
        %v812 = vpack.c.b16 %v742, %v735
        %v813 = vpack.c.b16 %v743, %v736
        %v814 = vpack.c.b16 %v744, %v737
        %v815 = vpack.c.b16 %v745, %v738
        %v816 = vpack.c.b16 %v753, %v746
        %v817 = vpack.c.b16 %v754, %v747
        %v818 = vpack.c.b16 %v755, %v748
        %v819 = vpack.c.b16 %v756, %v749
        %v820 = vpack.c.b16 %v757, %v750
        %v821 = vpack.c.b16 %v758, %v751
        %v822 = vpack.c.b16 %v759, %v752
        %v823 = vpack.c.b16 %v767, %v760
        %v824 = vpack.c.b16 %v768, %v761
        %v825 = vpack.c.b16 %v769, %v762
        %v826 = vpack.c.b16 %v770, %v763
        %v827 = vpack.c.b16 %v771, %v764
        %v828 = vpack.c.b16 %v772, %v765
        %v829 = vpack.c.b16 %v773, %v766
        %v998 = vunpack.c.l.b16 %v486
        %v999 = vunpack.c.h.b16 %v486
        %v1000 = vunpack.c.l.b16 %v487
        %v1001 = vunpack.c.h.b16 %v487
        %v1002 = vunpack.c.l.b16 %v488
        %v1003 = vunpack.c.h.b16 %v488
        %v1004 = vunpack.c.l.b16 %v489
        %v1005 = vunpack.c.h.b16 %v489
        %v1006 = vunpack.c.l.b16 %v490
        %v1007 = vunpack.c.h.b16 %v490
        %v1008 = vunpack.c.l.b16 %v491
        %v1009 = vunpack.c.h.b16 %v491
        %v1010 = vunpack.c.l.b16 %v492
        %v1011 = vunpack.c.h.b16 %v492
        %v1012 = vunpack.c.l.b16 %v493
        %v1013 = vunpack.c.h.b16 %v493
        %v1014 = vunpack.c.l.b16 %v494
        %v1015 = vunpack.c.h.b16 %v494
        %v1016 = vunpack.c.l.b16 %v495
        %v1017 = vunpack.c.h.b16 %v495
        %v1018 = vunpack.c.l.b16 %v496
        %v1019 = vunpack.c.h.b16 %v496
        %v1020 = vunpack.c.l.b16 %v497
        %v1021 = vunpack.c.h.b16 %v497
        %v1022 = vunpack.c.l.b16 %v498
        %v1023 = vunpack.c.h.b16 %v498
        %v1024 = vunpack.c.l.b16 %v499
        %v1025 = vunpack.c.h.b16 %v499
        %v1026 = vunpack.c.l.b16 %v500
        %v1027 = vunpack.c.h.b16 %v500
        %v1028 = vunpack.c.l.b16 %v501
        %v1029 = vunpack.c.h.b16 %v501
        %v1030 = vunpack.c.l.b16 %v502
        %v1031 = vunpack.c.h.b16 %v502
        %v1032 = vunpack.c.l.b16 %v503
        %v1033 = vunpack.c.h.b16 %v503
        %v1034 = vunpack.c.l.b16 %v504
        %v1035 = vunpack.c.h.b16 %v504
        %v1036 = vunpack.c.l.b16 %v505
        %v1037 = vunpack.c.h.b16 %v505
        %v1038 = vunpack.c.l.b16 %v506
        %v1039 = vunpack.c.h.b16 %v506
        %v1040 = vunpack.c.l.b16 %v507
        %v1041 = vunpack.c.h.b16 %v507
        %v1042 = vunpack.c.l.b16 %v508
        %v1043 = vunpack.c.h.b16 %v508
        %v1044 = vunpack.c.l.b16 %v509
        %v1045 = vunpack.c.h.b16 %v509
        %v1046 = vunpack.c.l.b16 %v510
        %v1047 = vunpack.c.h.b16 %v510
        %v1048 = vunpack.c.l.b16 %v511
        %v1049 = vunpack.c.h.b16 %v511
        %v1050 = vunpack.c.l.b16 %v512
        %v1051 = vunpack.c.h.b16 %v512
        %v1052 = vunpack.c.l.b16 %v513
        %v1053 = vunpack.c.h.b16 %v513
        %v1054 = vunpack.c.l.b16 %v514
        %v1055 = vunpack.c.h.b16 %v514
        %v1056 = vunpack.c.l.b16 %v515
        %v1057 = vunpack.c.h.b16 %v515
        %v1058 = vunpack.c.l.b16 %v516
        %v1059 = vunpack.c.h.b16 %v516
        %v1060 = vunpack.c.l.b16 %v517
        %v1061 = vunpack.c.h.b16 %v517
        %v1062 = vunpack.c.l.b16 %v518
        %v1063 = vunpack.c.h.b16 %v518
        %v1064 = vunpack.c.l.b16 %v519
        %v1065 = vunpack.c.h.b16 %v519
        %v1066 = vunpack.c.l.b16 %v520
        %v1067 = vunpack.c.h.b16 %v520
        %v1068 = vunpack.c.l.b16 %v521
        %v1069 = vunpack.c.h.b16 %v521
        %v1070 = vunpack.c.l.b16 %v522
        %v1071 = vunpack.c.h.b16 %v522
        %v1072 = vunpack.c.l.b16 %v523
        %v1073 = vunpack.c.h.b16 %v523
        %v1074 = vunpack.c.l.b16 %v524
        %v1075 = vunpack.c.h.b16 %v524
        %v1076 = vunpack.c.l.b16 %v525
        %v1077 = vunpack.c.h.b16 %v525
        %v1078 = vunpack.c.l.b16 %v526
        %v1079 = vunpack.c.h.b16 %v526
        %v1080 = vunpack.c.l.b16 %v527
        %v1081 = vunpack.c.h.b16 %v527
        %v1082 = vunpack.c.l.b16 %v528
        %v1083 = vunpack.c.h.b16 %v528
        %v1084 = vunpack.c.l.b16 %v529
        %v1085 = vunpack.c.h.b16 %v529
        %v1086 = vunpack.c.l.b16 %v530
        %v1087 = vunpack.c.h.b16 %v530
        %v1088 = vunpack.c.l.b16 %v531
        %v1089 = vunpack.c.h.b16 %v531
        %v1090 = vunpack.c.l.b16 %v532
        %v1091 = vunpack.c.h.b16 %v532
        %v1092 = vunpack.c.l.b16 %v533
        %v1093 = vunpack.c.h.b16 %v533
        %v1094 = vunpack.c.l.b16 %v534
        %v1095 = vunpack.c.h.b16 %v534
        %v1096 = vunpack.c.l.b16 %v535
        %v1097 = vunpack.c.h.b16 %v535
        %v1098 = vunpack.c.l.b16 %v536
        %v1099 = vunpack.c.h.b16 %v536
        %v1100 = vunpack.c.l.b16 %v537
        %v1101 = vunpack.c.h.b16 %v537
        %v1102 = vunpack.c.l.b16 %v538
        %v1103 = vunpack.c.h.b16 %v538
        %v1104 = vunpack.c.l.b16 %v539
        %v1105 = vunpack.c.h.b16 %v539
        %v1106 = vunpack.c.l.b16 %v540
        %v1107 = vunpack.c.h.b16 %v540
        %v1108 = vunpack.c.l.b16 %v541
        %v1109 = vunpack.c.h.b16 %v541
        %v1110 = vunpack.c.l.b16 %v542
        %v1111 = vunpack.c.h.b16 %v542
        %v1112 = vunpack.c.l.b16 %v543
        %v1113 = vunpack.c.h.b16 %v543
        %v1114 = vunpack.c.l.b16 %v544
        %v1115 = vunpack.c.h.b16 %v544
        %v1116 = vunpack.c.l.b16 %v545
        %v1117 = vunpack.c.h.b16 %v545
        %v1118 = vunpack.c.l.b16 %v546
        %v1119 = vunpack.c.h.b16 %v546
        %v1120 = vunpack.c.l.b16 %v547
        %v1121 = vunpack.c.h.b16 %v547
        %v1122 = vunpack.c.l.b16 %v548
        %v1123 = vunpack.c.h.b16 %v548
        %v1124 = vunpack.c.l.b16 %v549
        %v1125 = vunpack.c.h.b16 %v549
        %v1126 = vunpack.c.l.b16 %v550
        %v1127 = vunpack.c.h.b16 %v550
        %v1128 = vunpack.c.l.b16 %v551
        %v1129 = vunpack.c.h.b16 %v551
        %v1130 = vunpack.c.l.b16 %v552
        %v1131 = vunpack.c.h.b16 %v552
        %v1132 = vunpack.c.l.b16 %v553
        %v1133 = vunpack.c.h.b16 %v553
        %v1134 = vunpack.c.l.b16 %v554
        %v1135 = vunpack.c.h.b16 %v554
        %v1136 = vunpack.c.l.b16 %v555
        %v1137 = vunpack.c.h.b16 %v555
        %v1138 = vunpack.c.l.b16 %v556
        %v1139 = vunpack.c.h.b16 %v556
        %v1140 = vunpack.c.l.b16 %v557
        %v1141 = vunpack.c.h.b16 %v557
        %v1142 = vunpack.c.l.b16 %v558
        %v1143 = vunpack.c.h.b16 %v558
        %v1144 = vunpack.c.l.b16 %v559
        %v1145 = vunpack.c.h.b16 %v559
        %v1146 = vunpack.c.l.b16 %v560
        %v1147 = vunpack.c.h.b16 %v560
        %v1148 = vunpack.c.l.b16 %v561
        %v1149 = vunpack.c.h.b16 %v561
        %v1150 = vunpack.c.l.b16 %v562
        %v1151 = vunpack.c.h.b16 %v562
        %v1152 = vunpack.c.l.b16 %v563
        %v1153 = vunpack.c.h.b16 %v563
        %v1154 = vunpack.c.l.b16 %v564
        %v1155 = vunpack.c.h.b16 %v564
        %v1156 = vunpack.c.l.b16 %v565
        %v1157 = vunpack.c.h.b16 %v565
        %v1158 = vunpack.c.l.b16 %v566
        %v1159 = vunpack.c.h.b16 %v566
        %v1160 = vunpack.c.l.b16 %v567
        %v1161 = vunpack.c.h.b16 %v567
        %v1162 = vunpack.c.l.b16 %v568
        %v1163 = vunpack.c.h.b16 %v568
        %v1164 = vunpack.c.l.b16 %v569
        %v1165 = vunpack.c.h.b16 %v569
        %v1166 = vunpack.c.l.b16 %v570
        %v1167 = vunpack.c.h.b16 %v570
        %v1168 = vunpack.c.l.b16 %v571
        %v1169 = vunpack.c.h.b16 %v571
        %v1170 = vunpack.c.l.b16 %v572
        %v1171 = vunpack.c.h.b16 %v572
        %v1172 = vunpack.c.l.b16 %v573
        %v1173 = vunpack.c.h.b16 %v573
        %v1174 = vunpack.c.l.b16 %v574
        %v1175 = vunpack.c.h.b16 %v574
        %v1176 = vunpack.c.l.b16 %v575
        %v1177 = vunpack.c.h.b16 %v575
        %v1178 = vunpack.c.l.b16 %v576
        %v1179 = vunpack.c.h.b16 %v576
        %v1180 = vunpack.c.l.b16 %v577
        %v1181 = vunpack.c.h.b16 %v577
        %v1182 = vunpack.c.l.b16 %v578
        %v1183 = vunpack.c.h.b16 %v578
        %v1184 = vunpack.c.l.b16 %v579
        %v1185 = vunpack.c.h.b16 %v579
        %v1186 = vunpack.c.l.b16 %v580
        %v1187 = vunpack.c.h.b16 %v580
        %v1188 = vunpack.c.l.b16 %v581
        %v1189 = vunpack.c.h.b16 %v581
        %v1190 = vunpack.c.l.b16 %v582
        %v1191 = vunpack.c.h.b16 %v582
        %v1192 = vunpack.c.l.b16 %v583
        %v1193 = vunpack.c.h.b16 %v583
        %v1194 = vunpack.c.l.b16 %v584
        %v1195 = vunpack.c.h.b16 %v584
        %v1196 = vunpack.c.l.b16 %v585
        %v1197 = vunpack.c.h.b16 %v585
        %v1198 = vunpack.c.l.b16 %v586
        %v1199 = vunpack.c.h.b16 %v586
        %v1200 = vunpack.c.l.b16 %v587
        %v1201 = vunpack.c.h.b16 %v587
        %v1202 = vunpack.c.l.b16 %v588
        %v1203 = vunpack.c.h.b16 %v588
        %v1204 = vunpack.c.l.b16 %v589
        %v1205 = vunpack.c.h.b16 %v589
        %v1206 = vunpack.c.l.b16 %v590
        %v1207 = vunpack.c.h.b16 %v590
        %v1208 = vunpack.c.l.b16 %v591
        %v1209 = vunpack.c.h.b16 %v591
        %v1210 = vunpack.c.l.b16 %v592
        %v1211 = vunpack.c.h.b16 %v592
        %v1212 = vunpack.c.l.b16 %v593
        %v1213 = vunpack.c.h.b16 %v593
        %v1214 = vunpack.c.l.b16 %v594
        %v1215 = vunpack.c.h.b16 %v594
        %v1216 = vunpack.c.l.b16 %v595
        %v1217 = vunpack.c.h.b16 %v595
        %v1218 = vunpack.c.l.b16 %v596
        %v1219 = vunpack.c.h.b16 %v596
        %v1220 = vunpack.c.l.b16 %v597
        %v1221 = vunpack.c.h.b16 %v597
        %v1222 = vpack.c.b16 %v1000, %v998
        %v1223 = vpack.c.b16 %v1001, %v999
        %v1224 = vpack.c.b16 %v1004, %v1002
        %v1225 = vpack.c.b16 %v1005, %v1003
        %v1226 = vpack.c.b16 %v1008, %v1006
        %v1227 = vpack.c.b16 %v1009, %v1007
        %v1228 = vpack.c.b16 %v1012, %v1010
        %v1229 = vpack.c.b16 %v1013, %v1011
        %v1230 = vpack.c.b16 %v1016, %v1014
        %v1231 = vpack.c.b16 %v1017, %v1015
        %v1232 = vpack.c.b16 %v1020, %v1018
        %v1233 = vpack.c.b16 %v1021, %v1019
        %v1234 = vpack.c.b16 %v1024, %v1022
        %v1235 = vpack.c.b16 %v1025, %v1023
        %v1236 = vpack.c.b16 %v1028, %v1026
        %v1237 = vpack.c.b16 %v1029, %v1027
        %v1238 = vpack.c.b16 %v1032, %v1030
        %v1239 = vpack.c.b16 %v1033, %v1031
        %v1240 = vpack.c.b16 %v1036, %v1034
        %v1241 = vpack.c.b16 %v1037, %v1035
        %v1242 = vpack.c.b16 %v1040, %v1038
        %v1243 = vpack.c.b16 %v1041, %v1039
        %v1244 = vpack.c.b16 %v1044, %v1042
        %v1245 = vpack.c.b16 %v1045, %v1043
        %v1246 = vpack.c.b16 %v1048, %v1046
        %v1247 = vpack.c.b16 %v1049, %v1047
        %v1248 = vpack.c.b16 %v1052, %v1050
        %v1249 = vpack.c.b16 %v1053, %v1051
        %v1250 = vpack.c.b16 %v1056, %v1054
        %v1251 = vpack.c.b16 %v1057, %v1055
        %v1252 = vpack.c.b16 %v1060, %v1058
        %v1253 = vpack.c.b16 %v1061, %v1059
        %v1254 = vpack.c.b16 %v1064, %v1062
        %v1255 = vpack.c.b16 %v1065, %v1063
        %v1256 = vpack.c.b16 %v1068, %v1066
        %v1257 = vpack.c.b16 %v1069, %v1067
        %v1258 = vpack.c.b16 %v1072, %v1070
        %v1259 = vpack.c.b16 %v1073, %v1071
        %v1260 = vpack.c.b16 %v1076, %v1074
        %v1261 = vpack.c.b16 %v1077, %v1075
        %v1262 = vpack.c.b16 %v1080, %v1078
        %v1263 = vpack.c.b16 %v1081, %v1079
        %v1264 = vpack.c.b16 %v1084, %v1082
        %v1265 = vpack.c.b16 %v1085, %v1083
        %v1266 = vpack.c.b16 %v1088, %v1086
        %v1267 = vpack.c.b16 %v1089, %v1087
        %v1268 = vpack.c.b16 %v1092, %v1090
        %v1269 = vpack.c.b16 %v1093, %v1091
        %v1270 = vpack.c.b16 %v1096, %v1094
        %v1271 = vpack.c.b16 %v1097, %v1095
        %v1272 = vpack.c.b16 %v1100, %v1098
        %v1273 = vpack.c.b16 %v1101, %v1099
        %v1274 = vpack.c.b16 %v1104, %v1102
        %v1275 = vpack.c.b16 %v1105, %v1103
        %v1276 = vpack.c.b16 %v1108, %v1106
        %v1277 = vpack.c.b16 %v1109, %v1107
        %v1278 = vpack.c.b16 %v1112, %v1110
        %v1279 = vpack.c.b16 %v1113, %v1111
        %v1280 = vpack.c.b16 %v1116, %v1114
        %v1281 = vpack.c.b16 %v1117, %v1115
        %v1282 = vpack.c.b16 %v1120, %v1118
        %v1283 = vpack.c.b16 %v1121, %v1119
        %v1284 = vpack.c.b16 %v1124, %v1122
        %v1285 = vpack.c.b16 %v1125, %v1123
        %v1286 = vpack.c.b16 %v1128, %v1126
        %v1287 = vpack.c.b16 %v1129, %v1127
        %v1288 = vpack.c.b16 %v1132, %v1130
        %v1289 = vpack.c.b16 %v1133, %v1131
        %v1290 = vpack.c.b16 %v1136, %v1134
        %v1291 = vpack.c.b16 %v1137, %v1135
        %v1292 = vpack.c.b16 %v1140, %v1138
        %v1293 = vpack.c.b16 %v1141, %v1139
        %v1294 = vpack.c.b16 %v1144, %v1142
        %v1295 = vpack.c.b16 %v1145, %v1143
        %v1296 = vpack.c.b16 %v1148, %v1146
        %v1297 = vpack.c.b16 %v1149, %v1147
        %v1298 = vpack.c.b16 %v1152, %v1150
        %v1299 = vpack.c.b16 %v1153, %v1151
        %v1300 = vpack.c.b16 %v1156, %v1154
        %v1301 = vpack.c.b16 %v1157, %v1155
        %v1302 = vpack.c.b16 %v1160, %v1158
        %v1303 = vpack.c.b16 %v1161, %v1159
        %v1304 = vpack.c.b16 %v1164, %v1162
        %v1305 = vpack.c.b16 %v1165, %v1163
        %v1306 = vpack.c.b16 %v1168, %v1166
        %v1307 = vpack.c.b16 %v1169, %v1167
        %v1308 = vpack.c.b16 %v1172, %v1170
        %v1309 = vpack.c.b16 %v1173, %v1171
        %v1310 = vpack.c.b16 %v1176, %v1174
        %v1311 = vpack.c.b16 %v1177, %v1175
        %v1312 = vpack.c.b16 %v1180, %v1178
        %v1313 = vpack.c.b16 %v1181, %v1179
        %v1314 = vpack.c.b16 %v1184, %v1182
        %v1315 = vpack.c.b16 %v1185, %v1183
        %v1316 = vpack.c.b16 %v1188, %v1186
        %v1317 = vpack.c.b16 %v1189, %v1187
        %v1318 = vpack.c.b16 %v1192, %v1190
        %v1319 = vpack.c.b16 %v1193, %v1191
        %v1320 = vpack.c.b16 %v1196, %v1194
        %v1321 = vpack.c.b16 %v1197, %v1195
        %v1322 = vpack.c.b16 %v1200, %v1198
        %v1323 = vpack.c.b16 %v1201, %v1199
        %v1324 = vpack.c.b16 %v1204, %v1202
        %v1325 = vpack.c.b16 %v1205, %v1203
        %v1326 = vpack.c.b16 %v1208, %v1206
        %v1327 = vpack.c.b16 %v1209, %v1207
        %v1328 = vpack.c.b16 %v1212, %v1210
        %v1329 = vpack.c.b16 %v1213, %v1211
        %v1330 = vpack.c.b16 %v1216, %v1214
        %v1331 = vpack.c.b16 %v1217, %v1215
        %v1332 = vpack.c.b16 %v1220, %v1218
        %v1333 = vpack.c.b16 %v1221, %v1219
        %1446 = vmatprep.subr.bf16.mxu0 %v1237
        %1447 = vmatpush1.bf16.msra.mxu0 %v1236
        %1448 = vmatprep.subr.bf16.mxu0 %v1235
        %1449 = vmatpush1.bf16.msra.mxu0 %v1234
        %1450 = vmatprep.subr.bf16.mxu0 %v1233
        %1451 = vmatpush1.bf16.msra.mxu0 %v1232
        %1452 = vmatprep.subr.bf16.mxu0 %v1231
        %1453 = vmatpush1.bf16.msra.mxu0 %v1230
        %1454 = vmatprep.subr.bf16.mxu0 %v1229
        %1455 = vmatpush1.bf16.msra.mxu0 %v1228
        %1456 = vmatprep.subr.bf16.mxu0 %v1227
        %1457 = vmatpush1.bf16.msra.mxu0 %v1226
        %1458 = vmatprep.subr.bf16.mxu0 %v1225
        %1459 = vmatpush1.bf16.msra.mxu0 %v1224
        %1460 = vmatprep.subr.bf16.mxu0 %v1223
        %1461 = vmatpush1.bf16.msra.mxu0 %v1222
        %1462 = vmatprep.subr.bf16.mxu0 %v1253
        %1463 = vmatpush2.bf16.msra.mxu0 %v1252
        %1464 = vmatprep.subr.bf16.mxu0 %v1251
        %1465 = vmatpush2.bf16.msra.mxu0 %v1250
        %1466 = vmatprep.subr.bf16.mxu0 %v1249
        %1467 = vmatpush2.bf16.msra.mxu0 %v1248
        %1468 = vmatprep.subr.bf16.mxu0 %v1247
        %1469 = vmatpush2.bf16.msra.mxu0 %v1246
        %1470 = vmatprep.subr.bf16.mxu0 %v1245
        %1471 = vmatpush2.bf16.msra.mxu0 %v1244
        %1472 = vmatprep.subr.bf16.mxu0 %v1243
        %1473 = vmatpush2.bf16.msra.mxu0 %v1242
        %1474 = vmatprep.subr.bf16.mxu0 %v1241
        %1475 = vmatpush2.bf16.msra.mxu0 %v1240
        %1476 = vmatprep.subr.bf16.mxu0 %v1239
        %1477 = vmatpush2.bf16.msra.mxu0 %v1238
        %1478 = vmatprep.mubr.bf16.mxu0 %v775
        %1479 = vmatmul.mubr.bf16.gmra.mxu0 %v774
        %v1480 = vpop.f32.mrf.mxu0
        %v1481 = vadd.f32 0.0, %v1480
        %v1482 = vpop.f32.mrf.mxu0
        %v1483 = vadd.f32 0.0, %v1482
        %v1484 = vpop.f32.mrf.mxu0
        %v1485 = vadd.f32 0.0, %v1484
        %v1486 = vpop.f32.mrf.mxu0
        %v1487 = vadd.f32 0.0, %v1486
        %1488 = vmatprep.mubr.bf16.mxu0 %v782
        %1489 = vmatmul.mubr.bf16.gmra.mxu0 %v781
        %v1490 = vpop.f32.mrf.mxu0
        %v1491 = vadd.f32 0.0, %v1490
        %v1492 = vpop.f32.mrf.mxu0
        %v1493 = vadd.f32 0.0, %v1492
        %v1494 = vpop.f32.mrf.mxu0
        %v1495 = vadd.f32 0.0, %v1494
        %v1496 = vpop.f32.mrf.mxu0
        %v1497 = vadd.f32 0.0, %v1496
        %1498 = vmatprep.mubr.bf16.mxu0 %v789
        %1499 = vmatmul.mubr.bf16.gmra.mxu0 %v788
        %v1500 = vpop.f32.mrf.mxu0
        %v1501 = vadd.f32 0.0, %v1500
        %v1502 = vpop.f32.mrf.mxu0
        %v1503 = vadd.f32 0.0, %v1502
        %v1504 = vpop.f32.mrf.mxu0
        %v1505 = vadd.f32 0.0, %v1504
        %v1506 = vpop.f32.mrf.mxu0
        %v1507 = vadd.f32 0.0, %v1506
        %1508 = vmatprep.mubr.bf16.mxu0 %v796
        %1509 = vmatmul.mubr.bf16.gmra.mxu0 %v795
        %v1510 = vpop.f32.mrf.mxu0
        %v1511 = vadd.f32 0.0, %v1510
        %v1512 = vpop.f32.mrf.mxu0
        %v1513 = vadd.f32 0.0, %v1512
        %v1514 = vpop.f32.mrf.mxu0
        %v1515 = vadd.f32 0.0, %v1514
        %v1516 = vpop.f32.mrf.mxu0
        %v1517 = vadd.f32 0.0, %v1516
        %1518 = vmatprep.mubr.bf16.mxu0 %v803
        %1519 = vmatmul.mubr.bf16.gmra.mxu0 %v802
        %v1520 = vpop.f32.mrf.mxu0
        %v1521 = vadd.f32 0.0, %v1520
        %v1522 = vpop.f32.mrf.mxu0
        %v1523 = vadd.f32 0.0, %v1522
        %v1524 = vpop.f32.mrf.mxu0
        %v1525 = vadd.f32 0.0, %v1524
        %v1526 = vpop.f32.mrf.mxu0
        %v1527 = vadd.f32 0.0, %v1526
        %1528 = vmatprep.mubr.bf16.mxu0 %v810
        %1529 = vmatmul.mubr.bf16.gmra.mxu0 %v809
        %v1530 = vpop.f32.mrf.mxu0
        %v1531 = vadd.f32 0.0, %v1530
        %v1532 = vpop.f32.mrf.mxu0
        %v1533 = vadd.f32 0.0, %v1532
        %v1534 = vpop.f32.mrf.mxu0
        %v1535 = vadd.f32 0.0, %v1534
        %v1536 = vpop.f32.mrf.mxu0
        %v1537 = vadd.f32 0.0, %v1536
        %1538 = vmatprep.mubr.bf16.mxu0 %v817
        %1539 = vmatmul.mubr.bf16.gmra.mxu0 %v816
        %v1540 = vpop.f32.mrf.mxu0
        %v1541 = vadd.f32 0.0, %v1540
        %v1542 = vpop.f32.mrf.mxu0
        %v1543 = vadd.f32 0.0, %v1542
        %v1544 = vpop.f32.mrf.mxu0
        %v1545 = vadd.f32 0.0, %v1544
        %v1546 = vpop.f32.mrf.mxu0
        %v1547 = vadd.f32 0.0, %v1546
        %1548 = vmatprep.mubr.bf16.mxu0 %v824
        %1549 = vmatmul.mubr.bf16.gmra.mxu0 %v823
        %v1550 = vpop.f32.mrf.mxu0
        %v1551 = vadd.f32 0.0, %v1550
        %v1552 = vpop.f32.mrf.mxu0
        %v1553 = vadd.f32 0.0, %v1552
        %v1554 = vpop.f32.mrf.mxu0
        %v1555 = vadd.f32 0.0, %v1554
        %v1556 = vpop.f32.mrf.mxu0
        %v1557 = vadd.f32 0.0, %v1556
        %1558 = vdwg.mxu0
        %1559 = vmatprep.subr.bf16.mxu0 %v1269
        %1560 = vmatpush1.bf16.msra.mxu0 %v1268
        %1561 = vmatprep.subr.bf16.mxu0 %v1267
        %1562 = vmatpush1.bf16.msra.mxu0 %v1266
        %1563 = vmatprep.subr.bf16.mxu0 %v1265
        %1564 = vmatpush1.bf16.msra.mxu0 %v1264
        %1565 = vmatprep.subr.bf16.mxu0 %v1263
        %1566 = vmatpush1.bf16.msra.mxu0 %v1262
        %1567 = vmatprep.subr.bf16.mxu0 %v1261
        %1568 = vmatpush1.bf16.msra.mxu0 %v1260
        %1569 = vmatprep.subr.bf16.mxu0 %v1259
        %1570 = vmatpush1.bf16.msra.mxu0 %v1258
        %1571 = vmatprep.subr.bf16.mxu0 %v1257
        %1572 = vmatpush1.bf16.msra.mxu0 %v1256
        %1573 = vmatprep.subr.bf16.mxu0 %v1255
        %1574 = vmatpush1.bf16.msra.mxu0 %v1254
        %1575 = vmatprep.subr.bf16.mxu0 %v1285
        %1576 = vmatpush2.bf16.msra.mxu0 %v1284
        %1577 = vmatprep.subr.bf16.mxu0 %v1283
        %1578 = vmatpush2.bf16.msra.mxu0 %v1282
        %1579 = vmatprep.subr.bf16.mxu0 %v1281
        %1580 = vmatpush2.bf16.msra.mxu0 %v1280
        %1581 = vmatprep.subr.bf16.mxu0 %v1279
        %1582 = vmatpush2.bf16.msra.mxu0 %v1278
        %1583 = vmatprep.subr.bf16.mxu0 %v1277
        %1584 = vmatpush2.bf16.msra.mxu0 %v1276
        %1585 = vmatprep.subr.bf16.mxu0 %v1275
        %1586 = vmatpush2.bf16.msra.mxu0 %v1274
        %1587 = vmatprep.subr.bf16.mxu0 %v1273
        %1588 = vmatpush2.bf16.msra.mxu0 %v1272
        %1589 = vmatprep.subr.bf16.mxu0 %v1271
        %1590 = vmatpush2.bf16.msra.mxu0 %v1270
        %1591 = vmatprep.mubr.bf16.mxu0 %v777
        %1592 = vmatmul.mubr.bf16.gmra.mxu0 %v776
        %v1593 = vpop.f32.mrf.mxu0
        %v1594 = vadd.f32 %v1481, %v1593
        %v1595 = vpop.f32.mrf.mxu0
        %v1596 = vadd.f32 %v1483, %v1595
        %v1597 = vpop.f32.mrf.mxu0
        %v1598 = vadd.f32 %v1485, %v1597
        %v1599 = vpop.f32.mrf.mxu0
        %v1600 = vadd.f32 %v1487, %v1599
        %1601 = vmatprep.mubr.bf16.mxu0 %v784
        %1602 = vmatmul.mubr.bf16.gmra.mxu0 %v783
        %v1603 = vpop.f32.mrf.mxu0
        %v1604 = vadd.f32 %v1491, %v1603
        %v1605 = vpop.f32.mrf.mxu0
        %v1606 = vadd.f32 %v1493, %v1605
        %v1607 = vpop.f32.mrf.mxu0
        %v1608 = vadd.f32 %v1495, %v1607
        %v1609 = vpop.f32.mrf.mxu0
        %v1610 = vadd.f32 %v1497, %v1609
        %1611 = vmatprep.mubr.bf16.mxu0 %v791
        %1612 = vmatmul.mubr.bf16.gmra.mxu0 %v790
        %v1613 = vpop.f32.mrf.mxu0
        %v1614 = vadd.f32 %v1501, %v1613
        %v1615 = vpop.f32.mrf.mxu0
        %v1616 = vadd.f32 %v1503, %v1615
        %v1617 = vpop.f32.mrf.mxu0
        %v1618 = vadd.f32 %v1505, %v1617
        %v1619 = vpop.f32.mrf.mxu0
        %v1620 = vadd.f32 %v1507, %v1619
        %1621 = vmatprep.mubr.bf16.mxu0 %v798
        %1622 = vmatmul.mubr.bf16.gmra.mxu0 %v797
        %v1623 = vpop.f32.mrf.mxu0
        %v1624 = vadd.f32 %v1511, %v1623
        %v1625 = vpop.f32.mrf.mxu0
        %v1626 = vadd.f32 %v1513, %v1625
        %v1627 = vpop.f32.mrf.mxu0
        %v1628 = vadd.f32 %v1515, %v1627
        %v1629 = vpop.f32.mrf.mxu0
        %v1630 = vadd.f32 %v1517, %v1629
        %1631 = vmatprep.mubr.bf16.mxu0 %v805
        %1632 = vmatmul.mubr.bf16.gmra.mxu0 %v804
        %v1633 = vpop.f32.mrf.mxu0
        %v1634 = vadd.f32 %v1521, %v1633
        %v1635 = vpop.f32.mrf.mxu0
        %v1636 = vadd.f32 %v1523, %v1635
        %v1637 = vpop.f32.mrf.mxu0
        %v1638 = vadd.f32 %v1525, %v1637
        %v1639 = vpop.f32.mrf.mxu0
        %v1640 = vadd.f32 %v1527, %v1639
        %1641 = vmatprep.mubr.bf16.mxu0 %v812
        %1642 = vmatmul.mubr.bf16.gmra.mxu0 %v811
        %v1643 = vpop.f32.mrf.mxu0
        %v1644 = vadd.f32 %v1531, %v1643
        %v1645 = vpop.f32.mrf.mxu0
        %v1646 = vadd.f32 %v1533, %v1645
        %v1647 = vpop.f32.mrf.mxu0
        %v1648 = vadd.f32 %v1535, %v1647
        %v1649 = vpop.f32.mrf.mxu0
        %v1650 = vadd.f32 %v1537, %v1649
        %1651 = vmatprep.mubr.bf16.mxu0 %v819
        %1652 = vmatmul.mubr.bf16.gmra.mxu0 %v818
        %v1653 = vpop.f32.mrf.mxu0
        %v1654 = vadd.f32 %v1541, %v1653
        %v1655 = vpop.f32.mrf.mxu0
        %v1656 = vadd.f32 %v1543, %v1655
        %v1657 = vpop.f32.mrf.mxu0
        %v1658 = vadd.f32 %v1545, %v1657
        %v1659 = vpop.f32.mrf.mxu0
        %v1660 = vadd.f32 %v1547, %v1659
        %1661 = vmatprep.mubr.bf16.mxu0 %v826
        %1662 = vmatmul.mubr.bf16.gmra.mxu0 %v825
        %v1663 = vpop.f32.mrf.mxu0
        %v1664 = vadd.f32 %v1551, %v1663
        %v1665 = vpop.f32.mrf.mxu0
        %v1666 = vadd.f32 %v1553, %v1665
        %v1667 = vpop.f32.mrf.mxu0
        %v1668 = vadd.f32 %v1555, %v1667
        %v1669 = vpop.f32.mrf.mxu0
        %v1670 = vadd.f32 %v1557, %v1669
        %1671 = vdwg.mxu0
        %1672 = vmatprep.subr.bf16.mxu0 %v1301
        %1673 = vmatpush1.bf16.msra.mxu0 %v1300
        %1674 = vmatprep.subr.bf16.mxu0 %v1299
        %1675 = vmatpush1.bf16.msra.mxu0 %v1298
        %1676 = vmatprep.subr.bf16.mxu0 %v1297
        %1677 = vmatpush1.bf16.msra.mxu0 %v1296
        %1678 = vmatprep.subr.bf16.mxu0 %v1295
        %1679 = vmatpush1.bf16.msra.mxu0 %v1294
        %1680 = vmatprep.subr.bf16.mxu0 %v1293
        %1681 = vmatpush1.bf16.msra.mxu0 %v1292
        %1682 = vmatprep.subr.bf16.mxu0 %v1291
        %1683 = vmatpush1.bf16.msra.mxu0 %v1290
        %1684 = vmatprep.subr.bf16.mxu0 %v1289
        %1685 = vmatpush1.bf16.msra.mxu0 %v1288
        %1686 = vmatprep.subr.bf16.mxu0 %v1287
        %1687 = vmatpush1.bf16.msra.mxu0 %v1286
        %1688 = vmatprep.subr.bf16.mxu0 %v1317
        %1689 = vmatpush2.bf16.msra.mxu0 %v1316
        %1690 = vmatprep.subr.bf16.mxu0 %v1315
        %1691 = vmatpush2.bf16.msra.mxu0 %v1314
        %1692 = vmatprep.subr.bf16.mxu0 %v1313
        %1693 = vmatpush2.bf16.msra.mxu0 %v1312
        %1694 = vmatprep.subr.bf16.mxu0 %v1311
        %1695 = vmatpush2.bf16.msra.mxu0 %v1310
        %1696 = vmatprep.subr.bf16.mxu0 %v1309
        %1697 = vmatpush2.bf16.msra.mxu0 %v1308
        %1698 = vmatprep.subr.bf16.mxu0 %v1307
        %1699 = vmatpush2.bf16.msra.mxu0 %v1306
        %1700 = vmatprep.subr.bf16.mxu0 %v1305
        %1701 = vmatpush2.bf16.msra.mxu0 %v1304
        %1702 = vmatprep.subr.bf16.mxu0 %v1303
        %1703 = vmatpush2.bf16.msra.mxu0 %v1302
        %1704 = vmatprep.mubr.bf16.mxu0 %v779
        %1705 = vmatmul.mubr.bf16.gmra.mxu0 %v778
        %v1706 = vpop.f32.mrf.mxu0
        %v1707 = vadd.f32 %v1594, %v1706
        %v1708 = vpop.f32.mrf.mxu0
        %v1709 = vadd.f32 %v1596, %v1708
        %v1710 = vpop.f32.mrf.mxu0
        %v1711 = vadd.f32 %v1598, %v1710
        %v1712 = vpop.f32.mrf.mxu0
        %v1713 = vadd.f32 %v1600, %v1712
        %1714 = vmatprep.mubr.bf16.mxu0 %v786
        %1715 = vmatmul.mubr.bf16.gmra.mxu0 %v785
        %v1716 = vpop.f32.mrf.mxu0
        %v1717 = vadd.f32 %v1604, %v1716
        %v1718 = vpop.f32.mrf.mxu0
        %v1719 = vadd.f32 %v1606, %v1718
        %v1720 = vpop.f32.mrf.mxu0
        %v1721 = vadd.f32 %v1608, %v1720
        %v1722 = vpop.f32.mrf.mxu0
        %v1723 = vadd.f32 %v1610, %v1722
        %1724 = vmatprep.mubr.bf16.mxu0 %v793
        %1725 = vmatmul.mubr.bf16.gmra.mxu0 %v792
        %v1726 = vpop.f32.mrf.mxu0
        %v1727 = vadd.f32 %v1614, %v1726
        %v1728 = vpop.f32.mrf.mxu0
        %v1729 = vadd.f32 %v1616, %v1728
        %v1730 = vpop.f32.mrf.mxu0
        %v1731 = vadd.f32 %v1618, %v1730
        %v1732 = vpop.f32.mrf.mxu0
        %v1733 = vadd.f32 %v1620, %v1732
        %1734 = vmatprep.mubr.bf16.mxu0 %v800
        %1735 = vmatmul.mubr.bf16.gmra.mxu0 %v799
        %v1736 = vpop.f32.mrf.mxu0
        %v1737 = vadd.f32 %v1624, %v1736
        %v1738 = vpop.f32.mrf.mxu0
        %v1739 = vadd.f32 %v1626, %v1738
        %v1740 = vpop.f32.mrf.mxu0
        %v1741 = vadd.f32 %v1628, %v1740
        %v1742 = vpop.f32.mrf.mxu0
        %v1743 = vadd.f32 %v1630, %v1742
        %1744 = vmatprep.mubr.bf16.mxu0 %v807
        %1745 = vmatmul.mubr.bf16.gmra.mxu0 %v806
        %v1746 = vpop.f32.mrf.mxu0
        %v1747 = vadd.f32 %v1634, %v1746
        %v1748 = vpop.f32.mrf.mxu0
        %v1749 = vadd.f32 %v1636, %v1748
        %v1750 = vpop.f32.mrf.mxu0
        %v1751 = vadd.f32 %v1638, %v1750
        %v1752 = vpop.f32.mrf.mxu0
        %v1753 = vadd.f32 %v1640, %v1752
        %1754 = vmatprep.mubr.bf16.mxu0 %v814
        %1755 = vmatmul.mubr.bf16.gmra.mxu0 %v813
        %v1756 = vpop.f32.mrf.mxu0
        %v1757 = vadd.f32 %v1644, %v1756
        %v1758 = vpop.f32.mrf.mxu0
        %v1759 = vadd.f32 %v1646, %v1758
        %v1760 = vpop.f32.mrf.mxu0
        %v1761 = vadd.f32 %v1648, %v1760
        %v1762 = vpop.f32.mrf.mxu0
        %v1763 = vadd.f32 %v1650, %v1762
        %1764 = vmatprep.mubr.bf16.mxu0 %v821
        %1765 = vmatmul.mubr.bf16.gmra.mxu0 %v820
        %v1766 = vpop.f32.mrf.mxu0
        %v1767 = vadd.f32 %v1654, %v1766
        %v1768 = vpop.f32.mrf.mxu0
        %v1769 = vadd.f32 %v1656, %v1768
        %v1770 = vpop.f32.mrf.mxu0
        %v1771 = vadd.f32 %v1658, %v1770
        %v1772 = vpop.f32.mrf.mxu0
        %v1773 = vadd.f32 %v1660, %v1772
        %1774 = vmatprep.mubr.bf16.mxu0 %v828
        %1775 = vmatmul.mubr.bf16.gmra.mxu0 %v827
        %v1776 = vpop.f32.mrf.mxu0
        %v1777 = vadd.f32 %v1664, %v1776
        %v1778 = vpop.f32.mrf.mxu0
        %v1779 = vadd.f32 %v1666, %v1778
        %v1780 = vpop.f32.mrf.mxu0
        %v1781 = vadd.f32 %v1668, %v1780
        %v1782 = vpop.f32.mrf.mxu0
        %v1783 = vadd.f32 %v1670, %v1782
        %1784 = vdwg.mxu0
        %1785 = vmatprep.subr.bf16.mxu0 %v1333
        %1786 = vmatpush1.bf16.msra.mxu0 %v1332
        %1787 = vmatprep.subr.bf16.mxu0 %v1331
        %1788 = vmatpush1.bf16.msra.mxu0 %v1330
        %1789 = vmatprep.subr.bf16.mxu0 %v1329
        %1790 = vmatpush1.bf16.msra.mxu0 %v1328
        %1791 = vmatprep.subr.bf16.mxu0 %v1327
        %1792 = vmatpush1.bf16.msra.mxu0 %v1326
        %1793 = vmatprep.subr.bf16.mxu0 %v1325
        %1794 = vmatpush1.bf16.msra.mxu0 %v1324
        %1795 = vmatprep.subr.bf16.mxu0 %v1323
        %1796 = vmatpush1.bf16.msra.mxu0 %v1322
        %1797 = vmatprep.subr.bf16.mxu0 %v1321
        %1798 = vmatpush1.bf16.msra.mxu0 %v1320
        %1799 = vmatprep.subr.bf16.mxu0 %v1319
        %1800 = vmatpush1.bf16.msra.mxu0 %v1318
        %1801 = vmatprep.subr.bf16.mxu0 0
        %1802 = vmatpush2.bf16.msra.mxu0 0
        %1803 = vmatprep.subr.bf16.mxu0 0
        %1804 = vmatpush2.bf16.msra.mxu0 0
        %1805 = vmatprep.subr.bf16.mxu0 0
        %1806 = vmatpush2.bf16.msra.mxu0 0
        %1807 = vmatprep.subr.bf16.mxu0 0
        %1808 = vmatpush2.bf16.msra.mxu0 0
        %1809 = vmatprep.subr.bf16.mxu0 0
        %1810 = vmatpush2.bf16.msra.mxu0 0
        %1811 = vmatprep.subr.bf16.mxu0 0
        %1812 = vmatpush2.bf16.msra.mxu0 0
        %1813 = vmatprep.subr.bf16.mxu0 0
        %1814 = vmatpush2.bf16.msra.mxu0 0
        %1815 = vmatprep.subr.bf16.mxu0 0
        %1816 = vmatpush2.bf16.msra.mxu0 0
        %1817 = vmatprep.mubr.bf16.mxu0 0
        %1818 = vmatmul.mubr.bf16.gmra.mxu0 %v780
        %v1819 = vpop.f32.mrf.mxu0
        %v1820 = vadd.f32 %v1707, %v1819
        %v1821 = vpop.f32.mrf.mxu0
        %v1822 = vadd.f32 %v1709, %v1821
        %v1823 = vpop.f32.mrf.mxu0
        %v1824 = vadd.f32 %v1711, %v1823
        %v1825 = vpop.f32.mrf.mxu0
        %v1826 = vadd.f32 %v1713, %v1825
        %1827 = vmatprep.mubr.bf16.mxu0 0
        %1828 = vmatmul.mubr.bf16.gmra.mxu0 %v787
        %v1829 = vpop.f32.mrf.mxu0
        %v1830 = vadd.f32 %v1717, %v1829
        %v1831 = vpop.f32.mrf.mxu0
        %v1832 = vadd.f32 %v1719, %v1831
        %v1833 = vpop.f32.mrf.mxu0
        %v1834 = vadd.f32 %v1721, %v1833
        %v1835 = vpop.f32.mrf.mxu0
        %v1836 = vadd.f32 %v1723, %v1835
        %1837 = vmatprep.mubr.bf16.mxu0 0
        %1838 = vmatmul.mubr.bf16.gmra.mxu0 %v794
        %v1839 = vpop.f32.mrf.mxu0
        %v1840 = vadd.f32 %v1727, %v1839
        %v1841 = vpop.f32.mrf.mxu0
        %v1842 = vadd.f32 %v1729, %v1841
        %v1843 = vpop.f32.mrf.mxu0
        %v1844 = vadd.f32 %v1731, %v1843
        %v1845 = vpop.f32.mrf.mxu0
        %v1846 = vadd.f32 %v1733, %v1845
        %1847 = vmatprep.mubr.bf16.mxu0 0
        %1848 = vmatmul.mubr.bf16.gmra.mxu0 %v801
        %v1849 = vpop.f32.mrf.mxu0
        %v1850 = vadd.f32 %v1737, %v1849
        %v1851 = vpop.f32.mrf.mxu0
        %v1852 = vadd.f32 %v1739, %v1851
        %v1853 = vpop.f32.mrf.mxu0
        %v1854 = vadd.f32 %v1741, %v1853
        %v1855 = vpop.f32.mrf.mxu0
        %v1856 = vadd.f32 %v1743, %v1855
        %1857 = vmatprep.mubr.bf16.mxu0 0
        %1858 = vmatmul.mubr.bf16.gmra.mxu0 %v808
        %v1859 = vpop.f32.mrf.mxu0
        %v1860 = vadd.f32 %v1747, %v1859
        %v1861 = vpop.f32.mrf.mxu0
        %v1862 = vadd.f32 %v1749, %v1861
        %v1863 = vpop.f32.mrf.mxu0
        %v1864 = vadd.f32 %v1751, %v1863
        %v1865 = vpop.f32.mrf.mxu0
        %v1866 = vadd.f32 %v1753, %v1865
        %1867 = vmatprep.mubr.bf16.mxu0 0
        %1868 = vmatmul.mubr.bf16.gmra.mxu0 %v815
        %v1869 = vpop.f32.mrf.mxu0
        %v1870 = vadd.f32 %v1757, %v1869
        %v1871 = vpop.f32.mrf.mxu0
        %v1872 = vadd.f32 %v1759, %v1871
        %v1873 = vpop.f32.mrf.mxu0
        %v1874 = vadd.f32 %v1761, %v1873
        %v1875 = vpop.f32.mrf.mxu0
        %v1876 = vadd.f32 %v1763, %v1875
        %1877 = vmatprep.mubr.bf16.mxu0 0
        %1878 = vmatmul.mubr.bf16.gmra.mxu0 %v822
        %v1879 = vpop.f32.mrf.mxu0
        %v1880 = vadd.f32 %v1767, %v1879
        %v1881 = vpop.f32.mrf.mxu0
        %v1882 = vadd.f32 %v1769, %v1881
        %v1883 = vpop.f32.mrf.mxu0
        %v1884 = vadd.f32 %v1771, %v1883
        %v1885 = vpop.f32.mrf.mxu0
        %v1886 = vadd.f32 %v1773, %v1885
        %1887 = vmatprep.mubr.bf16.mxu0 0
        %1888 = vmatmul.mubr.bf16.gmra.mxu0 %v829
        %v1889 = vpop.f32.mrf.mxu0
        %v1890 = vadd.f32 %v1777, %v1889
        %v1891 = vpop.f32.mrf.mxu0
        %v1892 = vadd.f32 %v1779, %v1891
        %v1893 = vpop.f32.mrf.mxu0
        %v1894 = vadd.f32 %v1781, %v1893
        %v1895 = vpop.f32.mrf.mxu0
        %v1896 = vadd.f32 %v1783, %v1895
        %1897 = vdwg.mxu0
        %1898 = vmatprep.subr.mxu0 %v1896
        %1899 = vmatpush1.msra.mxu0 %v1894
        %1900 = vmatprep.subr.mxu0 %v1892
        %1901 = vmatpush1.msra.mxu0 %v1890
        %1902 = vmatprep.subr.mxu0 %v1886
        %1903 = vmatpush1.msra.mxu0 %v1884
        %1904 = vmatprep.subr.mxu0 %v1882
        %1905 = vmatpush1.msra.mxu0 %v1880
        %1906 = vmatprep.subr.mxu0 %v1876
        %1907 = vmatpush1.msra.mxu0 %v1874
        %1908 = vmatprep.subr.mxu0 %v1872
        %1909 = vmatpush1.msra.mxu0 %v1870
        %1910 = vmatprep.subr.mxu0 %v1866
        %1911 = vmatpush1.msra.mxu0 %v1864
        %1912 = vmatprep.subr.mxu0 %v1862
        %1913 = vmatpush1.msra.mxu0 %v1860
        %1914 = vmatprep.subr.mxu0 %v1856
        %1915 = vmatpush1.msra.mxu0 %v1854
        %1916 = vmatprep.subr.mxu0 %v1852
        %1917 = vmatpush1.msra.mxu0 %v1850
        %1918 = vmatprep.subr.mxu0 %v1846
        %1919 = vmatpush1.msra.mxu0 %v1844
        %1920 = vmatprep.subr.mxu0 %v1842
        %1921 = vmatpush1.msra.mxu0 %v1840
        %1922 = vmatprep.subr.mxu0 %v1836
        %1923 = vmatpush1.msra.mxu0 %v1834
        %1924 = vmatprep.subr.mxu0 %v1832
        %1925 = vmatpush1.msra.mxu0 %v1830
        %1926 = vmatprep.subr.mxu0 %v1826
        %1927 = vmatpush1.msra.mxu0 %v1824
        %1928 = vmatprep.subr.mxu0 %v1822
        %1929 = vmatpush1.msra.mxu0 %v1820
        %1930 = vmatprep.subr.mxu0 0.0
        %1931 = vmatpush2.msra.mxu0 0.0
        %1932 = vmatprep.subr.mxu0 0.0
        %1933 = vmatpush2.msra.mxu0 0.0
        %1934 = vmatprep.subr.mxu0 0.0
        %1935 = vmatpush2.msra.mxu0 0.0
        %1936 = vmatprep.subr.mxu0 0.0
        %1937 = vmatpush2.msra.mxu0 0.0
        %1938 = vmatprep.subr.mxu0 0.0
        %1939 = vmatpush2.msra.mxu0 0.0
        %1940 = vmatprep.subr.mxu0 0.0
        %1941 = vmatpush2.msra.mxu0 0.0
        %1942 = vmatprep.subr.mxu0 0.0
        %1943 = vmatpush2.msra.mxu0 0.0
        %1944 = vmatprep.subr.mxu0 0.0
        %1945 = vmatpush2.msra.mxu0 0.0
        %1946 = vmatprep.subr.mxu0 0.0
        %1947 = vmatpush2.msra.mxu0 0.0
        %1948 = vmatprep.subr.mxu0 0.0
        %1949 = vmatpush2.msra.mxu0 0.0
        %1950 = vmatprep.subr.mxu0 0.0
        %1951 = vmatpush2.msra.mxu0 0.0
        %1952 = vmatprep.subr.mxu0 0.0
        %1953 = vmatpush2.msra.mxu0 0.0
        %1954 = vmatprep.subr.mxu0 0.0
        %1955 = vmatpush2.msra.mxu0 0.0
        %1956 = vmatprep.subr.mxu0 0.0
        %1957 = vmatpush2.msra.mxu0 0.0
        %1958 = vmatprep.subr.mxu0 0.0
        %1959 = vmatpush2.msra.mxu0 0.0
        %1960 = vmatprep.subr.mxu0 0.0
        %1961 = vmatpush2.msra.mxu0 0.0
        %1962 = vmatprep.mubr.f32.mxu0 0.0
        %1963 = vmatmul.mubr.f32.gmra.mxu0 %v406
        %v1964 = vpop.f32.mrf.mxu0
        %v1965 = vadd.f32 0.0, %v1964
        %v1966 = vpop.f32.mrf.mxu0
        %v1967 = vadd.f32 0.0, %v1966
        %1968 = vmatprep.mubr.f32.mxu0 0.0
        %1969 = vmatmul.mubr.f32.gmra.mxu0 %v407
        %v1970 = vpop.f32.mrf.mxu0
        %v1971 = vadd.f32 0.0, %v1970
        %v1972 = vpop.f32.mrf.mxu0
        %v1973 = vadd.f32 0.0, %v1972
        %1974 = vmatprep.mubr.f32.mxu0 0.0
        %1975 = vmatmul.mubr.f32.gmra.mxu0 %v408
        %v1976 = vpop.f32.mrf.mxu0
        %v1977 = vadd.f32 0.0, %v1976
        %v1978 = vpop.f32.mrf.mxu0
        %v1979 = vadd.f32 0.0, %v1978
        %1980 = vmatprep.mubr.f32.mxu0 0.0
        %1981 = vmatmul.mubr.f32.gmra.mxu0 %v409
        %v1982 = vpop.f32.mrf.mxu0
        %v1983 = vadd.f32 0.0, %v1982
        %v1984 = vpop.f32.mrf.mxu0
        %v1985 = vadd.f32 0.0, %v1984
        %1986 = vmatprep.mubr.f32.mxu0 0.0
        %1987 = vmatmul.mubr.f32.gmra.mxu0 %v410
        %v1988 = vpop.f32.mrf.mxu0
        %v1989 = vadd.f32 0.0, %v1988
        %v1990 = vpop.f32.mrf.mxu0
        %v1991 = vadd.f32 0.0, %v1990
        %1992 = vmatprep.mubr.f32.mxu0 0.0
        %1993 = vmatmul.mubr.f32.gmra.mxu0 %v411
        %v1994 = vpop.f32.mrf.mxu0
        %v1995 = vadd.f32 0.0, %v1994
        %v1996 = vpop.f32.mrf.mxu0
        %v1997 = vadd.f32 0.0, %v1996
        %1998 = vmatprep.mubr.f32.mxu0 0.0
        %1999 = vmatmul.mubr.f32.gmra.mxu0 %v412
        %v2000 = vpop.f32.mrf.mxu0
        %v2001 = vadd.f32 0.0, %v2000
        %v2002 = vpop.f32.mrf.mxu0
        %v2003 = vadd.f32 0.0, %v2002
        %2004 = vmatprep.mubr.f32.mxu0 0.0
        %2005 = vmatmul.mubr.f32.gmra.mxu0 %v413
        %v2006 = vpop.f32.mrf.mxu0
        %v2007 = vadd.f32 0.0, %v2006
        %v2008 = vpop.f32.mrf.mxu0
        %v2009 = vadd.f32 0.0, %v2008
        %2010 = vmatprep.mubr.f32.mxu0 0.0
        %2011 = vmatmul.mubr.f32.gmra.mxu0 %v414
        %v2012 = vpop.f32.mrf.mxu0
        %v2013 = vadd.f32 0.0, %v2012
        %v2014 = vpop.f32.mrf.mxu0
        %v2015 = vadd.f32 0.0, %v2014
        %2016 = vmatprep.mubr.f32.mxu0 0.0
        %2017 = vmatmul.mubr.f32.gmra.mxu0 %v415
        %v2018 = vpop.f32.mrf.mxu0
        %v2019 = vadd.f32 0.0, %v2018
        %v2020 = vpop.f32.mrf.mxu0
        %v2021 = vadd.f32 0.0, %v2020
        %2022 = vmatprep.mubr.f32.mxu0 0.0
        %2023 = vmatmul.mubr.f32.gmra.mxu0 %v416
        %v2024 = vpop.f32.mrf.mxu0
        %v2025 = vadd.f32 0.0, %v2024
        %v2026 = vpop.f32.mrf.mxu0
        %v2027 = vadd.f32 0.0, %v2026
        %2028 = vmatprep.mubr.f32.mxu0 0.0
        %2029 = vmatmul.mubr.f32.gmra.mxu0 %v417
        %v2030 = vpop.f32.mrf.mxu0
        %v2031 = vadd.f32 0.0, %v2030
        %v2032 = vpop.f32.mrf.mxu0
        %v2033 = vadd.f32 0.0, %v2032
        %2034 = vmatprep.mubr.f32.mxu0 0.0
        %2035 = vmatmul.mubr.f32.gmra.mxu0 %v418
        %v2036 = vpop.f32.mrf.mxu0
        %v2037 = vadd.f32 0.0, %v2036
        %v2038 = vpop.f32.mrf.mxu0
        %v2039 = vadd.f32 0.0, %v2038
        %2040 = vmatprep.mubr.f32.mxu0 0.0
        %2041 = vmatmul.mubr.f32.gmra.mxu0 %v419
        %v2042 = vpop.f32.mrf.mxu0
        %v2043 = vadd.f32 0.0, %v2042
        %v2044 = vpop.f32.mrf.mxu0
        %v2045 = vadd.f32 0.0, %v2044
        %2046 = vmatprep.mubr.f32.mxu0 0.0
        %2047 = vmatmul.mubr.f32.gmra.mxu0 %v420
        %v2048 = vpop.f32.mrf.mxu0
        %v2049 = vadd.f32 0.0, %v2048
        %v2050 = vpop.f32.mrf.mxu0
        %v2051 = vadd.f32 0.0, %v2050
        %2052 = vmatprep.mubr.f32.mxu0 0.0
        %2053 = vmatmul.mubr.f32.gmra.mxu0 %v421
        %v2054 = vpop.f32.mrf.mxu0
        %v2055 = vadd.f32 0.0, %v2054
        %v2056 = vpop.f32.mrf.mxu0
        %v2057 = vadd.f32 0.0, %v2056
        %2058 = vdwg.mxu0
        %vm2059 = vcmp.ge.f32.partialorder %v1965, 1.0
        %vm2060 = vcmp.ge.f32.partialorder %v1967, 1.0
        %vm2061 = vcmp.ge.f32.partialorder %v1971, 1.0
        %vm2062 = vcmp.ge.f32.partialorder %v1973, 1.0
        %v2063 = vsel %vm2059, 1.0, 0.0
        %v2064 = vsel %vm2060, 1.0, 0.0
        %v2065 = vsel %vm2061, 1.0, 0.0
        %v2066 = vsel %vm2062, 1.0, 0.0
        %v2067 = vmul.f32 %v2063, -1.6487212
        %v2068 = vmul.f32 %v2064, -1.6487212
        %v2069 = vmul.f32 %v2065, -1.6487212
        %v2070 = vmul.f32 %v2066, -1.6487212
        %v2071 = vadd.f32 %v1977, %v2067
        %v2072 = vadd.f32 %v1979, %v2068
        %v2073 = vadd.f32 %v1983, %v2069
        %v2074 = vadd.f32 %v1985, %v2070
        %vm2075 = vcmp.ge.f32.partialorder %v2071, 1.0
        %vm2076 = vcmp.ge.f32.partialorder %v2072, 1.0
        %vm2077 = vcmp.ge.f32.partialorder %v2073, 1.0
        %vm2078 = vcmp.ge.f32.partialorder %v2074, 1.0
        %v2079 = vsel %vm2075, 1.0, 0.0
        %v2080 = vsel %vm2076, 1.0, 0.0
        %v2081 = vsel %vm2077, 1.0, 0.0
        %v2082 = vsel %vm2078, 1.0, 0.0
        %v2083 = vmul.f32 %v2063, -2.0
        %v2084 = vmul.f32 %v2064, -2.0
        %v2085 = vmul.f32 %v2065, -2.0
        %v2086 = vmul.f32 %v2066, -2.0
        %v2087 = vadd.f32 %v1989, %v2083
        %v2088 = vadd.f32 %v1991, %v2084
        %v2089 = vadd.f32 %v1995, %v2085
        %v2090 = vadd.f32 %v1997, %v2086
        %v2091 = vmul.f32 %v2079, -1.6487212
        %v2092 = vmul.f32 %v2080, -1.6487212
        %v2093 = vmul.f32 %v2081, -1.6487212
        %v2094 = vmul.f32 %v2082, -1.6487212
        %v2095 = vadd.f32 %v2087, %v2091
        %v2096 = vadd.f32 %v2088, %v2092
        %v2097 = vadd.f32 %v2089, %v2093
        %v2098 = vadd.f32 %v2090, %v2094
        %vm2099 = vcmp.ge.f32.partialorder %v2095, 1.0
        %vm2100 = vcmp.ge.f32.partialorder %v2096, 1.0
        %vm2101 = vcmp.ge.f32.partialorder %v2097, 1.0
        %vm2102 = vcmp.ge.f32.partialorder %v2098, 1.0
        %v2103 = vsel %vm2099, 1.0, 0.0
        %v2104 = vsel %vm2100, 1.0, 0.0
        %v2105 = vsel %vm2101, 1.0, 0.0
        %v2106 = vsel %vm2102, 1.0, 0.0
        %v2107 = vmul.f32 %v2063, -1.819592
        %v2108 = vmul.f32 %v2064, -1.819592
        %v2109 = vmul.f32 %v2065, -1.819592
        %v2110 = vmul.f32 %v2066, -1.819592
        %v2111 = vadd.f32 %v2001, %v2107
        %v2112 = vadd.f32 %v2003, %v2108
        %v2113 = vadd.f32 %v2007, %v2109
        %v2114 = vadd.f32 %v2009, %v2110
        %v2115 = vmul.f32 %v2079, -2.0
        %v2116 = vmul.f32 %v2080, -2.0
        %v2117 = vmul.f32 %v2081, -2.0
        %v2118 = vmul.f32 %v2082, -2.0
        %v2119 = vadd.f32 %v2111, %v2115
        %v2120 = vadd.f32 %v2112, %v2116
        %v2121 = vadd.f32 %v2113, %v2117
        %v2122 = vadd.f32 %v2114, %v2118
        %v2123 = vmul.f32 %v2103, -1.6487212
        %v2124 = vmul.f32 %v2104, -1.6487212
        %v2125 = vmul.f32 %v2105, -1.6487212
        %v2126 = vmul.f32 %v2106, -1.6487212
        %v2127 = vadd.f32 %v2119, %v2123
        %v2128 = vadd.f32 %v2120, %v2124
        %v2129 = vadd.f32 %v2121, %v2125
        %v2130 = vadd.f32 %v2122, %v2126
        %vm2131 = vcmp.ge.f32.partialorder %v2127, 1.0
        %vm2132 = vcmp.ge.f32.partialorder %v2128, 1.0
        %vm2133 = vcmp.ge.f32.partialorder %v2129, 1.0
        %vm2134 = vcmp.ge.f32.partialorder %v2130, 1.0
        %v2135 = vsel %vm2131, 1.0, 0.0
        %v2136 = vsel %vm2132, 1.0, 0.0
        %v2137 = vsel %vm2133, 1.0, 0.0
        %v2138 = vsel %vm2134, 1.0, 0.0
        %v2139 = vmul.f32 %v2063, -1.4715178
        %v2140 = vmul.f32 %v2064, -1.4715178
        %v2141 = vmul.f32 %v2065, -1.4715178
        %v2142 = vmul.f32 %v2066, -1.4715178
        %v2143 = vadd.f32 %v2013, %v2139
        %v2144 = vadd.f32 %v2015, %v2140
        %v2145 = vadd.f32 %v2019, %v2141
        %v2146 = vadd.f32 %v2021, %v2142
        %v2147 = vmul.f32 %v2079, -1.819592
        %v2148 = vmul.f32 %v2080, -1.819592
        %v2149 = vmul.f32 %v2081, -1.819592
        %v2150 = vmul.f32 %v2082, -1.819592
        %v2151 = vadd.f32 %v2143, %v2147
        %v2152 = vadd.f32 %v2144, %v2148
        %v2153 = vadd.f32 %v2145, %v2149
        %v2154 = vadd.f32 %v2146, %v2150
        %v2155 = vmul.f32 %v2103, -2.0
        %v2156 = vmul.f32 %v2104, -2.0
        %v2157 = vmul.f32 %v2105, -2.0
        %v2158 = vmul.f32 %v2106, -2.0
        %v2159 = vadd.f32 %v2151, %v2155
        %v2160 = vadd.f32 %v2152, %v2156
        %v2161 = vadd.f32 %v2153, %v2157
        %v2162 = vadd.f32 %v2154, %v2158
        %v2163 = vmul.f32 %v2135, -1.6487212
        %v2164 = vmul.f32 %v2136, -1.6487212
        %v2165 = vmul.f32 %v2137, -1.6487212
        %v2166 = vmul.f32 %v2138, -1.6487212
        %v2167 = vadd.f32 %v2159, %v2163
        %v2168 = vadd.f32 %v2160, %v2164
        %v2169 = vadd.f32 %v2161, %v2165
        %v2170 = vadd.f32 %v2162, %v2166
        %vm2171 = vcmp.ge.f32.partialorder %v2167, 1.0
        %vm2172 = vcmp.ge.f32.partialorder %v2168, 1.0
        %vm2173 = vcmp.ge.f32.partialorder %v2169, 1.0
        %vm2174 = vcmp.ge.f32.partialorder %v2170, 1.0
        %v2175 = vsel %vm2171, 1.0, 0.0
        %v2176 = vsel %vm2172, 1.0, 0.0
        %v2177 = vsel %vm2173, 1.0, 0.0
        %v2178 = vsel %vm2174, 1.0, 0.0
        %v2179 = vmul.f32 %v2063, -1.1156508
        %v2180 = vmul.f32 %v2064, -1.1156508
        %v2181 = vmul.f32 %v2065, -1.1156508
        %v2182 = vmul.f32 %v2066, -1.1156508
        %v2183 = vadd.f32 %v2025, %v2179
        %v2184 = vadd.f32 %v2027, %v2180
        %v2185 = vadd.f32 %v2031, %v2181
        %v2186 = vadd.f32 %v2033, %v2182
        %v2187 = vmul.f32 %v2079, -1.4715178
        %v2188 = vmul.f32 %v2080, -1.4715178
        %v2189 = vmul.f32 %v2081, -1.4715178
        %v2190 = vmul.f32 %v2082, -1.4715178
        %v2191 = vadd.f32 %v2183, %v2187
        %v2192 = vadd.f32 %v2184, %v2188
        %v2193 = vadd.f32 %v2185, %v2189
        %v2194 = vadd.f32 %v2186, %v2190
        %v2195 = vmul.f32 %v2103, -1.819592
        %v2196 = vmul.f32 %v2104, -1.819592
        %v2197 = vmul.f32 %v2105, -1.819592
        %v2198 = vmul.f32 %v2106, -1.819592
        %v2199 = vadd.f32 %v2191, %v2195
        %v2200 = vadd.f32 %v2192, %v2196
        %v2201 = vadd.f32 %v2193, %v2197
        %v2202 = vadd.f32 %v2194, %v2198
        %v2203 = vmul.f32 %v2135, -2.0
        %v2204 = vmul.f32 %v2136, -2.0
        %v2205 = vmul.f32 %v2137, -2.0
        %v2206 = vmul.f32 %v2138, -2.0
        %v2207 = vadd.f32 %v2199, %v2203
        %v2208 = vadd.f32 %v2200, %v2204
        %v2209 = vadd.f32 %v2201, %v2205
        %v2210 = vadd.f32 %v2202, %v2206
        %v2211 = vmul.f32 %v2175, -1.6487212
        %v2212 = vmul.f32 %v2176, -1.6487212
        %v2213 = vmul.f32 %v2177, -1.6487212
        %v2214 = vmul.f32 %v2178, -1.6487212
        %v2215 = vadd.f32 %v2207, %v2211
        %v2216 = vadd.f32 %v2208, %v2212
        %v2217 = vadd.f32 %v2209, %v2213
        %v2218 = vadd.f32 %v2210, %v2214
        %vm2219 = vcmp.ge.f32.partialorder %v2215, 1.0
        %vm2220 = vcmp.ge.f32.partialorder %v2216, 1.0
        %vm2221 = vcmp.ge.f32.partialorder %v2217, 1.0
        %vm2222 = vcmp.ge.f32.partialorder %v2218, 1.0
        %v2223 = vsel %vm2219, 1.0, 0.0
        %v2224 = vsel %vm2220, 1.0, 0.0
        %v2225 = vsel %vm2221, 1.0, 0.0
        %v2226 = vsel %vm2222, 1.0, 0.0
        %v2227 = vmul.f32 %v2063, -0.8120117
        %v2228 = vmul.f32 %v2064, -0.8120117
        %v2229 = vmul.f32 %v2065, -0.8120117
        %v2230 = vmul.f32 %v2066, -0.8120117
        %v2231 = vadd.f32 %v2037, %v2227
        %v2232 = vadd.f32 %v2039, %v2228
        %v2233 = vadd.f32 %v2043, %v2229
        %v2234 = vadd.f32 %v2045, %v2230
        %v2235 = vmul.f32 %v2079, -1.1156508
        %v2236 = vmul.f32 %v2080, -1.1156508
        %v2237 = vmul.f32 %v2081, -1.1156508
        %v2238 = vmul.f32 %v2082, -1.1156508
        %v2239 = vadd.f32 %v2231, %v2235
        %v2240 = vadd.f32 %v2232, %v2236
        %v2241 = vadd.f32 %v2233, %v2237
        %v2242 = vadd.f32 %v2234, %v2238
        %v2243 = vmul.f32 %v2103, -1.4715178
        %v2244 = vmul.f32 %v2104, -1.4715178
        %v2245 = vmul.f32 %v2105, -1.4715178
        %v2246 = vmul.f32 %v2106, -1.4715178
        %v2247 = vadd.f32 %v2239, %v2243
        %v2248 = vadd.f32 %v2240, %v2244
        %v2249 = vadd.f32 %v2241, %v2245
        %v2250 = vadd.f32 %v2242, %v2246
        %v2251 = vmul.f32 %v2135, -1.819592
        %v2252 = vmul.f32 %v2136, -1.819592
        %v2253 = vmul.f32 %v2137, -1.819592
        %v2254 = vmul.f32 %v2138, -1.819592
        %v2255 = vadd.f32 %v2247, %v2251
        %v2256 = vadd.f32 %v2248, %v2252
        %v2257 = vadd.f32 %v2249, %v2253
        %v2258 = vadd.f32 %v2250, %v2254
        %v2259 = vmul.f32 %v2175, -2.0
        %v2260 = vmul.f32 %v2176, -2.0
        %v2261 = vmul.f32 %v2177, -2.0
        %v2262 = vmul.f32 %v2178, -2.0
        %v2263 = vadd.f32 %v2255, %v2259
        %v2264 = vadd.f32 %v2256, %v2260
        %v2265 = vadd.f32 %v2257, %v2261
        %v2266 = vadd.f32 %v2258, %v2262
        %v2267 = vmul.f32 %v2223, -1.6487212
        %v2268 = vmul.f32 %v2224, -1.6487212
        %v2269 = vmul.f32 %v2225, -1.6487212
        %v2270 = vmul.f32 %v2226, -1.6487212
        %v2271 = vadd.f32 %v2263, %v2267
        %v2272 = vadd.f32 %v2264, %v2268
        %v2273 = vadd.f32 %v2265, %v2269
        %v2274 = vadd.f32 %v2266, %v2270
        %vm2275 = vcmp.ge.f32.partialorder %v2271, 1.0
        %vm2276 = vcmp.ge.f32.partialorder %v2272, 1.0
        %vm2277 = vcmp.ge.f32.partialorder %v2273, 1.0
        %vm2278 = vcmp.ge.f32.partialorder %v2274, 1.0
        %v2279 = vsel %vm2275, 1.0, 0.0
        %v2280 = vsel %vm2276, 1.0, 0.0
        %v2281 = vsel %vm2277, 1.0, 0.0
        %v2282 = vsel %vm2278, 1.0, 0.0
        %v2283 = vmul.f32 %v2063, -0.574595
        %v2284 = vmul.f32 %v2064, -0.574595
        %v2285 = vmul.f32 %v2065, -0.574595
        %v2286 = vmul.f32 %v2066, -0.574595
        %v2287 = vadd.f32 %v2049, %v2283
        %v2288 = vadd.f32 %v2051, %v2284
        %v2289 = vadd.f32 %v2055, %v2285
        %v2290 = vadd.f32 %v2057, %v2286
        %v2291 = vmul.f32 %v2079, -0.8120117
        %v2292 = vmul.f32 %v2080, -0.8120117
        %v2293 = vmul.f32 %v2081, -0.8120117
        %v2294 = vmul.f32 %v2082, -0.8120117
        %v2295 = vadd.f32 %v2287, %v2291
        %v2296 = vadd.f32 %v2288, %v2292
        %v2297 = vadd.f32 %v2289, %v2293
        %v2298 = vadd.f32 %v2290, %v2294
        %v2299 = vmul.f32 %v2103, -1.1156508
        %v2300 = vmul.f32 %v2104, -1.1156508
        %v2301 = vmul.f32 %v2105, -1.1156508
        %v2302 = vmul.f32 %v2106, -1.1156508
        %v2303 = vadd.f32 %v2295, %v2299
        %v2304 = vadd.f32 %v2296, %v2300
        %v2305 = vadd.f32 %v2297, %v2301
        %v2306 = vadd.f32 %v2298, %v2302
        %v2307 = vmul.f32 %v2135, -1.4715178
        %v2308 = vmul.f32 %v2136, -1.4715178
        %v2309 = vmul.f32 %v2137, -1.4715178
        %v2310 = vmul.f32 %v2138, -1.4715178
        %v2311 = vadd.f32 %v2303, %v2307
        %v2312 = vadd.f32 %v2304, %v2308
        %v2313 = vadd.f32 %v2305, %v2309
        %v2314 = vadd.f32 %v2306, %v2310
        %v2315 = vmul.f32 %v2175, -1.819592
        %v2316 = vmul.f32 %v2176, -1.819592
        %v2317 = vmul.f32 %v2177, -1.819592
        %v2318 = vmul.f32 %v2178, -1.819592
        %v2319 = vadd.f32 %v2311, %v2315
        %v2320 = vadd.f32 %v2312, %v2316
        %v2321 = vadd.f32 %v2313, %v2317
        %v2322 = vadd.f32 %v2314, %v2318
        %v2323 = vmul.f32 %v2223, -2.0
        %v2324 = vmul.f32 %v2224, -2.0
        %v2325 = vmul.f32 %v2225, -2.0
        %v2326 = vmul.f32 %v2226, -2.0
        %v2327 = vadd.f32 %v2319, %v2323
        %v2328 = vadd.f32 %v2320, %v2324
        %v2329 = vadd.f32 %v2321, %v2325
        %v2330 = vadd.f32 %v2322, %v2326
        %v2331 = vmul.f32 %v2279, -1.6487212
        %v2332 = vmul.f32 %v2280, -1.6487212
        %v2333 = vmul.f32 %v2281, -1.6487212
        %v2334 = vmul.f32 %v2282, -1.6487212
        %v2335 = vadd.f32 %v2327, %v2331
        %v2336 = vadd.f32 %v2328, %v2332
        %v2337 = vadd.f32 %v2329, %v2333
        %v2338 = vadd.f32 %v2330, %v2334
        %vm2339 = vcmp.ge.f32.partialorder %v2335, 1.0
        %vm2340 = vcmp.ge.f32.partialorder %v2336, 1.0
        %vm2341 = vcmp.ge.f32.partialorder %v2337, 1.0
        %vm2342 = vcmp.ge.f32.partialorder %v2338, 1.0
        %v2343 = vsel %vm2339, 1.0, 0.0
        %v2344 = vsel %vm2340, 1.0, 0.0
        %v2345 = vsel %vm2341, 1.0, 0.0
        %v2346 = vsel %vm2342, 1.0, 0.0
        %v2347 = vpack.c.bf16 %v2065, %v2063
        %v2348 = vpack.c.bf16 %v2066, %v2064
        %v2349 = vpack.c.bf16 %v2081, %v2079
        %v2350 = vpack.c.bf16 %v2082, %v2080
        %v2351 = vpack.c.bf16 %v2105, %v2103
        %v2352 = vpack.c.bf16 %v2106, %v2104
        %v2353 = vpack.c.bf16 %v2137, %v2135
        %v2354 = vpack.c.bf16 %v2138, %v2136
        %v2355 = vpack.c.bf16 %v2177, %v2175
        %v2356 = vpack.c.bf16 %v2178, %v2176
        %v2357 = vpack.c.bf16 %v2225, %v2223
        %v2358 = vpack.c.bf16 %v2226, %v2224
        %v2359 = vpack.c.bf16 %v2281, %v2279
        %v2360 = vpack.c.bf16 %v2282, %v2280
        %v2361 = vpack.c.bf16 %v2345, %v2343
        %v2362 = vpack.c.bf16 %v2346, %v2344
        %v2363 = vld [vmem:[%s3] sm:$0xf]
        %v2364 = vld [vmem:[%s3 + $0x4] sm:$0xf]
        %v2365 = vld [vmem:[%s3 + $0x8] sm:$0xf]
        %v2366 = vld [vmem:[%s3 + $0xc] sm:$0xf]
        %v2367 = vld [vmem:[%s3 + $0x10] sm:$0xf]
        %v2368 = vld [vmem:[%s3 + $0x14] sm:$0xf]
        %v2369 = vld [vmem:[%s3 + $0x18] sm:$0xf]
        %v2370 = vld [vmem:[%s3 + $0x1c] sm:$0xf]
        %v2371 = vld [vmem:[%s3 + $0x20] sm:$0xf]
        %v2372 = vld [vmem:[%s3 + $0x24] sm:$0xf]
        %v2373 = vld [vmem:[%s3 + $0x28] sm:$0xf]
        %v2374 = vld [vmem:[%s3 + $0x2c] sm:$0xf]
        %v2375 = vld [vmem:[%s3 + $0x30] sm:$0xf]
        %v2376 = vld [vmem:[%s3 + $0x34] sm:$0xf]
        %v2377 = vld [vmem:[%s3 + $0x38] sm:$0xf]
        %v2378 = vld [vmem:[%s3 + $0x3c] sm:$0xf]
        %v2379 = vld [vmem:[%s3 + $0x40] sm:$0xf]
        %v2380 = vld [vmem:[%s3 + $0x44] sm:$0xf]
        %v2381 = vld [vmem:[%s3 + $0x48] sm:$0xf]
        %v2382 = vld [vmem:[%s3 + $0x4c] sm:$0xf]
        %v2383 = vld [vmem:[%s3 + $0x50] sm:$0xf]
        %v2384 = vld [vmem:[%s3 + $0x54] sm:$0xf]
        %v2385 = vld [vmem:[%s3 + $0x58] sm:$0xf]
        %v2386 = vld [vmem:[%s3 + $0x5c] sm:$0xf]
        %v2387 = vld [vmem:[%s3 + $0x60] sm:$0xf]
        %v2388 = vld [vmem:[%s3 + $0x64] sm:$0xf]
        %v2389 = vld [vmem:[%s3 + $0x68] sm:$0xf]
        %v2390 = vld [vmem:[%s3 + $0x6c] sm:$0xf]
        %v2391 = vld [vmem:[%s3 + $0x70] sm:$0xf]
        %v2392 = vld [vmem:[%s3 + $0x74] sm:$0xf]
        %v2393 = vld [vmem:[%s3 + $0x78] sm:$0xf]
        %v2394 = vld [vmem:[%s3 + $0x7c] sm:$0xf]
        %v2427 = vunpack.c.l.b16 %v2363
        %v2428 = vunpack.c.l.b16 %v2364
        %v2429 = vunpack.c.l.b16 %v2365
        %v2430 = vunpack.c.l.b16 %v2366
        %v2431 = vunpack.c.l.b16 %v2367
        %v2432 = vunpack.c.l.b16 %v2368
        %v2433 = vunpack.c.l.b16 %v2369
        %v2434 = vunpack.c.l.b16 %v2370
        %v2435 = vunpack.c.l.b16 %v2371
        %v2436 = vunpack.c.l.b16 %v2372
        %v2437 = vunpack.c.l.b16 %v2373
        %v2438 = vunpack.c.l.b16 %v2374
        %v2439 = vunpack.c.l.b16 %v2375
        %v2440 = vunpack.c.l.b16 %v2376
        %v2441 = vunpack.c.l.b16 %v2377
        %v2442 = vunpack.c.l.b16 %v2378
        %v2443 = vunpack.c.l.b16 %v2379
        %v2444 = vunpack.c.l.b16 %v2380
        %v2445 = vunpack.c.l.b16 %v2381
        %v2446 = vunpack.c.l.b16 %v2382
        %v2447 = vunpack.c.l.b16 %v2383
        %v2448 = vunpack.c.l.b16 %v2384
        %v2449 = vunpack.c.l.b16 %v2385
        %v2450 = vunpack.c.l.b16 %v2386
        %v2451 = vunpack.c.l.b16 %v2387
        %v2452 = vunpack.c.l.b16 %v2388
        %v2453 = vunpack.c.l.b16 %v2389
        %v2454 = vunpack.c.l.b16 %v2390
        %v2455 = vunpack.c.l.b16 %v2391
        %v2456 = vunpack.c.l.b16 %v2392
        %v2457 = vunpack.c.l.b16 %v2393
        %v2458 = vunpack.c.l.b16 %v2394
        %v2459 = vpack.c.b16 %v2428, %v2427
        %v2460 = vpack.c.b16 %v2430, %v2429
        %v2461 = vpack.c.b16 %v2432, %v2431
        %v2462 = vpack.c.b16 %v2434, %v2433
        %v2463 = vpack.c.b16 %v2436, %v2435
        %v2464 = vpack.c.b16 %v2438, %v2437
        %v2465 = vpack.c.b16 %v2440, %v2439
        %v2466 = vpack.c.b16 %v2442, %v2441
        %v2467 = vpack.c.b16 %v2444, %v2443
        %v2468 = vpack.c.b16 %v2446, %v2445
        %v2469 = vpack.c.b16 %v2448, %v2447
        %v2470 = vpack.c.b16 %v2450, %v2449
        %v2471 = vpack.c.b16 %v2452, %v2451
        %v2472 = vpack.c.b16 %v2454, %v2453
        %v2473 = vpack.c.b16 %v2456, %v2455
        %v2474 = vpack.c.b16 %v2458, %v2457
        %2491 = vmatprep.subr.bf16.mxu0 0
        %2492 = vmatpush1.bf16.msra.mxu0 %v2466
        %2493 = vmatprep.subr.bf16.mxu0 0
        %2494 = vmatpush1.bf16.msra.mxu0 %v2465
        %2495 = vmatprep.subr.bf16.mxu0 0
        %2496 = vmatpush1.bf16.msra.mxu0 %v2464
        %2497 = vmatprep.subr.bf16.mxu0 0
        %2498 = vmatpush1.bf16.msra.mxu0 %v2463
        %2499 = vmatprep.subr.bf16.mxu0 0
        %2500 = vmatpush1.bf16.msra.mxu0 %v2462
        %2501 = vmatprep.subr.bf16.mxu0 0
        %2502 = vmatpush1.bf16.msra.mxu0 %v2461
        %2503 = vmatprep.subr.bf16.mxu0 0
        %2504 = vmatpush1.bf16.msra.mxu0 %v2460
        %2505 = vmatprep.subr.bf16.mxu0 0
        %2506 = vmatpush1.bf16.msra.mxu0 %v2459
        %2507 = vmatprep.subr.bf16.mxu0 0
        %2508 = vmatpush2.bf16.msra.mxu0 %v2474
        %2509 = vmatprep.subr.bf16.mxu0 0
        %2510 = vmatpush2.bf16.msra.mxu0 %v2473
        %2511 = vmatprep.subr.bf16.mxu0 0
        %2512 = vmatpush2.bf16.msra.mxu0 %v2472
        %2513 = vmatprep.subr.bf16.mxu0 0
        %2514 = vmatpush2.bf16.msra.mxu0 %v2471
        %2515 = vmatprep.subr.bf16.mxu0 0
        %2516 = vmatpush2.bf16.msra.mxu0 %v2470
        %2517 = vmatprep.subr.bf16.mxu0 0
        %2518 = vmatpush2.bf16.msra.mxu0 %v2469
        %2519 = vmatprep.subr.bf16.mxu0 0
        %2520 = vmatpush2.bf16.msra.mxu0 %v2468
        %2521 = vmatprep.subr.bf16.mxu0 0
        %2522 = vmatpush2.bf16.msra.mxu0 %v2467
        %2523 = vmatprep.mubr.bf16.mxu0 %v2348
        %2524 = vmatmul.mubr.bf16.gmra.mxu0 %v2347
        %v2525 = vpop.f32.mrf.mxu0
        %v2526 = vadd.f32 0.0, %v2525
        %v2527 = vpop.f32.mrf.mxu0
        %v2528 = vpop.f32.mrf.mxu0
        %v2529 = vadd.f32 0.0, %v2528
        %v2530 = vpop.f32.mrf.mxu0
        %2531 = vmatprep.mubr.bf16.mxu0 %v2350
        %2532 = vmatmul.mubr.bf16.gmra.mxu0 %v2349
        %v2533 = vpop.f32.mrf.mxu0
        %v2534 = vadd.f32 0.0, %v2533
        %v2535 = vpop.f32.mrf.mxu0
        %v2536 = vpop.f32.mrf.mxu0
        %v2537 = vadd.f32 0.0, %v2536
        %v2538 = vpop.f32.mrf.mxu0
        %2539 = vmatprep.mubr.bf16.mxu0 %v2352
        %2540 = vmatmul.mubr.bf16.gmra.mxu0 %v2351
        %v2541 = vpop.f32.mrf.mxu0
        %v2542 = vadd.f32 0.0, %v2541
        %v2543 = vpop.f32.mrf.mxu0
        %v2544 = vpop.f32.mrf.mxu0
        %v2545 = vadd.f32 0.0, %v2544
        %v2546 = vpop.f32.mrf.mxu0
        %2547 = vmatprep.mubr.bf16.mxu0 %v2354
        %2548 = vmatmul.mubr.bf16.gmra.mxu0 %v2353
        %v2549 = vpop.f32.mrf.mxu0
        %v2550 = vadd.f32 0.0, %v2549
        %v2551 = vpop.f32.mrf.mxu0
        %v2552 = vpop.f32.mrf.mxu0
        %v2553 = vadd.f32 0.0, %v2552
        %v2554 = vpop.f32.mrf.mxu0
        %2555 = vmatprep.mubr.bf16.mxu0 %v2356
        %2556 = vmatmul.mubr.bf16.gmra.mxu0 %v2355
        %v2557 = vpop.f32.mrf.mxu0
        %v2558 = vadd.f32 0.0, %v2557
        %v2559 = vpop.f32.mrf.mxu0
        %v2560 = vpop.f32.mrf.mxu0
        %v2561 = vadd.f32 0.0, %v2560
        %v2562 = vpop.f32.mrf.mxu0
        %2563 = vmatprep.mubr.bf16.mxu0 %v2358
        %2564 = vmatmul.mubr.bf16.gmra.mxu0 %v2357
        %v2565 = vpop.f32.mrf.mxu0
        %v2566 = vadd.f32 0.0, %v2565
        %v2567 = vpop.f32.mrf.mxu0
        %v2568 = vpop.f32.mrf.mxu0
        %v2569 = vadd.f32 0.0, %v2568
        %v2570 = vpop.f32.mrf.mxu0
        %2571 = vmatprep.mubr.bf16.mxu0 %v2360
        %2572 = vmatmul.mubr.bf16.gmra.mxu0 %v2359
        %v2573 = vpop.f32.mrf.mxu0
        %v2574 = vadd.f32 0.0, %v2573
        %v2575 = vpop.f32.mrf.mxu0
        %v2576 = vpop.f32.mrf.mxu0
        %v2577 = vadd.f32 0.0, %v2576
        %v2578 = vpop.f32.mrf.mxu0
        %2579 = vmatprep.mubr.bf16.mxu0 %v2362
        %2580 = vmatmul.mubr.bf16.gmra.mxu0 %v2361
        %v2581 = vpop.f32.mrf.mxu0
        %v2582 = vadd.f32 0.0, %v2581
        %v2583 = vpop.f32.mrf.mxu0
        %v2584 = vpop.f32.mrf.mxu0
        %v2585 = vadd.f32 0.0, %v2584
        %v2586 = vpop.f32.mrf.mxu0
        %2587 = vdwg.mxu0
        %2588 = vmatprep.subr.mxu0 0.0
        %2589 = vmatpush1.msra.mxu0 %v2585
        %2590 = vmatprep.subr.mxu0 0.0
        %2591 = vmatpush1.msra.mxu0 %v2582
        %2592 = vmatprep.subr.mxu0 0.0
        %2593 = vmatpush1.msra.mxu0 %v2577
        %2594 = vmatprep.subr.mxu0 0.0
        %2595 = vmatpush1.msra.mxu0 %v2574
        %2596 = vmatprep.subr.mxu0 0.0
        %2597 = vmatpush1.msra.mxu0 %v2569
        %2598 = vmatprep.subr.mxu0 0.0
        %2599 = vmatpush1.msra.mxu0 %v2566
        %2600 = vmatprep.subr.mxu0 0.0
        %2601 = vmatpush1.msra.mxu0 %v2561
        %2602 = vmatprep.subr.mxu0 0.0
        %2603 = vmatpush1.msra.mxu0 %v2558
        %2604 = vmatprep.subr.mxu0 0.0
        %2605 = vmatpush1.msra.mxu0 %v2553
        %2606 = vmatprep.subr.mxu0 0.0
        %2607 = vmatpush1.msra.mxu0 %v2550
        %2608 = vmatprep.subr.mxu0 0.0
        %2609 = vmatpush1.msra.mxu0 %v2545
        %2610 = vmatprep.subr.mxu0 0.0
        %2611 = vmatpush1.msra.mxu0 %v2542
        %2612 = vmatprep.subr.mxu0 0.0
        %2613 = vmatpush1.msra.mxu0 %v2537
        %2614 = vmatprep.subr.mxu0 0.0
        %2615 = vmatpush1.msra.mxu0 %v2534
        %2616 = vmatprep.subr.mxu0 0.0
        %2617 = vmatpush1.msra.mxu0 %v2529
        %2618 = vmatprep.subr.mxu0 0.0
        %2619 = vmatpush1.msra.mxu0 %v2526
        %2620 = vmatprep.subr.mxu0 0.0
        %2621 = vmatpush2.msra.mxu0 0.0
        %2622 = vmatprep.subr.mxu0 0.0
        %2623 = vmatpush2.msra.mxu0 0.0
        %2624 = vmatprep.subr.mxu0 0.0
        %2625 = vmatpush2.msra.mxu0 0.0
        %2626 = vmatprep.subr.mxu0 0.0
        %2627 = vmatpush2.msra.mxu0 0.0
        %2628 = vmatprep.subr.mxu0 0.0
        %2629 = vmatpush2.msra.mxu0 0.0
        %2630 = vmatprep.subr.mxu0 0.0
        %2631 = vmatpush2.msra.mxu0 0.0
        %2632 = vmatprep.subr.mxu0 0.0
        %2633 = vmatpush2.msra.mxu0 0.0
        %2634 = vmatprep.subr.mxu0 0.0
        %2635 = vmatpush2.msra.mxu0 0.0
        %2636 = vmatprep.subr.mxu0 0.0
        %2637 = vmatpush2.msra.mxu0 0.0
        %2638 = vmatprep.subr.mxu0 0.0
        %2639 = vmatpush2.msra.mxu0 0.0
        %2640 = vmatprep.subr.mxu0 0.0
        %2641 = vmatpush2.msra.mxu0 0.0
        %2642 = vmatprep.subr.mxu0 0.0
        %2643 = vmatpush2.msra.mxu0 0.0
        %2644 = vmatprep.subr.mxu0 0.0
        %2645 = vmatpush2.msra.mxu0 0.0
        %2646 = vmatprep.subr.mxu0 0.0
        %2647 = vmatpush2.msra.mxu0 0.0
        %2648 = vmatprep.subr.mxu0 0.0
        %2649 = vmatpush2.msra.mxu0 0.0
        %2650 = vmatprep.subr.mxu0 0.0
        %2651 = vmatpush2.msra.mxu0 0.0
        %2652 = vmatprep.mubr.f32.mxu0 0.0
        %2653 = vmatmul.mubr.f32.gmra.mxu0 %v406
        %v2654 = vpop.f32.mrf.mxu0
        %v2655 = vadd.f32 0.0, %v2654
        %v2656 = vpop.f32.mrf.mxu0
        %2657 = vmatprep.mubr.f32.mxu0 0.0
        %2658 = vmatmul.mubr.f32.gmra.mxu0 %v407
        %v2659 = vpop.f32.mrf.mxu0
        %v2660 = vadd.f32 0.0, %v2659
        %v2661 = vpop.f32.mrf.mxu0
        %2662 = vmatprep.mubr.f32.mxu0 0.0
        %2663 = vmatmul.mubr.f32.gmra.mxu0 %v408
        %v2664 = vpop.f32.mrf.mxu0
        %v2665 = vadd.f32 0.0, %v2664
        %v2666 = vpop.f32.mrf.mxu0
        %2667 = vmatprep.mubr.f32.mxu0 0.0
        %2668 = vmatmul.mubr.f32.gmra.mxu0 %v409
        %v2669 = vpop.f32.mrf.mxu0
        %v2670 = vadd.f32 0.0, %v2669
        %v2671 = vpop.f32.mrf.mxu0
        %2672 = vmatprep.mubr.f32.mxu0 0.0
        %2673 = vmatmul.mubr.f32.gmra.mxu0 %v410
        %v2674 = vpop.f32.mrf.mxu0
        %v2675 = vadd.f32 0.0, %v2674
        %v2676 = vpop.f32.mrf.mxu0
        %2677 = vmatprep.mubr.f32.mxu0 0.0
        %2678 = vmatmul.mubr.f32.gmra.mxu0 %v411
        %v2679 = vpop.f32.mrf.mxu0
        %v2680 = vadd.f32 0.0, %v2679
        %v2681 = vpop.f32.mrf.mxu0
        %2682 = vmatprep.mubr.f32.mxu0 0.0
        %2683 = vmatmul.mubr.f32.gmra.mxu0 %v412
        %v2684 = vpop.f32.mrf.mxu0
        %v2685 = vadd.f32 0.0, %v2684
        %v2686 = vpop.f32.mrf.mxu0
        %2687 = vmatprep.mubr.f32.mxu0 0.0
        %2688 = vmatmul.mubr.f32.gmra.mxu0 %v413
        %v2689 = vpop.f32.mrf.mxu0
        %v2690 = vadd.f32 0.0, %v2689
        %v2691 = vpop.f32.mrf.mxu0
        %2692 = vmatprep.mubr.f32.mxu0 0.0
        %2693 = vmatmul.mubr.f32.gmra.mxu0 %v414
        %v2694 = vpop.f32.mrf.mxu0
        %v2695 = vadd.f32 0.0, %v2694
        %v2696 = vpop.f32.mrf.mxu0
        %2697 = vmatprep.mubr.f32.mxu0 0.0
        %2698 = vmatmul.mubr.f32.gmra.mxu0 %v415
        %v2699 = vpop.f32.mrf.mxu0
        %v2700 = vadd.f32 0.0, %v2699
        %v2701 = vpop.f32.mrf.mxu0
        %2702 = vmatprep.mubr.f32.mxu0 0.0
        %2703 = vmatmul.mubr.f32.gmra.mxu0 %v416
        %v2704 = vpop.f32.mrf.mxu0
        %v2705 = vadd.f32 0.0, %v2704
        %v2706 = vpop.f32.mrf.mxu0
        %2707 = vmatprep.mubr.f32.mxu0 0.0
        %2708 = vmatmul.mubr.f32.gmra.mxu0 %v417
        %v2709 = vpop.f32.mrf.mxu0
        %v2710 = vadd.f32 0.0, %v2709
        %v2711 = vpop.f32.mrf.mxu0
        %2712 = vmatprep.mubr.f32.mxu0 0.0
        %2713 = vmatmul.mubr.f32.gmra.mxu0 %v418
        %v2714 = vpop.f32.mrf.mxu0
        %v2715 = vadd.f32 0.0, %v2714
        %v2716 = vpop.f32.mrf.mxu0
        %2717 = vmatprep.mubr.f32.mxu0 0.0
        %2718 = vmatmul.mubr.f32.gmra.mxu0 %v419
        %v2719 = vpop.f32.mrf.mxu0
        %v2720 = vadd.f32 0.0, %v2719
        %v2721 = vpop.f32.mrf.mxu0
        %2722 = vmatprep.mubr.f32.mxu0 0.0
        %2723 = vmatmul.mubr.f32.gmra.mxu0 %v420
        %v2724 = vpop.f32.mrf.mxu0
        %v2725 = vadd.f32 0.0, %v2724
        %v2726 = vpop.f32.mrf.mxu0
        %2727 = vmatprep.mubr.f32.mxu0 0.0
        %2728 = vmatmul.mubr.f32.gmra.mxu0 %v421
        %v2729 = vpop.f32.mrf.mxu0
        %v2730 = vadd.f32 0.0, %v2729
        %v2731 = vpop.f32.mrf.mxu0
        %2732 = vdwg.mxu0
        %vm2733 = vcmp.ge.f32.partialorder %v2655, 1.0
        %vm2734 = vcmp.ge.f32.partialorder %v2660, 1.0
        %v2735 = vsel %vm2733, 1.0, 0.0
        %v2736 = vsel %vm2734, 1.0, 0.0
        %v2737 = vmul.f32 %v2735, -1.6487212
        %v2738 = vmul.f32 %v2736, -1.6487212
        %v2739 = vadd.f32 %v2665, %v2737
        %v2740 = vadd.f32 %v2670, %v2738
        %vm2741 = vcmp.ge.f32.partialorder %v2739, 1.0
        %vm2742 = vcmp.ge.f32.partialorder %v2740, 1.0
        %v2743 = vsel %vm2741, 1.0, 0.0
        %v2744 = vsel %vm2742, 1.0, 0.0
        %v2745 = vmul.f32 %v2735, -2.0
        %v2746 = vmul.f32 %v2736, -2.0
        %v2747 = vadd.f32 %v2675, %v2745
        %v2748 = vadd.f32 %v2680, %v2746
        %v2749 = vmul.f32 %v2743, -1.6487212
        %v2750 = vmul.f32 %v2744, -1.6487212
        %v2751 = vadd.f32 %v2747, %v2749
        %v2752 = vadd.f32 %v2748, %v2750
        %vm2753 = vcmp.ge.f32.partialorder %v2751, 1.0
        %vm2754 = vcmp.ge.f32.partialorder %v2752, 1.0
        %v2755 = vsel %vm2753, 1.0, 0.0
        %v2756 = vsel %vm2754, 1.0, 0.0
        %v2757 = vmul.f32 %v2735, -1.819592
        %v2758 = vmul.f32 %v2736, -1.819592
        %v2759 = vadd.f32 %v2685, %v2757
        %v2760 = vadd.f32 %v2690, %v2758
        %v2761 = vmul.f32 %v2743, -2.0
        %v2762 = vmul.f32 %v2744, -2.0
        %v2763 = vadd.f32 %v2759, %v2761
        %v2764 = vadd.f32 %v2760, %v2762
        %v2765 = vmul.f32 %v2755, -1.6487212
        %v2766 = vmul.f32 %v2756, -1.6487212
        %v2767 = vadd.f32 %v2763, %v2765
        %v2768 = vadd.f32 %v2764, %v2766
        %vm2769 = vcmp.ge.f32.partialorder %v2767, 1.0
        %vm2770 = vcmp.ge.f32.partialorder %v2768, 1.0
        %v2771 = vsel %vm2769, 1.0, 0.0
        %v2772 = vsel %vm2770, 1.0, 0.0
        %v2773 = vmul.f32 %v2735, -1.4715178
        %v2774 = vmul.f32 %v2736, -1.4715178
        %v2775 = vadd.f32 %v2695, %v2773
        %v2776 = vadd.f32 %v2700, %v2774
        %v2777 = vmul.f32 %v2743, -1.819592
        %v2778 = vmul.f32 %v2744, -1.819592
        %v2779 = vadd.f32 %v2775, %v2777
        %v2780 = vadd.f32 %v2776, %v2778
        %v2781 = vmul.f32 %v2755, -2.0
        %v2782 = vmul.f32 %v2756, -2.0
        %v2783 = vadd.f32 %v2779, %v2781
        %v2784 = vadd.f32 %v2780, %v2782
        %v2785 = vmul.f32 %v2771, -1.6487212
        %v2786 = vmul.f32 %v2772, -1.6487212
        %v2787 = vadd.f32 %v2783, %v2785
        %v2788 = vadd.f32 %v2784, %v2786
        %vm2789 = vcmp.ge.f32.partialorder %v2787, 1.0
        %vm2790 = vcmp.ge.f32.partialorder %v2788, 1.0
        %v2791 = vsel %vm2789, 1.0, 0.0
        %v2792 = vsel %vm2790, 1.0, 0.0
        %v2793 = vmul.f32 %v2735, -1.1156508
        %v2794 = vmul.f32 %v2736, -1.1156508
        %v2795 = vadd.f32 %v2705, %v2793
        %v2796 = vadd.f32 %v2710, %v2794
        %v2797 = vmul.f32 %v2743, -1.4715178
        %v2798 = vmul.f32 %v2744, -1.4715178
        %v2799 = vadd.f32 %v2795, %v2797
        %v2800 = vadd.f32 %v2796, %v2798
        %v2801 = vmul.f32 %v2755, -1.819592
        %v2802 = vmul.f32 %v2756, -1.819592
        %v2803 = vadd.f32 %v2799, %v2801
        %v2804 = vadd.f32 %v2800, %v2802
        %v2805 = vmul.f32 %v2771, -2.0
        %v2806 = vmul.f32 %v2772, -2.0
        %v2807 = vadd.f32 %v2803, %v2805
        %v2808 = vadd.f32 %v2804, %v2806
        %v2809 = vmul.f32 %v2791, -1.6487212
        %v2810 = vmul.f32 %v2792, -1.6487212
        %v2811 = vadd.f32 %v2807, %v2809
        %v2812 = vadd.f32 %v2808, %v2810
        %vm2813 = vcmp.ge.f32.partialorder %v2811, 1.0
        %vm2814 = vcmp.ge.f32.partialorder %v2812, 1.0
        %v2815 = vsel %vm2813, 1.0, 0.0
        %v2816 = vsel %vm2814, 1.0, 0.0
        %v2817 = vmul.f32 %v2735, -0.8120117
        %v2818 = vmul.f32 %v2736, -0.8120117
        %v2819 = vadd.f32 %v2715, %v2817
        %v2820 = vadd.f32 %v2720, %v2818
        %v2821 = vmul.f32 %v2743, -1.1156508
        %v2822 = vmul.f32 %v2744, -1.1156508
        %v2823 = vadd.f32 %v2819, %v2821
        %v2824 = vadd.f32 %v2820, %v2822
        %v2825 = vmul.f32 %v2755, -1.4715178
        %v2826 = vmul.f32 %v2756, -1.4715178
        %v2827 = vadd.f32 %v2823, %v2825
        %v2828 = vadd.f32 %v2824, %v2826
        %v2829 = vmul.f32 %v2771, -1.819592
        %v2830 = vmul.f32 %v2772, -1.819592
        %v2831 = vadd.f32 %v2827, %v2829
        %v2832 = vadd.f32 %v2828, %v2830
        %v2833 = vmul.f32 %v2791, -2.0
        %v2834 = vmul.f32 %v2792, -2.0
        %v2835 = vadd.f32 %v2831, %v2833
        %v2836 = vadd.f32 %v2832, %v2834
        %v2837 = vmul.f32 %v2815, -1.6487212
        %v2838 = vmul.f32 %v2816, -1.6487212
        %v2839 = vadd.f32 %v2835, %v2837
        %v2840 = vadd.f32 %v2836, %v2838
        %vm2841 = vcmp.ge.f32.partialorder %v2839, 1.0
        %vm2842 = vcmp.ge.f32.partialorder %v2840, 1.0
        %v2843 = vsel %vm2841, 1.0, 0.0
        %v2844 = vsel %vm2842, 1.0, 0.0
        %v2845 = vmul.f32 %v2735, -0.574595
        %v2846 = vmul.f32 %v2736, -0.574595
        %v2847 = vadd.f32 %v2725, %v2845
        %v2848 = vadd.f32 %v2730, %v2846
        %v2849 = vmul.f32 %v2743, -0.8120117
        %v2850 = vmul.f32 %v2744, -0.8120117
        %v2851 = vadd.f32 %v2847, %v2849
        %v2852 = vadd.f32 %v2848, %v2850
        %v2853 = vmul.f32 %v2755, -1.1156508
        %v2854 = vmul.f32 %v2756, -1.1156508
        %v2855 = vadd.f32 %v2851, %v2853
        %v2856 = vadd.f32 %v2852, %v2854
        %v2857 = vmul.f32 %v2771, -1.4715178
        %v2858 = vmul.f32 %v2772, -1.4715178
        %v2859 = vadd.f32 %v2855, %v2857
        %v2860 = vadd.f32 %v2856, %v2858
        %v2861 = vmul.f32 %v2791, -1.819592
        %v2862 = vmul.f32 %v2792, -1.819592
        %v2863 = vadd.f32 %v2859, %v2861
        %v2864 = vadd.f32 %v2860, %v2862
        %v2865 = vmul.f32 %v2815, -2.0
        %v2866 = vmul.f32 %v2816, -2.0
        %v2867 = vadd.f32 %v2863, %v2865
        %v2868 = vadd.f32 %v2864, %v2866
        %v2869 = vmul.f32 %v2843, -1.6487212
        %v2870 = vmul.f32 %v2844, -1.6487212
        %v2871 = vadd.f32 %v2867, %v2869
        %v2872 = vadd.f32 %v2868, %v2870
        %vm2873 = vcmp.ge.f32.partialorder %v2871, 1.0
        %vm2874 = vcmp.ge.f32.partialorder %v2872, 1.0
        %v2875 = vsel %vm2873, 1.0, 0.0
        %v2876 = vsel %vm2874, 1.0, 0.0
        %v2877 = vpack.c.bf16 %v2736, %v2735
        %v2878 = vpack.c.bf16 %v2744, %v2743
        %v2879 = vpack.c.bf16 %v2756, %v2755
        %v2880 = vpack.c.bf16 %v2772, %v2771
        %v2881 = vpack.c.bf16 %v2792, %v2791
        %v2882 = vpack.c.bf16 %v2816, %v2815
        %v2883 = vpack.c.bf16 %v2844, %v2843
        %v2884 = vpack.c.bf16 %v2876, %v2875
        %v2885 = vld [vmem:[%s4] sm:$0xff]
        %v2886 = vld [vmem:[%s4 + $0x8] sm:$0xff]
        %v2887 = vld [vmem:[%s4 + $0x10] sm:$0xff]
        %v2888 = vld [vmem:[%s4 + $0x18] sm:$0xff]
        %v2889 = vld [vmem:[%s4 + $0x20] sm:$0xff]
        %v2890 = vld [vmem:[%s4 + $0x28] sm:$0xff]
        %v2891 = vld [vmem:[%s4 + $0x30] sm:$0xff]
        %v2892 = vld [vmem:[%s4 + $0x38] sm:$0xff]
        %v2893 = vld [vmem:[%s4 + $0x40] sm:$0xff]
        %v2894 = vld [vmem:[%s4 + $0x48] sm:$0xff]
        %v2895 = vld [vmem:[%s4 + $0x50] sm:$0xff]
        %v2896 = vld [vmem:[%s4 + $0x58] sm:$0xff]
        %v2897 = vld [vmem:[%s4 + $0x60] sm:$0xff]
        %v2898 = vld [vmem:[%s4 + $0x68] sm:$0xff]
        %v2899 = vld [vmem:[%s4 + $0x70] sm:$0xff]
        %v2900 = vld [vmem:[%s4 + $0x78] sm:$0xff]
        %v2917 = vunpack.c.l.b16 %v2885
        %v2918 = vunpack.c.h.b16 %v2885
        %v2919 = vunpack.c.l.b16 %v2886
        %v2920 = vunpack.c.h.b16 %v2886
        %v2921 = vunpack.c.l.b16 %v2887
        %v2922 = vunpack.c.h.b16 %v2887
        %v2923 = vunpack.c.l.b16 %v2888
        %v2924 = vunpack.c.h.b16 %v2888
        %v2925 = vunpack.c.l.b16 %v2889
        %v2926 = vunpack.c.h.b16 %v2889
        %v2927 = vunpack.c.l.b16 %v2890
        %v2928 = vunpack.c.h.b16 %v2890
        %v2929 = vunpack.c.l.b16 %v2891
        %v2930 = vunpack.c.h.b16 %v2891
        %v2931 = vunpack.c.l.b16 %v2892
        %v2932 = vunpack.c.h.b16 %v2892
        %v2933 = vunpack.c.l.b16 %v2893
        %v2934 = vunpack.c.h.b16 %v2893
        %v2935 = vunpack.c.l.b16 %v2894
        %v2936 = vunpack.c.h.b16 %v2894
        %v2937 = vunpack.c.l.b16 %v2895
        %v2938 = vunpack.c.h.b16 %v2895
        %v2939 = vunpack.c.l.b16 %v2896
        %v2940 = vunpack.c.h.b16 %v2896
        %v2941 = vunpack.c.l.b16 %v2897
        %v2942 = vunpack.c.h.b16 %v2897
        %v2943 = vunpack.c.l.b16 %v2898
        %v2944 = vunpack.c.h.b16 %v2898
        %v2945 = vunpack.c.l.b16 %v2899
        %v2946 = vunpack.c.h.b16 %v2899
        %v2947 = vunpack.c.l.b16 %v2900
        %v2948 = vunpack.c.h.b16 %v2900
        %v2949 = vpack.c.b16 %v2919, %v2917
        %v2950 = vpack.c.b16 %v2920, %v2918
        %v2951 = vpack.c.b16 %v2923, %v2921
        %v2952 = vpack.c.b16 %v2924, %v2922
        %v2953 = vpack.c.b16 %v2927, %v2925
        %v2954 = vpack.c.b16 %v2928, %v2926
        %v2955 = vpack.c.b16 %v2931, %v2929
        %v2956 = vpack.c.b16 %v2932, %v2930
        %v2957 = vpack.c.b16 %v2935, %v2933
        %v2958 = vpack.c.b16 %v2936, %v2934
        %v2959 = vpack.c.b16 %v2939, %v2937
        %v2960 = vpack.c.b16 %v2940, %v2938
        %v2961 = vpack.c.b16 %v2943, %v2941
        %v2962 = vpack.c.b16 %v2944, %v2942
        %v2963 = vpack.c.b16 %v2947, %v2945
        %v2964 = vpack.c.b16 %v2948, %v2946
        %2981 = vmatprep.subr.bf16.mxu0 %v2964
        %2982 = vmatpush1.bf16.msra.mxu0 %v2963
        %2983 = vmatprep.subr.bf16.mxu0 %v2962
        %2984 = vmatpush1.bf16.msra.mxu0 %v2961
        %2985 = vmatprep.subr.bf16.mxu0 %v2960
        %2986 = vmatpush1.bf16.msra.mxu0 %v2959
        %2987 = vmatprep.subr.bf16.mxu0 %v2958
        %2988 = vmatpush1.bf16.msra.mxu0 %v2957
        %2989 = vmatprep.subr.bf16.mxu0 %v2956
        %2990 = vmatpush1.bf16.msra.mxu0 %v2955
        %2991 = vmatprep.subr.bf16.mxu0 %v2954
        %2992 = vmatpush1.bf16.msra.mxu0 %v2953
        %2993 = vmatprep.subr.bf16.mxu0 %v2952
        %2994 = vmatpush1.bf16.msra.mxu0 %v2951
        %2995 = vmatprep.subr.bf16.mxu0 %v2950
        %2996 = vmatpush1.bf16.msra.mxu0 %v2949
        %2997 = vmatprep.subr.bf16.mxu0 0
        %2998 = vmatpush2.bf16.msra.mxu0 0
        %2999 = vmatprep.subr.bf16.mxu0 0
        %3000 = vmatpush2.bf16.msra.mxu0 0
        %3001 = vmatprep.subr.bf16.mxu0 0
        %3002 = vmatpush2.bf16.msra.mxu0 0
        %3003 = vmatprep.subr.bf16.mxu0 0
        %3004 = vmatpush2.bf16.msra.mxu0 0
        %3005 = vmatprep.subr.bf16.mxu0 0
        %3006 = vmatpush2.bf16.msra.mxu0 0
        %3007 = vmatprep.subr.bf16.mxu0 0
        %3008 = vmatpush2.bf16.msra.mxu0 0
        %3009 = vmatprep.subr.bf16.mxu0 0
        %3010 = vmatpush2.bf16.msra.mxu0 0
        %3011 = vmatprep.subr.bf16.mxu0 0
        %3012 = vmatpush2.bf16.msra.mxu0 0
        %3013 = vmatprep.mubr.bf16.mxu0 0
        %3014 = vmatmul.mubr.bf16.gmra.mxu0 %v2877
        %v3015 = vpop.f32.mrf.mxu0
        %v3016 = vadd.f32 0.0, %v3015
        %v3017 = vpop.f32.mrf.mxu0
        %v3018 = vadd.f32 0.0, %v3017
        %v3019 = vpop.f32.mrf.mxu0
        %v3020 = vadd.f32 0.0, %v3019
        %v3021 = vpop.f32.mrf.mxu0
        %v3022 = vadd.f32 0.0, %v3021
        %3023 = vmatprep.mubr.bf16.mxu0 0
        %3024 = vmatmul.mubr.bf16.gmra.mxu0 %v2878
        %v3025 = vpop.f32.mrf.mxu0
        %v3026 = vadd.f32 0.0, %v3025
        %v3027 = vpop.f32.mrf.mxu0
        %v3028 = vadd.f32 0.0, %v3027
        %v3029 = vpop.f32.mrf.mxu0
        %v3030 = vadd.f32 0.0, %v3029
        %v3031 = vpop.f32.mrf.mxu0
        %v3032 = vadd.f32 0.0, %v3031
        %3033 = vmatprep.mubr.bf16.mxu0 0
        %3034 = vmatmul.mubr.bf16.gmra.mxu0 %v2879
        %v3035 = vpop.f32.mrf.mxu0
        %v3036 = vadd.f32 0.0, %v3035
        %v3037 = vpop.f32.mrf.mxu0
        %v3038 = vadd.f32 0.0, %v3037
        %v3039 = vpop.f32.mrf.mxu0
        %v3040 = vadd.f32 0.0, %v3039
        %v3041 = vpop.f32.mrf.mxu0
        %v3042 = vadd.f32 0.0, %v3041
        %3043 = vmatprep.mubr.bf16.mxu0 0
        %3044 = vmatmul.mubr.bf16.gmra.mxu0 %v2880
        %v3045 = vpop.f32.mrf.mxu0
        %v3046 = vadd.f32 0.0, %v3045
        %v3047 = vpop.f32.mrf.mxu0
        %v3048 = vadd.f32 0.0, %v3047
        %v3049 = vpop.f32.mrf.mxu0
        %v3050 = vadd.f32 0.0, %v3049
        %v3051 = vpop.f32.mrf.mxu0
        %v3052 = vadd.f32 0.0, %v3051
        %3053 = vmatprep.mubr.bf16.mxu0 0
        %3054 = vmatmul.mubr.bf16.gmra.mxu0 %v2881
        %v3055 = vpop.f32.mrf.mxu0
        %v3056 = vadd.f32 0.0, %v3055
        %v3057 = vpop.f32.mrf.mxu0
        %v3058 = vadd.f32 0.0, %v3057
        %v3059 = vpop.f32.mrf.mxu0
        %v3060 = vadd.f32 0.0, %v3059
        %v3061 = vpop.f32.mrf.mxu0
        %v3062 = vadd.f32 0.0, %v3061
        %3063 = vmatprep.mubr.bf16.mxu0 0
        %3064 = vmatmul.mubr.bf16.gmra.mxu0 %v2882
        %v3065 = vpop.f32.mrf.mxu0
        %v3066 = vadd.f32 0.0, %v3065
        %v3067 = vpop.f32.mrf.mxu0
        %v3068 = vadd.f32 0.0, %v3067
        %v3069 = vpop.f32.mrf.mxu0
        %v3070 = vadd.f32 0.0, %v3069
        %v3071 = vpop.f32.mrf.mxu0
        %v3072 = vadd.f32 0.0, %v3071
        %3073 = vmatprep.mubr.bf16.mxu0 0
        %3074 = vmatmul.mubr.bf16.gmra.mxu0 %v2883
        %v3075 = vpop.f32.mrf.mxu0
        %v3076 = vadd.f32 0.0, %v3075
        %v3077 = vpop.f32.mrf.mxu0
        %v3078 = vadd.f32 0.0, %v3077
        %v3079 = vpop.f32.mrf.mxu0
        %v3080 = vadd.f32 0.0, %v3079
        %v3081 = vpop.f32.mrf.mxu0
        %v3082 = vadd.f32 0.0, %v3081
        %3083 = vmatprep.mubr.bf16.mxu0 0
        %3084 = vmatmul.mubr.bf16.gmra.mxu0 %v2884
        %v3085 = vpop.f32.mrf.mxu0
        %v3086 = vadd.f32 0.0, %v3085
        %v3087 = vpop.f32.mrf.mxu0
        %v3088 = vadd.f32 0.0, %v3087
        %v3089 = vpop.f32.mrf.mxu0
        %v3090 = vadd.f32 0.0, %v3089
        %v3091 = vpop.f32.mrf.mxu0
        %v3092 = vadd.f32 0.0, %v3091
        %3093 = vdwg.mxu0
        %3094 = vmatprep.subr.mxu0 %v3092
        %3095 = vmatpush1.msra.mxu0 %v3090
        %3096 = vmatprep.subr.mxu0 %v3088
        %3097 = vmatpush1.msra.mxu0 %v3086
        %3098 = vmatprep.subr.mxu0 %v3082
        %3099 = vmatpush1.msra.mxu0 %v3080
        %3100 = vmatprep.subr.mxu0 %v3078
        %3101 = vmatpush1.msra.mxu0 %v3076
        %3102 = vmatprep.subr.mxu0 %v3072
        %3103 = vmatpush1.msra.mxu0 %v3070
        %3104 = vmatprep.subr.mxu0 %v3068
        %3105 = vmatpush1.msra.mxu0 %v3066
        %3106 = vmatprep.subr.mxu0 %v3062
        %3107 = vmatpush1.msra.mxu0 %v3060
        %3108 = vmatprep.subr.mxu0 %v3058
        %3109 = vmatpush1.msra.mxu0 %v3056
        %3110 = vmatprep.subr.mxu0 %v3052
        %3111 = vmatpush1.msra.mxu0 %v3050
        %3112 = vmatprep.subr.mxu0 %v3048
        %3113 = vmatpush1.msra.mxu0 %v3046
        %3114 = vmatprep.subr.mxu0 %v3042
        %3115 = vmatpush1.msra.mxu0 %v3040
        %3116 = vmatprep.subr.mxu0 %v3038
        %3117 = vmatpush1.msra.mxu0 %v3036
        %3118 = vmatprep.subr.mxu0 %v3032
        %3119 = vmatpush1.msra.mxu0 %v3030
        %3120 = vmatprep.subr.mxu0 %v3028
        %3121 = vmatpush1.msra.mxu0 %v3026
        %3122 = vmatprep.subr.mxu0 %v3022
        %3123 = vmatpush1.msra.mxu0 %v3020
        %3124 = vmatprep.subr.mxu0 %v3018
        %3125 = vmatpush1.msra.mxu0 %v3016
        %3126 = vmatprep.subr.mxu0 0.0
        %3127 = vmatpush2.msra.mxu0 0.0
        %3128 = vmatprep.subr.mxu0 0.0
        %3129 = vmatpush2.msra.mxu0 0.0
        %3130 = vmatprep.subr.mxu0 0.0
        %3131 = vmatpush2.msra.mxu0 0.0
        %3132 = vmatprep.subr.mxu0 0.0
        %3133 = vmatpush2.msra.mxu0 0.0
        %3134 = vmatprep.subr.mxu0 0.0
        %3135 = vmatpush2.msra.mxu0 0.0
        %3136 = vmatprep.subr.mxu0 0.0
        %3137 = vmatpush2.msra.mxu0 0.0
        %3138 = vmatprep.subr.mxu0 0.0
        %3139 = vmatpush2.msra.mxu0 0.0
        %3140 = vmatprep.subr.mxu0 0.0
        %3141 = vmatpush2.msra.mxu0 0.0
        %3142 = vmatprep.subr.mxu0 0.0
        %3143 = vmatpush2.msra.mxu0 0.0
        %3144 = vmatprep.subr.mxu0 0.0
        %3145 = vmatpush2.msra.mxu0 0.0
        %3146 = vmatprep.subr.mxu0 0.0
        %3147 = vmatpush2.msra.mxu0 0.0
        %3148 = vmatprep.subr.mxu0 0.0
        %3149 = vmatpush2.msra.mxu0 0.0
        %3150 = vmatprep.subr.mxu0 0.0
        %3151 = vmatpush2.msra.mxu0 0.0
        %3152 = vmatprep.subr.mxu0 0.0
        %3153 = vmatpush2.msra.mxu0 0.0
        %3154 = vmatprep.subr.mxu0 0.0
        %3155 = vmatpush2.msra.mxu0 0.0
        %3156 = vmatprep.subr.mxu0 0.0
        %3157 = vmatpush2.msra.mxu0 0.0
        %3158 = vmatprep.mubr.f32.mxu0 0.0
        %3159 = vmatmul.mubr.f32.gmra.mxu0 %v406
        %v3160 = vpop.f32.mrf.mxu0
        %v3161 = vadd.f32 0.0, %v3160
        %v3162 = vpop.f32.mrf.mxu0
        %v3163 = vadd.f32 0.0, %v3162
        %3164 = vmatprep.mubr.f32.mxu0 0.0
        %3165 = vmatmul.mubr.f32.gmra.mxu0 %v407
        %v3166 = vpop.f32.mrf.mxu0
        %v3167 = vadd.f32 0.0, %v3166
        %v3168 = vpop.f32.mrf.mxu0
        %v3169 = vadd.f32 0.0, %v3168
        %3170 = vmatprep.mubr.f32.mxu0 0.0
        %3171 = vmatmul.mubr.f32.gmra.mxu0 %v408
        %v3172 = vpop.f32.mrf.mxu0
        %v3173 = vadd.f32 0.0, %v3172
        %v3174 = vpop.f32.mrf.mxu0
        %v3175 = vadd.f32 0.0, %v3174
        %3176 = vmatprep.mubr.f32.mxu0 0.0
        %3177 = vmatmul.mubr.f32.gmra.mxu0 %v409
        %v3178 = vpop.f32.mrf.mxu0
        %v3179 = vadd.f32 0.0, %v3178
        %v3180 = vpop.f32.mrf.mxu0
        %v3181 = vadd.f32 0.0, %v3180
        %3182 = vmatprep.mubr.f32.mxu0 0.0
        %3183 = vmatmul.mubr.f32.gmra.mxu0 %v410
        %v3184 = vpop.f32.mrf.mxu0
        %v3185 = vadd.f32 0.0, %v3184
        %v3186 = vpop.f32.mrf.mxu0
        %v3187 = vadd.f32 0.0, %v3186
        %3188 = vmatprep.mubr.f32.mxu0 0.0
        %3189 = vmatmul.mubr.f32.gmra.mxu0 %v411
        %v3190 = vpop.f32.mrf.mxu0
        %v3191 = vadd.f32 0.0, %v3190
        %v3192 = vpop.f32.mrf.mxu0
        %v3193 = vadd.f32 0.0, %v3192
        %3194 = vmatprep.mubr.f32.mxu0 0.0
        %3195 = vmatmul.mubr.f32.gmra.mxu0 %v412
        %v3196 = vpop.f32.mrf.mxu0
        %v3197 = vadd.f32 0.0, %v3196
        %v3198 = vpop.f32.mrf.mxu0
        %v3199 = vadd.f32 0.0, %v3198
        %3200 = vmatprep.mubr.f32.mxu0 0.0
        %3201 = vmatmul.mubr.f32.gmra.mxu0 %v413
        %v3202 = vpop.f32.mrf.mxu0
        %v3203 = vadd.f32 0.0, %v3202
        %v3204 = vpop.f32.mrf.mxu0
        %v3205 = vadd.f32 0.0, %v3204
        %3206 = vmatprep.mubr.f32.mxu0 0.0
        %3207 = vmatmul.mubr.f32.gmra.mxu0 %v414
        %v3208 = vpop.f32.mrf.mxu0
        %v3209 = vadd.f32 0.0, %v3208
        %v3210 = vpop.f32.mrf.mxu0
        %v3211 = vadd.f32 0.0, %v3210
        %3212 = vmatprep.mubr.f32.mxu0 0.0
        %3213 = vmatmul.mubr.f32.gmra.mxu0 %v415
        %v3214 = vpop.f32.mrf.mxu0
        %v3215 = vadd.f32 0.0, %v3214
        %v3216 = vpop.f32.mrf.mxu0
        %v3217 = vadd.f32 0.0, %v3216
        %3218 = vmatprep.mubr.f32.mxu0 0.0
        %3219 = vmatmul.mubr.f32.gmra.mxu0 %v416
        %v3220 = vpop.f32.mrf.mxu0
        %v3221 = vadd.f32 0.0, %v3220
        %v3222 = vpop.f32.mrf.mxu0
        %v3223 = vadd.f32 0.0, %v3222
        %3224 = vmatprep.mubr.f32.mxu0 0.0
        %3225 = vmatmul.mubr.f32.gmra.mxu0 %v417
        %v3226 = vpop.f32.mrf.mxu0
        %v3227 = vadd.f32 0.0, %v3226
        %v3228 = vpop.f32.mrf.mxu0
        %v3229 = vadd.f32 0.0, %v3228
        %3230 = vmatprep.mubr.f32.mxu0 0.0
        %3231 = vmatmul.mubr.f32.gmra.mxu0 %v418
        %v3232 = vpop.f32.mrf.mxu0
        %v3233 = vadd.f32 0.0, %v3232
        %v3234 = vpop.f32.mrf.mxu0
        %v3235 = vadd.f32 0.0, %v3234
        %3236 = vmatprep.mubr.f32.mxu0 0.0
        %3237 = vmatmul.mubr.f32.gmra.mxu0 %v419
        %v3238 = vpop.f32.mrf.mxu0
        %v3239 = vadd.f32 0.0, %v3238
        %v3240 = vpop.f32.mrf.mxu0
        %v3241 = vadd.f32 0.0, %v3240
        %3242 = vmatprep.mubr.f32.mxu0 0.0
        %3243 = vmatmul.mubr.f32.gmra.mxu0 %v420
        %v3244 = vpop.f32.mrf.mxu0
        %v3245 = vadd.f32 0.0, %v3244
        %v3246 = vpop.f32.mrf.mxu0
        %v3247 = vadd.f32 0.0, %v3246
        %3248 = vmatprep.mubr.f32.mxu0 0.0
        %3249 = vmatmul.mubr.f32.gmra.mxu0 %v421
        %v3250 = vpop.f32.mrf.mxu0
        %v3251 = vadd.f32 0.0, %v3250
        %v3252 = vpop.f32.mrf.mxu0
        %v3253 = vadd.f32 0.0, %v3252
        %3254 = vdwg.mxu0
        %vm3255 = vcmp.ge.f32.partialorder %v3161, 1.0
        %vm3256 = vcmp.ge.f32.partialorder %v3163, 1.0
        %vm3257 = vcmp.ge.f32.partialorder %v3167, 1.0
        %vm3258 = vcmp.ge.f32.partialorder %v3169, 1.0
        %v3259 = vsel %vm3255, 1.0, 0.0
        %v3260 = vsel %vm3256, 1.0, 0.0
        %v3261 = vsel %vm3257, 1.0, 0.0
        %v3262 = vsel %vm3258, 1.0, 0.0
        %v3263 = vmul.f32 %v3259, -1.6487212
        %v3264 = vmul.f32 %v3260, -1.6487212
        %v3265 = vmul.f32 %v3261, -1.6487212
        %v3266 = vmul.f32 %v3262, -1.6487212
        %v3267 = vadd.f32 %v3173, %v3263
        %v3268 = vadd.f32 %v3175, %v3264
        %v3269 = vadd.f32 %v3179, %v3265
        %v3270 = vadd.f32 %v3181, %v3266
        %vm3271 = vcmp.ge.f32.partialorder %v3267, 1.0
        %vm3272 = vcmp.ge.f32.partialorder %v3268, 1.0
        %vm3273 = vcmp.ge.f32.partialorder %v3269, 1.0
        %vm3274 = vcmp.ge.f32.partialorder %v3270, 1.0
        %v3275 = vsel %vm3271, 1.0, 0.0
        %v3276 = vsel %vm3272, 1.0, 0.0
        %v3277 = vsel %vm3273, 1.0, 0.0
        %v3278 = vsel %vm3274, 1.0, 0.0
        %v3279 = vmul.f32 %v3259, -2.0
        %v3280 = vmul.f32 %v3260, -2.0
        %v3281 = vmul.f32 %v3261, -2.0
        %v3282 = vmul.f32 %v3262, -2.0
        %v3283 = vadd.f32 %v3185, %v3279
        %v3284 = vadd.f32 %v3187, %v3280
        %v3285 = vadd.f32 %v3191, %v3281
        %v3286 = vadd.f32 %v3193, %v3282
        %v3287 = vmul.f32 %v3275, -1.6487212
        %v3288 = vmul.f32 %v3276, -1.6487212
        %v3289 = vmul.f32 %v3277, -1.6487212
        %v3290 = vmul.f32 %v3278, -1.6487212
        %v3291 = vadd.f32 %v3283, %v3287
        %v3292 = vadd.f32 %v3284, %v3288
        %v3293 = vadd.f32 %v3285, %v3289
        %v3294 = vadd.f32 %v3286, %v3290
        %vm3295 = vcmp.ge.f32.partialorder %v3291, 1.0
        %vm3296 = vcmp.ge.f32.partialorder %v3292, 1.0
        %vm3297 = vcmp.ge.f32.partialorder %v3293, 1.0
        %vm3298 = vcmp.ge.f32.partialorder %v3294, 1.0
        %v3299 = vsel %vm3295, 1.0, 0.0
        %v3300 = vsel %vm3296, 1.0, 0.0
        %v3301 = vsel %vm3297, 1.0, 0.0
        %v3302 = vsel %vm3298, 1.0, 0.0
        %v3303 = vmul.f32 %v3259, -1.819592
        %v3304 = vmul.f32 %v3260, -1.819592
        %v3305 = vmul.f32 %v3261, -1.819592
        %v3306 = vmul.f32 %v3262, -1.819592
        %v3307 = vadd.f32 %v3197, %v3303
        %v3308 = vadd.f32 %v3199, %v3304
        %v3309 = vadd.f32 %v3203, %v3305
        %v3310 = vadd.f32 %v3205, %v3306
        %v3311 = vmul.f32 %v3275, -2.0
        %v3312 = vmul.f32 %v3276, -2.0
        %v3313 = vmul.f32 %v3277, -2.0
        %v3314 = vmul.f32 %v3278, -2.0
        %v3315 = vadd.f32 %v3307, %v3311
        %v3316 = vadd.f32 %v3308, %v3312
        %v3317 = vadd.f32 %v3309, %v3313
        %v3318 = vadd.f32 %v3310, %v3314
        %v3319 = vmul.f32 %v3299, -1.6487212
        %v3320 = vmul.f32 %v3300, -1.6487212
        %v3321 = vmul.f32 %v3301, -1.6487212
        %v3322 = vmul.f32 %v3302, -1.6487212
        %v3323 = vadd.f32 %v3315, %v3319
        %v3324 = vadd.f32 %v3316, %v3320
        %v3325 = vadd.f32 %v3317, %v3321
        %v3326 = vadd.f32 %v3318, %v3322
        %vm3327 = vcmp.ge.f32.partialorder %v3323, 1.0
        %vm3328 = vcmp.ge.f32.partialorder %v3324, 1.0
        %vm3329 = vcmp.ge.f32.partialorder %v3325, 1.0
        %vm3330 = vcmp.ge.f32.partialorder %v3326, 1.0
        %v3331 = vsel %vm3327, 1.0, 0.0
        %v3332 = vsel %vm3328, 1.0, 0.0
        %v3333 = vsel %vm3329, 1.0, 0.0
        %v3334 = vsel %vm3330, 1.0, 0.0
        %v3335 = vmul.f32 %v3259, -1.4715178
        %v3336 = vmul.f32 %v3260, -1.4715178
        %v3337 = vmul.f32 %v3261, -1.4715178
        %v3338 = vmul.f32 %v3262, -1.4715178
        %v3339 = vadd.f32 %v3209, %v3335
        %v3340 = vadd.f32 %v3211, %v3336
        %v3341 = vadd.f32 %v3215, %v3337
        %v3342 = vadd.f32 %v3217, %v3338
        %v3343 = vmul.f32 %v3275, -1.819592
        %v3344 = vmul.f32 %v3276, -1.819592
        %v3345 = vmul.f32 %v3277, -1.819592
        %v3346 = vmul.f32 %v3278, -1.819592
        %v3347 = vadd.f32 %v3339, %v3343
        %v3348 = vadd.f32 %v3340, %v3344
        %v3349 = vadd.f32 %v3341, %v3345
        %v3350 = vadd.f32 %v3342, %v3346
        %v3351 = vmul.f32 %v3299, -2.0
        %v3352 = vmul.f32 %v3300, -2.0
        %v3353 = vmul.f32 %v3301, -2.0
        %v3354 = vmul.f32 %v3302, -2.0
        %v3355 = vadd.f32 %v3347, %v3351
        %v3356 = vadd.f32 %v3348, %v3352
        %v3357 = vadd.f32 %v3349, %v3353
        %v3358 = vadd.f32 %v3350, %v3354
        %v3359 = vmul.f32 %v3331, -1.6487212
        %v3360 = vmul.f32 %v3332, -1.6487212
        %v3361 = vmul.f32 %v3333, -1.6487212
        %v3362 = vmul.f32 %v3334, -1.6487212
        %v3363 = vadd.f32 %v3355, %v3359
        %v3364 = vadd.f32 %v3356, %v3360
        %v3365 = vadd.f32 %v3357, %v3361
        %v3366 = vadd.f32 %v3358, %v3362
        %vm3367 = vcmp.ge.f32.partialorder %v3363, 1.0
        %vm3368 = vcmp.ge.f32.partialorder %v3364, 1.0
        %vm3369 = vcmp.ge.f32.partialorder %v3365, 1.0
        %vm3370 = vcmp.ge.f32.partialorder %v3366, 1.0
        %v3371 = vsel %vm3367, 1.0, 0.0
        %v3372 = vsel %vm3368, 1.0, 0.0
        %v3373 = vsel %vm3369, 1.0, 0.0
        %v3374 = vsel %vm3370, 1.0, 0.0
        %v3375 = vmul.f32 %v3259, -1.1156508
        %v3376 = vmul.f32 %v3260, -1.1156508
        %v3377 = vmul.f32 %v3261, -1.1156508
        %v3378 = vmul.f32 %v3262, -1.1156508
        %v3379 = vadd.f32 %v3221, %v3375
        %v3380 = vadd.f32 %v3223, %v3376
        %v3381 = vadd.f32 %v3227, %v3377
        %v3382 = vadd.f32 %v3229, %v3378
        %v3383 = vmul.f32 %v3275, -1.4715178
        %v3384 = vmul.f32 %v3276, -1.4715178
        %v3385 = vmul.f32 %v3277, -1.4715178
        %v3386 = vmul.f32 %v3278, -1.4715178
        %v3387 = vadd.f32 %v3379, %v3383
        %v3388 = vadd.f32 %v3380, %v3384
        %v3389 = vadd.f32 %v3381, %v3385
        %v3390 = vadd.f32 %v3382, %v3386
        %v3391 = vmul.f32 %v3299, -1.819592
        %v3392 = vmul.f32 %v3300, -1.819592
        %v3393 = vmul.f32 %v3301, -1.819592
        %v3394 = vmul.f32 %v3302, -1.819592
        %v3395 = vadd.f32 %v3387, %v3391
        %v3396 = vadd.f32 %v3388, %v3392
        %v3397 = vadd.f32 %v3389, %v3393
        %v3398 = vadd.f32 %v3390, %v3394
        %v3399 = vmul.f32 %v3331, -2.0
        %v3400 = vmul.f32 %v3332, -2.0
        %v3401 = vmul.f32 %v3333, -2.0
        %v3402 = vmul.f32 %v3334, -2.0
        %v3403 = vadd.f32 %v3395, %v3399
        %v3404 = vadd.f32 %v3396, %v3400
        %v3405 = vadd.f32 %v3397, %v3401
        %v3406 = vadd.f32 %v3398, %v3402
        %v3407 = vmul.f32 %v3371, -1.6487212
        %v3408 = vmul.f32 %v3372, -1.6487212
        %v3409 = vmul.f32 %v3373, -1.6487212
        %v3410 = vmul.f32 %v3374, -1.6487212
        %v3411 = vadd.f32 %v3403, %v3407
        %v3412 = vadd.f32 %v3404, %v3408
        %v3413 = vadd.f32 %v3405, %v3409
        %v3414 = vadd.f32 %v3406, %v3410
        %vm3415 = vcmp.ge.f32.partialorder %v3411, 1.0
        %vm3416 = vcmp.ge.f32.partialorder %v3412, 1.0
        %vm3417 = vcmp.ge.f32.partialorder %v3413, 1.0
        %vm3418 = vcmp.ge.f32.partialorder %v3414, 1.0
        %v3419 = vsel %vm3415, 1.0, 0.0
        %v3420 = vsel %vm3416, 1.0, 0.0
        %v3421 = vsel %vm3417, 1.0, 0.0
        %v3422 = vsel %vm3418, 1.0, 0.0
        %v3423 = vmul.f32 %v3259, -0.8120117
        %v3424 = vmul.f32 %v3260, -0.8120117
        %v3425 = vmul.f32 %v3261, -0.8120117
        %v3426 = vmul.f32 %v3262, -0.8120117
        %v3427 = vadd.f32 %v3233, %v3423
        %v3428 = vadd.f32 %v3235, %v3424
        %v3429 = vadd.f32 %v3239, %v3425
        %v3430 = vadd.f32 %v3241, %v3426
        %v3431 = vmul.f32 %v3275, -1.1156508
        %v3432 = vmul.f32 %v3276, -1.1156508
        %v3433 = vmul.f32 %v3277, -1.1156508
        %v3434 = vmul.f32 %v3278, -1.1156508
        %v3435 = vadd.f32 %v3427, %v3431
        %v3436 = vadd.f32 %v3428, %v3432
        %v3437 = vadd.f32 %v3429, %v3433
        %v3438 = vadd.f32 %v3430, %v3434
        %v3439 = vmul.f32 %v3299, -1.4715178
        %v3440 = vmul.f32 %v3300, -1.4715178
        %v3441 = vmul.f32 %v3301, -1.4715178
        %v3442 = vmul.f32 %v3302, -1.4715178
        %v3443 = vadd.f32 %v3435, %v3439
        %v3444 = vadd.f32 %v3436, %v3440
        %v3445 = vadd.f32 %v3437, %v3441
        %v3446 = vadd.f32 %v3438, %v3442
        %v3447 = vmul.f32 %v3331, -1.819592
        %v3448 = vmul.f32 %v3332, -1.819592
        %v3449 = vmul.f32 %v3333, -1.819592
        %v3450 = vmul.f32 %v3334, -1.819592
        %v3451 = vadd.f32 %v3443, %v3447
        %v3452 = vadd.f32 %v3444, %v3448
        %v3453 = vadd.f32 %v3445, %v3449
        %v3454 = vadd.f32 %v3446, %v3450
        %v3455 = vmul.f32 %v3371, -2.0
        %v3456 = vmul.f32 %v3372, -2.0
        %v3457 = vmul.f32 %v3373, -2.0
        %v3458 = vmul.f32 %v3374, -2.0
        %v3459 = vadd.f32 %v3451, %v3455
        %v3460 = vadd.f32 %v3452, %v3456
        %v3461 = vadd.f32 %v3453, %v3457
        %v3462 = vadd.f32 %v3454, %v3458
        %v3463 = vmul.f32 %v3419, -1.6487212
        %v3464 = vmul.f32 %v3420, -1.6487212
        %v3465 = vmul.f32 %v3421, -1.6487212
        %v3466 = vmul.f32 %v3422, -1.6487212
        %v3467 = vadd.f32 %v3459, %v3463
        %v3468 = vadd.f32 %v3460, %v3464
        %v3469 = vadd.f32 %v3461, %v3465
        %v3470 = vadd.f32 %v3462, %v3466
        %vm3471 = vcmp.ge.f32.partialorder %v3467, 1.0
        %vm3472 = vcmp.ge.f32.partialorder %v3468, 1.0
        %vm3473 = vcmp.ge.f32.partialorder %v3469, 1.0
        %vm3474 = vcmp.ge.f32.partialorder %v3470, 1.0
        %v3475 = vsel %vm3471, 1.0, 0.0
        %v3476 = vsel %vm3472, 1.0, 0.0
        %v3477 = vsel %vm3473, 1.0, 0.0
        %v3478 = vsel %vm3474, 1.0, 0.0
        %v3479 = vmul.f32 %v3259, -0.574595
        %v3480 = vmul.f32 %v3260, -0.574595
        %v3481 = vmul.f32 %v3261, -0.574595
        %v3482 = vmul.f32 %v3262, -0.574595
        %v3483 = vadd.f32 %v3245, %v3479
        %v3484 = vadd.f32 %v3247, %v3480
        %v3485 = vadd.f32 %v3251, %v3481
        %v3486 = vadd.f32 %v3253, %v3482
        %v3487 = vmul.f32 %v3275, -0.8120117
        %v3488 = vmul.f32 %v3276, -0.8120117
        %v3489 = vmul.f32 %v3277, -0.8120117
        %v3490 = vmul.f32 %v3278, -0.8120117
        %v3491 = vadd.f32 %v3483, %v3487
        %v3492 = vadd.f32 %v3484, %v3488
        %v3493 = vadd.f32 %v3485, %v3489
        %v3494 = vadd.f32 %v3486, %v3490
        %v3495 = vmul.f32 %v3299, -1.1156508
        %v3496 = vmul.f32 %v3300, -1.1156508
        %v3497 = vmul.f32 %v3301, -1.1156508
        %v3498 = vmul.f32 %v3302, -1.1156508
        %v3499 = vadd.f32 %v3491, %v3495
        %v3500 = vadd.f32 %v3492, %v3496
        %v3501 = vadd.f32 %v3493, %v3497
        %v3502 = vadd.f32 %v3494, %v3498
        %v3503 = vmul.f32 %v3331, -1.4715178
        %v3504 = vmul.f32 %v3332, -1.4715178
        %v3505 = vmul.f32 %v3333, -1.4715178
        %v3506 = vmul.f32 %v3334, -1.4715178
        %v3507 = vadd.f32 %v3499, %v3503
        %v3508 = vadd.f32 %v3500, %v3504
        %v3509 = vadd.f32 %v3501, %v3505
        %v3510 = vadd.f32 %v3502, %v3506
        %v3511 = vmul.f32 %v3371, -1.819592
        %v3512 = vmul.f32 %v3372, -1.819592
        %v3513 = vmul.f32 %v3373, -1.819592
        %v3514 = vmul.f32 %v3374, -1.819592
        %v3515 = vadd.f32 %v3507, %v3511
        %v3516 = vadd.f32 %v3508, %v3512
        %v3517 = vadd.f32 %v3509, %v3513
        %v3518 = vadd.f32 %v3510, %v3514
        %v3519 = vmul.f32 %v3419, -2.0
        %v3520 = vmul.f32 %v3420, -2.0
        %v3521 = vmul.f32 %v3421, -2.0
        %v3522 = vmul.f32 %v3422, -2.0
        %v3523 = vadd.f32 %v3515, %v3519
        %v3524 = vadd.f32 %v3516, %v3520
        %v3525 = vadd.f32 %v3517, %v3521
        %v3526 = vadd.f32 %v3518, %v3522
        %v3527 = vmul.f32 %v3475, -1.6487212
        %v3528 = vmul.f32 %v3476, -1.6487212
        %v3529 = vmul.f32 %v3477, -1.6487212
        %v3530 = vmul.f32 %v3478, -1.6487212
        %v3531 = vadd.f32 %v3523, %v3527
        %v3532 = vadd.f32 %v3524, %v3528
        %v3533 = vadd.f32 %v3525, %v3529
        %v3534 = vadd.f32 %v3526, %v3530
        %vm3535 = vcmp.ge.f32.partialorder %v3531, 1.0
        %vm3536 = vcmp.ge.f32.partialorder %v3532, 1.0
        %vm3537 = vcmp.ge.f32.partialorder %v3533, 1.0
        %vm3538 = vcmp.ge.f32.partialorder %v3534, 1.0
        %v3539 = vsel %vm3535, 1.0, 0.0
        %v3540 = vsel %vm3536, 1.0, 0.0
        %v3541 = vsel %vm3537, 1.0, 0.0
        %v3542 = vsel %vm3538, 1.0, 0.0
        %v3543 = vpack.c.bf16 %v3261, %v3259
        %v3544 = vpack.c.bf16 %v3262, %v3260
        %v3545 = vpack.c.bf16 %v3277, %v3275
        %v3546 = vpack.c.bf16 %v3278, %v3276
        %v3547 = vpack.c.bf16 %v3301, %v3299
        %v3548 = vpack.c.bf16 %v3302, %v3300
        %v3549 = vpack.c.bf16 %v3333, %v3331
        %v3550 = vpack.c.bf16 %v3334, %v3332
        %v3551 = vpack.c.bf16 %v3373, %v3371
        %v3552 = vpack.c.bf16 %v3374, %v3372
        %v3553 = vpack.c.bf16 %v3421, %v3419
        %v3554 = vpack.c.bf16 %v3422, %v3420
        %v3555 = vpack.c.bf16 %v3477, %v3475
        %v3556 = vpack.c.bf16 %v3478, %v3476
        %v3557 = vpack.c.bf16 %v3541, %v3539
        %v3558 = vpack.c.bf16 %v3542, %v3540
        %v3559 = vld [vmem:[%s5] sm:$0xff]
        %v3560 = vld [vmem:[%s5 + $0x8] sm:$0xff]
        %v3561 = vld [vmem:[%s5 + $0x10] sm:$0xff]
        %v3562 = vld [vmem:[%s5 + $0x18] sm:$0xf]
        %v3563 = vld [vmem:[%s5 + $0x1c] sm:$0xff]
        %v3564 = vld [vmem:[%s5 + $0x24] sm:$0xff]
        %v3565 = vld [vmem:[%s5 + $0x2c] sm:$0xff]
        %v3566 = vld [vmem:[%s5 + $0x34] sm:$0xf]
        %v3567 = vld [vmem:[%s5 + $0x38] sm:$0xff]
        %v3568 = vld [vmem:[%s5 + $0x40] sm:$0xff]
        %v3569 = vld [vmem:[%s5 + $0x48] sm:$0xff]
        %v3570 = vld [vmem:[%s5 + $0x50] sm:$0xf]
        %v3571 = vld [vmem:[%s5 + $0x54] sm:$0xff]
        %v3572 = vld [vmem:[%s5 + $0x5c] sm:$0xff]
        %v3573 = vld [vmem:[%s5 + $0x64] sm:$0xff]
        %v3574 = vld [vmem:[%s5 + $0x6c] sm:$0xf]
        %v3575 = vld [vmem:[%s5 + $0x70] sm:$0xff]
        %v3576 = vld [vmem:[%s5 + $0x78] sm:$0xff]
        %v3577 = vld [vmem:[%s5 + $0x80] sm:$0xff]
        %v3578 = vld [vmem:[%s5 + $0x88] sm:$0xf]
        %v3579 = vld [vmem:[%s5 + $0x8c] sm:$0xff]
        %v3580 = vld [vmem:[%s5 + $0x94] sm:$0xff]
        %v3581 = vld [vmem:[%s5 + $0x9c] sm:$0xff]
        %v3582 = vld [vmem:[%s5 + $0xa4] sm:$0xf]
        %v3583 = vld [vmem:[%s5 + $0xa8] sm:$0xff]
        %v3584 = vld [vmem:[%s5 + $0xb0] sm:$0xff]
        %v3585 = vld [vmem:[%s5 + $0xb8] sm:$0xff]
        %v3586 = vld [vmem:[%s5 + $0xc0] sm:$0xf]
        %v3587 = vld [vmem:[%s5 + $0xc4] sm:$0xff]
        %v3588 = vld [vmem:[%s5 + $0xcc] sm:$0xff]
        %v3589 = vld [vmem:[%s5 + $0xd4] sm:$0xff]
        %v3590 = vld [vmem:[%s5 + $0xdc] sm:$0xf]
        %v3591 = vld [vmem:[%s5 + $0xe0] sm:$0xff]
        %v3592 = vld [vmem:[%s5 + $0xe8] sm:$0xff]
        %v3593 = vld [vmem:[%s5 + $0xf0] sm:$0xff]
        %v3594 = vld [vmem:[%s5 + $0xf8] sm:$0xf]
        %v3595 = vld [vmem:[%s5 + $0xfc] sm:$0xff]
        %v3596 = vld [vmem:[%s5 + $0x104] sm:$0xff]
        %v3597 = vld [vmem:[%s5 + $0x10c] sm:$0xff]
        %v3598 = vld [vmem:[%s5 + $0x114] sm:$0xf]
        %v3599 = vld [vmem:[%s5 + $0x118] sm:$0xff]
        %v3600 = vld [vmem:[%s5 + $0x120] sm:$0xff]
        %v3601 = vld [vmem:[%s5 + $0x128] sm:$0xff]
        %v3602 = vld [vmem:[%s5 + $0x130] sm:$0xf]
        %v3603 = vld [vmem:[%s5 + $0x134] sm:$0xff]
        %v3604 = vld [vmem:[%s5 + $0x13c] sm:$0xff]
        %v3605 = vld [vmem:[%s5 + $0x144] sm:$0xff]
        %v3606 = vld [vmem:[%s5 + $0x14c] sm:$0xf]
        %v3607 = vld [vmem:[%s5 + $0x150] sm:$0xff]
        %v3608 = vld [vmem:[%s5 + $0x158] sm:$0xff]
        %v3609 = vld [vmem:[%s5 + $0x160] sm:$0xff]
        %v3610 = vld [vmem:[%s5 + $0x168] sm:$0xf]
        %v3611 = vld [vmem:[%s5 + $0x16c] sm:$0xff]
        %v3612 = vld [vmem:[%s5 + $0x174] sm:$0xff]
        %v3613 = vld [vmem:[%s5 + $0x17c] sm:$0xff]
        %v3614 = vld [vmem:[%s5 + $0x184] sm:$0xf]
        %v3615 = vld [vmem:[%s5 + $0x188] sm:$0xff]
        %v3616 = vld [vmem:[%s5 + $0x190] sm:$0xff]
        %v3617 = vld [vmem:[%s5 + $0x198] sm:$0xff]
        %v3618 = vld [vmem:[%s5 + $0x1a0] sm:$0xf]
        %v3619 = vld [vmem:[%s5 + $0x1a4] sm:$0xff]
        %v3620 = vld [vmem:[%s5 + $0x1ac] sm:$0xff]
        %v3621 = vld [vmem:[%s5 + $0x1b4] sm:$0xff]
        %v3622 = vld [vmem:[%s5 + $0x1bc] sm:$0xf]
        %v3623 = vld [vmem:[%s5 + $0x1c0] sm:$0xff]
        %v3624 = vld [vmem:[%s5 + $0x1c8] sm:$0xff]
        %v3625 = vld [vmem:[%s5 + $0x1d0] sm:$0xff]
        %v3626 = vld [vmem:[%s5 + $0x1d8] sm:$0xf]
        %v3627 = vld [vmem:[%s5 + $0x1dc] sm:$0xff]
        %v3628 = vld [vmem:[%s5 + $0x1e4] sm:$0xff]
        %v3629 = vld [vmem:[%s5 + $0x1ec] sm:$0xff]
        %v3630 = vld [vmem:[%s5 + $0x1f4] sm:$0xf]
        %v3631 = vld [vmem:[%s5 + $0x1f8] sm:$0xff]
        %v3632 = vld [vmem:[%s5 + $0x200] sm:$0xff]
        %v3633 = vld [vmem:[%s5 + $0x208] sm:$0xff]
        %v3634 = vld [vmem:[%s5 + $0x210] sm:$0xf]
        %v3635 = vld [vmem:[%s5 + $0x214] sm:$0xff]
        %v3636 = vld [vmem:[%s5 + $0x21c] sm:$0xff]
        %v3637 = vld [vmem:[%s5 + $0x224] sm:$0xff]
        %v3638 = vld [vmem:[%s5 + $0x22c] sm:$0xf]
        %v3639 = vld [vmem:[%s5 + $0x230] sm:$0xff]
        %v3640 = vld [vmem:[%s5 + $0x238] sm:$0xff]
        %v3641 = vld [vmem:[%s5 + $0x240] sm:$0xff]
        %v3642 = vld [vmem:[%s5 + $0x248] sm:$0xf]
        %v3643 = vld [vmem:[%s5 + $0x24c] sm:$0xff]
        %v3644 = vld [vmem:[%s5 + $0x254] sm:$0xff]
        %v3645 = vld [vmem:[%s5 + $0x25c] sm:$0xff]
        %v3646 = vld [vmem:[%s5 + $0x264] sm:$0xf]
        %v3647 = vld [vmem:[%s5 + $0x268] sm:$0xff]
        %v3648 = vld [vmem:[%s5 + $0x270] sm:$0xff]
        %v3649 = vld [vmem:[%s5 + $0x278] sm:$0xff]
        %v3650 = vld [vmem:[%s5 + $0x280] sm:$0xf]
        %v3651 = vld [vmem:[%s5 + $0x284] sm:$0xff]
        %v3652 = vld [vmem:[%s5 + $0x28c] sm:$0xff]
        %v3653 = vld [vmem:[%s5 + $0x294] sm:$0xff]
        %v3654 = vld [vmem:[%s5 + $0x29c] sm:$0xf]
        %v3655 = vld [vmem:[%s5 + $0x2a0] sm:$0xff]
        %v3656 = vld [vmem:[%s5 + $0x2a8] sm:$0xff]
        %v3657 = vld [vmem:[%s5 + $0x2b0] sm:$0xff]
        %v3658 = vld [vmem:[%s5 + $0x2b8] sm:$0xf]
        %v3659 = vld [vmem:[%s5 + $0x2bc] sm:$0xff]
        %v3660 = vld [vmem:[%s5 + $0x2c4] sm:$0xff]
        %v3661 = vld [vmem:[%s5 + $0x2cc] sm:$0xff]
        %v3662 = vld [vmem:[%s5 + $0x2d4] sm:$0xf]
        %v3663 = vld [vmem:[%s5 + $0x2d8] sm:$0xff]
        %v3664 = vld [vmem:[%s5 + $0x2e0] sm:$0xff]
        %v3665 = vld [vmem:[%s5 + $0x2e8] sm:$0xff]
        %v3666 = vld [vmem:[%s5 + $0x2f0] sm:$0xf]
        %v3667 = vld [vmem:[%s5 + $0x2f4] sm:$0xff]
        %v3668 = vld [vmem:[%s5 + $0x2fc] sm:$0xff]
        %v3669 = vld [vmem:[%s5 + $0x304] sm:$0xff]
        %v3670 = vld [vmem:[%s5 + $0x30c] sm:$0xf]
        %v3671 = vld [vmem:[%s5 + $0x310] sm:$0xff]
        %v3672 = vld [vmem:[%s5 + $0x318] sm:$0xff]
        %v3673 = vld [vmem:[%s5 + $0x320] sm:$0xff]
        %v3674 = vld [vmem:[%s5 + $0x328] sm:$0xf]
        %v3675 = vld [vmem:[%s5 + $0x32c] sm:$0xff]
        %v3676 = vld [vmem:[%s5 + $0x334] sm:$0xff]
        %v3677 = vld [vmem:[%s5 + $0x33c] sm:$0xff]
        %v3678 = vld [vmem:[%s5 + $0x344] sm:$0xf]
        %v3679 = vld [vmem:[%s5 + $0x348] sm:$0xff]
        %v3680 = vld [vmem:[%s5 + $0x350] sm:$0xff]
        %v3681 = vld [vmem:[%s5 + $0x358] sm:$0xff]
        %v3682 = vld [vmem:[%s5 + $0x360] sm:$0xf]
        %v3683 = vld [vmem:[%s5 + $0x364] sm:$0xff]
        %v3684 = vld [vmem:[%s5 + $0x36c] sm:$0xff]
        %v3685 = vld [vmem:[%s5 + $0x374] sm:$0xff]
        %v3686 = vld [vmem:[%s5 + $0x37c] sm:$0xf]
        %v3815 = vunpack.c.l.b16 %v3559
        %v3816 = vunpack.c.h.b16 %v3559
        %v3817 = vunpack.c.l.b16 %v3560
        %v3818 = vunpack.c.h.b16 %v3560
        %v3819 = vunpack.c.l.b16 %v3561
        %v3820 = vunpack.c.h.b16 %v3561
        %v3821 = vunpack.c.l.b16 %v3562
        %v3822 = vunpack.c.l.b16 %v3563
        %v3823 = vunpack.c.h.b16 %v3563
        %v3824 = vunpack.c.l.b16 %v3564
        %v3825 = vunpack.c.h.b16 %v3564
        %v3826 = vunpack.c.l.b16 %v3565
        %v3827 = vunpack.c.h.b16 %v3565
        %v3828 = vunpack.c.l.b16 %v3566
        %v3829 = vunpack.c.l.b16 %v3567
        %v3830 = vunpack.c.h.b16 %v3567
        %v3831 = vunpack.c.l.b16 %v3568
        %v3832 = vunpack.c.h.b16 %v3568
        %v3833 = vunpack.c.l.b16 %v3569
        %v3834 = vunpack.c.h.b16 %v3569
        %v3835 = vunpack.c.l.b16 %v3570
        %v3836 = vunpack.c.l.b16 %v3571
        %v3837 = vunpack.c.h.b16 %v3571
        %v3838 = vunpack.c.l.b16 %v3572
        %v3839 = vunpack.c.h.b16 %v3572
        %v3840 = vunpack.c.l.b16 %v3573
        %v3841 = vunpack.c.h.b16 %v3573
        %v3842 = vunpack.c.l.b16 %v3574
        %v3843 = vunpack.c.l.b16 %v3575
        %v3844 = vunpack.c.h.b16 %v3575
        %v3845 = vunpack.c.l.b16 %v3576
        %v3846 = vunpack.c.h.b16 %v3576
        %v3847 = vunpack.c.l.b16 %v3577
        %v3848 = vunpack.c.h.b16 %v3577
        %v3849 = vunpack.c.l.b16 %v3578
        %v3850 = vunpack.c.l.b16 %v3579
        %v3851 = vunpack.c.h.b16 %v3579
        %v3852 = vunpack.c.l.b16 %v3580
        %v3853 = vunpack.c.h.b16 %v3580
        %v3854 = vunpack.c.l.b16 %v3581
        %v3855 = vunpack.c.h.b16 %v3581
        %v3856 = vunpack.c.l.b16 %v3582
        %v3857 = vunpack.c.l.b16 %v3583
        %v3858 = vunpack.c.h.b16 %v3583
        %v3859 = vunpack.c.l.b16 %v3584
        %v3860 = vunpack.c.h.b16 %v3584
        %v3861 = vunpack.c.l.b16 %v3585
        %v3862 = vunpack.c.h.b16 %v3585
        %v3863 = vunpack.c.l.b16 %v3586
        %v3864 = vunpack.c.l.b16 %v3587
        %v3865 = vunpack.c.h.b16 %v3587
        %v3866 = vunpack.c.l.b16 %v3588
        %v3867 = vunpack.c.h.b16 %v3588
        %v3868 = vunpack.c.l.b16 %v3589
        %v3869 = vunpack.c.h.b16 %v3589
        %v3870 = vunpack.c.l.b16 %v3590
        %v3871 = vunpack.c.l.b16 %v3591
        %v3872 = vunpack.c.h.b16 %v3591
        %v3873 = vunpack.c.l.b16 %v3592
        %v3874 = vunpack.c.h.b16 %v3592
        %v3875 = vunpack.c.l.b16 %v3593
        %v3876 = vunpack.c.h.b16 %v3593
        %v3877 = vunpack.c.l.b16 %v3594
        %v3878 = vunpack.c.l.b16 %v3595
        %v3879 = vunpack.c.h.b16 %v3595
        %v3880 = vunpack.c.l.b16 %v3596
        %v3881 = vunpack.c.h.b16 %v3596
        %v3882 = vunpack.c.l.b16 %v3597
        %v3883 = vunpack.c.h.b16 %v3597
        %v3884 = vunpack.c.l.b16 %v3598
        %v3885 = vunpack.c.l.b16 %v3599
        %v3886 = vunpack.c.h.b16 %v3599
        %v3887 = vunpack.c.l.b16 %v3600
        %v3888 = vunpack.c.h.b16 %v3600
        %v3889 = vunpack.c.l.b16 %v3601
        %v3890 = vunpack.c.h.b16 %v3601
        %v3891 = vunpack.c.l.b16 %v3602
        %v3892 = vunpack.c.l.b16 %v3603
        %v3893 = vunpack.c.h.b16 %v3603
        %v3894 = vunpack.c.l.b16 %v3604
        %v3895 = vunpack.c.h.b16 %v3604
        %v3896 = vunpack.c.l.b16 %v3605
        %v3897 = vunpack.c.h.b16 %v3605
        %v3898 = vunpack.c.l.b16 %v3606
        %v3899 = vunpack.c.l.b16 %v3607
        %v3900 = vunpack.c.h.b16 %v3607
        %v3901 = vunpack.c.l.b16 %v3608
        %v3902 = vunpack.c.h.b16 %v3608
        %v3903 = vunpack.c.l.b16 %v3609
        %v3904 = vunpack.c.h.b16 %v3609
        %v3905 = vunpack.c.l.b16 %v3610
        %v3906 = vunpack.c.l.b16 %v3611
        %v3907 = vunpack.c.h.b16 %v3611
        %v3908 = vunpack.c.l.b16 %v3612
        %v3909 = vunpack.c.h.b16 %v3612
        %v3910 = vunpack.c.l.b16 %v3613
        %v3911 = vunpack.c.h.b16 %v3613
        %v3912 = vunpack.c.l.b16 %v3614
        %v3913 = vunpack.c.l.b16 %v3615
        %v3914 = vunpack.c.h.b16 %v3615
        %v3915 = vunpack.c.l.b16 %v3616
        %v3916 = vunpack.c.h.b16 %v3616
        %v3917 = vunpack.c.l.b16 %v3617
        %v3918 = vunpack.c.h.b16 %v3617
        %v3919 = vunpack.c.l.b16 %v3618
        %v3920 = vunpack.c.l.b16 %v3619
        %v3921 = vunpack.c.h.b16 %v3619
        %v3922 = vunpack.c.l.b16 %v3620
        %v3923 = vunpack.c.h.b16 %v3620
        %v3924 = vunpack.c.l.b16 %v3621
        %v3925 = vunpack.c.h.b16 %v3621
        %v3926 = vunpack.c.l.b16 %v3622
        %v3927 = vunpack.c.l.b16 %v3623
        %v3928 = vunpack.c.h.b16 %v3623
        %v3929 = vunpack.c.l.b16 %v3624
        %v3930 = vunpack.c.h.b16 %v3624
        %v3931 = vunpack.c.l.b16 %v3625
        %v3932 = vunpack.c.h.b16 %v3625
        %v3933 = vunpack.c.l.b16 %v3626
        %v3934 = vunpack.c.l.b16 %v3627
        %v3935 = vunpack.c.h.b16 %v3627
        %v3936 = vunpack.c.l.b16 %v3628
        %v3937 = vunpack.c.h.b16 %v3628
        %v3938 = vunpack.c.l.b16 %v3629
        %v3939 = vunpack.c.h.b16 %v3629
        %v3940 = vunpack.c.l.b16 %v3630
        %v3941 = vunpack.c.l.b16 %v3631
        %v3942 = vunpack.c.h.b16 %v3631
        %v3943 = vunpack.c.l.b16 %v3632
        %v3944 = vunpack.c.h.b16 %v3632
        %v3945 = vunpack.c.l.b16 %v3633
        %v3946 = vunpack.c.h.b16 %v3633
        %v3947 = vunpack.c.l.b16 %v3634
        %v3948 = vunpack.c.l.b16 %v3635
        %v3949 = vunpack.c.h.b16 %v3635
        %v3950 = vunpack.c.l.b16 %v3636
        %v3951 = vunpack.c.h.b16 %v3636
        %v3952 = vunpack.c.l.b16 %v3637
        %v3953 = vunpack.c.h.b16 %v3637
        %v3954 = vunpack.c.l.b16 %v3638
        %v3955 = vunpack.c.l.b16 %v3639
        %v3956 = vunpack.c.h.b16 %v3639
        %v3957 = vunpack.c.l.b16 %v3640
        %v3958 = vunpack.c.h.b16 %v3640
        %v3959 = vunpack.c.l.b16 %v3641
        %v3960 = vunpack.c.h.b16 %v3641
        %v3961 = vunpack.c.l.b16 %v3642
        %v3962 = vunpack.c.l.b16 %v3643
        %v3963 = vunpack.c.h.b16 %v3643
        %v3964 = vunpack.c.l.b16 %v3644
        %v3965 = vunpack.c.h.b16 %v3644
        %v3966 = vunpack.c.l.b16 %v3645
        %v3967 = vunpack.c.h.b16 %v3645
        %v3968 = vunpack.c.l.b16 %v3646
        %v3969 = vunpack.c.l.b16 %v3647
        %v3970 = vunpack.c.h.b16 %v3647
        %v3971 = vunpack.c.l.b16 %v3648
        %v3972 = vunpack.c.h.b16 %v3648
        %v3973 = vunpack.c.l.b16 %v3649
        %v3974 = vunpack.c.h.b16 %v3649
        %v3975 = vunpack.c.l.b16 %v3650
        %v3976 = vunpack.c.l.b16 %v3651
        %v3977 = vunpack.c.h.b16 %v3651
        %v3978 = vunpack.c.l.b16 %v3652
        %v3979 = vunpack.c.h.b16 %v3652
        %v3980 = vunpack.c.l.b16 %v3653
        %v3981 = vunpack.c.h.b16 %v3653
        %v3982 = vunpack.c.l.b16 %v3654
        %v3983 = vunpack.c.l.b16 %v3655
        %v3984 = vunpack.c.h.b16 %v3655
        %v3985 = vunpack.c.l.b16 %v3656
        %v3986 = vunpack.c.h.b16 %v3656
        %v3987 = vunpack.c.l.b16 %v3657
        %v3988 = vunpack.c.h.b16 %v3657
        %v3989 = vunpack.c.l.b16 %v3658
        %v3990 = vunpack.c.l.b16 %v3659
        %v3991 = vunpack.c.h.b16 %v3659
        %v3992 = vunpack.c.l.b16 %v3660
        %v3993 = vunpack.c.h.b16 %v3660
        %v3994 = vunpack.c.l.b16 %v3661
        %v3995 = vunpack.c.h.b16 %v3661
        %v3996 = vunpack.c.l.b16 %v3662
        %v3997 = vunpack.c.l.b16 %v3663
        %v3998 = vunpack.c.h.b16 %v3663
        %v3999 = vunpack.c.l.b16 %v3664
        %v4000 = vunpack.c.h.b16 %v3664
        %v4001 = vunpack.c.l.b16 %v3665
        %v4002 = vunpack.c.h.b16 %v3665
        %v4003 = vunpack.c.l.b16 %v3666
        %v4004 = vunpack.c.l.b16 %v3667
        %v4005 = vunpack.c.h.b16 %v3667
        %v4006 = vunpack.c.l.b16 %v3668
        %v4007 = vunpack.c.h.b16 %v3668
        %v4008 = vunpack.c.l.b16 %v3669
        %v4009 = vunpack.c.h.b16 %v3669
        %v4010 = vunpack.c.l.b16 %v3670
        %v4011 = vunpack.c.l.b16 %v3671
        %v4012 = vunpack.c.h.b16 %v3671
        %v4013 = vunpack.c.l.b16 %v3672
        %v4014 = vunpack.c.h.b16 %v3672
        %v4015 = vunpack.c.l.b16 %v3673
        %v4016 = vunpack.c.h.b16 %v3673
        %v4017 = vunpack.c.l.b16 %v3674
        %v4018 = vunpack.c.l.b16 %v3675
        %v4019 = vunpack.c.h.b16 %v3675
        %v4020 = vunpack.c.l.b16 %v3676
        %v4021 = vunpack.c.h.b16 %v3676
        %v4022 = vunpack.c.l.b16 %v3677
        %v4023 = vunpack.c.h.b16 %v3677
        %v4024 = vunpack.c.l.b16 %v3678
        %v4025 = vunpack.c.l.b16 %v3679
        %v4026 = vunpack.c.h.b16 %v3679
        %v4027 = vunpack.c.l.b16 %v3680
        %v4028 = vunpack.c.h.b16 %v3680
        %v4029 = vunpack.c.l.b16 %v3681
        %v4030 = vunpack.c.h.b16 %v3681
        %v4031 = vunpack.c.l.b16 %v3682
        %v4032 = vunpack.c.l.b16 %v3683
        %v4033 = vunpack.c.h.b16 %v3683
        %v4034 = vunpack.c.l.b16 %v3684
        %v4035 = vunpack.c.h.b16 %v3684
        %v4036 = vunpack.c.l.b16 %v3685
        %v4037 = vunpack.c.h.b16 %v3685
        %v4038 = vunpack.c.l.b16 %v3686
        %v4039 = vpack.c.b16 %v3822, %v3815
        %v4040 = vpack.c.b16 %v3823, %v3816
        %v4041 = vpack.c.b16 %v3824, %v3817
        %v4042 = vpack.c.b16 %v3825, %v3818
        %v4043 = vpack.c.b16 %v3826, %v3819
        %v4044 = vpack.c.b16 %v3827, %v3820
        %v4045 = vpack.c.b16 %v3828, %v3821
        %v4046 = vpack.c.b16 %v3836, %v3829
        %v4047 = vpack.c.b16 %v3837, %v3830
        %v4048 = vpack.c.b16 %v3838, %v3831
        %v4049 = vpack.c.b16 %v3839, %v3832
        %v4050 = vpack.c.b16 %v3840, %v3833
        %v4051 = vpack.c.b16 %v3841, %v3834
        %v4052 = vpack.c.b16 %v3842, %v3835
        %v4053 = vpack.c.b16 %v3850, %v3843
        %v4054 = vpack.c.b16 %v3851, %v3844
        %v4055 = vpack.c.b16 %v3852, %v3845
        %v4056 = vpack.c.b16 %v3853, %v3846
        %v4057 = vpack.c.b16 %v3854, %v3847
        %v4058 = vpack.c.b16 %v3855, %v3848
        %v4059 = vpack.c.b16 %v3856, %v3849
        %v4060 = vpack.c.b16 %v3864, %v3857
        %v4061 = vpack.c.b16 %v3865, %v3858
        %v4062 = vpack.c.b16 %v3866, %v3859
        %v4063 = vpack.c.b16 %v3867, %v3860
        %v4064 = vpack.c.b16 %v3868, %v3861
        %v4065 = vpack.c.b16 %v3869, %v3862
        %v4066 = vpack.c.b16 %v3870, %v3863
        %v4067 = vpack.c.b16 %v3878, %v3871
        %v4068 = vpack.c.b16 %v3879, %v3872
        %v4069 = vpack.c.b16 %v3880, %v3873
        %v4070 = vpack.c.b16 %v3881, %v3874
        %v4071 = vpack.c.b16 %v3882, %v3875
        %v4072 = vpack.c.b16 %v3883, %v3876
        %v4073 = vpack.c.b16 %v3884, %v3877
        %v4074 = vpack.c.b16 %v3892, %v3885
        %v4075 = vpack.c.b16 %v3893, %v3886
        %v4076 = vpack.c.b16 %v3894, %v3887
        %v4077 = vpack.c.b16 %v3895, %v3888
        %v4078 = vpack.c.b16 %v3896, %v3889
        %v4079 = vpack.c.b16 %v3897, %v3890
        %v4080 = vpack.c.b16 %v3898, %v3891
        %v4081 = vpack.c.b16 %v3906, %v3899
        %v4082 = vpack.c.b16 %v3907, %v3900
        %v4083 = vpack.c.b16 %v3908, %v3901
        %v4084 = vpack.c.b16 %v3909, %v3902
        %v4085 = vpack.c.b16 %v3910, %v3903
        %v4086 = vpack.c.b16 %v3911, %v3904
        %v4087 = vpack.c.b16 %v3912, %v3905
        %v4088 = vpack.c.b16 %v3920, %v3913
        %v4089 = vpack.c.b16 %v3921, %v3914
        %v4090 = vpack.c.b16 %v3922, %v3915
        %v4091 = vpack.c.b16 %v3923, %v3916
        %v4092 = vpack.c.b16 %v3924, %v3917
        %v4093 = vpack.c.b16 %v3925, %v3918
        %v4094 = vpack.c.b16 %v3926, %v3919
        %v4095 = vpack.c.b16 %v3934, %v3927
        %v4096 = vpack.c.b16 %v3935, %v3928
        %v4097 = vpack.c.b16 %v3936, %v3929
        %v4098 = vpack.c.b16 %v3937, %v3930
        %v4099 = vpack.c.b16 %v3938, %v3931
        %v4100 = vpack.c.b16 %v3939, %v3932
        %v4101 = vpack.c.b16 %v3940, %v3933
        %v4102 = vpack.c.b16 %v3948, %v3941
        %v4103 = vpack.c.b16 %v3949, %v3942
        %v4104 = vpack.c.b16 %v3950, %v3943
        %v4105 = vpack.c.b16 %v3951, %v3944
        %v4106 = vpack.c.b16 %v3952, %v3945
        %v4107 = vpack.c.b16 %v3953, %v3946
        %v4108 = vpack.c.b16 %v3954, %v3947
        %v4109 = vpack.c.b16 %v3962, %v3955
        %v4110 = vpack.c.b16 %v3963, %v3956
        %v4111 = vpack.c.b16 %v3964, %v3957
        %v4112 = vpack.c.b16 %v3965, %v3958
        %v4113 = vpack.c.b16 %v3966, %v3959
        %v4114 = vpack.c.b16 %v3967, %v3960
        %v4115 = vpack.c.b16 %v3968, %v3961
        %v4116 = vpack.c.b16 %v3976, %v3969
        %v4117 = vpack.c.b16 %v3977, %v3970
        %v4118 = vpack.c.b16 %v3978, %v3971
        %v4119 = vpack.c.b16 %v3979, %v3972
        %v4120 = vpack.c.b16 %v3980, %v3973
        %v4121 = vpack.c.b16 %v3981, %v3974
        %v4122 = vpack.c.b16 %v3982, %v3975
        %v4123 = vpack.c.b16 %v3990, %v3983
        %v4124 = vpack.c.b16 %v3991, %v3984
        %v4125 = vpack.c.b16 %v3992, %v3985
        %v4126 = vpack.c.b16 %v3993, %v3986
        %v4127 = vpack.c.b16 %v3994, %v3987
        %v4128 = vpack.c.b16 %v3995, %v3988
        %v4129 = vpack.c.b16 %v3996, %v3989
        %v4130 = vpack.c.b16 %v4004, %v3997
        %v4131 = vpack.c.b16 %v4005, %v3998
        %v4132 = vpack.c.b16 %v4006, %v3999
        %v4133 = vpack.c.b16 %v4007, %v4000
        %v4134 = vpack.c.b16 %v4008, %v4001
        %v4135 = vpack.c.b16 %v4009, %v4002
        %v4136 = vpack.c.b16 %v4010, %v4003
        %v4137 = vpack.c.b16 %v4018, %v4011
        %v4138 = vpack.c.b16 %v4019, %v4012
        %v4139 = vpack.c.b16 %v4020, %v4013
        %v4140 = vpack.c.b16 %v4021, %v4014
        %v4141 = vpack.c.b16 %v4022, %v4015
        %v4142 = vpack.c.b16 %v4023, %v4016
        %v4143 = vpack.c.b16 %v4024, %v4017
        %v4144 = vpack.c.b16 %v4032, %v4025
        %v4145 = vpack.c.b16 %v4033, %v4026
        %v4146 = vpack.c.b16 %v4034, %v4027
        %v4147 = vpack.c.b16 %v4035, %v4028
        %v4148 = vpack.c.b16 %v4036, %v4029
        %v4149 = vpack.c.b16 %v4037, %v4030
        %v4150 = vpack.c.b16 %v4038, %v4031
        %4263 = vmatprep.subr.bf16.mxu0 %v4089
        %4264 = vmatpush1.bf16.msra.mxu0 %v4088
        %4265 = vmatprep.subr.bf16.mxu0 %v4082
        %4266 = vmatpush1.bf16.msra.mxu0 %v4081
        %4267 = vmatprep.subr.bf16.mxu0 %v4075
        %4268 = vmatpush1.bf16.msra.mxu0 %v4074
        %4269 = vmatprep.subr.bf16.mxu0 %v4068
        %4270 = vmatpush1.bf16.msra.mxu0 %v4067
        %4271 = vmatprep.subr.bf16.mxu0 %v4061
        %4272 = vmatpush1.bf16.msra.mxu0 %v4060
        %4273 = vmatprep.subr.bf16.mxu0 %v4054
        %4274 = vmatpush1.bf16.msra.mxu0 %v4053
        %4275 = vmatprep.subr.bf16.mxu0 %v4047
        %4276 = vmatpush1.bf16.msra.mxu0 %v4046
        %4277 = vmatprep.subr.bf16.mxu0 %v4040
        %4278 = vmatpush1.bf16.msra.mxu0 %v4039
        %4279 = vmatprep.subr.bf16.mxu0 %v4145
        %4280 = vmatpush2.bf16.msra.mxu0 %v4144
        %4281 = vmatprep.subr.bf16.mxu0 %v4138
        %4282 = vmatpush2.bf16.msra.mxu0 %v4137
        %4283 = vmatprep.subr.bf16.mxu0 %v4131
        %4284 = vmatpush2.bf16.msra.mxu0 %v4130
        %4285 = vmatprep.subr.bf16.mxu0 %v4124
        %4286 = vmatpush2.bf16.msra.mxu0 %v4123
        %4287 = vmatprep.subr.bf16.mxu0 %v4117
        %4288 = vmatpush2.bf16.msra.mxu0 %v4116
        %4289 = vmatprep.subr.bf16.mxu0 %v4110
        %4290 = vmatpush2.bf16.msra.mxu0 %v4109
        %4291 = vmatprep.subr.bf16.mxu0 %v4103
        %4292 = vmatpush2.bf16.msra.mxu0 %v4102
        %4293 = vmatprep.subr.bf16.mxu0 %v4096
        %4294 = vmatpush2.bf16.msra.mxu0 %v4095
        %4295 = vmatprep.mubr.bf16.mxu0 %v3544
        %4296 = vmatmul.mubr.bf16.gmra.mxu0 %v3543
        %v4297 = vpop.f32.mrf.mxu0
        %v4298 = vadd.f32 0.0, %v4297
        %v4299 = vpop.f32.mrf.mxu0
        %v4300 = vadd.f32 0.0, %v4299
        %v4301 = vpop.f32.mrf.mxu0
        %v4302 = vadd.f32 0.0, %v4301
        %v4303 = vpop.f32.mrf.mxu0
        %v4304 = vadd.f32 0.0, %v4303
        %4305 = vmatprep.mubr.bf16.mxu0 %v3546
        %4306 = vmatmul.mubr.bf16.gmra.mxu0 %v3545
        %v4307 = vpop.f32.mrf.mxu0
        %v4308 = vadd.f32 0.0, %v4307
        %v4309 = vpop.f32.mrf.mxu0
        %v4310 = vadd.f32 0.0, %v4309
        %v4311 = vpop.f32.mrf.mxu0
        %v4312 = vadd.f32 0.0, %v4311
        %v4313 = vpop.f32.mrf.mxu0
        %v4314 = vadd.f32 0.0, %v4313
        %4315 = vmatprep.mubr.bf16.mxu0 %v3548
        %4316 = vmatmul.mubr.bf16.gmra.mxu0 %v3547
        %v4317 = vpop.f32.mrf.mxu0
        %v4318 = vadd.f32 0.0, %v4317
        %v4319 = vpop.f32.mrf.mxu0
        %v4320 = vadd.f32 0.0, %v4319
        %v4321 = vpop.f32.mrf.mxu0
        %v4322 = vadd.f32 0.0, %v4321
        %v4323 = vpop.f32.mrf.mxu0
        %v4324 = vadd.f32 0.0, %v4323
        %4325 = vmatprep.mubr.bf16.mxu0 %v3550
        %4326 = vmatmul.mubr.bf16.gmra.mxu0 %v3549
        %v4327 = vpop.f32.mrf.mxu0
        %v4328 = vadd.f32 0.0, %v4327
        %v4329 = vpop.f32.mrf.mxu0
        %v4330 = vadd.f32 0.0, %v4329
        %v4331 = vpop.f32.mrf.mxu0
        %v4332 = vadd.f32 0.0, %v4331
        %v4333 = vpop.f32.mrf.mxu0
        %v4334 = vadd.f32 0.0, %v4333
        %4335 = vmatprep.mubr.bf16.mxu0 %v3552
        %4336 = vmatmul.mubr.bf16.gmra.mxu0 %v3551
        %v4337 = vpop.f32.mrf.mxu0
        %v4338 = vadd.f32 0.0, %v4337
        %v4339 = vpop.f32.mrf.mxu0
        %v4340 = vadd.f32 0.0, %v4339
        %v4341 = vpop.f32.mrf.mxu0
        %v4342 = vadd.f32 0.0, %v4341
        %v4343 = vpop.f32.mrf.mxu0
        %v4344 = vadd.f32 0.0, %v4343
        %4345 = vmatprep.mubr.bf16.mxu0 %v3554
        %4346 = vmatmul.mubr.bf16.gmra.mxu0 %v3553
        %v4347 = vpop.f32.mrf.mxu0
        %v4348 = vadd.f32 0.0, %v4347
        %v4349 = vpop.f32.mrf.mxu0
        %v4350 = vadd.f32 0.0, %v4349
        %v4351 = vpop.f32.mrf.mxu0
        %v4352 = vadd.f32 0.0, %v4351
        %v4353 = vpop.f32.mrf.mxu0
        %v4354 = vadd.f32 0.0, %v4353
        %4355 = vmatprep.mubr.bf16.mxu0 %v3556
        %4356 = vmatmul.mubr.bf16.gmra.mxu0 %v3555
        %v4357 = vpop.f32.mrf.mxu0
        %v4358 = vadd.f32 0.0, %v4357
        %v4359 = vpop.f32.mrf.mxu0
        %v4360 = vadd.f32 0.0, %v4359
        %v4361 = vpop.f32.mrf.mxu0
        %v4362 = vadd.f32 0.0, %v4361
        %v4363 = vpop.f32.mrf.mxu0
        %v4364 = vadd.f32 0.0, %v4363
        %4365 = vmatprep.mubr.bf16.mxu0 %v3558
        %4366 = vmatmul.mubr.bf16.gmra.mxu0 %v3557
        %v4367 = vpop.f32.mrf.mxu0
        %v4368 = vadd.f32 0.0, %v4367
        %v4369 = vpop.f32.mrf.mxu0
        %v4370 = vadd.f32 0.0, %v4369
        %v4371 = vpop.f32.mrf.mxu0
        %v4372 = vadd.f32 0.0, %v4371
        %v4373 = vpop.f32.mrf.mxu0
        %v4374 = vadd.f32 0.0, %v4373
        %4375 = vdwg.mxu0
        %4376 = vmatprep.subr.bf16.mxu0 %v4091
        %4377 = vmatpush1.bf16.msra.mxu0 %v4090
        %4378 = vmatprep.subr.bf16.mxu0 %v4084
        %4379 = vmatpush1.bf16.msra.mxu0 %v4083
        %4380 = vmatprep.subr.bf16.mxu0 %v4077
        %4381 = vmatpush1.bf16.msra.mxu0 %v4076
        %4382 = vmatprep.subr.bf16.mxu0 %v4070
        %4383 = vmatpush1.bf16.msra.mxu0 %v4069
        %4384 = vmatprep.subr.bf16.mxu0 %v4063
        %4385 = vmatpush1.bf16.msra.mxu0 %v4062
        %4386 = vmatprep.subr.bf16.mxu0 %v4056
        %4387 = vmatpush1.bf16.msra.mxu0 %v4055
        %4388 = vmatprep.subr.bf16.mxu0 %v4049
        %4389 = vmatpush1.bf16.msra.mxu0 %v4048
        %4390 = vmatprep.subr.bf16.mxu0 %v4042
        %4391 = vmatpush1.bf16.msra.mxu0 %v4041
        %4392 = vmatprep.subr.bf16.mxu0 %v4147
        %4393 = vmatpush2.bf16.msra.mxu0 %v4146
        %4394 = vmatprep.subr.bf16.mxu0 %v4140
        %4395 = vmatpush2.bf16.msra.mxu0 %v4139
        %4396 = vmatprep.subr.bf16.mxu0 %v4133
        %4397 = vmatpush2.bf16.msra.mxu0 %v4132
        %4398 = vmatprep.subr.bf16.mxu0 %v4126
        %4399 = vmatpush2.bf16.msra.mxu0 %v4125
        %4400 = vmatprep.subr.bf16.mxu0 %v4119
        %4401 = vmatpush2.bf16.msra.mxu0 %v4118
        %4402 = vmatprep.subr.bf16.mxu0 %v4112
        %4403 = vmatpush2.bf16.msra.mxu0 %v4111
        %4404 = vmatprep.subr.bf16.mxu0 %v4105
        %4405 = vmatpush2.bf16.msra.mxu0 %v4104
        %4406 = vmatprep.subr.bf16.mxu0 %v4098
        %4407 = vmatpush2.bf16.msra.mxu0 %v4097
        %4408 = vmatprep.mubr.bf16.mxu0 %v3544
        %4409 = vmatmul.mubr.bf16.gmra.mxu0 %v3543
        %v4410 = vpop.f32.mrf.mxu0
        %v4411 = vadd.f32 0.0, %v4410
        %v4412 = vpop.f32.mrf.mxu0
        %v4413 = vadd.f32 0.0, %v4412
        %v4414 = vpop.f32.mrf.mxu0
        %v4415 = vadd.f32 0.0, %v4414
        %v4416 = vpop.f32.mrf.mxu0
        %v4417 = vadd.f32 0.0, %v4416
        %4418 = vmatprep.mubr.bf16.mxu0 %v3546
        %4419 = vmatmul.mubr.bf16.gmra.mxu0 %v3545
        %v4420 = vpop.f32.mrf.mxu0
        %v4421 = vadd.f32 0.0, %v4420
        %v4422 = vpop.f32.mrf.mxu0
        %v4423 = vadd.f32 0.0, %v4422
        %v4424 = vpop.f32.mrf.mxu0
        %v4425 = vadd.f32 0.0, %v4424
        %v4426 = vpop.f32.mrf.mxu0
        %v4427 = vadd.f32 0.0, %v4426
        %4428 = vmatprep.mubr.bf16.mxu0 %v3548
        %4429 = vmatmul.mubr.bf16.gmra.mxu0 %v3547
        %v4430 = vpop.f32.mrf.mxu0
        %v4431 = vadd.f32 0.0, %v4430
        %v4432 = vpop.f32.mrf.mxu0
        %v4433 = vadd.f32 0.0, %v4432
        %v4434 = vpop.f32.mrf.mxu0
        %v4435 = vadd.f32 0.0, %v4434
        %v4436 = vpop.f32.mrf.mxu0
        %v4437 = vadd.f32 0.0, %v4436
        %4438 = vmatprep.mubr.bf16.mxu0 %v3550
        %4439 = vmatmul.mubr.bf16.gmra.mxu0 %v3549
        %v4440 = vpop.f32.mrf.mxu0
        %v4441 = vadd.f32 0.0, %v4440
        %v4442 = vpop.f32.mrf.mxu0
        %v4443 = vadd.f32 0.0, %v4442
        %v4444 = vpop.f32.mrf.mxu0
        %v4445 = vadd.f32 0.0, %v4444
        %v4446 = vpop.f32.mrf.mxu0
        %v4447 = vadd.f32 0.0, %v4446
        %4448 = vmatprep.mubr.bf16.mxu0 %v3552
        %4449 = vmatmul.mubr.bf16.gmra.mxu0 %v3551
        %v4450 = vpop.f32.mrf.mxu0
        %v4451 = vadd.f32 0.0, %v4450
        %v4452 = vpop.f32.mrf.mxu0
        %v4453 = vadd.f32 0.0, %v4452
        %v4454 = vpop.f32.mrf.mxu0
        %v4455 = vadd.f32 0.0, %v4454
        %v4456 = vpop.f32.mrf.mxu0
        %v4457 = vadd.f32 0.0, %v4456
        %4458 = vmatprep.mubr.bf16.mxu0 %v3554
        %4459 = vmatmul.mubr.bf16.gmra.mxu0 %v3553
        %v4460 = vpop.f32.mrf.mxu0
        %v4461 = vadd.f32 0.0, %v4460
        %v4462 = vpop.f32.mrf.mxu0
        %v4463 = vadd.f32 0.0, %v4462
        %v4464 = vpop.f32.mrf.mxu0
        %v4465 = vadd.f32 0.0, %v4464
        %v4466 = vpop.f32.mrf.mxu0
        %v4467 = vadd.f32 0.0, %v4466
        %4468 = vmatprep.mubr.bf16.mxu0 %v3556
        %4469 = vmatmul.mubr.bf16.gmra.mxu0 %v3555
        %v4470 = vpop.f32.mrf.mxu0
        %v4471 = vadd.f32 0.0, %v4470
        %v4472 = vpop.f32.mrf.mxu0
        %v4473 = vadd.f32 0.0, %v4472
        %v4474 = vpop.f32.mrf.mxu0
        %v4475 = vadd.f32 0.0, %v4474
        %v4476 = vpop.f32.mrf.mxu0
        %v4477 = vadd.f32 0.0, %v4476
        %4478 = vmatprep.mubr.bf16.mxu0 %v3558
        %4479 = vmatmul.mubr.bf16.gmra.mxu0 %v3557
        %v4480 = vpop.f32.mrf.mxu0
        %v4481 = vadd.f32 0.0, %v4480
        %v4482 = vpop.f32.mrf.mxu0
        %v4483 = vadd.f32 0.0, %v4482
        %v4484 = vpop.f32.mrf.mxu0
        %v4485 = vadd.f32 0.0, %v4484
        %v4486 = vpop.f32.mrf.mxu0
        %v4487 = vadd.f32 0.0, %v4486
        %4488 = vdwg.mxu0
        %4489 = vmatprep.subr.bf16.mxu0 %v4093
        %4490 = vmatpush1.bf16.msra.mxu0 %v4092
        %4491 = vmatprep.subr.bf16.mxu0 %v4086
        %4492 = vmatpush1.bf16.msra.mxu0 %v4085
        %4493 = vmatprep.subr.bf16.mxu0 %v4079
        %4494 = vmatpush1.bf16.msra.mxu0 %v4078
        %4495 = vmatprep.subr.bf16.mxu0 %v4072
        %4496 = vmatpush1.bf16.msra.mxu0 %v4071
        %4497 = vmatprep.subr.bf16.mxu0 %v4065
        %4498 = vmatpush1.bf16.msra.mxu0 %v4064
        %4499 = vmatprep.subr.bf16.mxu0 %v4058
        %4500 = vmatpush1.bf16.msra.mxu0 %v4057
        %4501 = vmatprep.subr.bf16.mxu0 %v4051
        %4502 = vmatpush1.bf16.msra.mxu0 %v4050
        %4503 = vmatprep.subr.bf16.mxu0 %v4044
        %4504 = vmatpush1.bf16.msra.mxu0 %v4043
        %4505 = vmatprep.subr.bf16.mxu0 %v4149
        %4506 = vmatpush2.bf16.msra.mxu0 %v4148
        %4507 = vmatprep.subr.bf16.mxu0 %v4142
        %4508 = vmatpush2.bf16.msra.mxu0 %v4141
        %4509 = vmatprep.subr.bf16.mxu0 %v4135
        %4510 = vmatpush2.bf16.msra.mxu0 %v4134
        %4511 = vmatprep.subr.bf16.mxu0 %v4128
        %4512 = vmatpush2.bf16.msra.mxu0 %v4127
        %4513 = vmatprep.subr.bf16.mxu0 %v4121
        %4514 = vmatpush2.bf16.msra.mxu0 %v4120
        %4515 = vmatprep.subr.bf16.mxu0 %v4114
        %4516 = vmatpush2.bf16.msra.mxu0 %v4113
        %4517 = vmatprep.subr.bf16.mxu0 %v4107
        %4518 = vmatpush2.bf16.msra.mxu0 %v4106
        %4519 = vmatprep.subr.bf16.mxu0 %v4100
        %4520 = vmatpush2.bf16.msra.mxu0 %v4099
        %4521 = vmatprep.mubr.bf16.mxu0 %v3544
        %4522 = vmatmul.mubr.bf16.gmra.mxu0 %v3543
        %v4523 = vpop.f32.mrf.mxu0
        %v4524 = vadd.f32 0.0, %v4523
        %v4525 = vpop.f32.mrf.mxu0
        %v4526 = vadd.f32 0.0, %v4525
        %v4527 = vpop.f32.mrf.mxu0
        %v4528 = vadd.f32 0.0, %v4527
        %v4529 = vpop.f32.mrf.mxu0
        %v4530 = vadd.f32 0.0, %v4529
        %4531 = vmatprep.mubr.bf16.mxu0 %v3546
        %4532 = vmatmul.mubr.bf16.gmra.mxu0 %v3545
        %v4533 = vpop.f32.mrf.mxu0
        %v4534 = vadd.f32 0.0, %v4533
        %v4535 = vpop.f32.mrf.mxu0
        %v4536 = vadd.f32 0.0, %v4535
        %v4537 = vpop.f32.mrf.mxu0
        %v4538 = vadd.f32 0.0, %v4537
        %v4539 = vpop.f32.mrf.mxu0
        %v4540 = vadd.f32 0.0, %v4539
        %4541 = vmatprep.mubr.bf16.mxu0 %v3548
        %4542 = vmatmul.mubr.bf16.gmra.mxu0 %v3547
        %v4543 = vpop.f32.mrf.mxu0
        %v4544 = vadd.f32 0.0, %v4543
        %v4545 = vpop.f32.mrf.mxu0
        %v4546 = vadd.f32 0.0, %v4545
        %v4547 = vpop.f32.mrf.mxu0
        %v4548 = vadd.f32 0.0, %v4547
        %v4549 = vpop.f32.mrf.mxu0
        %v4550 = vadd.f32 0.0, %v4549
        %4551 = vmatprep.mubr.bf16.mxu0 %v3550
        %4552 = vmatmul.mubr.bf16.gmra.mxu0 %v3549
        %v4553 = vpop.f32.mrf.mxu0
        %v4554 = vadd.f32 0.0, %v4553
        %v4555 = vpop.f32.mrf.mxu0
        %v4556 = vadd.f32 0.0, %v4555
        %v4557 = vpop.f32.mrf.mxu0
        %v4558 = vadd.f32 0.0, %v4557
        %v4559 = vpop.f32.mrf.mxu0
        %v4560 = vadd.f32 0.0, %v4559
        %4561 = vmatprep.mubr.bf16.mxu0 %v3552
        %4562 = vmatmul.mubr.bf16.gmra.mxu0 %v3551
        %v4563 = vpop.f32.mrf.mxu0
        %v4564 = vadd.f32 0.0, %v4563
        %v4565 = vpop.f32.mrf.mxu0
        %v4566 = vadd.f32 0.0, %v4565
        %v4567 = vpop.f32.mrf.mxu0
        %v4568 = vadd.f32 0.0, %v4567
        %v4569 = vpop.f32.mrf.mxu0
        %v4570 = vadd.f32 0.0, %v4569
        %4571 = vmatprep.mubr.bf16.mxu0 %v3554
        %4572 = vmatmul.mubr.bf16.gmra.mxu0 %v3553
        %v4573 = vpop.f32.mrf.mxu0
        %v4574 = vadd.f32 0.0, %v4573
        %v4575 = vpop.f32.mrf.mxu0
        %v4576 = vadd.f32 0.0, %v4575
        %v4577 = vpop.f32.mrf.mxu0
        %v4578 = vadd.f32 0.0, %v4577
        %v4579 = vpop.f32.mrf.mxu0
        %v4580 = vadd.f32 0.0, %v4579
        %4581 = vmatprep.mubr.bf16.mxu0 %v3556
        %4582 = vmatmul.mubr.bf16.gmra.mxu0 %v3555
        %v4583 = vpop.f32.mrf.mxu0
        %v4584 = vadd.f32 0.0, %v4583
        %v4585 = vpop.f32.mrf.mxu0
        %v4586 = vadd.f32 0.0, %v4585
        %v4587 = vpop.f32.mrf.mxu0
        %v4588 = vadd.f32 0.0, %v4587
        %v4589 = vpop.f32.mrf.mxu0
        %v4590 = vadd.f32 0.0, %v4589
        %4591 = vmatprep.mubr.bf16.mxu0 %v3558
        %4592 = vmatmul.mubr.bf16.gmra.mxu0 %v3557
        %v4593 = vpop.f32.mrf.mxu0
        %v4594 = vadd.f32 0.0, %v4593
        %v4595 = vpop.f32.mrf.mxu0
        %v4596 = vadd.f32 0.0, %v4595
        %v4597 = vpop.f32.mrf.mxu0
        %v4598 = vadd.f32 0.0, %v4597
        %v4599 = vpop.f32.mrf.mxu0
        %v4600 = vadd.f32 0.0, %v4599
        %4601 = vdwg.mxu0
        %4602 = vmatprep.subr.bf16.mxu0 0
        %4603 = vmatpush1.bf16.msra.mxu0 %v4094
        %4604 = vmatprep.subr.bf16.mxu0 0
        %4605 = vmatpush1.bf16.msra.mxu0 %v4087
        %4606 = vmatprep.subr.bf16.mxu0 0
        %4607 = vmatpush1.bf16.msra.mxu0 %v4080
        %4608 = vmatprep.subr.bf16.mxu0 0
        %4609 = vmatpush1.bf16.msra.mxu0 %v4073
        %4610 = vmatprep.subr.bf16.mxu0 0
        %4611 = vmatpush1.bf16.msra.mxu0 %v4066
        %4612 = vmatprep.subr.bf16.mxu0 0
        %4613 = vmatpush1.bf16.msra.mxu0 %v4059
        %4614 = vmatprep.subr.bf16.mxu0 0
        %4615 = vmatpush1.bf16.msra.mxu0 %v4052
        %4616 = vmatprep.subr.bf16.mxu0 0
        %4617 = vmatpush1.bf16.msra.mxu0 %v4045
        %4618 = vmatprep.subr.bf16.mxu0 0
        %4619 = vmatpush2.bf16.msra.mxu0 %v4150
        %4620 = vmatprep.subr.bf16.mxu0 0
        %4621 = vmatpush2.bf16.msra.mxu0 %v4143
        %4622 = vmatprep.subr.bf16.mxu0 0
        %4623 = vmatpush2.bf16.msra.mxu0 %v4136
        %4624 = vmatprep.subr.bf16.mxu0 0
        %4625 = vmatpush2.bf16.msra.mxu0 %v4129
        %4626 = vmatprep.subr.bf16.mxu0 0
        %4627 = vmatpush2.bf16.msra.mxu0 %v4122
        %4628 = vmatprep.subr.bf16.mxu0 0
        %4629 = vmatpush2.bf16.msra.mxu0 %v4115
        %4630 = vmatprep.subr.bf16.mxu0 0
        %4631 = vmatpush2.bf16.msra.mxu0 %v4108
        %4632 = vmatprep.subr.bf16.mxu0 0
        %4633 = vmatpush2.bf16.msra.mxu0 %v4101
        %4634 = vmatprep.mubr.bf16.mxu0 %v3544
        %4635 = vmatmul.mubr.bf16.gmra.mxu0 %v3543
        %v4636 = vpop.f32.mrf.mxu0
        %v4637 = vadd.f32 0.0, %v4636
        %v4638 = vpop.f32.mrf.mxu0
        %v4639 = vpop.f32.mrf.mxu0
        %v4640 = vadd.f32 0.0, %v4639
        %v4641 = vpop.f32.mrf.mxu0
        %4642 = vmatprep.mubr.bf16.mxu0 %v3546
        %4643 = vmatmul.mubr.bf16.gmra.mxu0 %v3545
        %v4644 = vpop.f32.mrf.mxu0
        %v4645 = vadd.f32 0.0, %v4644
        %v4646 = vpop.f32.mrf.mxu0
        %v4647 = vpop.f32.mrf.mxu0
        %v4648 = vadd.f32 0.0, %v4647
        %v4649 = vpop.f32.mrf.mxu0
        %4650 = vmatprep.mubr.bf16.mxu0 %v3548
        %4651 = vmatmul.mubr.bf16.gmra.mxu0 %v3547
        %v4652 = vpop.f32.mrf.mxu0
        %v4653 = vadd.f32 0.0, %v4652
        %v4654 = vpop.f32.mrf.mxu0
        %v4655 = vpop.f32.mrf.mxu0
        %v4656 = vadd.f32 0.0, %v4655
        %v4657 = vpop.f32.mrf.mxu0
        %4658 = vmatprep.mubr.bf16.mxu0 %v3550
        %4659 = vmatmul.mubr.bf16.gmra.mxu0 %v3549
        %v4660 = vpop.f32.mrf.mxu0
        %v4661 = vadd.f32 0.0, %v4660
        %v4662 = vpop.f32.mrf.mxu0
        %v4663 = vpop.f32.mrf.mxu0
        %v4664 = vadd.f32 0.0, %v4663
        %v4665 = vpop.f32.mrf.mxu0
        %4666 = vmatprep.mubr.bf16.mxu0 %v3552
        %4667 = vmatmul.mubr.bf16.gmra.mxu0 %v3551
        %v4668 = vpop.f32.mrf.mxu0
        %v4669 = vadd.f32 0.0, %v4668
        %v4670 = vpop.f32.mrf.mxu0
        %v4671 = vpop.f32.mrf.mxu0
        %v4672 = vadd.f32 0.0, %v4671
        %v4673 = vpop.f32.mrf.mxu0
        %4674 = vmatprep.mubr.bf16.mxu0 %v3554
        %4675 = vmatmul.mubr.bf16.gmra.mxu0 %v3553
        %v4676 = vpop.f32.mrf.mxu0
        %v4677 = vadd.f32 0.0, %v4676
        %v4678 = vpop.f32.mrf.mxu0
        %v4679 = vpop.f32.mrf.mxu0
        %v4680 = vadd.f32 0.0, %v4679
        %v4681 = vpop.f32.mrf.mxu0
        %4682 = vmatprep.mubr.bf16.mxu0 %v3556
        %4683 = vmatmul.mubr.bf16.gmra.mxu0 %v3555
        %v4684 = vpop.f32.mrf.mxu0
        %v4685 = vadd.f32 0.0, %v4684
        %v4686 = vpop.f32.mrf.mxu0
        %v4687 = vpop.f32.mrf.mxu0
        %v4688 = vadd.f32 0.0, %v4687
        %v4689 = vpop.f32.mrf.mxu0
        %4690 = vmatprep.mubr.bf16.mxu0 %v3558
        %4691 = vmatmul.mubr.bf16.gmra.mxu0 %v3557
        %v4692 = vpop.f32.mrf.mxu0
        %v4693 = vadd.f32 0.0, %v4692
        %v4694 = vpop.f32.mrf.mxu0
        %v4695 = vpop.f32.mrf.mxu0
        %v4696 = vadd.f32 0.0, %v4695
        %v4697 = vpop.f32.mrf.mxu0
        %4698 = vdwg.mxu0
        %4699 = vmatprep.subr.mxu0 %v4374
        %4700 = vmatpush1.msra.mxu0 %v4372
        %4701 = vmatprep.subr.mxu0 %v4370
        %4702 = vmatpush1.msra.mxu0 %v4368
        %4703 = vmatprep.subr.mxu0 %v4364
        %4704 = vmatpush1.msra.mxu0 %v4362
        %4705 = vmatprep.subr.mxu0 %v4360
        %4706 = vmatpush1.msra.mxu0 %v4358
        %4707 = vmatprep.subr.mxu0 %v4354
        %4708 = vmatpush1.msra.mxu0 %v4352
        %4709 = vmatprep.subr.mxu0 %v4350
        %4710 = vmatpush1.msra.mxu0 %v4348
        %4711 = vmatprep.subr.mxu0 %v4344
        %4712 = vmatpush1.msra.mxu0 %v4342
        %4713 = vmatprep.subr.mxu0 %v4340
        %4714 = vmatpush1.msra.mxu0 %v4338
        %4715 = vmatprep.subr.mxu0 %v4334
        %4716 = vmatpush1.msra.mxu0 %v4332
        %4717 = vmatprep.subr.mxu0 %v4330
        %4718 = vmatpush1.msra.mxu0 %v4328
        %4719 = vmatprep.subr.mxu0 %v4324
        %4720 = vmatpush1.msra.mxu0 %v4322
        %4721 = vmatprep.subr.mxu0 %v4320
        %4722 = vmatpush1.msra.mxu0 %v4318
        %4723 = vmatprep.subr.mxu0 %v4314
        %4724 = vmatpush1.msra.mxu0 %v4312
        %4725 = vmatprep.subr.mxu0 %v4310
        %4726 = vmatpush1.msra.mxu0 %v4308
        %4727 = vmatprep.subr.mxu0 %v4304
        %4728 = vmatpush1.msra.mxu0 %v4302
        %4729 = vmatprep.subr.mxu0 %v4300
        %4730 = vmatpush1.msra.mxu0 %v4298
        %4731 = vmatprep.subr.mxu0 0.0
        %4732 = vmatpush2.msra.mxu0 0.0
        %4733 = vmatprep.subr.mxu0 0.0
        %4734 = vmatpush2.msra.mxu0 0.0
        %4735 = vmatprep.subr.mxu0 0.0
        %4736 = vmatpush2.msra.mxu0 0.0
        %4737 = vmatprep.subr.mxu0 0.0
        %4738 = vmatpush2.msra.mxu0 0.0
        %4739 = vmatprep.subr.mxu0 0.0
        %4740 = vmatpush2.msra.mxu0 0.0
        %4741 = vmatprep.subr.mxu0 0.0
        %4742 = vmatpush2.msra.mxu0 0.0
        %4743 = vmatprep.subr.mxu0 0.0
        %4744 = vmatpush2.msra.mxu0 0.0
        %4745 = vmatprep.subr.mxu0 0.0
        %4746 = vmatpush2.msra.mxu0 0.0
        %4747 = vmatprep.subr.mxu0 0.0
        %4748 = vmatpush2.msra.mxu0 0.0
        %4749 = vmatprep.subr.mxu0 0.0
        %4750 = vmatpush2.msra.mxu0 0.0
        %4751 = vmatprep.subr.mxu0 0.0
        %4752 = vmatpush2.msra.mxu0 0.0
        %4753 = vmatprep.subr.mxu0 0.0
        %4754 = vmatpush2.msra.mxu0 0.0
        %4755 = vmatprep.subr.mxu0 0.0
        %4756 = vmatpush2.msra.mxu0 0.0
        %4757 = vmatprep.subr.mxu0 0.0
        %4758 = vmatpush2.msra.mxu0 0.0
        %4759 = vmatprep.subr.mxu0 0.0
        %4760 = vmatpush2.msra.mxu0 0.0
        %4761 = vmatprep.subr.mxu0 0.0
        %4762 = vmatpush2.msra.mxu0 0.0
        %4763 = vmatprep.mubr.f32.mxu0 0.0
        %4764 = vmatmul.mubr.f32.gmra.mxu0 %v406
        %v4765 = vpop.f32.mrf.mxu0
        %v4766 = vadd.f32 0.0, %v4765
        %v4767 = vpop.f32.mrf.mxu0
        %v4768 = vadd.f32 0.0, %v4767
        %4769 = vmatprep.mubr.f32.mxu0 0.0
        %4770 = vmatmul.mubr.f32.gmra.mxu0 %v407
        %v4771 = vpop.f32.mrf.mxu0
        %v4772 = vadd.f32 0.0, %v4771
        %v4773 = vpop.f32.mrf.mxu0
        %v4774 = vadd.f32 0.0, %v4773
        %4775 = vmatprep.mubr.f32.mxu0 0.0
        %4776 = vmatmul.mubr.f32.gmra.mxu0 %v408
        %v4777 = vpop.f32.mrf.mxu0
        %v4778 = vadd.f32 0.0, %v4777
        %v4779 = vpop.f32.mrf.mxu0
        %v4780 = vadd.f32 0.0, %v4779
        %4781 = vmatprep.mubr.f32.mxu0 0.0
        %4782 = vmatmul.mubr.f32.gmra.mxu0 %v409
        %v4783 = vpop.f32.mrf.mxu0
        %v4784 = vadd.f32 0.0, %v4783
        %v4785 = vpop.f32.mrf.mxu0
        %v4786 = vadd.f32 0.0, %v4785
        %4787 = vmatprep.mubr.f32.mxu0 0.0
        %4788 = vmatmul.mubr.f32.gmra.mxu0 %v410
        %v4789 = vpop.f32.mrf.mxu0
        %v4790 = vadd.f32 0.0, %v4789
        %v4791 = vpop.f32.mrf.mxu0
        %v4792 = vadd.f32 0.0, %v4791
        %4793 = vmatprep.mubr.f32.mxu0 0.0
        %4794 = vmatmul.mubr.f32.gmra.mxu0 %v411
        %v4795 = vpop.f32.mrf.mxu0
        %v4796 = vadd.f32 0.0, %v4795
        %v4797 = vpop.f32.mrf.mxu0
        %v4798 = vadd.f32 0.0, %v4797
        %4799 = vmatprep.mubr.f32.mxu0 0.0
        %4800 = vmatmul.mubr.f32.gmra.mxu0 %v412
        %v4801 = vpop.f32.mrf.mxu0
        %v4802 = vadd.f32 0.0, %v4801
        %v4803 = vpop.f32.mrf.mxu0
        %v4804 = vadd.f32 0.0, %v4803
        %4805 = vmatprep.mubr.f32.mxu0 0.0
        %4806 = vmatmul.mubr.f32.gmra.mxu0 %v413
        %v4807 = vpop.f32.mrf.mxu0
        %v4808 = vadd.f32 0.0, %v4807
        %v4809 = vpop.f32.mrf.mxu0
        %v4810 = vadd.f32 0.0, %v4809
        %4811 = vmatprep.mubr.f32.mxu0 0.0
        %4812 = vmatmul.mubr.f32.gmra.mxu0 %v414
        %v4813 = vpop.f32.mrf.mxu0
        %v4814 = vadd.f32 0.0, %v4813
        %v4815 = vpop.f32.mrf.mxu0
        %v4816 = vadd.f32 0.0, %v4815
        %4817 = vmatprep.mubr.f32.mxu0 0.0
        %4818 = vmatmul.mubr.f32.gmra.mxu0 %v415
        %v4819 = vpop.f32.mrf.mxu0
        %v4820 = vadd.f32 0.0, %v4819
        %v4821 = vpop.f32.mrf.mxu0
        %v4822 = vadd.f32 0.0, %v4821
        %4823 = vmatprep.mubr.f32.mxu0 0.0
        %4824 = vmatmul.mubr.f32.gmra.mxu0 %v416
        %v4825 = vpop.f32.mrf.mxu0
        %v4826 = vadd.f32 0.0, %v4825
        %v4827 = vpop.f32.mrf.mxu0
        %v4828 = vadd.f32 0.0, %v4827
        %4829 = vmatprep.mubr.f32.mxu0 0.0
        %4830 = vmatmul.mubr.f32.gmra.mxu0 %v417
        %v4831 = vpop.f32.mrf.mxu0
        %v4832 = vadd.f32 0.0, %v4831
        %v4833 = vpop.f32.mrf.mxu0
        %v4834 = vadd.f32 0.0, %v4833
        %4835 = vmatprep.mubr.f32.mxu0 0.0
        %4836 = vmatmul.mubr.f32.gmra.mxu0 %v418
        %v4837 = vpop.f32.mrf.mxu0
        %v4838 = vadd.f32 0.0, %v4837
        %v4839 = vpop.f32.mrf.mxu0
        %v4840 = vadd.f32 0.0, %v4839
        %4841 = vmatprep.mubr.f32.mxu0 0.0
        %4842 = vmatmul.mubr.f32.gmra.mxu0 %v419
        %v4843 = vpop.f32.mrf.mxu0
        %v4844 = vadd.f32 0.0, %v4843
        %v4845 = vpop.f32.mrf.mxu0
        %v4846 = vadd.f32 0.0, %v4845
        %4847 = vmatprep.mubr.f32.mxu0 0.0
        %4848 = vmatmul.mubr.f32.gmra.mxu0 %v420
        %v4849 = vpop.f32.mrf.mxu0
        %v4850 = vadd.f32 0.0, %v4849
        %v4851 = vpop.f32.mrf.mxu0
        %v4852 = vadd.f32 0.0, %v4851
        %4853 = vmatprep.mubr.f32.mxu0 0.0
        %4854 = vmatmul.mubr.f32.gmra.mxu0 %v421
        %v4855 = vpop.f32.mrf.mxu0
        %v4856 = vadd.f32 0.0, %v4855
        %v4857 = vpop.f32.mrf.mxu0
        %v4858 = vadd.f32 0.0, %v4857
        %4859 = vdwg.mxu0
        %4860 = vmatprep.subr.mxu0 %v4487
        %4861 = vmatpush1.msra.mxu0 %v4485
        %4862 = vmatprep.subr.mxu0 %v4483
        %4863 = vmatpush1.msra.mxu0 %v4481
        %4864 = vmatprep.subr.mxu0 %v4477
        %4865 = vmatpush1.msra.mxu0 %v4475
        %4866 = vmatprep.subr.mxu0 %v4473
        %4867 = vmatpush1.msra.mxu0 %v4471
        %4868 = vmatprep.subr.mxu0 %v4467
        %4869 = vmatpush1.msra.mxu0 %v4465
        %4870 = vmatprep.subr.mxu0 %v4463
        %4871 = vmatpush1.msra.mxu0 %v4461
        %4872 = vmatprep.subr.mxu0 %v4457
        %4873 = vmatpush1.msra.mxu0 %v4455
        %4874 = vmatprep.subr.mxu0 %v4453
        %4875 = vmatpush1.msra.mxu0 %v4451
        %4876 = vmatprep.subr.mxu0 %v4447
        %4877 = vmatpush1.msra.mxu0 %v4445
        %4878 = vmatprep.subr.mxu0 %v4443
        %4879 = vmatpush1.msra.mxu0 %v4441
        %4880 = vmatprep.subr.mxu0 %v4437
        %4881 = vmatpush1.msra.mxu0 %v4435
        %4882 = vmatprep.subr.mxu0 %v4433
        %4883 = vmatpush1.msra.mxu0 %v4431
        %4884 = vmatprep.subr.mxu0 %v4427
        %4885 = vmatpush1.msra.mxu0 %v4425
        %4886 = vmatprep.subr.mxu0 %v4423
        %4887 = vmatpush1.msra.mxu0 %v4421
        %4888 = vmatprep.subr.mxu0 %v4417
        %4889 = vmatpush1.msra.mxu0 %v4415
        %4890 = vmatprep.subr.mxu0 %v4413
        %4891 = vmatpush1.msra.mxu0 %v4411
        %4892 = vmatprep.subr.mxu0 0.0
        %4893 = vmatpush2.msra.mxu0 0.0
        %4894 = vmatprep.subr.mxu0 0.0
        %4895 = vmatpush2.msra.mxu0 0.0
        %4896 = vmatprep.subr.mxu0 0.0
        %4897 = vmatpush2.msra.mxu0 0.0
        %4898 = vmatprep.subr.mxu0 0.0
        %4899 = vmatpush2.msra.mxu0 0.0
        %4900 = vmatprep.subr.mxu0 0.0
        %4901 = vmatpush2.msra.mxu0 0.0
        %4902 = vmatprep.subr.mxu0 0.0
        %4903 = vmatpush2.msra.mxu0 0.0
        %4904 = vmatprep.subr.mxu0 0.0
        %4905 = vmatpush2.msra.mxu0 0.0
        %4906 = vmatprep.subr.mxu0 0.0
        %4907 = vmatpush2.msra.mxu0 0.0
        %4908 = vmatprep.subr.mxu0 0.0
        %4909 = vmatpush2.msra.mxu0 0.0
        %4910 = vmatprep.subr.mxu0 0.0
        %4911 = vmatpush2.msra.mxu0 0.0
        %4912 = vmatprep.subr.mxu0 0.0
        %4913 = vmatpush2.msra.mxu0 0.0
        %4914 = vmatprep.subr.mxu0 0.0
        %4915 = vmatpush2.msra.mxu0 0.0
        %4916 = vmatprep.subr.mxu0 0.0
        %4917 = vmatpush2.msra.mxu0 0.0
        %4918 = vmatprep.subr.mxu0 0.0
        %4919 = vmatpush2.msra.mxu0 0.0
        %4920 = vmatprep.subr.mxu0 0.0
        %4921 = vmatpush2.msra.mxu0 0.0
        %4922 = vmatprep.subr.mxu0 0.0
        %4923 = vmatpush2.msra.mxu0 0.0
        %4924 = vmatprep.mubr.f32.mxu0 0.0
        %4925 = vmatmul.mubr.f32.gmra.mxu0 %v406
        %v4926 = vpop.f32.mrf.mxu0
        %v4927 = vadd.f32 0.0, %v4926
        %v4928 = vpop.f32.mrf.mxu0
        %v4929 = vadd.f32 0.0, %v4928
        %4930 = vmatprep.mubr.f32.mxu0 0.0
        %4931 = vmatmul.mubr.f32.gmra.mxu0 %v407
        %v4932 = vpop.f32.mrf.mxu0
        %v4933 = vadd.f32 0.0, %v4932
        %v4934 = vpop.f32.mrf.mxu0
        %v4935 = vadd.f32 0.0, %v4934
        %4936 = vmatprep.mubr.f32.mxu0 0.0
        %4937 = vmatmul.mubr.f32.gmra.mxu0 %v408
        %v4938 = vpop.f32.mrf.mxu0
        %v4939 = vadd.f32 0.0, %v4938
        %v4940 = vpop.f32.mrf.mxu0
        %v4941 = vadd.f32 0.0, %v4940
        %4942 = vmatprep.mubr.f32.mxu0 0.0
        %4943 = vmatmul.mubr.f32.gmra.mxu0 %v409
        %v4944 = vpop.f32.mrf.mxu0
        %v4945 = vadd.f32 0.0, %v4944
        %v4946 = vpop.f32.mrf.mxu0
        %v4947 = vadd.f32 0.0, %v4946
        %4948 = vmatprep.mubr.f32.mxu0 0.0
        %4949 = vmatmul.mubr.f32.gmra.mxu0 %v410
        %v4950 = vpop.f32.mrf.mxu0
        %v4951 = vadd.f32 0.0, %v4950
        %v4952 = vpop.f32.mrf.mxu0
        %v4953 = vadd.f32 0.0, %v4952
        %4954 = vmatprep.mubr.f32.mxu0 0.0
        %4955 = vmatmul.mubr.f32.gmra.mxu0 %v411
        %v4956 = vpop.f32.mrf.mxu0
        %v4957 = vadd.f32 0.0, %v4956
        %v4958 = vpop.f32.mrf.mxu0
        %v4959 = vadd.f32 0.0, %v4958
        %4960 = vmatprep.mubr.f32.mxu0 0.0
        %4961 = vmatmul.mubr.f32.gmra.mxu0 %v412
        %v4962 = vpop.f32.mrf.mxu0
        %v4963 = vadd.f32 0.0, %v4962
        %v4964 = vpop.f32.mrf.mxu0
        %v4965 = vadd.f32 0.0, %v4964
        %4966 = vmatprep.mubr.f32.mxu0 0.0
        %4967 = vmatmul.mubr.f32.gmra.mxu0 %v413
        %v4968 = vpop.f32.mrf.mxu0
        %v4969 = vadd.f32 0.0, %v4968
        %v4970 = vpop.f32.mrf.mxu0
        %v4971 = vadd.f32 0.0, %v4970
        %4972 = vmatprep.mubr.f32.mxu0 0.0
        %4973 = vmatmul.mubr.f32.gmra.mxu0 %v414
        %v4974 = vpop.f32.mrf.mxu0
        %v4975 = vadd.f32 0.0, %v4974
        %v4976 = vpop.f32.mrf.mxu0
        %v4977 = vadd.f32 0.0, %v4976
        %4978 = vmatprep.mubr.f32.mxu0 0.0
        %4979 = vmatmul.mubr.f32.gmra.mxu0 %v415
        %v4980 = vpop.f32.mrf.mxu0
        %v4981 = vadd.f32 0.0, %v4980
        %v4982 = vpop.f32.mrf.mxu0
        %v4983 = vadd.f32 0.0, %v4982
        %4984 = vmatprep.mubr.f32.mxu0 0.0
        %4985 = vmatmul.mubr.f32.gmra.mxu0 %v416
        %v4986 = vpop.f32.mrf.mxu0
        %v4987 = vadd.f32 0.0, %v4986
        %v4988 = vpop.f32.mrf.mxu0
        %v4989 = vadd.f32 0.0, %v4988
        %4990 = vmatprep.mubr.f32.mxu0 0.0
        %4991 = vmatmul.mubr.f32.gmra.mxu0 %v417
        %v4992 = vpop.f32.mrf.mxu0
        %v4993 = vadd.f32 0.0, %v4992
        %v4994 = vpop.f32.mrf.mxu0
        %v4995 = vadd.f32 0.0, %v4994
        %4996 = vmatprep.mubr.f32.mxu0 0.0
        %4997 = vmatmul.mubr.f32.gmra.mxu0 %v418
        %v4998 = vpop.f32.mrf.mxu0
        %v4999 = vadd.f32 0.0, %v4998
        %v5000 = vpop.f32.mrf.mxu0
        %v5001 = vadd.f32 0.0, %v5000
        %5002 = vmatprep.mubr.f32.mxu0 0.0
        %5003 = vmatmul.mubr.f32.gmra.mxu0 %v419
        %v5004 = vpop.f32.mrf.mxu0
        %v5005 = vadd.f32 0.0, %v5004
        %v5006 = vpop.f32.mrf.mxu0
        %v5007 = vadd.f32 0.0, %v5006
        %5008 = vmatprep.mubr.f32.mxu0 0.0
        %5009 = vmatmul.mubr.f32.gmra.mxu0 %v420
        %v5010 = vpop.f32.mrf.mxu0
        %v5011 = vadd.f32 0.0, %v5010
        %v5012 = vpop.f32.mrf.mxu0
        %v5013 = vadd.f32 0.0, %v5012
        %5014 = vmatprep.mubr.f32.mxu0 0.0
        %5015 = vmatmul.mubr.f32.gmra.mxu0 %v421
        %v5016 = vpop.f32.mrf.mxu0
        %v5017 = vadd.f32 0.0, %v5016
        %v5018 = vpop.f32.mrf.mxu0
        %v5019 = vadd.f32 0.0, %v5018
        %5020 = vdwg.mxu0
        %5021 = vmatprep.subr.mxu0 %v4600
        %5022 = vmatpush1.msra.mxu0 %v4598
        %5023 = vmatprep.subr.mxu0 %v4596
        %5024 = vmatpush1.msra.mxu0 %v4594
        %5025 = vmatprep.subr.mxu0 %v4590
        %5026 = vmatpush1.msra.mxu0 %v4588
        %5027 = vmatprep.subr.mxu0 %v4586
        %5028 = vmatpush1.msra.mxu0 %v4584
        %5029 = vmatprep.subr.mxu0 %v4580
        %5030 = vmatpush1.msra.mxu0 %v4578
        %5031 = vmatprep.subr.mxu0 %v4576
        %5032 = vmatpush1.msra.mxu0 %v4574
        %5033 = vmatprep.subr.mxu0 %v4570
        %5034 = vmatpush1.msra.mxu0 %v4568
        %5035 = vmatprep.subr.mxu0 %v4566
        %5036 = vmatpush1.msra.mxu0 %v4564
        %5037 = vmatprep.subr.mxu0 %v4560
        %5038 = vmatpush1.msra.mxu0 %v4558
        %5039 = vmatprep.subr.mxu0 %v4556
        %5040 = vmatpush1.msra.mxu0 %v4554
        %5041 = vmatprep.subr.mxu0 %v4550
        %5042 = vmatpush1.msra.mxu0 %v4548
        %5043 = vmatprep.subr.mxu0 %v4546
        %5044 = vmatpush1.msra.mxu0 %v4544
        %5045 = vmatprep.subr.mxu0 %v4540
        %5046 = vmatpush1.msra.mxu0 %v4538
        %5047 = vmatprep.subr.mxu0 %v4536
        %5048 = vmatpush1.msra.mxu0 %v4534
        %5049 = vmatprep.subr.mxu0 %v4530
        %5050 = vmatpush1.msra.mxu0 %v4528
        %5051 = vmatprep.subr.mxu0 %v4526
        %5052 = vmatpush1.msra.mxu0 %v4524
        %5053 = vmatprep.subr.mxu0 0.0
        %5054 = vmatpush2.msra.mxu0 0.0
        %5055 = vmatprep.subr.mxu0 0.0
        %5056 = vmatpush2.msra.mxu0 0.0
        %5057 = vmatprep.subr.mxu0 0.0
        %5058 = vmatpush2.msra.mxu0 0.0
        %5059 = vmatprep.subr.mxu0 0.0
        %5060 = vmatpush2.msra.mxu0 0.0
        %5061 = vmatprep.subr.mxu0 0.0
        %5062 = vmatpush2.msra.mxu0 0.0
        %5063 = vmatprep.subr.mxu0 0.0
        %5064 = vmatpush2.msra.mxu0 0.0
        %5065 = vmatprep.subr.mxu0 0.0
        %5066 = vmatpush2.msra.mxu0 0.0
        %5067 = vmatprep.subr.mxu0 0.0
        %5068 = vmatpush2.msra.mxu0 0.0
        %5069 = vmatprep.subr.mxu0 0.0
        %5070 = vmatpush2.msra.mxu0 0.0
        %5071 = vmatprep.subr.mxu0 0.0
        %5072 = vmatpush2.msra.mxu0 0.0
        %5073 = vmatprep.subr.mxu0 0.0
        %5074 = vmatpush2.msra.mxu0 0.0
        %5075 = vmatprep.subr.mxu0 0.0
        %5076 = vmatpush2.msra.mxu0 0.0
        %5077 = vmatprep.subr.mxu0 0.0
        %5078 = vmatpush2.msra.mxu0 0.0
        %5079 = vmatprep.subr.mxu0 0.0
        %5080 = vmatpush2.msra.mxu0 0.0
        %5081 = vmatprep.subr.mxu0 0.0
        %5082 = vmatpush2.msra.mxu0 0.0
        %5083 = vmatprep.subr.mxu0 0.0
        %5084 = vmatpush2.msra.mxu0 0.0
        %5085 = vmatprep.mubr.f32.mxu0 0.0
        %5086 = vmatmul.mubr.f32.gmra.mxu0 %v406
        %v5087 = vpop.f32.mrf.mxu0
        %v5088 = vadd.f32 0.0, %v5087
        %v5089 = vpop.f32.mrf.mxu0
        %v5090 = vadd.f32 0.0, %v5089
        %5091 = vmatprep.mubr.f32.mxu0 0.0
        %5092 = vmatmul.mubr.f32.gmra.mxu0 %v407
        %v5093 = vpop.f32.mrf.mxu0
        %v5094 = vadd.f32 0.0, %v5093
        %v5095 = vpop.f32.mrf.mxu0
        %v5096 = vadd.f32 0.0, %v5095
        %5097 = vmatprep.mubr.f32.mxu0 0.0
        %5098 = vmatmul.mubr.f32.gmra.mxu0 %v408
        %v5099 = vpop.f32.mrf.mxu0
        %v5100 = vadd.f32 0.0, %v5099
        %v5101 = vpop.f32.mrf.mxu0
        %v5102 = vadd.f32 0.0, %v5101
        %5103 = vmatprep.mubr.f32.mxu0 0.0
        %5104 = vmatmul.mubr.f32.gmra.mxu0 %v409
        %v5105 = vpop.f32.mrf.mxu0
        %v5106 = vadd.f32 0.0, %v5105
        %v5107 = vpop.f32.mrf.mxu0
        %v5108 = vadd.f32 0.0, %v5107
        %5109 = vmatprep.mubr.f32.mxu0 0.0
        %5110 = vmatmul.mubr.f32.gmra.mxu0 %v410
        %v5111 = vpop.f32.mrf.mxu0
        %v5112 = vadd.f32 0.0, %v5111
        %v5113 = vpop.f32.mrf.mxu0
        %v5114 = vadd.f32 0.0, %v5113
        %5115 = vmatprep.mubr.f32.mxu0 0.0
        %5116 = vmatmul.mubr.f32.gmra.mxu0 %v411
        %v5117 = vpop.f32.mrf.mxu0
        %v5118 = vadd.f32 0.0, %v5117
        %v5119 = vpop.f32.mrf.mxu0
        %v5120 = vadd.f32 0.0, %v5119
        %5121 = vmatprep.mubr.f32.mxu0 0.0
        %5122 = vmatmul.mubr.f32.gmra.mxu0 %v412
        %v5123 = vpop.f32.mrf.mxu0
        %v5124 = vadd.f32 0.0, %v5123
        %v5125 = vpop.f32.mrf.mxu0
        %v5126 = vadd.f32 0.0, %v5125
        %5127 = vmatprep.mubr.f32.mxu0 0.0
        %5128 = vmatmul.mubr.f32.gmra.mxu0 %v413
        %v5129 = vpop.f32.mrf.mxu0
        %v5130 = vadd.f32 0.0, %v5129
        %v5131 = vpop.f32.mrf.mxu0
        %v5132 = vadd.f32 0.0, %v5131
        %5133 = vmatprep.mubr.f32.mxu0 0.0
        %5134 = vmatmul.mubr.f32.gmra.mxu0 %v414
        %v5135 = vpop.f32.mrf.mxu0
        %v5136 = vadd.f32 0.0, %v5135
        %v5137 = vpop.f32.mrf.mxu0
        %v5138 = vadd.f32 0.0, %v5137
        %5139 = vmatprep.mubr.f32.mxu0 0.0
        %5140 = vmatmul.mubr.f32.gmra.mxu0 %v415
        %v5141 = vpop.f32.mrf.mxu0
        %v5142 = vadd.f32 0.0, %v5141
        %v5143 = vpop.f32.mrf.mxu0
        %v5144 = vadd.f32 0.0, %v5143
        %5145 = vmatprep.mubr.f32.mxu0 0.0
        %5146 = vmatmul.mubr.f32.gmra.mxu0 %v416
        %v5147 = vpop.f32.mrf.mxu0
        %v5148 = vadd.f32 0.0, %v5147
        %v5149 = vpop.f32.mrf.mxu0
        %v5150 = vadd.f32 0.0, %v5149
        %5151 = vmatprep.mubr.f32.mxu0 0.0
        %5152 = vmatmul.mubr.f32.gmra.mxu0 %v417
        %v5153 = vpop.f32.mrf.mxu0
        %v5154 = vadd.f32 0.0, %v5153
        %v5155 = vpop.f32.mrf.mxu0
        %v5156 = vadd.f32 0.0, %v5155
        %5157 = vmatprep.mubr.f32.mxu0 0.0
        %5158 = vmatmul.mubr.f32.gmra.mxu0 %v418
        %v5159 = vpop.f32.mrf.mxu0
        %v5160 = vadd.f32 0.0, %v5159
        %v5161 = vpop.f32.mrf.mxu0
        %v5162 = vadd.f32 0.0, %v5161
        %5163 = vmatprep.mubr.f32.mxu0 0.0
        %5164 = vmatmul.mubr.f32.gmra.mxu0 %v419
        %v5165 = vpop.f32.mrf.mxu0
        %v5166 = vadd.f32 0.0, %v5165
        %v5167 = vpop.f32.mrf.mxu0
        %v5168 = vadd.f32 0.0, %v5167
        %5169 = vmatprep.mubr.f32.mxu0 0.0
        %5170 = vmatmul.mubr.f32.gmra.mxu0 %v420
        %v5171 = vpop.f32.mrf.mxu0
        %v5172 = vadd.f32 0.0, %v5171
        %v5173 = vpop.f32.mrf.mxu0
        %v5174 = vadd.f32 0.0, %v5173
        %5175 = vmatprep.mubr.f32.mxu0 0.0
        %5176 = vmatmul.mubr.f32.gmra.mxu0 %v421
        %v5177 = vpop.f32.mrf.mxu0
        %v5178 = vadd.f32 0.0, %v5177
        %v5179 = vpop.f32.mrf.mxu0
        %v5180 = vadd.f32 0.0, %v5179
        %5181 = vdwg.mxu0
        %5182 = vmatprep.subr.mxu0 0.0
        %5183 = vmatpush1.msra.mxu0 %v4696
        %5184 = vmatprep.subr.mxu0 0.0
        %5185 = vmatpush1.msra.mxu0 %v4693
        %5186 = vmatprep.subr.mxu0 0.0
        %5187 = vmatpush1.msra.mxu0 %v4688
        %5188 = vmatprep.subr.mxu0 0.0
        %5189 = vmatpush1.msra.mxu0 %v4685
        %5190 = vmatprep.subr.mxu0 0.0
        %5191 = vmatpush1.msra.mxu0 %v4680
        %5192 = vmatprep.subr.mxu0 0.0
        %5193 = vmatpush1.msra.mxu0 %v4677
        %5194 = vmatprep.subr.mxu0 0.0
        %5195 = vmatpush1.msra.mxu0 %v4672
        %5196 = vmatprep.subr.mxu0 0.0
        %5197 = vmatpush1.msra.mxu0 %v4669
        %5198 = vmatprep.subr.mxu0 0.0
        %5199 = vmatpush1.msra.mxu0 %v4664
        %5200 = vmatprep.subr.mxu0 0.0
        %5201 = vmatpush1.msra.mxu0 %v4661
        %5202 = vmatprep.subr.mxu0 0.0
        %5203 = vmatpush1.msra.mxu0 %v4656
        %5204 = vmatprep.subr.mxu0 0.0
        %5205 = vmatpush1.msra.mxu0 %v4653
        %5206 = vmatprep.subr.mxu0 0.0
        %5207 = vmatpush1.msra.mxu0 %v4648
        %5208 = vmatprep.subr.mxu0 0.0
        %5209 = vmatpush1.msra.mxu0 %v4645
        %5210 = vmatprep.subr.mxu0 0.0
        %5211 = vmatpush1.msra.mxu0 %v4640
        %5212 = vmatprep.subr.mxu0 0.0
        %5213 = vmatpush1.msra.mxu0 %v4637
        %5214 = vmatprep.subr.mxu0 0.0
        %5215 = vmatpush2.msra.mxu0 0.0
        %5216 = vmatprep.subr.mxu0 0.0
        %5217 = vmatpush2.msra.mxu0 0.0
        %5218 = vmatprep.subr.mxu0 0.0
        %5219 = vmatpush2.msra.mxu0 0.0
        %5220 = vmatprep.subr.mxu0 0.0
        %5221 = vmatpush2.msra.mxu0 0.0
        %5222 = vmatprep.subr.mxu0 0.0
        %5223 = vmatpush2.msra.mxu0 0.0
        %5224 = vmatprep.subr.mxu0 0.0
        %5225 = vmatpush2.msra.mxu0 0.0
        %5226 = vmatprep.subr.mxu0 0.0
        %5227 = vmatpush2.msra.mxu0 0.0
        %5228 = vmatprep.subr.mxu0 0.0
        %5229 = vmatpush2.msra.mxu0 0.0
        %5230 = vmatprep.subr.mxu0 0.0
        %5231 = vmatpush2.msra.mxu0 0.0
        %5232 = vmatprep.subr.mxu0 0.0
        %5233 = vmatpush2.msra.mxu0 0.0
        %5234 = vmatprep.subr.mxu0 0.0
        %5235 = vmatpush2.msra.mxu0 0.0
        %5236 = vmatprep.subr.mxu0 0.0
        %5237 = vmatpush2.msra.mxu0 0.0
        %5238 = vmatprep.subr.mxu0 0.0
        %5239 = vmatpush2.msra.mxu0 0.0
        %5240 = vmatprep.subr.mxu0 0.0
        %5241 = vmatpush2.msra.mxu0 0.0
        %5242 = vmatprep.subr.mxu0 0.0
        %5243 = vmatpush2.msra.mxu0 0.0
        %5244 = vmatprep.subr.mxu0 0.0
        %5245 = vmatpush2.msra.mxu0 0.0
        %5246 = vmatprep.mubr.f32.mxu0 0.0
        %5247 = vmatmul.mubr.f32.gmra.mxu0 %v406
        %v5248 = vpop.f32.mrf.mxu0
        %v5249 = vadd.f32 0.0, %v5248
        %v5250 = vpop.f32.mrf.mxu0
        %5251 = vmatprep.mubr.f32.mxu0 0.0
        %5252 = vmatmul.mubr.f32.gmra.mxu0 %v407
        %v5253 = vpop.f32.mrf.mxu0
        %v5254 = vadd.f32 0.0, %v5253
        %v5255 = vpop.f32.mrf.mxu0
        %5256 = vmatprep.mubr.f32.mxu0 0.0
        %5257 = vmatmul.mubr.f32.gmra.mxu0 %v408
        %v5258 = vpop.f32.mrf.mxu0
        %v5259 = vadd.f32 0.0, %v5258
        %v5260 = vpop.f32.mrf.mxu0
        %5261 = vmatprep.mubr.f32.mxu0 0.0
        %5262 = vmatmul.mubr.f32.gmra.mxu0 %v409
        %v5263 = vpop.f32.mrf.mxu0
        %v5264 = vadd.f32 0.0, %v5263
        %v5265 = vpop.f32.mrf.mxu0
        %5266 = vmatprep.mubr.f32.mxu0 0.0
        %5267 = vmatmul.mubr.f32.gmra.mxu0 %v410
        %v5268 = vpop.f32.mrf.mxu0
        %v5269 = vadd.f32 0.0, %v5268
        %v5270 = vpop.f32.mrf.mxu0
        %5271 = vmatprep.mubr.f32.mxu0 0.0
        %5272 = vmatmul.mubr.f32.gmra.mxu0 %v411
        %v5273 = vpop.f32.mrf.mxu0
        %v5274 = vadd.f32 0.0, %v5273
        %v5275 = vpop.f32.mrf.mxu0
        %5276 = vmatprep.mubr.f32.mxu0 0.0
        %5277 = vmatmul.mubr.f32.gmra.mxu0 %v412
        %v5278 = vpop.f32.mrf.mxu0
        %v5279 = vadd.f32 0.0, %v5278
        %v5280 = vpop.f32.mrf.mxu0
        %5281 = vmatprep.mubr.f32.mxu0 0.0
        %5282 = vmatmul.mubr.f32.gmra.mxu0 %v413
        %v5283 = vpop.f32.mrf.mxu0
        %v5284 = vadd.f32 0.0, %v5283
        %v5285 = vpop.f32.mrf.mxu0
        %5286 = vmatprep.mubr.f32.mxu0 0.0
        %5287 = vmatmul.mubr.f32.gmra.mxu0 %v414
        %v5288 = vpop.f32.mrf.mxu0
        %v5289 = vadd.f32 0.0, %v5288
        %v5290 = vpop.f32.mrf.mxu0
        %5291 = vmatprep.mubr.f32.mxu0 0.0
        %5292 = vmatmul.mubr.f32.gmra.mxu0 %v415
        %v5293 = vpop.f32.mrf.mxu0
        %v5294 = vadd.f32 0.0, %v5293
        %v5295 = vpop.f32.mrf.mxu0
        %5296 = vmatprep.mubr.f32.mxu0 0.0
        %5297 = vmatmul.mubr.f32.gmra.mxu0 %v416
        %v5298 = vpop.f32.mrf.mxu0
        %v5299 = vadd.f32 0.0, %v5298
        %v5300 = vpop.f32.mrf.mxu0
        %5301 = vmatprep.mubr.f32.mxu0 0.0
        %5302 = vmatmul.mubr.f32.gmra.mxu0 %v417
        %v5303 = vpop.f32.mrf.mxu0
        %v5304 = vadd.f32 0.0, %v5303
        %v5305 = vpop.f32.mrf.mxu0
        %5306 = vmatprep.mubr.f32.mxu0 0.0
        %5307 = vmatmul.mubr.f32.gmra.mxu0 %v418
        %v5308 = vpop.f32.mrf.mxu0
        %v5309 = vadd.f32 0.0, %v5308
        %v5310 = vpop.f32.mrf.mxu0
        %5311 = vmatprep.mubr.f32.mxu0 0.0
        %5312 = vmatmul.mubr.f32.gmra.mxu0 %v419
        %v5313 = vpop.f32.mrf.mxu0
        %v5314 = vadd.f32 0.0, %v5313
        %v5315 = vpop.f32.mrf.mxu0
        %5316 = vmatprep.mubr.f32.mxu0 0.0
        %5317 = vmatmul.mubr.f32.gmra.mxu0 %v420
        %v5318 = vpop.f32.mrf.mxu0
        %v5319 = vadd.f32 0.0, %v5318
        %v5320 = vpop.f32.mrf.mxu0
        %5321 = vmatprep.mubr.f32.mxu0 0.0
        %5322 = vmatmul.mubr.f32.gmra.mxu0 %v421
        %v5323 = vpop.f32.mrf.mxu0
        %v5324 = vadd.f32 0.0, %v5323
        %v5325 = vpop.f32.mrf.mxu0
        %5326 = vdwg.mxu0
        %vm5327 = vcmp.ge.f32.partialorder %v4766, 1.0
        %vm5328 = vcmp.ge.f32.partialorder %v4768, 1.0
        %vm5329 = vcmp.ge.f32.partialorder %v4927, 1.0
        %vm5330 = vcmp.ge.f32.partialorder %v4929, 1.0
        %vm5331 = vcmp.ge.f32.partialorder %v5088, 1.0
        %vm5332 = vcmp.ge.f32.partialorder %v5090, 1.0
        %vm5333 = vcmp.ge.f32.partialorder %v5249, 1.0
        %vm5334 = vcmp.ge.f32.partialorder %v4772, 1.0
        %vm5335 = vcmp.ge.f32.partialorder %v4774, 1.0
        %vm5336 = vcmp.ge.f32.partialorder %v4933, 1.0
        %vm5337 = vcmp.ge.f32.partialorder %v4935, 1.0
        %vm5338 = vcmp.ge.f32.partialorder %v5094, 1.0
        %vm5339 = vcmp.ge.f32.partialorder %v5096, 1.0
        %vm5340 = vcmp.ge.f32.partialorder %v5254, 1.0
        %v5341 = vsel %vm5327, 1.0, 0.0
        %v5342 = vsel %vm5328, 1.0, 0.0
        %v5343 = vsel %vm5329, 1.0, 0.0
        %v5344 = vsel %vm5330, 1.0, 0.0
        %v5345 = vsel %vm5331, 1.0, 0.0
        %v5346 = vsel %vm5332, 1.0, 0.0
        %v5347 = vsel %vm5333, 1.0, 0.0
        %v5348 = vsel %vm5334, 1.0, 0.0
        %v5349 = vsel %vm5335, 1.0, 0.0
        %v5350 = vsel %vm5336, 1.0, 0.0
        %v5351 = vsel %vm5337, 1.0, 0.0
        %v5352 = vsel %vm5338, 1.0, 0.0
        %v5353 = vsel %vm5339, 1.0, 0.0
        %v5354 = vsel %vm5340, 1.0, 0.0
        %v5355 = vmul.f32 %v5341, -1.6487212
        %v5356 = vmul.f32 %v5342, -1.6487212
        %v5357 = vmul.f32 %v5343, -1.6487212
        %v5358 = vmul.f32 %v5344, -1.6487212
        %v5359 = vmul.f32 %v5345, -1.6487212
        %v5360 = vmul.f32 %v5346, -1.6487212
        %v5361 = vmul.f32 %v5347, -1.6487212
        %v5362 = vmul.f32 %v5348, -1.6487212
        %v5363 = vmul.f32 %v5349, -1.6487212
        %v5364 = vmul.f32 %v5350, -1.6487212
        %v5365 = vmul.f32 %v5351, -1.6487212
        %v5366 = vmul.f32 %v5352, -1.6487212
        %v5367 = vmul.f32 %v5353, -1.6487212
        %v5368 = vmul.f32 %v5354, -1.6487212
        %v5369 = vadd.f32 %v4778, %v5355
        %v5370 = vadd.f32 %v4780, %v5356
        %v5371 = vadd.f32 %v4939, %v5357
        %v5372 = vadd.f32 %v4941, %v5358
        %v5373 = vadd.f32 %v5100, %v5359
        %v5374 = vadd.f32 %v5102, %v5360
        %v5375 = vadd.f32 %v5259, %v5361
        %v5376 = vadd.f32 %v4784, %v5362
        %v5377 = vadd.f32 %v4786, %v5363
        %v5378 = vadd.f32 %v4945, %v5364
        %v5379 = vadd.f32 %v4947, %v5365
        %v5380 = vadd.f32 %v5106, %v5366
        %v5381 = vadd.f32 %v5108, %v5367
        %v5382 = vadd.f32 %v5264, %v5368
        %vm5383 = vcmp.ge.f32.partialorder %v5369, 1.0
        %vm5384 = vcmp.ge.f32.partialorder %v5370, 1.0
        %vm5385 = vcmp.ge.f32.partialorder %v5371, 1.0
        %vm5386 = vcmp.ge.f32.partialorder %v5372, 1.0
        %vm5387 = vcmp.ge.f32.partialorder %v5373, 1.0
        %vm5388 = vcmp.ge.f32.partialorder %v5374, 1.0
        %vm5389 = vcmp.ge.f32.partialorder %v5375, 1.0
        %vm5390 = vcmp.ge.f32.partialorder %v5376, 1.0
        %vm5391 = vcmp.ge.f32.partialorder %v5377, 1.0
        %vm5392 = vcmp.ge.f32.partialorder %v5378, 1.0
        %vm5393 = vcmp.ge.f32.partialorder %v5379, 1.0
        %vm5394 = vcmp.ge.f32.partialorder %v5380, 1.0
        %vm5395 = vcmp.ge.f32.partialorder %v5381, 1.0
        %vm5396 = vcmp.ge.f32.partialorder %v5382, 1.0
        %v5397 = vsel %vm5383, 1.0, 0.0
        %v5398 = vsel %vm5384, 1.0, 0.0
        %v5399 = vsel %vm5385, 1.0, 0.0
        %v5400 = vsel %vm5386, 1.0, 0.0
        %v5401 = vsel %vm5387, 1.0, 0.0
        %v5402 = vsel %vm5388, 1.0, 0.0
        %v5403 = vsel %vm5389, 1.0, 0.0
        %v5404 = vsel %vm5390, 1.0, 0.0
        %v5405 = vsel %vm5391, 1.0, 0.0
        %v5406 = vsel %vm5392, 1.0, 0.0
        %v5407 = vsel %vm5393, 1.0, 0.0
        %v5408 = vsel %vm5394, 1.0, 0.0
        %v5409 = vsel %vm5395, 1.0, 0.0
        %v5410 = vsel %vm5396, 1.0, 0.0
        %v5411 = vmul.f32 %v5341, -2.0
        %v5412 = vmul.f32 %v5342, -2.0
        %v5413 = vmul.f32 %v5343, -2.0
        %v5414 = vmul.f32 %v5344, -2.0
        %v5415 = vmul.f32 %v5345, -2.0
        %v5416 = vmul.f32 %v5346, -2.0
        %v5417 = vmul.f32 %v5347, -2.0
        %v5418 = vmul.f32 %v5348, -2.0
        %v5419 = vmul.f32 %v5349, -2.0
        %v5420 = vmul.f32 %v5350, -2.0
        %v5421 = vmul.f32 %v5351, -2.0
        %v5422 = vmul.f32 %v5352, -2.0
        %v5423 = vmul.f32 %v5353, -2.0
        %v5424 = vmul.f32 %v5354, -2.0
        %v5425 = vadd.f32 %v4790, %v5411
        %v5426 = vadd.f32 %v4792, %v5412
        %v5427 = vadd.f32 %v4951, %v5413
        %v5428 = vadd.f32 %v4953, %v5414
        %v5429 = vadd.f32 %v5112, %v5415
        %v5430 = vadd.f32 %v5114, %v5416
        %v5431 = vadd.f32 %v5269, %v5417
        %v5432 = vadd.f32 %v4796, %v5418
        %v5433 = vadd.f32 %v4798, %v5419
        %v5434 = vadd.f32 %v4957, %v5420
        %v5435 = vadd.f32 %v4959, %v5421
        %v5436 = vadd.f32 %v5118, %v5422
        %v5437 = vadd.f32 %v5120, %v5423
        %v5438 = vadd.f32 %v5274, %v5424
        %v5439 = vmul.f32 %v5397, -1.6487212
        %v5440 = vmul.f32 %v5398, -1.6487212
        %v5441 = vmul.f32 %v5399, -1.6487212
        %v5442 = vmul.f32 %v5400, -1.6487212
        %v5443 = vmul.f32 %v5401, -1.6487212
        %v5444 = vmul.f32 %v5402, -1.6487212
        %v5445 = vmul.f32 %v5403, -1.6487212
        %v5446 = vmul.f32 %v5404, -1.6487212
        %v5447 = vmul.f32 %v5405, -1.6487212
        %v5448 = vmul.f32 %v5406, -1.6487212
        %v5449 = vmul.f32 %v5407, -1.6487212
        %v5450 = vmul.f32 %v5408, -1.6487212
        %v5451 = vmul.f32 %v5409, -1.6487212
        %v5452 = vmul.f32 %v5410, -1.6487212
        %v5453 = vadd.f32 %v5425, %v5439
        %v5454 = vadd.f32 %v5426, %v5440
        %v5455 = vadd.f32 %v5427, %v5441
        %v5456 = vadd.f32 %v5428, %v5442
        %v5457 = vadd.f32 %v5429, %v5443
        %v5458 = vadd.f32 %v5430, %v5444
        %v5459 = vadd.f32 %v5431, %v5445
        %v5460 = vadd.f32 %v5432, %v5446
        %v5461 = vadd.f32 %v5433, %v5447
        %v5462 = vadd.f32 %v5434, %v5448
        %v5463 = vadd.f32 %v5435, %v5449
        %v5464 = vadd.f32 %v5436, %v5450
        %v5465 = vadd.f32 %v5437, %v5451
        %v5466 = vadd.f32 %v5438, %v5452
        %vm5467 = vcmp.ge.f32.partialorder %v5453, 1.0
        %vm5468 = vcmp.ge.f32.partialorder %v5454, 1.0
        %vm5469 = vcmp.ge.f32.partialorder %v5455, 1.0
        %vm5470 = vcmp.ge.f32.partialorder %v5456, 1.0
        %vm5471 = vcmp.ge.f32.partialorder %v5457, 1.0
        %vm5472 = vcmp.ge.f32.partialorder %v5458, 1.0
        %vm5473 = vcmp.ge.f32.partialorder %v5459, 1.0
        %vm5474 = vcmp.ge.f32.partialorder %v5460, 1.0
        %vm5475 = vcmp.ge.f32.partialorder %v5461, 1.0
        %vm5476 = vcmp.ge.f32.partialorder %v5462, 1.0
        %vm5477 = vcmp.ge.f32.partialorder %v5463, 1.0
        %vm5478 = vcmp.ge.f32.partialorder %v5464, 1.0
        %vm5479 = vcmp.ge.f32.partialorder %v5465, 1.0
        %vm5480 = vcmp.ge.f32.partialorder %v5466, 1.0
        %v5481 = vsel %vm5467, 1.0, 0.0
        %v5482 = vsel %vm5468, 1.0, 0.0
        %v5483 = vsel %vm5469, 1.0, 0.0
        %v5484 = vsel %vm5470, 1.0, 0.0
        %v5485 = vsel %vm5471, 1.0, 0.0
        %v5486 = vsel %vm5472, 1.0, 0.0
        %v5487 = vsel %vm5473, 1.0, 0.0
        %v5488 = vsel %vm5474, 1.0, 0.0
        %v5489 = vsel %vm5475, 1.0, 0.0
        %v5490 = vsel %vm5476, 1.0, 0.0
        %v5491 = vsel %vm5477, 1.0, 0.0
        %v5492 = vsel %vm5478, 1.0, 0.0
        %v5493 = vsel %vm5479, 1.0, 0.0
        %v5494 = vsel %vm5480, 1.0, 0.0
        %v5495 = vmul.f32 %v5341, -1.819592
        %v5496 = vmul.f32 %v5342, -1.819592
        %v5497 = vmul.f32 %v5343, -1.819592
        %v5498 = vmul.f32 %v5344, -1.819592
        %v5499 = vmul.f32 %v5345, -1.819592
        %v5500 = vmul.f32 %v5346, -1.819592
        %v5501 = vmul.f32 %v5347, -1.819592
        %v5502 = vmul.f32 %v5348, -1.819592
        %v5503 = vmul.f32 %v5349, -1.819592
        %v5504 = vmul.f32 %v5350, -1.819592
        %v5505 = vmul.f32 %v5351, -1.819592
        %v5506 = vmul.f32 %v5352, -1.819592
        %v5507 = vmul.f32 %v5353, -1.819592
        %v5508 = vmul.f32 %v5354, -1.819592
        %v5509 = vadd.f32 %v4802, %v5495
        %v5510 = vadd.f32 %v4804, %v5496
        %v5511 = vadd.f32 %v4963, %v5497
        %v5512 = vadd.f32 %v4965, %v5498
        %v5513 = vadd.f32 %v5124, %v5499
        %v5514 = vadd.f32 %v5126, %v5500
        %v5515 = vadd.f32 %v5279, %v5501
        %v5516 = vadd.f32 %v4808, %v5502
        %v5517 = vadd.f32 %v4810, %v5503
        %v5518 = vadd.f32 %v4969, %v5504
        %v5519 = vadd.f32 %v4971, %v5505
        %v5520 = vadd.f32 %v5130, %v5506
        %v5521 = vadd.f32 %v5132, %v5507
        %v5522 = vadd.f32 %v5284, %v5508
        %v5523 = vmul.f32 %v5397, -2.0
        %v5524 = vmul.f32 %v5398, -2.0
        %v5525 = vmul.f32 %v5399, -2.0
        %v5526 = vmul.f32 %v5400, -2.0
        %v5527 = vmul.f32 %v5401, -2.0
        %v5528 = vmul.f32 %v5402, -2.0
        %v5529 = vmul.f32 %v5403, -2.0
        %v5530 = vmul.f32 %v5404, -2.0
        %v5531 = vmul.f32 %v5405, -2.0
        %v5532 = vmul.f32 %v5406, -2.0
        %v5533 = vmul.f32 %v5407, -2.0
        %v5534 = vmul.f32 %v5408, -2.0
        %v5535 = vmul.f32 %v5409, -2.0
        %v5536 = vmul.f32 %v5410, -2.0
        %v5537 = vadd.f32 %v5509, %v5523
        %v5538 = vadd.f32 %v5510, %v5524
        %v5539 = vadd.f32 %v5511, %v5525
        %v5540 = vadd.f32 %v5512, %v5526
        %v5541 = vadd.f32 %v5513, %v5527
        %v5542 = vadd.f32 %v5514, %v5528
        %v5543 = vadd.f32 %v5515, %v5529
        %v5544 = vadd.f32 %v5516, %v5530
        %v5545 = vadd.f32 %v5517, %v5531
        %v5546 = vadd.f32 %v5518, %v5532
        %v5547 = vadd.f32 %v5519, %v5533
        %v5548 = vadd.f32 %v5520, %v5534
        %v5549 = vadd.f32 %v5521, %v5535
        %v5550 = vadd.f32 %v5522, %v5536
        %v5551 = vmul.f32 %v5481, -1.6487212
        %v5552 = vmul.f32 %v5482, -1.6487212
        %v5553 = vmul.f32 %v5483, -1.6487212
        %v5554 = vmul.f32 %v5484, -1.6487212
        %v5555 = vmul.f32 %v5485, -1.6487212
        %v5556 = vmul.f32 %v5486, -1.6487212
        %v5557 = vmul.f32 %v5487, -1.6487212
        %v5558 = vmul.f32 %v5488, -1.6487212
        %v5559 = vmul.f32 %v5489, -1.6487212
        %v5560 = vmul.f32 %v5490, -1.6487212
        %v5561 = vmul.f32 %v5491, -1.6487212
        %v5562 = vmul.f32 %v5492, -1.6487212
        %v5563 = vmul.f32 %v5493, -1.6487212
        %v5564 = vmul.f32 %v5494, -1.6487212
        %v5565 = vadd.f32 %v5537, %v5551
        %v5566 = vadd.f32 %v5538, %v5552
        %v5567 = vadd.f32 %v5539, %v5553
        %v5568 = vadd.f32 %v5540, %v5554
        %v5569 = vadd.f32 %v5541, %v5555
        %v5570 = vadd.f32 %v5542, %v5556
        %v5571 = vadd.f32 %v5543, %v5557
        %v5572 = vadd.f32 %v5544, %v5558
        %v5573 = vadd.f32 %v5545, %v5559
        %v5574 = vadd.f32 %v5546, %v5560
        %v5575 = vadd.f32 %v5547, %v5561
        %v5576 = vadd.f32 %v5548, %v5562
        %v5577 = vadd.f32 %v5549, %v5563
        %v5578 = vadd.f32 %v5550, %v5564
        %vm5579 = vcmp.ge.f32.partialorder %v5565, 1.0
        %vm5580 = vcmp.ge.f32.partialorder %v5566, 1.0
        %vm5581 = vcmp.ge.f32.partialorder %v5567, 1.0
        %vm5582 = vcmp.ge.f32.partialorder %v5568, 1.0
        %vm5583 = vcmp.ge.f32.partialorder %v5569, 1.0
        %vm5584 = vcmp.ge.f32.partialorder %v5570, 1.0
        %vm5585 = vcmp.ge.f32.partialorder %v5571, 1.0
        %vm5586 = vcmp.ge.f32.partialorder %v5572, 1.0
        %vm5587 = vcmp.ge.f32.partialorder %v5573, 1.0
        %vm5588 = vcmp.ge.f32.partialorder %v5574, 1.0
        %vm5589 = vcmp.ge.f32.partialorder %v5575, 1.0
        %vm5590 = vcmp.ge.f32.partialorder %v5576, 1.0
        %vm5591 = vcmp.ge.f32.partialorder %v5577, 1.0
        %vm5592 = vcmp.ge.f32.partialorder %v5578, 1.0
        %v5593 = vsel %vm5579, 1.0, 0.0
        %v5594 = vsel %vm5580, 1.0, 0.0
        %v5595 = vsel %vm5581, 1.0, 0.0
        %v5596 = vsel %vm5582, 1.0, 0.0
        %v5597 = vsel %vm5583, 1.0, 0.0
        %v5598 = vsel %vm5584, 1.0, 0.0
        %v5599 = vsel %vm5585, 1.0, 0.0
        %v5600 = vsel %vm5586, 1.0, 0.0
        %v5601 = vsel %vm5587, 1.0, 0.0
        %v5602 = vsel %vm5588, 1.0, 0.0
        %v5603 = vsel %vm5589, 1.0, 0.0
        %v5604 = vsel %vm5590, 1.0, 0.0
        %v5605 = vsel %vm5591, 1.0, 0.0
        %v5606 = vsel %vm5592, 1.0, 0.0
        %v5607 = vmul.f32 %v5341, -1.4715178
        %v5608 = vmul.f32 %v5342, -1.4715178
        %v5609 = vmul.f32 %v5343, -1.4715178
        %v5610 = vmul.f32 %v5344, -1.4715178
        %v5611 = vmul.f32 %v5345, -1.4715178
        %v5612 = vmul.f32 %v5346, -1.4715178
        %v5613 = vmul.f32 %v5347, -1.4715178
        %v5614 = vmul.f32 %v5348, -1.4715178
        %v5615 = vmul.f32 %v5349, -1.4715178
        %v5616 = vmul.f32 %v5350, -1.4715178
        %v5617 = vmul.f32 %v5351, -1.4715178
        %v5618 = vmul.f32 %v5352, -1.4715178
        %v5619 = vmul.f32 %v5353, -1.4715178
        %v5620 = vmul.f32 %v5354, -1.4715178
        %v5621 = vadd.f32 %v4814, %v5607
        %v5622 = vadd.f32 %v4816, %v5608
        %v5623 = vadd.f32 %v4975, %v5609
        %v5624 = vadd.f32 %v4977, %v5610
        %v5625 = vadd.f32 %v5136, %v5611
        %v5626 = vadd.f32 %v5138, %v5612
        %v5627 = vadd.f32 %v5289, %v5613
        %v5628 = vadd.f32 %v4820, %v5614
        %v5629 = vadd.f32 %v4822, %v5615
        %v5630 = vadd.f32 %v4981, %v5616
        %v5631 = vadd.f32 %v4983, %v5617
        %v5632 = vadd.f32 %v5142, %v5618
        %v5633 = vadd.f32 %v5144, %v5619
        %v5634 = vadd.f32 %v5294, %v5620
        %v5635 = vmul.f32 %v5397, -1.819592
        %v5636 = vmul.f32 %v5398, -1.819592
        %v5637 = vmul.f32 %v5399, -1.819592
        %v5638 = vmul.f32 %v5400, -1.819592
        %v5639 = vmul.f32 %v5401, -1.819592
        %v5640 = vmul.f32 %v5402, -1.819592
        %v5641 = vmul.f32 %v5403, -1.819592
        %v5642 = vmul.f32 %v5404, -1.819592
        %v5643 = vmul.f32 %v5405, -1.819592
        %v5644 = vmul.f32 %v5406, -1.819592
        %v5645 = vmul.f32 %v5407, -1.819592
        %v5646 = vmul.f32 %v5408, -1.819592
        %v5647 = vmul.f32 %v5409, -1.819592
        %v5648 = vmul.f32 %v5410, -1.819592
        %v5649 = vadd.f32 %v5621, %v5635
        %v5650 = vadd.f32 %v5622, %v5636
        %v5651 = vadd.f32 %v5623, %v5637
        %v5652 = vadd.f32 %v5624, %v5638
        %v5653 = vadd.f32 %v5625, %v5639
        %v5654 = vadd.f32 %v5626, %v5640
        %v5655 = vadd.f32 %v5627, %v5641
        %v5656 = vadd.f32 %v5628, %v5642
        %v5657 = vadd.f32 %v5629, %v5643
        %v5658 = vadd.f32 %v5630, %v5644
        %v5659 = vadd.f32 %v5631, %v5645
        %v5660 = vadd.f32 %v5632, %v5646
        %v5661 = vadd.f32 %v5633, %v5647
        %v5662 = vadd.f32 %v5634, %v5648
        %v5663 = vmul.f32 %v5481, -2.0
        %v5664 = vmul.f32 %v5482, -2.0
        %v5665 = vmul.f32 %v5483, -2.0
        %v5666 = vmul.f32 %v5484, -2.0
        %v5667 = vmul.f32 %v5485, -2.0
        %v5668 = vmul.f32 %v5486, -2.0
        %v5669 = vmul.f32 %v5487, -2.0
        %v5670 = vmul.f32 %v5488, -2.0
        %v5671 = vmul.f32 %v5489, -2.0
        %v5672 = vmul.f32 %v5490, -2.0
        %v5673 = vmul.f32 %v5491, -2.0
        %v5674 = vmul.f32 %v5492, -2.0
        %v5675 = vmul.f32 %v5493, -2.0
        %v5676 = vmul.f32 %v5494, -2.0
        %v5677 = vadd.f32 %v5649, %v5663
        %v5678 = vadd.f32 %v5650, %v5664
        %v5679 = vadd.f32 %v5651, %v5665
        %v5680 = vadd.f32 %v5652, %v5666
        %v5681 = vadd.f32 %v5653, %v5667
        %v5682 = vadd.f32 %v5654, %v5668
        %v5683 = vadd.f32 %v5655, %v5669
        %v5684 = vadd.f32 %v5656, %v5670
        %v5685 = vadd.f32 %v5657, %v5671
        %v5686 = vadd.f32 %v5658, %v5672
        %v5687 = vadd.f32 %v5659, %v5673
        %v5688 = vadd.f32 %v5660, %v5674
        %v5689 = vadd.f32 %v5661, %v5675
        %v5690 = vadd.f32 %v5662, %v5676
        %v5691 = vmul.f32 %v5593, -1.6487212
        %v5692 = vmul.f32 %v5594, -1.6487212
        %v5693 = vmul.f32 %v5595, -1.6487212
        %v5694 = vmul.f32 %v5596, -1.6487212
        %v5695 = vmul.f32 %v5597, -1.6487212
        %v5696 = vmul.f32 %v5598, -1.6487212
        %v5697 = vmul.f32 %v5599, -1.6487212
        %v5698 = vmul.f32 %v5600, -1.6487212
        %v5699 = vmul.f32 %v5601, -1.6487212
        %v5700 = vmul.f32 %v5602, -1.6487212
        %v5701 = vmul.f32 %v5603, -1.6487212
        %v5702 = vmul.f32 %v5604, -1.6487212
        %v5703 = vmul.f32 %v5605, -1.6487212
        %v5704 = vmul.f32 %v5606, -1.6487212
        %v5705 = vadd.f32 %v5677, %v5691
        %v5706 = vadd.f32 %v5678, %v5692
        %v5707 = vadd.f32 %v5679, %v5693
        %v5708 = vadd.f32 %v5680, %v5694
        %v5709 = vadd.f32 %v5681, %v5695
        %v5710 = vadd.f32 %v5682, %v5696
        %v5711 = vadd.f32 %v5683, %v5697
        %v5712 = vadd.f32 %v5684, %v5698
        %v5713 = vadd.f32 %v5685, %v5699
        %v5714 = vadd.f32 %v5686, %v5700
        %v5715 = vadd.f32 %v5687, %v5701
        %v5716 = vadd.f32 %v5688, %v5702
        %v5717 = vadd.f32 %v5689, %v5703
        %v5718 = vadd.f32 %v5690, %v5704
        %vm5719 = vcmp.ge.f32.partialorder %v5705, 1.0
        %vm5720 = vcmp.ge.f32.partialorder %v5706, 1.0
        %vm5721 = vcmp.ge.f32.partialorder %v5707, 1.0
        %vm5722 = vcmp.ge.f32.partialorder %v5708, 1.0
        %vm5723 = vcmp.ge.f32.partialorder %v5709, 1.0
        %vm5724 = vcmp.ge.f32.partialorder %v5710, 1.0
        %vm5725 = vcmp.ge.f32.partialorder %v5711, 1.0
        %vm5726 = vcmp.ge.f32.partialorder %v5712, 1.0
        %vm5727 = vcmp.ge.f32.partialorder %v5713, 1.0
        %vm5728 = vcmp.ge.f32.partialorder %v5714, 1.0
        %vm5729 = vcmp.ge.f32.partialorder %v5715, 1.0
        %vm5730 = vcmp.ge.f32.partialorder %v5716, 1.0
        %vm5731 = vcmp.ge.f32.partialorder %v5717, 1.0
        %vm5732 = vcmp.ge.f32.partialorder %v5718, 1.0
        %v5733 = vsel %vm5719, 1.0, 0.0
        %v5734 = vsel %vm5720, 1.0, 0.0
        %v5735 = vsel %vm5721, 1.0, 0.0
        %v5736 = vsel %vm5722, 1.0, 0.0
        %v5737 = vsel %vm5723, 1.0, 0.0
        %v5738 = vsel %vm5724, 1.0, 0.0
        %v5739 = vsel %vm5725, 1.0, 0.0
        %v5740 = vsel %vm5726, 1.0, 0.0
        %v5741 = vsel %vm5727, 1.0, 0.0
        %v5742 = vsel %vm5728, 1.0, 0.0
        %v5743 = vsel %vm5729, 1.0, 0.0
        %v5744 = vsel %vm5730, 1.0, 0.0
        %v5745 = vsel %vm5731, 1.0, 0.0
        %v5746 = vsel %vm5732, 1.0, 0.0
        %v5747 = vmul.f32 %v5341, -1.1156508
        %v5748 = vmul.f32 %v5342, -1.1156508
        %v5749 = vmul.f32 %v5343, -1.1156508
        %v5750 = vmul.f32 %v5344, -1.1156508
        %v5751 = vmul.f32 %v5345, -1.1156508
        %v5752 = vmul.f32 %v5346, -1.1156508
        %v5753 = vmul.f32 %v5347, -1.1156508
        %v5754 = vmul.f32 %v5348, -1.1156508
        %v5755 = vmul.f32 %v5349, -1.1156508
        %v5756 = vmul.f32 %v5350, -1.1156508
        %v5757 = vmul.f32 %v5351, -1.1156508
        %v5758 = vmul.f32 %v5352, -1.1156508
        %v5759 = vmul.f32 %v5353, -1.1156508
        %v5760 = vmul.f32 %v5354, -1.1156508
        %v5761 = vadd.f32 %v4826, %v5747
        %v5762 = vadd.f32 %v4828, %v5748
        %v5763 = vadd.f32 %v4987, %v5749
        %v5764 = vadd.f32 %v4989, %v5750
        %v5765 = vadd.f32 %v5148, %v5751
        %v5766 = vadd.f32 %v5150, %v5752
        %v5767 = vadd.f32 %v5299, %v5753
        %v5768 = vadd.f32 %v4832, %v5754
        %v5769 = vadd.f32 %v4834, %v5755
        %v5770 = vadd.f32 %v4993, %v5756
        %v5771 = vadd.f32 %v4995, %v5757
        %v5772 = vadd.f32 %v5154, %v5758
        %v5773 = vadd.f32 %v5156, %v5759
        %v5774 = vadd.f32 %v5304, %v5760
        %v5775 = vmul.f32 %v5397, -1.4715178
        %v5776 = vmul.f32 %v5398, -1.4715178
        %v5777 = vmul.f32 %v5399, -1.4715178
        %v5778 = vmul.f32 %v5400, -1.4715178
        %v5779 = vmul.f32 %v5401, -1.4715178
        %v5780 = vmul.f32 %v5402, -1.4715178
        %v5781 = vmul.f32 %v5403, -1.4715178
        %v5782 = vmul.f32 %v5404, -1.4715178
        %v5783 = vmul.f32 %v5405, -1.4715178
        %v5784 = vmul.f32 %v5406, -1.4715178
        %v5785 = vmul.f32 %v5407, -1.4715178
        %v5786 = vmul.f32 %v5408, -1.4715178
        %v5787 = vmul.f32 %v5409, -1.4715178
        %v5788 = vmul.f32 %v5410, -1.4715178
        %v5789 = vadd.f32 %v5761, %v5775
        %v5790 = vadd.f32 %v5762, %v5776
        %v5791 = vadd.f32 %v5763, %v5777
        %v5792 = vadd.f32 %v5764, %v5778
        %v5793 = vadd.f32 %v5765, %v5779
        %v5794 = vadd.f32 %v5766, %v5780
        %v5795 = vadd.f32 %v5767, %v5781
        %v5796 = vadd.f32 %v5768, %v5782
        %v5797 = vadd.f32 %v5769, %v5783
        %v5798 = vadd.f32 %v5770, %v5784
        %v5799 = vadd.f32 %v5771, %v5785
        %v5800 = vadd.f32 %v5772, %v5786
        %v5801 = vadd.f32 %v5773, %v5787
        %v5802 = vadd.f32 %v5774, %v5788
        %v5803 = vmul.f32 %v5481, -1.819592
        %v5804 = vmul.f32 %v5482, -1.819592
        %v5805 = vmul.f32 %v5483, -1.819592
        %v5806 = vmul.f32 %v5484, -1.819592
        %v5807 = vmul.f32 %v5485, -1.819592
        %v5808 = vmul.f32 %v5486, -1.819592
        %v5809 = vmul.f32 %v5487, -1.819592
        %v5810 = vmul.f32 %v5488, -1.819592
        %v5811 = vmul.f32 %v5489, -1.819592
        %v5812 = vmul.f32 %v5490, -1.819592
        %v5813 = vmul.f32 %v5491, -1.819592
        %v5814 = vmul.f32 %v5492, -1.819592
        %v5815 = vmul.f32 %v5493, -1.819592
        %v5816 = vmul.f32 %v5494, -1.819592
        %v5817 = vadd.f32 %v5789, %v5803
        %v5818 = vadd.f32 %v5790, %v5804
        %v5819 = vadd.f32 %v5791, %v5805
        %v5820 = vadd.f32 %v5792, %v5806
        %v5821 = vadd.f32 %v5793, %v5807
        %v5822 = vadd.f32 %v5794, %v5808
        %v5823 = vadd.f32 %v5795, %v5809
        %v5824 = vadd.f32 %v5796, %v5810
        %v5825 = vadd.f32 %v5797, %v5811
        %v5826 = vadd.f32 %v5798, %v5812
        %v5827 = vadd.f32 %v5799, %v5813
        %v5828 = vadd.f32 %v5800, %v5814
        %v5829 = vadd.f32 %v5801, %v5815
        %v5830 = vadd.f32 %v5802, %v5816
        %v5831 = vmul.f32 %v5593, -2.0
        %v5832 = vmul.f32 %v5594, -2.0
        %v5833 = vmul.f32 %v5595, -2.0
        %v5834 = vmul.f32 %v5596, -2.0
        %v5835 = vmul.f32 %v5597, -2.0
        %v5836 = vmul.f32 %v5598, -2.0
        %v5837 = vmul.f32 %v5599, -2.0
        %v5838 = vmul.f32 %v5600, -2.0
        %v5839 = vmul.f32 %v5601, -2.0
        %v5840 = vmul.f32 %v5602, -2.0
        %v5841 = vmul.f32 %v5603, -2.0
        %v5842 = vmul.f32 %v5604, -2.0
        %v5843 = vmul.f32 %v5605, -2.0
        %v5844 = vmul.f32 %v5606, -2.0
        %v5845 = vadd.f32 %v5817, %v5831
        %v5846 = vadd.f32 %v5818, %v5832
        %v5847 = vadd.f32 %v5819, %v5833
        %v5848 = vadd.f32 %v5820, %v5834
        %v5849 = vadd.f32 %v5821, %v5835
        %v5850 = vadd.f32 %v5822, %v5836
        %v5851 = vadd.f32 %v5823, %v5837
        %v5852 = vadd.f32 %v5824, %v5838
        %v5853 = vadd.f32 %v5825, %v5839
        %v5854 = vadd.f32 %v5826, %v5840
        %v5855 = vadd.f32 %v5827, %v5841
        %v5856 = vadd.f32 %v5828, %v5842
        %v5857 = vadd.f32 %v5829, %v5843
        %v5858 = vadd.f32 %v5830, %v5844
        %v5859 = vmul.f32 %v5733, -1.6487212
        %v5860 = vmul.f32 %v5734, -1.6487212
        %v5861 = vmul.f32 %v5735, -1.6487212
        %v5862 = vmul.f32 %v5736, -1.6487212
        %v5863 = vmul.f32 %v5737, -1.6487212
        %v5864 = vmul.f32 %v5738, -1.6487212
        %v5865 = vmul.f32 %v5739, -1.6487212
        %v5866 = vmul.f32 %v5740, -1.6487212
        %v5867 = vmul.f32 %v5741, -1.6487212
        %v5868 = vmul.f32 %v5742, -1.6487212
        %v5869 = vmul.f32 %v5743, -1.6487212
        %v5870 = vmul.f32 %v5744, -1.6487212
        %v5871 = vmul.f32 %v5745, -1.6487212
        %v5872 = vmul.f32 %v5746, -1.6487212
        %v5873 = vadd.f32 %v5845, %v5859
        %v5874 = vadd.f32 %v5846, %v5860
        %v5875 = vadd.f32 %v5847, %v5861
        %v5876 = vadd.f32 %v5848, %v5862
        %v5877 = vadd.f32 %v5849, %v5863
        %v5878 = vadd.f32 %v5850, %v5864
        %v5879 = vadd.f32 %v5851, %v5865
        %v5880 = vadd.f32 %v5852, %v5866
        %v5881 = vadd.f32 %v5853, %v5867
        %v5882 = vadd.f32 %v5854, %v5868
        %v5883 = vadd.f32 %v5855, %v5869
        %v5884 = vadd.f32 %v5856, %v5870
        %v5885 = vadd.f32 %v5857, %v5871
        %v5886 = vadd.f32 %v5858, %v5872
        %vm5887 = vcmp.ge.f32.partialorder %v5873, 1.0
        %vm5888 = vcmp.ge.f32.partialorder %v5874, 1.0
        %vm5889 = vcmp.ge.f32.partialorder %v5875, 1.0
        %vm5890 = vcmp.ge.f32.partialorder %v5876, 1.0
        %vm5891 = vcmp.ge.f32.partialorder %v5877, 1.0
        %vm5892 = vcmp.ge.f32.partialorder %v5878, 1.0
        %vm5893 = vcmp.ge.f32.partialorder %v5879, 1.0
        %vm5894 = vcmp.ge.f32.partialorder %v5880, 1.0
        %vm5895 = vcmp.ge.f32.partialorder %v5881, 1.0
        %vm5896 = vcmp.ge.f32.partialorder %v5882, 1.0
        %vm5897 = vcmp.ge.f32.partialorder %v5883, 1.0
        %vm5898 = vcmp.ge.f32.partialorder %v5884, 1.0
        %vm5899 = vcmp.ge.f32.partialorder %v5885, 1.0
        %vm5900 = vcmp.ge.f32.partialorder %v5886, 1.0
        %v5901 = vsel %vm5887, 1.0, 0.0
        %v5902 = vsel %vm5888, 1.0, 0.0
        %v5903 = vsel %vm5889, 1.0, 0.0
        %v5904 = vsel %vm5890, 1.0, 0.0
        %v5905 = vsel %vm5891, 1.0, 0.0
        %v5906 = vsel %vm5892, 1.0, 0.0
        %v5907 = vsel %vm5893, 1.0, 0.0
        %v5908 = vsel %vm5894, 1.0, 0.0
        %v5909 = vsel %vm5895, 1.0, 0.0
        %v5910 = vsel %vm5896, 1.0, 0.0
        %v5911 = vsel %vm5897, 1.0, 0.0
        %v5912 = vsel %vm5898, 1.0, 0.0
        %v5913 = vsel %vm5899, 1.0, 0.0
        %v5914 = vsel %vm5900, 1.0, 0.0
        %v5915 = vmul.f32 %v5341, -0.8120117
        %v5916 = vmul.f32 %v5342, -0.8120117
        %v5917 = vmul.f32 %v5343, -0.8120117
        %v5918 = vmul.f32 %v5344, -0.8120117
        %v5919 = vmul.f32 %v5345, -0.8120117
        %v5920 = vmul.f32 %v5346, -0.8120117
        %v5921 = vmul.f32 %v5347, -0.8120117
        %v5922 = vmul.f32 %v5348, -0.8120117
        %v5923 = vmul.f32 %v5349, -0.8120117
        %v5924 = vmul.f32 %v5350, -0.8120117
        %v5925 = vmul.f32 %v5351, -0.8120117
        %v5926 = vmul.f32 %v5352, -0.8120117
        %v5927 = vmul.f32 %v5353, -0.8120117
        %v5928 = vmul.f32 %v5354, -0.8120117
        %v5929 = vadd.f32 %v4838, %v5915
        %v5930 = vadd.f32 %v4840, %v5916
        %v5931 = vadd.f32 %v4999, %v5917
        %v5932 = vadd.f32 %v5001, %v5918
        %v5933 = vadd.f32 %v5160, %v5919
        %v5934 = vadd.f32 %v5162, %v5920
        %v5935 = vadd.f32 %v5309, %v5921
        %v5936 = vadd.f32 %v4844, %v5922
        %v5937 = vadd.f32 %v4846, %v5923
        %v5938 = vadd.f32 %v5005, %v5924
        %v5939 = vadd.f32 %v5007, %v5925
        %v5940 = vadd.f32 %v5166, %v5926
        %v5941 = vadd.f32 %v5168, %v5927
        %v5942 = vadd.f32 %v5314, %v5928
        %v5943 = vmul.f32 %v5397, -1.1156508
        %v5944 = vmul.f32 %v5398, -1.1156508
        %v5945 = vmul.f32 %v5399, -1.1156508
        %v5946 = vmul.f32 %v5400, -1.1156508
        %v5947 = vmul.f32 %v5401, -1.1156508
        %v5948 = vmul.f32 %v5402, -1.1156508
        %v5949 = vmul.f32 %v5403, -1.1156508
        %v5950 = vmul.f32 %v5404, -1.1156508
        %v5951 = vmul.f32 %v5405, -1.1156508
        %v5952 = vmul.f32 %v5406, -1.1156508
        %v5953 = vmul.f32 %v5407, -1.1156508
        %v5954 = vmul.f32 %v5408, -1.1156508
        %v5955 = vmul.f32 %v5409, -1.1156508
        %v5956 = vmul.f32 %v5410, -1.1156508
        %v5957 = vadd.f32 %v5929, %v5943
        %v5958 = vadd.f32 %v5930, %v5944
        %v5959 = vadd.f32 %v5931, %v5945
        %v5960 = vadd.f32 %v5932, %v5946
        %v5961 = vadd.f32 %v5933, %v5947
        %v5962 = vadd.f32 %v5934, %v5948
        %v5963 = vadd.f32 %v5935, %v5949
        %v5964 = vadd.f32 %v5936, %v5950
        %v5965 = vadd.f32 %v5937, %v5951
        %v5966 = vadd.f32 %v5938, %v5952
        %v5967 = vadd.f32 %v5939, %v5953
        %v5968 = vadd.f32 %v5940, %v5954
        %v5969 = vadd.f32 %v5941, %v5955
        %v5970 = vadd.f32 %v5942, %v5956
        %v5971 = vmul.f32 %v5481, -1.4715178
        %v5972 = vmul.f32 %v5482, -1.4715178
        %v5973 = vmul.f32 %v5483, -1.4715178
        %v5974 = vmul.f32 %v5484, -1.4715178
        %v5975 = vmul.f32 %v5485, -1.4715178
        %v5976 = vmul.f32 %v5486, -1.4715178
        %v5977 = vmul.f32 %v5487, -1.4715178
        %v5978 = vmul.f32 %v5488, -1.4715178
        %v5979 = vmul.f32 %v5489, -1.4715178
        %v5980 = vmul.f32 %v5490, -1.4715178
        %v5981 = vmul.f32 %v5491, -1.4715178
        %v5982 = vmul.f32 %v5492, -1.4715178
        %v5983 = vmul.f32 %v5493, -1.4715178
        %v5984 = vmul.f32 %v5494, -1.4715178
        %v5985 = vadd.f32 %v5957, %v5971
        %v5986 = vadd.f32 %v5958, %v5972
        %v5987 = vadd.f32 %v5959, %v5973
        %v5988 = vadd.f32 %v5960, %v5974
        %v5989 = vadd.f32 %v5961, %v5975
        %v5990 = vadd.f32 %v5962, %v5976
        %v5991 = vadd.f32 %v5963, %v5977
        %v5992 = vadd.f32 %v5964, %v5978
        %v5993 = vadd.f32 %v5965, %v5979
        %v5994 = vadd.f32 %v5966, %v5980
        %v5995 = vadd.f32 %v5967, %v5981
        %v5996 = vadd.f32 %v5968, %v5982
        %v5997 = vadd.f32 %v5969, %v5983
        %v5998 = vadd.f32 %v5970, %v5984
        %v5999 = vmul.f32 %v5593, -1.819592
        %v6000 = vmul.f32 %v5594, -1.819592
        %v6001 = vmul.f32 %v5595, -1.819592
        %v6002 = vmul.f32 %v5596, -1.819592
        %v6003 = vmul.f32 %v5597, -1.819592
        %v6004 = vmul.f32 %v5598, -1.819592
        %v6005 = vmul.f32 %v5599, -1.819592
        %v6006 = vmul.f32 %v5600, -1.819592
        %v6007 = vmul.f32 %v5601, -1.819592
        %v6008 = vmul.f32 %v5602, -1.819592
        %v6009 = vmul.f32 %v5603, -1.819592
        %v6010 = vmul.f32 %v5604, -1.819592
        %v6011 = vmul.f32 %v5605, -1.819592
        %v6012 = vmul.f32 %v5606, -1.819592
        %v6013 = vadd.f32 %v5985, %v5999
        %v6014 = vadd.f32 %v5986, %v6000
        %v6015 = vadd.f32 %v5987, %v6001
        %v6016 = vadd.f32 %v5988, %v6002
        %v6017 = vadd.f32 %v5989, %v6003
        %v6018 = vadd.f32 %v5990, %v6004
        %v6019 = vadd.f32 %v5991, %v6005
        %v6020 = vadd.f32 %v5992, %v6006
        %v6021 = vadd.f32 %v5993, %v6007
        %v6022 = vadd.f32 %v5994, %v6008
        %v6023 = vadd.f32 %v5995, %v6009
        %v6024 = vadd.f32 %v5996, %v6010
        %v6025 = vadd.f32 %v5997, %v6011
        %v6026 = vadd.f32 %v5998, %v6012
        %v6027 = vmul.f32 %v5733, -2.0
        %v6028 = vmul.f32 %v5734, -2.0
        %v6029 = vmul.f32 %v5735, -2.0
        %v6030 = vmul.f32 %v5736, -2.0
        %v6031 = vmul.f32 %v5737, -2.0
        %v6032 = vmul.f32 %v5738, -2.0
        %v6033 = vmul.f32 %v5739, -2.0
        %v6034 = vmul.f32 %v5740, -2.0
        %v6035 = vmul.f32 %v5741, -2.0
        %v6036 = vmul.f32 %v5742, -2.0
        %v6037 = vmul.f32 %v5743, -2.0
        %v6038 = vmul.f32 %v5744, -2.0
        %v6039 = vmul.f32 %v5745, -2.0
        %v6040 = vmul.f32 %v5746, -2.0
        %v6041 = vadd.f32 %v6013, %v6027
        %v6042 = vadd.f32 %v6014, %v6028
        %v6043 = vadd.f32 %v6015, %v6029
        %v6044 = vadd.f32 %v6016, %v6030
        %v6045 = vadd.f32 %v6017, %v6031
        %v6046 = vadd.f32 %v6018, %v6032
        %v6047 = vadd.f32 %v6019, %v6033
        %v6048 = vadd.f32 %v6020, %v6034
        %v6049 = vadd.f32 %v6021, %v6035
        %v6050 = vadd.f32 %v6022, %v6036
        %v6051 = vadd.f32 %v6023, %v6037
        %v6052 = vadd.f32 %v6024, %v6038
        %v6053 = vadd.f32 %v6025, %v6039
        %v6054 = vadd.f32 %v6026, %v6040
        %v6055 = vmul.f32 %v5901, -1.6487212
        %v6056 = vmul.f32 %v5902, -1.6487212
        %v6057 = vmul.f32 %v5903, -1.6487212
        %v6058 = vmul.f32 %v5904, -1.6487212
        %v6059 = vmul.f32 %v5905, -1.6487212
        %v6060 = vmul.f32 %v5906, -1.6487212
        %v6061 = vmul.f32 %v5907, -1.6487212
        %v6062 = vmul.f32 %v5908, -1.6487212
        %v6063 = vmul.f32 %v5909, -1.6487212
        %v6064 = vmul.f32 %v5910, -1.6487212
        %v6065 = vmul.f32 %v5911, -1.6487212
        %v6066 = vmul.f32 %v5912, -1.6487212
        %v6067 = vmul.f32 %v5913, -1.6487212
        %v6068 = vmul.f32 %v5914, -1.6487212
        %v6069 = vadd.f32 %v6041, %v6055
        %v6070 = vadd.f32 %v6042, %v6056
        %v6071 = vadd.f32 %v6043, %v6057
        %v6072 = vadd.f32 %v6044, %v6058
        %v6073 = vadd.f32 %v6045, %v6059
        %v6074 = vadd.f32 %v6046, %v6060
        %v6075 = vadd.f32 %v6047, %v6061
        %v6076 = vadd.f32 %v6048, %v6062
        %v6077 = vadd.f32 %v6049, %v6063
        %v6078 = vadd.f32 %v6050, %v6064
        %v6079 = vadd.f32 %v6051, %v6065
        %v6080 = vadd.f32 %v6052, %v6066
        %v6081 = vadd.f32 %v6053, %v6067
        %v6082 = vadd.f32 %v6054, %v6068
        %vm6083 = vcmp.ge.f32.partialorder %v6069, 1.0
        %vm6084 = vcmp.ge.f32.partialorder %v6070, 1.0
        %vm6085 = vcmp.ge.f32.partialorder %v6071, 1.0
        %vm6086 = vcmp.ge.f32.partialorder %v6072, 1.0
        %vm6087 = vcmp.ge.f32.partialorder %v6073, 1.0
        %vm6088 = vcmp.ge.f32.partialorder %v6074, 1.0
        %vm6089 = vcmp.ge.f32.partialorder %v6075, 1.0
        %vm6090 = vcmp.ge.f32.partialorder %v6076, 1.0
        %vm6091 = vcmp.ge.f32.partialorder %v6077, 1.0
        %vm6092 = vcmp.ge.f32.partialorder %v6078, 1.0
        %vm6093 = vcmp.ge.f32.partialorder %v6079, 1.0
        %vm6094 = vcmp.ge.f32.partialorder %v6080, 1.0
        %vm6095 = vcmp.ge.f32.partialorder %v6081, 1.0
        %vm6096 = vcmp.ge.f32.partialorder %v6082, 1.0
        %v6097 = vsel %vm6083, 1.0, 0.0
        %v6098 = vsel %vm6084, 1.0, 0.0
        %v6099 = vsel %vm6085, 1.0, 0.0
        %v6100 = vsel %vm6086, 1.0, 0.0
        %v6101 = vsel %vm6087, 1.0, 0.0
        %v6102 = vsel %vm6088, 1.0, 0.0
        %v6103 = vsel %vm6089, 1.0, 0.0
        %v6104 = vsel %vm6090, 1.0, 0.0
        %v6105 = vsel %vm6091, 1.0, 0.0
        %v6106 = vsel %vm6092, 1.0, 0.0
        %v6107 = vsel %vm6093, 1.0, 0.0
        %v6108 = vsel %vm6094, 1.0, 0.0
        %v6109 = vsel %vm6095, 1.0, 0.0
        %v6110 = vsel %vm6096, 1.0, 0.0
        %v6111 = vmul.f32 %v5341, -0.574595
        %v6112 = vmul.f32 %v5342, -0.574595
        %v6113 = vmul.f32 %v5343, -0.574595
        %v6114 = vmul.f32 %v5344, -0.574595
        %v6115 = vmul.f32 %v5345, -0.574595
        %v6116 = vmul.f32 %v5346, -0.574595
        %v6117 = vmul.f32 %v5347, -0.574595
        %v6118 = vmul.f32 %v5348, -0.574595
        %v6119 = vmul.f32 %v5349, -0.574595
        %v6120 = vmul.f32 %v5350, -0.574595
        %v6121 = vmul.f32 %v5351, -0.574595
        %v6122 = vmul.f32 %v5352, -0.574595
        %v6123 = vmul.f32 %v5353, -0.574595
        %v6124 = vmul.f32 %v5354, -0.574595
        %v6125 = vadd.f32 %v4850, %v6111
        %v6126 = vadd.f32 %v4852, %v6112
        %v6127 = vadd.f32 %v5011, %v6113
        %v6128 = vadd.f32 %v5013, %v6114
        %v6129 = vadd.f32 %v5172, %v6115
        %v6130 = vadd.f32 %v5174, %v6116
        %v6131 = vadd.f32 %v5319, %v6117
        %v6132 = vadd.f32 %v4856, %v6118
        %v6133 = vadd.f32 %v4858, %v6119
        %v6134 = vadd.f32 %v5017, %v6120
        %v6135 = vadd.f32 %v5019, %v6121
        %v6136 = vadd.f32 %v5178, %v6122
        %v6137 = vadd.f32 %v5180, %v6123
        %v6138 = vadd.f32 %v5324, %v6124
        %v6139 = vmul.f32 %v5397, -0.8120117
        %v6140 = vmul.f32 %v5398, -0.8120117
        %v6141 = vmul.f32 %v5399, -0.8120117
        %v6142 = vmul.f32 %v5400, -0.8120117
        %v6143 = vmul.f32 %v5401, -0.8120117
        %v6144 = vmul.f32 %v5402, -0.8120117
        %v6145 = vmul.f32 %v5403, -0.8120117
        %v6146 = vmul.f32 %v5404, -0.8120117
        %v6147 = vmul.f32 %v5405, -0.8120117
        %v6148 = vmul.f32 %v5406, -0.8120117
        %v6149 = vmul.f32 %v5407, -0.8120117
        %v6150 = vmul.f32 %v5408, -0.8120117
        %v6151 = vmul.f32 %v5409, -0.8120117
        %v6152 = vmul.f32 %v5410, -0.8120117
        %v6153 = vadd.f32 %v6125, %v6139
        %v6154 = vadd.f32 %v6126, %v6140
        %v6155 = vadd.f32 %v6127, %v6141
        %v6156 = vadd.f32 %v6128, %v6142
        %v6157 = vadd.f32 %v6129, %v6143
        %v6158 = vadd.f32 %v6130, %v6144
        %v6159 = vadd.f32 %v6131, %v6145
        %v6160 = vadd.f32 %v6132, %v6146
        %v6161 = vadd.f32 %v6133, %v6147
        %v6162 = vadd.f32 %v6134, %v6148
        %v6163 = vadd.f32 %v6135, %v6149
        %v6164 = vadd.f32 %v6136, %v6150
        %v6165 = vadd.f32 %v6137, %v6151
        %v6166 = vadd.f32 %v6138, %v6152
        %v6167 = vmul.f32 %v5481, -1.1156508
        %v6168 = vmul.f32 %v5482, -1.1156508
        %v6169 = vmul.f32 %v5483, -1.1156508
        %v6170 = vmul.f32 %v5484, -1.1156508
        %v6171 = vmul.f32 %v5485, -1.1156508
        %v6172 = vmul.f32 %v5486, -1.1156508
        %v6173 = vmul.f32 %v5487, -1.1156508
        %v6174 = vmul.f32 %v5488, -1.1156508
        %v6175 = vmul.f32 %v5489, -1.1156508
        %v6176 = vmul.f32 %v5490, -1.1156508
        %v6177 = vmul.f32 %v5491, -1.1156508
        %v6178 = vmul.f32 %v5492, -1.1156508
        %v6179 = vmul.f32 %v5493, -1.1156508
        %v6180 = vmul.f32 %v5494, -1.1156508
        %v6181 = vadd.f32 %v6153, %v6167
        %v6182 = vadd.f32 %v6154, %v6168
        %v6183 = vadd.f32 %v6155, %v6169
        %v6184 = vadd.f32 %v6156, %v6170
        %v6185 = vadd.f32 %v6157, %v6171
        %v6186 = vadd.f32 %v6158, %v6172
        %v6187 = vadd.f32 %v6159, %v6173
        %v6188 = vadd.f32 %v6160, %v6174
        %v6189 = vadd.f32 %v6161, %v6175
        %v6190 = vadd.f32 %v6162, %v6176
        %v6191 = vadd.f32 %v6163, %v6177
        %v6192 = vadd.f32 %v6164, %v6178
        %v6193 = vadd.f32 %v6165, %v6179
        %v6194 = vadd.f32 %v6166, %v6180
        %v6195 = vmul.f32 %v5593, -1.4715178
        %v6196 = vmul.f32 %v5594, -1.4715178
        %v6197 = vmul.f32 %v5595, -1.4715178
        %v6198 = vmul.f32 %v5596, -1.4715178
        %v6199 = vmul.f32 %v5597, -1.4715178
        %v6200 = vmul.f32 %v5598, -1.4715178
        %v6201 = vmul.f32 %v5599, -1.4715178
        %v6202 = vmul.f32 %v5600, -1.4715178
        %v6203 = vmul.f32 %v5601, -1.4715178
        %v6204 = vmul.f32 %v5602, -1.4715178
        %v6205 = vmul.f32 %v5603, -1.4715178
        %v6206 = vmul.f32 %v5604, -1.4715178
        %v6207 = vmul.f32 %v5605, -1.4715178
        %v6208 = vmul.f32 %v5606, -1.4715178
        %v6209 = vadd.f32 %v6181, %v6195
        %v6210 = vadd.f32 %v6182, %v6196
        %v6211 = vadd.f32 %v6183, %v6197
        %v6212 = vadd.f32 %v6184, %v6198
        %v6213 = vadd.f32 %v6185, %v6199
        %v6214 = vadd.f32 %v6186, %v6200
        %v6215 = vadd.f32 %v6187, %v6201
        %v6216 = vadd.f32 %v6188, %v6202
        %v6217 = vadd.f32 %v6189, %v6203
        %v6218 = vadd.f32 %v6190, %v6204
        %v6219 = vadd.f32 %v6191, %v6205
        %v6220 = vadd.f32 %v6192, %v6206
        %v6221 = vadd.f32 %v6193, %v6207
        %v6222 = vadd.f32 %v6194, %v6208
        %v6223 = vmul.f32 %v5733, -1.819592
        %v6224 = vmul.f32 %v5734, -1.819592
        %v6225 = vmul.f32 %v5735, -1.819592
        %v6226 = vmul.f32 %v5736, -1.819592
        %v6227 = vmul.f32 %v5737, -1.819592
        %v6228 = vmul.f32 %v5738, -1.819592
        %v6229 = vmul.f32 %v5739, -1.819592
        %v6230 = vmul.f32 %v5740, -1.819592
        %v6231 = vmul.f32 %v5741, -1.819592
        %v6232 = vmul.f32 %v5742, -1.819592
        %v6233 = vmul.f32 %v5743, -1.819592
        %v6234 = vmul.f32 %v5744, -1.819592
        %v6235 = vmul.f32 %v5745, -1.819592
        %v6236 = vmul.f32 %v5746, -1.819592
        %v6237 = vadd.f32 %v6209, %v6223
        %v6238 = vadd.f32 %v6210, %v6224
        %v6239 = vadd.f32 %v6211, %v6225
        %v6240 = vadd.f32 %v6212, %v6226
        %v6241 = vadd.f32 %v6213, %v6227
        %v6242 = vadd.f32 %v6214, %v6228
        %v6243 = vadd.f32 %v6215, %v6229
        %v6244 = vadd.f32 %v6216, %v6230
        %v6245 = vadd.f32 %v6217, %v6231
        %v6246 = vadd.f32 %v6218, %v6232
        %v6247 = vadd.f32 %v6219, %v6233
        %v6248 = vadd.f32 %v6220, %v6234
        %v6249 = vadd.f32 %v6221, %v6235
        %v6250 = vadd.f32 %v6222, %v6236
        %v6251 = vmul.f32 %v5901, -2.0
        %v6252 = vmul.f32 %v5902, -2.0
        %v6253 = vmul.f32 %v5903, -2.0
        %v6254 = vmul.f32 %v5904, -2.0
        %v6255 = vmul.f32 %v5905, -2.0
        %v6256 = vmul.f32 %v5906, -2.0
        %v6257 = vmul.f32 %v5907, -2.0
        %v6258 = vmul.f32 %v5908, -2.0
        %v6259 = vmul.f32 %v5909, -2.0
        %v6260 = vmul.f32 %v5910, -2.0
        %v6261 = vmul.f32 %v5911, -2.0
        %v6262 = vmul.f32 %v5912, -2.0
        %v6263 = vmul.f32 %v5913, -2.0
        %v6264 = vmul.f32 %v5914, -2.0
        %v6265 = vadd.f32 %v6237, %v6251
        %v6266 = vadd.f32 %v6238, %v6252
        %v6267 = vadd.f32 %v6239, %v6253
        %v6268 = vadd.f32 %v6240, %v6254
        %v6269 = vadd.f32 %v6241, %v6255
        %v6270 = vadd.f32 %v6242, %v6256
        %v6271 = vadd.f32 %v6243, %v6257
        %v6272 = vadd.f32 %v6244, %v6258
        %v6273 = vadd.f32 %v6245, %v6259
        %v6274 = vadd.f32 %v6246, %v6260
        %v6275 = vadd.f32 %v6247, %v6261
        %v6276 = vadd.f32 %v6248, %v6262
        %v6277 = vadd.f32 %v6249, %v6263
        %v6278 = vadd.f32 %v6250, %v6264
        %v6279 = vmul.f32 %v6097, -1.6487212
        %v6280 = vmul.f32 %v6098, -1.6487212
        %v6281 = vmul.f32 %v6099, -1.6487212
        %v6282 = vmul.f32 %v6100, -1.6487212
        %v6283 = vmul.f32 %v6101, -1.6487212
        %v6284 = vmul.f32 %v6102, -1.6487212
        %v6285 = vmul.f32 %v6103, -1.6487212
        %v6286 = vmul.f32 %v6104, -1.6487212
        %v6287 = vmul.f32 %v6105, -1.6487212
        %v6288 = vmul.f32 %v6106, -1.6487212
        %v6289 = vmul.f32 %v6107, -1.6487212
        %v6290 = vmul.f32 %v6108, -1.6487212
        %v6291 = vmul.f32 %v6109, -1.6487212
        %v6292 = vmul.f32 %v6110, -1.6487212
        %v6293 = vadd.f32 %v6265, %v6279
        %v6294 = vadd.f32 %v6266, %v6280
        %v6295 = vadd.f32 %v6267, %v6281
        %v6296 = vadd.f32 %v6268, %v6282
        %v6297 = vadd.f32 %v6269, %v6283
        %v6298 = vadd.f32 %v6270, %v6284
        %v6299 = vadd.f32 %v6271, %v6285
        %v6300 = vadd.f32 %v6272, %v6286
        %v6301 = vadd.f32 %v6273, %v6287
        %v6302 = vadd.f32 %v6274, %v6288
        %v6303 = vadd.f32 %v6275, %v6289
        %v6304 = vadd.f32 %v6276, %v6290
        %v6305 = vadd.f32 %v6277, %v6291
        %v6306 = vadd.f32 %v6278, %v6292
        %vm6307 = vcmp.ge.f32.partialorder %v6293, 1.0
        %vm6308 = vcmp.ge.f32.partialorder %v6294, 1.0
        %vm6309 = vcmp.ge.f32.partialorder %v6295, 1.0
        %vm6310 = vcmp.ge.f32.partialorder %v6296, 1.0
        %vm6311 = vcmp.ge.f32.partialorder %v6297, 1.0
        %vm6312 = vcmp.ge.f32.partialorder %v6298, 1.0
        %vm6313 = vcmp.ge.f32.partialorder %v6299, 1.0
        %vm6314 = vcmp.ge.f32.partialorder %v6300, 1.0
        %vm6315 = vcmp.ge.f32.partialorder %v6301, 1.0
        %vm6316 = vcmp.ge.f32.partialorder %v6302, 1.0
        %vm6317 = vcmp.ge.f32.partialorder %v6303, 1.0
        %vm6318 = vcmp.ge.f32.partialorder %v6304, 1.0
        %vm6319 = vcmp.ge.f32.partialorder %v6305, 1.0
        %vm6320 = vcmp.ge.f32.partialorder %v6306, 1.0
        %v6321 = vsel %vm6307, 1.0, 0.0
        %v6322 = vsel %vm6308, 1.0, 0.0
        %v6323 = vsel %vm6309, 1.0, 0.0
        %v6324 = vsel %vm6310, 1.0, 0.0
        %v6325 = vsel %vm6311, 1.0, 0.0
        %v6326 = vsel %vm6312, 1.0, 0.0
        %v6327 = vsel %vm6313, 1.0, 0.0
        %v6328 = vsel %vm6314, 1.0, 0.0
        %v6329 = vsel %vm6315, 1.0, 0.0
        %v6330 = vsel %vm6316, 1.0, 0.0
        %v6331 = vsel %vm6317, 1.0, 0.0
        %v6332 = vsel %vm6318, 1.0, 0.0
        %v6333 = vsel %vm6319, 1.0, 0.0
        %v6334 = vsel %vm6320, 1.0, 0.0
        %v6335 = vpack.c.bf16 %v5348, %v5341
        %v6336 = vpack.c.bf16 %v5349, %v5342
        %v6337 = vpack.c.bf16 %v5350, %v5343
        %v6338 = vpack.c.bf16 %v5351, %v5344
        %v6339 = vpack.c.bf16 %v5352, %v5345
        %v6340 = vpack.c.bf16 %v5353, %v5346
        %v6341 = vpack.c.bf16 %v5354, %v5347
        %v6342 = vpack.c.bf16 %v5404, %v5397
        %v6343 = vpack.c.bf16 %v5405, %v5398
        %v6344 = vpack.c.bf16 %v5406, %v5399
        %v6345 = vpack.c.bf16 %v5407, %v5400
        %v6346 = vpack.c.bf16 %v5408, %v5401
        %v6347 = vpack.c.bf16 %v5409, %v5402
        %v6348 = vpack.c.bf16 %v5410, %v5403
        %v6349 = vpack.c.bf16 %v5488, %v5481
        %v6350 = vpack.c.bf16 %v5489, %v5482
        %v6351 = vpack.c.bf16 %v5490, %v5483
        %v6352 = vpack.c.bf16 %v5491, %v5484
        %v6353 = vpack.c.bf16 %v5492, %v5485
        %v6354 = vpack.c.bf16 %v5493, %v5486
        %v6355 = vpack.c.bf16 %v5494, %v5487
        %v6356 = vpack.c.bf16 %v5600, %v5593
        %v6357 = vpack.c.bf16 %v5601, %v5594
        %v6358 = vpack.c.bf16 %v5602, %v5595
        %v6359 = vpack.c.bf16 %v5603, %v5596
        %v6360 = vpack.c.bf16 %v5604, %v5597
        %v6361 = vpack.c.bf16 %v5605, %v5598
        %v6362 = vpack.c.bf16 %v5606, %v5599
        %v6363 = vpack.c.bf16 %v5740, %v5733
        %v6364 = vpack.c.bf16 %v5741, %v5734
        %v6365 = vpack.c.bf16 %v5742, %v5735
        %v6366 = vpack.c.bf16 %v5743, %v5736
        %v6367 = vpack.c.bf16 %v5744, %v5737
        %v6368 = vpack.c.bf16 %v5745, %v5738
        %v6369 = vpack.c.bf16 %v5746, %v5739
        %v6370 = vpack.c.bf16 %v5908, %v5901
        %v6371 = vpack.c.bf16 %v5909, %v5902
        %v6372 = vpack.c.bf16 %v5910, %v5903
        %v6373 = vpack.c.bf16 %v5911, %v5904
        %v6374 = vpack.c.bf16 %v5912, %v5905
        %v6375 = vpack.c.bf16 %v5913, %v5906
        %v6376 = vpack.c.bf16 %v5914, %v5907
        %v6377 = vpack.c.bf16 %v6104, %v6097
        %v6378 = vpack.c.bf16 %v6105, %v6098
        %v6379 = vpack.c.bf16 %v6106, %v6099
        %v6380 = vpack.c.bf16 %v6107, %v6100
        %v6381 = vpack.c.bf16 %v6108, %v6101
        %v6382 = vpack.c.bf16 %v6109, %v6102
        %v6383 = vpack.c.bf16 %v6110, %v6103
        %v6384 = vpack.c.bf16 %v6328, %v6321
        %v6385 = vpack.c.bf16 %v6329, %v6322
        %v6386 = vpack.c.bf16 %v6330, %v6323
        %v6387 = vpack.c.bf16 %v6331, %v6324
        %v6388 = vpack.c.bf16 %v6332, %v6325
        %v6389 = vpack.c.bf16 %v6333, %v6326
        %v6390 = vpack.c.bf16 %v6334, %v6327
        %v6447 = vunpack.c.l.b16 %v6335
        %v6448 = vunpack.c.l.b16 %v6336
        %v6449 = vunpack.c.l.b16 %v6337
        %v6450 = vunpack.c.l.b16 %v6338
        %v6451 = vunpack.c.l.b16 %v6339
        %v6452 = vunpack.c.l.b16 %v6340
        %v6453 = vunpack.c.l.b16 %v6341
        %v6454 = vunpack.c.h.b16 %v6335
        %v6455 = vunpack.c.h.b16 %v6336
        %v6456 = vunpack.c.h.b16 %v6337
        %v6457 = vunpack.c.h.b16 %v6338
        %v6458 = vunpack.c.h.b16 %v6339
        %v6459 = vunpack.c.h.b16 %v6340
        %v6460 = vunpack.c.h.b16 %v6341
        %v6461 = vunpack.c.l.b16 %v6342
        %v6462 = vunpack.c.l.b16 %v6343
        %v6463 = vunpack.c.l.b16 %v6344
        %v6464 = vunpack.c.l.b16 %v6345
        %v6465 = vunpack.c.l.b16 %v6346
        %v6466 = vunpack.c.l.b16 %v6347
        %v6467 = vunpack.c.l.b16 %v6348
        %v6468 = vunpack.c.h.b16 %v6342
        %v6469 = vunpack.c.h.b16 %v6343
        %v6470 = vunpack.c.h.b16 %v6344
        %v6471 = vunpack.c.h.b16 %v6345
        %v6472 = vunpack.c.h.b16 %v6346
        %v6473 = vunpack.c.h.b16 %v6347
        %v6474 = vunpack.c.h.b16 %v6348
        %v6475 = vunpack.c.l.b16 %v6349
        %v6476 = vunpack.c.l.b16 %v6350
        %v6477 = vunpack.c.l.b16 %v6351
        %v6478 = vunpack.c.l.b16 %v6352
        %v6479 = vunpack.c.l.b16 %v6353
        %v6480 = vunpack.c.l.b16 %v6354
        %v6481 = vunpack.c.l.b16 %v6355
        %v6482 = vunpack.c.h.b16 %v6349
        %v6483 = vunpack.c.h.b16 %v6350
        %v6484 = vunpack.c.h.b16 %v6351
        %v6485 = vunpack.c.h.b16 %v6352
        %v6486 = vunpack.c.h.b16 %v6353
        %v6487 = vunpack.c.h.b16 %v6354
        %v6488 = vunpack.c.h.b16 %v6355
        %v6489 = vunpack.c.l.b16 %v6356
        %v6490 = vunpack.c.l.b16 %v6357
        %v6491 = vunpack.c.l.b16 %v6358
        %v6492 = vunpack.c.l.b16 %v6359
        %v6493 = vunpack.c.l.b16 %v6360
        %v6494 = vunpack.c.l.b16 %v6361
        %v6495 = vunpack.c.l.b16 %v6362
        %v6496 = vunpack.c.h.b16 %v6356
        %v6497 = vunpack.c.h.b16 %v6357
        %v6498 = vunpack.c.h.b16 %v6358
        %v6499 = vunpack.c.h.b16 %v6359
        %v6500 = vunpack.c.h.b16 %v6360
        %v6501 = vunpack.c.h.b16 %v6361
        %v6502 = vunpack.c.h.b16 %v6362
        %v6503 = vunpack.c.l.b16 %v6363
        %v6504 = vunpack.c.l.b16 %v6364
        %v6505 = vunpack.c.l.b16 %v6365
        %v6506 = vunpack.c.l.b16 %v6366
        %v6507 = vunpack.c.l.b16 %v6367
        %v6508 = vunpack.c.l.b16 %v6368
        %v6509 = vunpack.c.l.b16 %v6369
        %v6510 = vunpack.c.h.b16 %v6363
        %v6511 = vunpack.c.h.b16 %v6364
        %v6512 = vunpack.c.h.b16 %v6365
        %v6513 = vunpack.c.h.b16 %v6366
        %v6514 = vunpack.c.h.b16 %v6367
        %v6515 = vunpack.c.h.b16 %v6368
        %v6516 = vunpack.c.h.b16 %v6369
        %v6517 = vunpack.c.l.b16 %v6370
        %v6518 = vunpack.c.l.b16 %v6371
        %v6519 = vunpack.c.l.b16 %v6372
        %v6520 = vunpack.c.l.b16 %v6373
        %v6521 = vunpack.c.l.b16 %v6374
        %v6522 = vunpack.c.l.b16 %v6375
        %v6523 = vunpack.c.l.b16 %v6376
        %v6524 = vunpack.c.h.b16 %v6370
        %v6525 = vunpack.c.h.b16 %v6371
        %v6526 = vunpack.c.h.b16 %v6372
        %v6527 = vunpack.c.h.b16 %v6373
        %v6528 = vunpack.c.h.b16 %v6374
        %v6529 = vunpack.c.h.b16 %v6375
        %v6530 = vunpack.c.h.b16 %v6376
        %v6531 = vunpack.c.l.b16 %v6377
        %v6532 = vunpack.c.l.b16 %v6378
        %v6533 = vunpack.c.l.b16 %v6379
        %v6534 = vunpack.c.l.b16 %v6380
        %v6535 = vunpack.c.l.b16 %v6381
        %v6536 = vunpack.c.l.b16 %v6382
        %v6537 = vunpack.c.l.b16 %v6383
        %v6538 = vunpack.c.h.b16 %v6377
        %v6539 = vunpack.c.h.b16 %v6378
        %v6540 = vunpack.c.h.b16 %v6379
        %v6541 = vunpack.c.h.b16 %v6380
        %v6542 = vunpack.c.h.b16 %v6381
        %v6543 = vunpack.c.h.b16 %v6382
        %v6544 = vunpack.c.h.b16 %v6383
        %v6545 = vunpack.c.l.b16 %v6384
        %v6546 = vunpack.c.l.b16 %v6385
        %v6547 = vunpack.c.l.b16 %v6386
        %v6548 = vunpack.c.l.b16 %v6387
        %v6549 = vunpack.c.l.b16 %v6388
        %v6550 = vunpack.c.l.b16 %v6389
        %v6551 = vunpack.c.l.b16 %v6390
        %v6552 = vunpack.c.h.b16 %v6384
        %v6553 = vunpack.c.h.b16 %v6385
        %v6554 = vunpack.c.h.b16 %v6386
        %v6555 = vunpack.c.h.b16 %v6387
        %v6556 = vunpack.c.h.b16 %v6388
        %v6557 = vunpack.c.h.b16 %v6389
        %v6558 = vunpack.c.h.b16 %v6390
        %v6559 = vpack.c.b16 %v6448, %v6447
        %v6560 = vpack.c.b16 %v6450, %v6449
        %v6561 = vpack.c.b16 %v6452, %v6451
        %v6562 = vpack.c.b16 %v6453, %v6453
        %v6563 = vpack.c.b16 %v6455, %v6454
        %v6564 = vpack.c.b16 %v6457, %v6456
        %v6565 = vpack.c.b16 %v6459, %v6458
        %v6566 = vpack.c.b16 %v6460, %v6460
        %v6567 = vpack.c.b16 %v6462, %v6461
        %v6568 = vpack.c.b16 %v6464, %v6463
        %v6569 = vpack.c.b16 %v6466, %v6465
        %v6570 = vpack.c.b16 %v6467, %v6467
        %v6571 = vpack.c.b16 %v6469, %v6468
        %v6572 = vpack.c.b16 %v6471, %v6470
        %v6573 = vpack.c.b16 %v6473, %v6472
        %v6574 = vpack.c.b16 %v6474, %v6474
        %v6575 = vpack.c.b16 %v6476, %v6475
        %v6576 = vpack.c.b16 %v6478, %v6477
        %v6577 = vpack.c.b16 %v6480, %v6479
        %v6578 = vpack.c.b16 %v6481, %v6481
        %v6579 = vpack.c.b16 %v6483, %v6482
        %v6580 = vpack.c.b16 %v6485, %v6484
        %v6581 = vpack.c.b16 %v6487, %v6486
        %v6582 = vpack.c.b16 %v6488, %v6488
        %v6583 = vpack.c.b16 %v6490, %v6489
        %v6584 = vpack.c.b16 %v6492, %v6491
        %v6585 = vpack.c.b16 %v6494, %v6493
        %v6586 = vpack.c.b16 %v6495, %v6495
        %v6587 = vpack.c.b16 %v6497, %v6496
        %v6588 = vpack.c.b16 %v6499, %v6498
        %v6589 = vpack.c.b16 %v6501, %v6500
        %v6590 = vpack.c.b16 %v6502, %v6502
        %v6591 = vpack.c.b16 %v6504, %v6503
        %v6592 = vpack.c.b16 %v6506, %v6505
        %v6593 = vpack.c.b16 %v6508, %v6507
        %v6594 = vpack.c.b16 %v6509, %v6509
        %v6595 = vpack.c.b16 %v6511, %v6510
        %v6596 = vpack.c.b16 %v6513, %v6512
        %v6597 = vpack.c.b16 %v6515, %v6514
        %v6598 = vpack.c.b16 %v6516, %v6516
        %v6599 = vpack.c.b16 %v6518, %v6517
        %v6600 = vpack.c.b16 %v6520, %v6519
        %v6601 = vpack.c.b16 %v6522, %v6521
        %v6602 = vpack.c.b16 %v6523, %v6523
        %v6603 = vpack.c.b16 %v6525, %v6524
        %v6604 = vpack.c.b16 %v6527, %v6526
        %v6605 = vpack.c.b16 %v6529, %v6528
        %v6606 = vpack.c.b16 %v6530, %v6530
        %v6607 = vpack.c.b16 %v6532, %v6531
        %v6608 = vpack.c.b16 %v6534, %v6533
        %v6609 = vpack.c.b16 %v6536, %v6535
        %v6610 = vpack.c.b16 %v6537, %v6537
        %v6611 = vpack.c.b16 %v6539, %v6538
        %v6612 = vpack.c.b16 %v6541, %v6540
        %v6613 = vpack.c.b16 %v6543, %v6542
        %v6614 = vpack.c.b16 %v6544, %v6544
        %v6615 = vpack.c.b16 %v6546, %v6545
        %v6616 = vpack.c.b16 %v6548, %v6547
        %v6617 = vpack.c.b16 %v6550, %v6549
        %v6618 = vpack.c.b16 %v6551, %v6551
        %v6619 = vpack.c.b16 %v6553, %v6552
        %v6620 = vpack.c.b16 %v6555, %v6554
        %v6621 = vpack.c.b16 %v6557, %v6556
        %v6622 = vpack.c.b16 %v6558, %v6558
        %6687 = vst [vmem:[%s402] sm:$0xff] %v6559
        %6688 = vst [vmem:[%s402 + $0x8] sm:$0xff] %v6560
        %6689 = vst [vmem:[%s402 + $0x10] sm:$0xff] %v6561
        %6690 = vst [vmem:[%s402 + $0x18] sm:$0xf] %v6562
        %6691 = vst [vmem:[%s402 + $0x1c] sm:$0xff] %v6563
        %6692 = vst [vmem:[%s402 + $0x24] sm:$0xff] %v6564
        %6693 = vst [vmem:[%s402 + $0x2c] sm:$0xff] %v6565
        %6694 = vst [vmem:[%s402 + $0x34] sm:$0xf] %v6566
        %6695 = vst [vmem:[%s402 + $0x38] sm:$0xff] %v6567
        %6696 = vst [vmem:[%s402 + $0x40] sm:$0xff] %v6568
        %6697 = vst [vmem:[%s402 + $0x48] sm:$0xff] %v6569
        %6698 = vst [vmem:[%s402 + $0x50] sm:$0xf] %v6570
        %6699 = vst [vmem:[%s402 + $0x54] sm:$0xff] %v6571
        %6700 = vst [vmem:[%s402 + $0x5c] sm:$0xff] %v6572
        %6701 = vst [vmem:[%s402 + $0x64] sm:$0xff] %v6573
        %6702 = vst [vmem:[%s402 + $0x6c] sm:$0xf] %v6574
        %6703 = vst [vmem:[%s402 + $0x70] sm:$0xff] %v6575
        %6704 = vst [vmem:[%s402 + $0x78] sm:$0xff] %v6576
        %6705 = vst [vmem:[%s402 + $0x80] sm:$0xff] %v6577
        %6706 = vst [vmem:[%s402 + $0x88] sm:$0xf] %v6578
        %6707 = vst [vmem:[%s402 + $0x8c] sm:$0xff] %v6579
        %6708 = vst [vmem:[%s402 + $0x94] sm:$0xff] %v6580
        %6709 = vst [vmem:[%s402 + $0x9c] sm:$0xff] %v6581
        %6710 = vst [vmem:[%s402 + $0xa4] sm:$0xf] %v6582
        %6711 = vst [vmem:[%s402 + $0xa8] sm:$0xff] %v6583
        %6712 = vst [vmem:[%s402 + $0xb0] sm:$0xff] %v6584
        %6713 = vst [vmem:[%s402 + $0xb8] sm:$0xff] %v6585
        %6714 = vst [vmem:[%s402 + $0xc0] sm:$0xf] %v6586
        %6715 = vst [vmem:[%s402 + $0xc4] sm:$0xff] %v6587
        %6716 = vst [vmem:[%s402 + $0xcc] sm:$0xff] %v6588
        %6717 = vst [vmem:[%s402 + $0xd4] sm:$0xff] %v6589
        %6718 = vst [vmem:[%s402 + $0xdc] sm:$0xf] %v6590
        %6719 = vst [vmem:[%s402 + $0xe0] sm:$0xff] %v6591
        %6720 = vst [vmem:[%s402 + $0xe8] sm:$0xff] %v6592
        %6721 = vst [vmem:[%s402 + $0xf0] sm:$0xff] %v6593
        %6722 = vst [vmem:[%s402 + $0xf8] sm:$0xf] %v6594
        %6723 = vst [vmem:[%s402 + $0xfc] sm:$0xff] %v6595
        %6724 = vst [vmem:[%s402 + $0x104] sm:$0xff] %v6596
        %6725 = vst [vmem:[%s402 + $0x10c] sm:$0xff] %v6597
        %6726 = vst [vmem:[%s402 + $0x114] sm:$0xf] %v6598
        %6727 = vst [vmem:[%s402 + $0x118] sm:$0xff] %v6599
        %6728 = vst [vmem:[%s402 + $0x120] sm:$0xff] %v6600
        %6729 = vst [vmem:[%s402 + $0x128] sm:$0xff] %v6601
        %6730 = vst [vmem:[%s402 + $0x130] sm:$0xf] %v6602
        %6731 = vst [vmem:[%s402 + $0x134] sm:$0xff] %v6603
        %6732 = vst [vmem:[%s402 + $0x13c] sm:$0xff] %v6604
        %6733 = vst [vmem:[%s402 + $0x144] sm:$0xff] %v6605
        %6734 = vst [vmem:[%s402 + $0x14c] sm:$0xf] %v6606
        %6735 = vst [vmem:[%s402 + $0x150] sm:$0xff] %v6607
        %6736 = vst [vmem:[%s402 + $0x158] sm:$0xff] %v6608
        %6737 = vst [vmem:[%s402 + $0x160] sm:$0xff] %v6609
        %6738 = vst [vmem:[%s402 + $0x168] sm:$0xf] %v6610
        %6739 = vst [vmem:[%s402 + $0x16c] sm:$0xff] %v6611
        %6740 = vst [vmem:[%s402 + $0x174] sm:$0xff] %v6612
        %6741 = vst [vmem:[%s402 + $0x17c] sm:$0xff] %v6613
        %6742 = vst [vmem:[%s402 + $0x184] sm:$0xf] %v6614
        %6743 = vst [vmem:[%s402 + $0x188] sm:$0xff] %v6615
        %6744 = vst [vmem:[%s402 + $0x190] sm:$0xff] %v6616
        %6745 = vst [vmem:[%s402 + $0x198] sm:$0xff] %v6617
        %6746 = vst [vmem:[%s402 + $0x1a0] sm:$0xf] %v6618
        %6747 = vst [vmem:[%s402 + $0x1a4] sm:$0xff] %v6619
        %6748 = vst [vmem:[%s402 + $0x1ac] sm:$0xff] %v6620
        %6749 = vst [vmem:[%s402 + $0x1b4] sm:$0xff] %v6621
        %6750 = vst [vmem:[%s402 + $0x1bc] sm:$0xf] %v6622
        %s6751 = sand.u32 %s156, 1
        %s6752 = sand.u32 %s156, 1
        %s6753 = smul.addr %s6752, 448
        %s6754 = scalar_lea.vmem [#allocation3], %s6753
        // Predicated region
        $region71: #{simple_autoencoder_forward.1} parent=65 // pred_check
          %p6755 = pneg %p166
        $region72: #{simple_autoencoder_forward.1} parent=65 // pred_check_branch
          %6757 = sbr.rel (%p6755) target = $region74
        $region73: #{simple_autoencoder_forward.1} parent=65 // pred_region
          %s6758 = smul.u32 2, %s17
          %s6759 = smul.addr %s6758, 7
          %s6760 = smul.addr %s6759, 4
          %s6761 = scalar_lea.vmem %s6, %s6760
          // Predicated region
          $region75: #{simple_autoencoder_forward.1} parent=73 // pred_check
            _
          $region76: #{simple_autoencoder_forward.1} parent=73 // pred_check_branch
            %6763 = sbr.rel (0) target = $region78
          $region77: #{simple_autoencoder_forward.1} parent=73 // pred_region
            // Predicated region
            $region79: #{simple_autoencoder_forward.1} parent=77 // pred_check
              _
            $region80: #{simple_autoencoder_forward.1} parent=77 // pred_check_branch
              %6765 = sbr.rel (0) target = $region82
            $region81: #{simple_autoencoder_forward.1} parent=77 // pred_region
              %s6766 = scalar_lea.vmem %s6754, 24 [#allocation3]
              %s6767 = scalar_lea.vmem %s6761, 24
              loop: start=0, step=1, limit=1
              $region83: #{simple_autoencoder_forward.1} parent=81 // loop_pre_header
                _
              $region84: #{simple_autoencoder_forward.1} parent=81 // loop_header
                %s6769 = sphi 0, %s6773
                %p6770 = scmp.ge.s32.totalorder %s6769, 1
                %s6774 = sphi %s6754, %s6754
                %s6775 = sphi %s6761, %s6761
              $region85: #{simple_autoencoder_forward.1} parent=81 // loop_header_branch
                %6772 = sbr.rel (%p6770) target = $region89
              $region86: #{simple_autoencoder_forward.1} parent=81 // loop_body
                %v6776 = vld [vmem:[%s6774] sm:$0xff]
                %6777 = vst [vmem:[%s6775] sm:$0xff] %v6776
                %v6778 = vld [vmem:[%s6774 + $0x8] sm:$0xff]
                %6779 = vst [vmem:[%s6775 + $0x8] sm:$0xff] %v6778
                %v6780 = vld [vmem:[%s6774 + $0x10] sm:$0xff]
                %6781 = vst [vmem:[%s6775 + $0x10] sm:$0xff] %v6780
                %v6782 = vld [vmem:[%s6774 + $0x1c] sm:$0xff]
                %6783 = vst [vmem:[%s6775 + $0x1c] sm:$0xff] %v6782
                %v6784 = vld [vmem:[%s6774 + $0x24] sm:$0xff]
                %6785 = vst [vmem:[%s6775 + $0x24] sm:$0xff] %v6784
                %v6786 = vld [vmem:[%s6774 + $0x2c] sm:$0xff]
                %6787 = vst [vmem:[%s6775 + $0x2c] sm:$0xff] %v6786
                %v6788 = vld [vmem:[%s6774 + $0x38] sm:$0xff]
                %6789 = vst [vmem:[%s6775 + $0x70] sm:$0xff] %v6788
                %v6790 = vld [vmem:[%s6774 + $0x40] sm:$0xff]
                %6791 = vst [vmem:[%s6775 + $0x78] sm:$0xff] %v6790
                %v6792 = vld [vmem:[%s6774 + $0x48] sm:$0xff]
                %6793 = vst [vmem:[%s6775 + $0x80] sm:$0xff] %v6792
                %v6794 = vld [vmem:[%s6774 + $0x54] sm:$0xff]
                %6795 = vst [vmem:[%s6775 + $0x8c] sm:$0xff] %v6794
                %v6796 = vld [vmem:[%s6774 + $0x5c] sm:$0xff]
                %6797 = vst [vmem:[%s6775 + $0x94] sm:$0xff] %v6796
                %v6798 = vld [vmem:[%s6774 + $0x64] sm:$0xff]
                %6799 = vst [vmem:[%s6775 + $0x9c] sm:$0xff] %v6798
                %v6800 = vld [vmem:[%s6774 + $0x70] sm:$0xff]
                %6801 = vst [vmem:[%s6775 + $0xe0] sm:$0xff] %v6800
                %v6802 = vld [vmem:[%s6774 + $0x78] sm:$0xff]
                %6803 = vst [vmem:[%s6775 + $0xe8] sm:$0xff] %v6802
                %v6804 = vld [vmem:[%s6774 + $0x80] sm:$0xff]
                %6805 = vst [vmem:[%s6775 + $0xf0] sm:$0xff] %v6804
                %v6806 = vld [vmem:[%s6774 + $0x8c] sm:$0xff]
                %6807 = vst [vmem:[%s6775 + $0xfc] sm:$0xff] %v6806
                %v6808 = vld [vmem:[%s6774 + $0x94] sm:$0xff]
                %6809 = vst [vmem:[%s6775 + $0x104] sm:$0xff] %v6808
                %v6810 = vld [vmem:[%s6774 + $0x9c] sm:$0xff]
                %6811 = vst [vmem:[%s6775 + $0x10c] sm:$0xff] %v6810
                %v6812 = vld [vmem:[%s6774 + $0xa8] sm:$0xff]
                %6813 = vst [vmem:[%s6775 + $0x150] sm:$0xff] %v6812
                %v6814 = vld [vmem:[%s6774 + $0xb0] sm:$0xff]
                %6815 = vst [vmem:[%s6775 + $0x158] sm:$0xff] %v6814
                %v6816 = vld [vmem:[%s6774 + $0xb8] sm:$0xff]
                %6817 = vst [vmem:[%s6775 + $0x160] sm:$0xff] %v6816
                %v6818 = vld [vmem:[%s6774 + $0xc4] sm:$0xff]
                %6819 = vst [vmem:[%s6775 + $0x16c] sm:$0xff] %v6818
                %v6820 = vld [vmem:[%s6774 + $0xcc] sm:$0xff]
                %6821 = vst [vmem:[%s6775 + $0x174] sm:$0xff] %v6820
                %v6822 = vld [vmem:[%s6774 + $0xd4] sm:$0xff]
                %6823 = vst [vmem:[%s6775 + $0x17c] sm:$0xff] %v6822
                %v6824 = vld [vmem:[%s6774 + $0xe0] sm:$0xff]
                %6825 = vst [vmem:[%s6775 + $0x1c0] sm:$0xff] %v6824
                %v6826 = vld [vmem:[%s6774 + $0xe8] sm:$0xff]
                %6827 = vst [vmem:[%s6775 + $0x1c8] sm:$0xff] %v6826
                %v6828 = vld [vmem:[%s6774 + $0xf0] sm:$0xff]
                %6829 = vst [vmem:[%s6775 + $0x1d0] sm:$0xff] %v6828
                %v6830 = vld [vmem:[%s6774 + $0xfc] sm:$0xff]
                %6831 = vst [vmem:[%s6775 + $0x1dc] sm:$0xff] %v6830
                %v6832 = vld [vmem:[%s6774 + $0x104] sm:$0xff]
                %6833 = vst [vmem:[%s6775 + $0x1e4] sm:$0xff] %v6832
                %v6834 = vld [vmem:[%s6774 + $0x10c] sm:$0xff]
                %6835 = vst [vmem:[%s6775 + $0x1ec] sm:$0xff] %v6834
                %v6836 = vld [vmem:[%s6774 + $0x118] sm:$0xff]
                %6837 = vst [vmem:[%s6775 + $0x230] sm:$0xff] %v6836
                %v6838 = vld [vmem:[%s6774 + $0x120] sm:$0xff]
                %6839 = vst [vmem:[%s6775 + $0x238] sm:$0xff] %v6838
                %v6840 = vld [vmem:[%s6774 + $0x128] sm:$0xff]
                %6841 = vst [vmem:[%s6775 + $0x240] sm:$0xff] %v6840
                %v6842 = vld [vmem:[%s6774 + $0x134] sm:$0xff]
                %6843 = vst [vmem:[%s6775 + $0x24c] sm:$0xff] %v6842
                %v6844 = vld [vmem:[%s6774 + $0x13c] sm:$0xff]
                %6845 = vst [vmem:[%s6775 + $0x254] sm:$0xff] %v6844
                %v6846 = vld [vmem:[%s6774 + $0x144] sm:$0xff]
                %6847 = vst [vmem:[%s6775 + $0x25c] sm:$0xff] %v6846
                %v6848 = vld [vmem:[%s6774 + $0x150] sm:$0xff]
                %6849 = vst [vmem:[%s6775 + $0x2a0] sm:$0xff] %v6848
                %v6850 = vld [vmem:[%s6774 + $0x158] sm:$0xff]
                %6851 = vst [vmem:[%s6775 + $0x2a8] sm:$0xff] %v6850
                %v6852 = vld [vmem:[%s6774 + $0x160] sm:$0xff]
                %6853 = vst [vmem:[%s6775 + $0x2b0] sm:$0xff] %v6852
                %v6854 = vld [vmem:[%s6774 + $0x16c] sm:$0xff]
                %6855 = vst [vmem:[%s6775 + $0x2bc] sm:$0xff] %v6854
                %v6856 = vld [vmem:[%s6774 + $0x174] sm:$0xff]
                %6857 = vst [vmem:[%s6775 + $0x2c4] sm:$0xff] %v6856
                %v6858 = vld [vmem:[%s6774 + $0x17c] sm:$0xff]
                %6859 = vst [vmem:[%s6775 + $0x2cc] sm:$0xff] %v6858
                %v6860 = vld [vmem:[%s6774 + $0x188] sm:$0xff]
                %6861 = vst [vmem:[%s6775 + $0x310] sm:$0xff] %v6860
                %v6862 = vld [vmem:[%s6774 + $0x190] sm:$0xff]
                %6863 = vst [vmem:[%s6775 + $0x318] sm:$0xff] %v6862
                %v6864 = vld [vmem:[%s6774 + $0x198] sm:$0xff]
                %6865 = vst [vmem:[%s6775 + $0x320] sm:$0xff] %v6864
                %v6866 = vld [vmem:[%s6774 + $0x1a4] sm:$0xff]
                %6867 = vst [vmem:[%s6775 + $0x32c] sm:$0xff] %v6866
                %v6868 = vld [vmem:[%s6774 + $0x1ac] sm:$0xff]
                %6869 = vst [vmem:[%s6775 + $0x334] sm:$0xff] %v6868
                %v6870 = vld [vmem:[%s6774 + $0x1b4] sm:$0xff]
                %6871 = vst [vmem:[%s6775 + $0x33c] sm:$0xff] %v6870
              $region87: #{simple_autoencoder_forward.1} parent=81 // loop_footer
                %s6773 = sadd.s32 1, %s6769
              $region88: #{simple_autoencoder_forward.1} parent=81 // loop_footer_branch
                %6768 = sbr.rel target = $region84
              $region89: #{simple_autoencoder_forward.1} parent=81 // loop_exit
                _
              %s6873 = ssub.s32 16, 1
              loop: start=0, step=1, limit=1
              $region90: #{simple_autoencoder_forward.1} parent=81 // loop_pre_header
                _
              $region91: #{simple_autoencoder_forward.1} parent=81 // loop_header
                %s6875 = sphi 0, %s6879
                %p6876 = scmp.ge.s32.totalorder %s6875, 1
                %s6880 = sphi %s6766, %s6766
                %s6881 = sphi %s6767, %s6767
              $region92: #{simple_autoencoder_forward.1} parent=81 // loop_header_branch
                %6878 = sbr.rel (%p6876) target = $region96
              $region93: #{simple_autoencoder_forward.1} parent=81 // loop_body
                %v6882 = vld [vmem:[%s6880] sm:%s6873]
                %6883 = vst [vmem:[%s6881] sm:%s6873] %v6882
                %v6884 = vld [vmem:[%s6880 + $0x1c] sm:%s6873]
                %6885 = vst [vmem:[%s6881 + $0x1c] sm:%s6873] %v6884
                %v6886 = vld [vmem:[%s6880 + $0x38] sm:%s6873]
                %6887 = vst [vmem:[%s6881 + $0x70] sm:%s6873] %v6886
                %v6888 = vld [vmem:[%s6880 + $0x54] sm:%s6873]
                %6889 = vst [vmem:[%s6881 + $0x8c] sm:%s6873] %v6888
                %v6890 = vld [vmem:[%s6880 + $0x70] sm:%s6873]
                %6891 = vst [vmem:[%s6881 + $0xe0] sm:%s6873] %v6890
                %v6892 = vld [vmem:[%s6880 + $0x8c] sm:%s6873]
                %6893 = vst [vmem:[%s6881 + $0xfc] sm:%s6873] %v6892
                %v6894 = vld [vmem:[%s6880 + $0xa8] sm:%s6873]
                %6895 = vst [vmem:[%s6881 + $0x150] sm:%s6873] %v6894
                %v6896 = vld [vmem:[%s6880 + $0xc4] sm:%s6873]
                %6897 = vst [vmem:[%s6881 + $0x16c] sm:%s6873] %v6896
                %v6898 = vld [vmem:[%s6880 + $0xe0] sm:%s6873]
                %6899 = vst [vmem:[%s6881 + $0x1c0] sm:%s6873] %v6898
                %v6900 = vld [vmem:[%s6880 + $0xfc] sm:%s6873]
                %6901 = vst [vmem:[%s6881 + $0x1dc] sm:%s6873] %v6900
                %v6902 = vld [vmem:[%s6880 + $0x118] sm:%s6873]
                %6903 = vst [vmem:[%s6881 + $0x230] sm:%s6873] %v6902
                %v6904 = vld [vmem:[%s6880 + $0x134] sm:%s6873]
                %6905 = vst [vmem:[%s6881 + $0x24c] sm:%s6873] %v6904
                %v6906 = vld [vmem:[%s6880 + $0x150] sm:%s6873]
                %6907 = vst [vmem:[%s6881 + $0x2a0] sm:%s6873] %v6906
                %v6908 = vld [vmem:[%s6880 + $0x16c] sm:%s6873]
                %6909 = vst [vmem:[%s6881 + $0x2bc] sm:%s6873] %v6908
                %v6910 = vld [vmem:[%s6880 + $0x188] sm:%s6873]
                %6911 = vst [vmem:[%s6881 + $0x310] sm:%s6873] %v6910
                %v6912 = vld [vmem:[%s6880 + $0x1a4] sm:%s6873]
                %6913 = vst [vmem:[%s6881 + $0x32c] sm:%s6873] %v6912
              $region94: #{simple_autoencoder_forward.1} parent=81 // loop_footer
                %s6879 = sadd.s32 1, %s6875
              $region95: #{simple_autoencoder_forward.1} parent=81 // loop_footer_branch
                %6874 = sbr.rel target = $region91
              $region96: #{simple_autoencoder_forward.1} parent=81 // loop_exit
                _
            $region82: #{simple_autoencoder_forward.1} parent=77 // pred_fallthru
              _
          $region78: #{simple_autoencoder_forward.1} parent=73 // pred_fallthru
            _
          %6914 = vnop
        $region74: #{simple_autoencoder_forward.1} parent=65 // pred_fallthru
          _
      $region66: #{simple_autoencoder_forward.1} parent=5 // pred_fallthru
        _
      %p6915 = scmp.le.s32.totalorder 2, %s12
      // Predicated region
      $region97: #{simple_autoencoder_forward.1} parent=5 // pred_check
        %p6916 = pneg %p6915
      $region98: #{simple_autoencoder_forward.1} parent=5 // pred_check_branch
        %6918 = sbr.rel (%p6916) target = $region100
      $region99: #{simple_autoencoder_forward.1} parent=5 // pred_region
        %s6919 = ssub.s32 %s12, 2
        // Predicated region
        $region101: #{simple_autoencoder_forward.1} parent=99 // pred_check
          %p6920 = pneg %p172
        $region102: #{simple_autoencoder_forward.1} parent=99 // pred_check_branch
          %6922 = sbr.rel (%p6920) target = $region104
        $region103: #{simple_autoencoder_forward.1} parent=99 // pred_region
          %s6923 = sand.u32 %s157, 1
          %s6924 = sand.u32 %s157, 1
          %s6925 = smul.addr %s6924, 448
          %s6926 = scalar_lea.vmem [#allocation3], %s6925
        $region104: #{simple_autoencoder_forward.1} parent=99 // pred_fallthru
          _
      $region100: #{simple_autoencoder_forward.1} parent=5 // pred_fallthru
        _
    $region6: #{simple_autoencoder_forward.1} parent=1 // loop_footer
      %s16 = sadd.s32 1, %s12
    $region7: #{simple_autoencoder_forward.1} parent=1 // loop_footer_branch
      %11 = sbr.rel target = $region3
    $region8: #{simple_autoencoder_forward.1} parent=1 // loop_exit
      _

</llo_original>
